<compile_context>
chip_gen: v7x
topology: tpu7x:2x2x1
jax: 0.10.0
libtpu: 0.0.40
codegen_flags: <defaults>
</compile_context>

<pallas_src>
import math
from functools import partial

import jax
import jax.numpy as jnp
from jax.experimental import pallas as pl
from jax.experimental.pallas import tpu as pltpu

# ----------------------------- configuration --------------------------------
NODE_TYPES = ("a", "b")
EDGE_TYPES = (("a", "to", "b"), ("b", "to", "a"))
IN_CHANNELS = 16
HID_DIM = 32
OUT_CHANNELS = 4
LAYERS = 3
HEADS = 1
POOL_SIZE = 4
NUM_GRAPHS = 2
NODES_PER_TYPE_PER_GRAPH = 4
HEAD_DIM = HID_DIM // HEADS

if LAYERS == 1:
    JK_LAYERS = [0]
elif LAYERS == 2:
    JK_LAYERS = [0, 1]
else:
    JK_LAYERS = [0, LAYERS // 2, LAYERS - 1]
JK_NUM = len(JK_LAYERS)
LSTM_HIDDEN = (JK_NUM * HID_DIM) // 2           # JumpingKnowledge(mode='lstm') hidden size


# ----------------------------- in-kernel math helpers ------------------------
def _gelu(x):
    # tanh-approximation GELU (EUP tanh instead of a VPU erf polynomial).
    c0 = 0.7978845608028654                      # sqrt(2/pi)
    return 0.5 * x * (1.0 + jnp.tanh(c0 * (x + 0.044715 * x * x * x)))


# ----------------------------- generic grid=(1,) wrapper ---------------------
def _spec(shape):
    nd = len(shape)
    return pl.BlockSpec(tuple(shape), lambda i, nd=nd: (0,) * nd)


def _pallas_apply(kernel, out_shapes, *args):
    multi = isinstance(out_shapes, (tuple, list))
    outs = tuple(out_shapes) if multi else (out_shapes,)
    return pl.pallas_call(
        kernel,
        grid=(1,),
        out_shape=outs if multi else outs[0],
        in_specs=[_spec(a.shape) for a in args],
        out_specs=tuple(_spec(o.shape) for o in outs) if multi else _spec(outs[0].shape),
        compiler_params=pltpu.CompilerParams(dimension_semantics=("arbitrary",)),
    )(*args)


# ----------------------------- fused HGTConv layer ---------------------------
def _hgt_layer_kernel(xd_ref, xs_ref, wq_ref, bq_ref, wk_ref, bk_ref,
                      wv_ref, bv_ref, mask_ref, wo_ref, bo_ref, *rest, use_skip):
    if use_skip:
        alpha_ref, o_ref = rest
    else:
        (o_ref,) = rest

    xd = xd_ref[0]                                            # (N_dst, C_in)
    xs = xs_ref[0]                                            # (N_src, C_in)

    # projections (scale folded into wq/bq; a_rel*p_rel folded into wk/bk; m_rel into wv/bv)
    q = jnp.dot(xd, wq_ref[0], preferred_element_type=jnp.float32) + bq_ref[0]
    k = jnp.dot(xs, wk_ref[0], preferred_element_type=jnp.float32) + bk_ref[0]
    v = jnp.dot(xs, wv_ref[0], preferred_element_type=jnp.float32) + bv_ref[0]

    # masked softmax over the src axis (== PyG per-destination segment softmax)
    s = jnp.dot(q, k.T, preferred_element_type=jnp.float32)   # (N_dst, N_src)
    mask = mask_ref[0]
    s = jnp.where(mask > 0.0, s, -1e30)
    m = jnp.max(s, axis=-1, keepdims=True)
    p = jnp.exp(s - m) * mask
    denom = jnp.maximum(jnp.sum(p, axis=-1, keepdims=True), 1e-30)
    attn = p * pl.reciprocal(denom, approx=True)
    agg = jnp.dot(attn, v, preferred_element_type=jnp.float32)

    # out_lin(gelu(agg)) + learnable skip blend
    out = (jnp.dot(_gelu(agg), wo_ref[0], preferred_element_type=jnp.float32)
           + bo_ref[0])
    if use_skip:
        a = alpha_ref[0]                                      # (1, 1) = sigmoid(skip)
        out = a * out + (1.0 - a) * xd
    o_ref[0] = out


def hgt_conv_layer(lprep, x, mask_stacked):
    """One fused HGTConv layer.  x: (2, N, C_in) stacked per node type; grid=(2,) over
    destination node types (parallel => shards across v7x's two TensorCores)."""
    ntypes, N, c_in = x.shape
    use_skip = (c_in == HID_DIM)

    def dst3(shape):
        return pl.BlockSpec((1,) + shape, lambda t: (t, 0, 0))

    def src3(shape):
        # TODO(synk): assumes exactly one incoming edge type per destination (the toy
        #             graph's a<->b connectivity); general HGT needs a concat over edges.
        return pl.BlockSpec((1,) + shape, lambda t: (1 - t, 0, 0))

    in_specs = [
        dst3((N, c_in)),                 # x for destination nodes (q + skip)
        src3((N, c_in)),                 # x for source nodes (k, v)
        dst3((c_in, HID_DIM)),           # wq (1/sqrt(d) folded)
        dst3((1, HID_DIM)),              # bq
        dst3((c_in, HID_DIM)),           # wk (a_rel * p_rel folded)
        dst3((1, HID_DIM)),              # bk
        dst3((c_in, HID_DIM)),           # wv (m_rel folded)
        dst3((1, HID_DIM)),              # bv
        dst3((N, N)),                    # adjacency mask[dst, src]
        dst3((HID_DIM, HID_DIM)),        # out_w
        dst3((1, HID_DIM)),              # out_b
    ]
    args = [x, x, lprep["wq"], lprep["bq"], lprep["wk"], lprep["bk"],
            lprep["wv"], lprep["bv"], mask_stacked, lprep["out_w"], lprep["out_b"]]
    if use_skip:
        in_specs.append(dst3((1, 1)))    # alpha = sigmoid(skip)
        args.append(lprep["alpha"])

    return pl.pallas_call(
        partial(_hgt_layer_kernel, use_skip=use_skip),
        grid=(ntypes,),
        out_shape=jax.ShapeDtypeStruct((ntypes, N, HID_DIM), jnp.float32),
        in_specs=in_specs,
        out_specs=pl.BlockSpec((1, N, HID_DIM), lambda t: (t, 0, 0)),
        compiler_params=pltpu.CompilerParams(dimension_semantics=("parallel",)),
    )(*args)


# ------------------- fused JumpingKnowledge bi-LSTM + SAGPool scoring --------
def _jk_pool_kernel(x_ref, wih_f_ref, whh_f_ref, bf_ref,
                    wih_b_ref, whh_b_ref, bb_ref,
                    attw_ref, attb_ref, adj_ref, wrel_ref, wroot_ref, pb_ref,
                    y_ref, score_ref, *, hidden, T):
    N = x_ref.shape[1]
    C = x_ref.shape[2]

    def run_lstm(wih, whh, b, order):
        h = jnp.zeros((N, hidden), jnp.float32)
        c = jnp.zeros((N, hidden), jnp.float32)
        hs = [None] * T
        for t in order:                                          # T=3, fully unrolled
            gates = (jnp.dot(x_ref[t], wih, preferred_element_type=jnp.float32)
                     + jnp.dot(h, whh, preferred_element_type=jnp.float32) + b)
            i = jax.nn.sigmoid(gates[:, 0:hidden])
            f = jax.nn.sigmoid(gates[:, hidden:2 * hidden])
            g = jnp.tanh(gates[:, 2 * hidden:3 * hidden])
            o = jax.nn.sigmoid(gates[:, 3 * hidden:4 * hidden])
            c = f * c + i * g
            h = o * jnp.tanh(c)
            hs[t] = h
        return hs

    hs_f = run_lstm(wih_f_ref[...], whh_f_ref[...], bf_ref[...], list(range(T)))
    hs_b = run_lstm(wih_b_ref[...], whh_b_ref[...], bb_ref[...], list(reversed(range(T))))

    # attention over layers: logit_t = [h_f_t, h_b_t] @ att_w + att_b   (computed split
    # to avoid an in-kernel concat), then softmax over T without materializing (N, T).
    attw = attw_ref[...]                                          # (2*hidden, 1)
    attb = attb_ref[...]                                          # (1, 1)
    aw_f = attw[0:hidden, :]
    aw_b = attw[hidden:2 * hidden, :]
    logits = [jnp.dot(hs_f[t], aw_f, preferred_element_type=jnp.float32)
              + jnp.dot(hs_b[t], aw_b, preferred_element_type=jnp.float32) + attb
              for t in range(T)]
    mmax = logits[0]
    for t in range(1, T):
        mmax = jnp.maximum(mmax, logits[t])
    exps = [jnp.exp(l - mmax) for l in logits]
    ssum = exps[0]
    for t in range(1, T):
        ssum = ssum + exps[t]
    inv = pl.reciprocal(ssum, approx=True)

    jk = jnp.zeros((N, C), jnp.float32)
    for t in range(T):
        jk = jk + (exps[t] * inv) * x_ref[t]

    # SAGPooling scoring: tanh(GraphConv(jk)) = tanh((A @ jk) @ W_rel + jk @ W_root + b)
    agg = jnp.dot(adj_ref[...], jk, preferred_element_type=jnp.float32)
    score = jnp.tanh(jnp.dot(agg, wrel_ref[...], preferred_element_type=jnp.float32)
                     + jnp.dot(jk, wroot_ref[...], preferred_element_type=jnp.float32)
                     + pb_ref[...])                               # (N, 1)
    y_ref[...] = jk * score                # score-weighted features (pool output, pre-gather)
    score_ref[...] = score                 # needed outside only for data-dependent top-k


def pallas_jk_pool(jkp, pp, x_jk, hom_adj):
    T, N, C = x_jk.shape
    outs = (jax.ShapeDtypeStruct((N, C), jnp.float32),
            jax.ShapeDtypeStruct((N, 1), jnp.float32))
    return _pallas_apply(
        partial(_jk_pool_kernel, hidden=LSTM_HIDDEN, T=T), outs,
        x_jk, jkp["wih_f"], jkp["whh_f"], jkp["b_f"],
        jkp["wih_b"], jkp["whh_b"], jkp["b_b"],
        jkp["att_w"], jkp["att_b"],
        hom_adj, pp["wrel"], pp["wroot"], pp["b"])


# ----------------------------- fused MLP head --------------------------------
def _mlp_kernel(x_ref, *refs, num_layers):
    o_ref = refs[-1]
    h = x_ref[...]
    for i in range(num_layers):
        w = refs[2 * i][...]
        b = refs[2 * i + 1][...]
        h = jnp.dot(h, w, preferred_element_type=jnp.float32) + b
        if i < num_layers - 1:             # GELU after every Linear except the final one
            h = _gelu(h)
    o_ref[...] = h


def pallas_mlp(x, weights):
    args = [x]
    for w, b in weights:
        args.extend([w, b])
    out = jax.ShapeDtypeStruct((x.shape[0], weights[-1][0].shape[1]), jnp.float32)
    return _pallas_apply(partial(_mlp_kernel, num_layers=len(weights)), out, *args)


# ----------------------------- parameter init --------------------------------
def _kaiming(key, shape):
    fan_in = shape[-2]
    return (jax.random.normal(key, shape, dtype=jnp.float32)
            * jnp.sqrt(2.0 / fan_in)).astype(jnp.float32)


def init_params(key):
    params = {"conv": [], "jk": {}, "pool": {}, "mlp": []}
    for layer in range(LAYERS):
        lp = {"kqv_w": {}, "kqv_b": {}, "out_w": {}, "out_b": {}, "skip": {},
              "a_rel": {}, "m_rel": {}, "p_rel": {}}
        in_dim = IN_CHANNELS if layer == 0 else HID_DIM
        for t in NODE_TYPES:
            key, k1, k2 = jax.random.split(key, 3)
            lp["kqv_w"][t] = _kaiming(k1, (in_dim, 3 * HID_DIM))
            lp["kqv_b"][t] = jnp.zeros((3 * HID_DIM,), jnp.float32)
            lp["out_w"][t] = _kaiming(k2, (HID_DIM, HID_DIM))
            lp["out_b"][t] = jnp.zeros((HID_DIM,), jnp.float32)
            lp["skip"][t] = jnp.float32(1.0)
        for e in EDGE_TYPES:
            key, k1, k2 = jax.random.split(key, 3)
            lp["a_rel"][e] = _kaiming(k1, (HEADS, HEAD_DIM, HEAD_DIM))
            lp["m_rel"][e] = _kaiming(k2, (HEADS, HEAD_DIM, HEAD_DIM))
            lp["p_rel"][e] = jnp.ones((HEADS,), jnp.float32)
        params["conv"].append(lp)

    key, kf1, kf2, kb1, kb2, ka = jax.random.split(key, 6)

    def lstm_dir(k1, k2):
        s = 1.0 / math.sqrt(LSTM_HIDDEN)
        return {"wih": jax.random.normal(k1, (HID_DIM, 4 * LSTM_HIDDEN), jnp.float32) * s,
                "whh": jax.random.normal(k2, (LSTM_HIDDEN, 4 * LSTM_HIDDEN), jnp.float32) * s,
                "b": jnp.zeros((4 * LSTM_HIDDEN,), jnp.float32)}

    params["jk"]["fwd"] = lstm_dir(kf1, kf2)
    params["jk"]["bwd"] = lstm_dir(kb1, kb2)
    params["jk"]["att_w"] = _kaiming(ka, (2 * LSTM_HIDDEN, 1))
    params["jk"]["att_b"] = jnp.zeros((1,), jnp.float32)

    key, kp1, kp2 = jax.random.split(key, 3)
    params["pool"]["wrel"] = _kaiming(kp1, (HID_DIM, 1))
    params["pool"]["wroot"] = _kaiming(kp2, (HID_DIM, 1))
    params["pool"]["b"] = jnp.zeros((1,), jnp.float32)

    # MLP sizes replicate the PyTorch constructor: [128, 64, 32, 16, 8] -> out_channels
    dims = [HID_DIM * POOL_SIZE]
    dims.append(max(OUT_CHANNELS * 2, dims[-1] // 2))
    while dims[-1] // 2 > OUT_CHANNELS:
        dims.append(dims[-1] // 2)
    dims.append(OUT_CHANNELS)
    for i in range(len(dims) - 1):
        key, kw = jax.random.split(key)
        params["mlp"].append((_kaiming(kw, (dims[i], dims[i + 1])),
                              jnp.zeros((dims[i + 1],), jnp.float32)))
    return params


# ----------------- one-time parameter preparation (stack + exact folds) ------
def _prepare_conv_layer(lp):
    scale = 1.0 / math.sqrt(HEAD_DIM)
    wq, bq, wk, bk, wv, bv, wo, bo, alpha = [], [], [], [], [], [], [], [], []
    for t in NODE_TYPES:                                   # dst-type order == NODE_TYPES
        e = next(et for et in EDGE_TYPES if et[2] == t)    # unique incoming edge type
        src = e[0]
        A = lp["a_rel"][e][0] * lp["p_rel"][e][0]          # fold attention prior p_rel
        M = lp["m_rel"][e][0]
        w_dst, b_dst = lp["kqv_w"][t], lp["kqv_b"][t]
        w_src, b_src = lp["kqv_w"][src], lp["kqv_b"][src]
        wq.append(w_dst[:, HID_DIM:2 * HID_DIM] * scale)                     # q of dst
        bq.append((b_dst[HID_DIM:2 * HID_DIM] * scale)[None, :])
        wk.append(w_src[:, 0:HID_DIM] @ A)                                   # k of src ∘ a_rel
        bk.append((b_src[0:HID_DIM] @ A)[None, :])
        wv.append(w_src[:, 2 * HID_DIM:3 * HID_DIM] @ M)                     # v of src ∘ m_rel
        bv.append((b_src[2 * HID_DIM:3 * HID_DIM] @ M)[None, :])
        wo.append(lp["out_w"][t])
        bo.append(lp["out_b"][t][None, :])
        alpha.append(jax.nn.sigmoid(lp["skip"][t]).reshape(1, 1))
    return {"wq": jnp.stack(wq), "bq": jnp.stack(bq),
            "wk": jnp.stack(wk), "bk": jnp.stack(bk),
            "wv": jnp.stack(wv), "bv": jnp.stack(bv),
            "out_w": jnp.stack(wo), "out_b": jnp.stack(bo),
            "alpha": jnp.stack(alpha)}


def prepare_params(params):
    prep = {"conv": [_prepare_conv_layer(lp) for lp in params["conv"]]}
    jk = params["jk"]
    prep["jk"] = {"wih_f": jk["fwd"]["wih"], "whh_f": jk["fwd"]["whh"],
                  "b_f": jk["fwd"]["b"].reshape(1, -1),
                  "wih_b": jk["bwd"]["wih"], "whh_b": jk["bwd"]["whh"],
                  "b_b": jk["bwd"]["b"].reshape(1, -1),
                  "att_w": jk["att_w"], "att_b": jk["att_b"].reshape(1, 1)}
    prep["pool"] = {"wrel": params["pool"]["wrel"], "wroot": params["pool"]["wroot"],
                    "b": params["pool"]["b"].reshape(1, 1)}
    prep["mlp"] = [(w, b.reshape(1, -1)) for w, b in params["mlp"]]
    return prep


# ----------------------------- model forward ---------------------------------
@partial(jax.jit, static_argnames=("num_batches",))
def hgt_forward(prep, x_stacked, mask_stacked, hom_adj, batch, num_batches):
    x = x_stacked                                            # (2, N, C) type-major
    jk_inputs = []
    for layer in range(LAYERS):
        x = hgt_conv_layer(prep["conv"][layer], x, mask_stacked)
        if layer in JK_LAYERS:
            # type-major flatten == concat([x['a'], x['b']], axis=0)
            jk_inputs.append(x.reshape(-1, HID_DIM))
    x_jk = jnp.stack(jk_inputs, axis=0)                      # (T, N_total, HID_DIM)

    y, score = pallas_jk_pool(prep["jk"], prep["pool"], x_jk, hom_adj)
    score = score[:, 0]

    # TODO(synk): per-graph top-k node selection is a data-dependent gather with no clean
    # Pallas equivalent; kept in plain JAX (descending score within each graph, graphs in
    # ascending batch order, matching PyG SAGPooling/topk).
    perms = []
    for b in range(num_batches):
        masked = jnp.where(batch == b, score, -jnp.inf)
        _, idx = jax.lax.top_k(masked, POOL_SIZE)
        perms.append(idx)
    perm = jnp.concatenate(perms, axis=0)

    pooled = y[perm]                                         # already score-weighted in-kernel
    out = pooled.reshape(num_batches, HID_DIM * POOL_SIZE)   # (B, 128) lane-dense
    out = pallas_mlp(out, prep["mlp"])                       # (B, OUT_CHANNELS)
    out = jnp.nan_to_num(out)
    return out.reshape(-1)


# ----------------------------- main -------------------------------------------
if __name__ == "__main__":
    key = jax.random.PRNGKey(0)
    key, kx_a, kx_b, kp = jax.random.split(key, 4)

    n_per_type = NUM_GRAPHS * NODES_PER_TYPE_PER_GRAPH       # 8 nodes per type
    x_a = jax.random.normal(kx_a, (n_per_type, IN_CHANNELS), jnp.float32)
    x_b = jax.random.normal(kx_b, (n_per_type, IN_CHANNELS), jnp.float32)
    x_stacked = jnp.stack([x_a, x_b], axis=0)                # (2, N, C), NODE_TYPES order

    batch_per_type = jnp.repeat(jnp.arange(NUM_GRAPHS), NODES_PER_TYPE_PER_GRAPH)
    # dense per-edge-type adjacency masks mask[dst, src] (complete bipartite within a graph)
    same_graph = (batch_per_type[:, None] == batch_per_type[None, :]).astype(jnp.float32)
    masks = {("a", "to", "b"): same_graph, ("b", "to", "a"): same_graph}
    # stacked per destination type (hoisted out of the layer loop — layer-invariant)
    mask_stacked = jnp.stack(
        [masks[next(e for e in EDGE_TYPES if e[2] == t)] for t in NODE_TYPES], axis=0)

    # homogeneous graph (to_homogeneous node order: all 'a' nodes, then all 'b' nodes)
    n_total = 2 * n_per_type
    hom_adj = jnp.zeros((n_total, n_total), jnp.float32)
    hom_adj = hom_adj.at[n_per_type:, :n_per_type].set(masks[("a", "to", "b")])
    hom_adj = hom_adj.at[:n_per_type, n_per_type:].set(masks[("b", "to", "a")])
    batch_hom = jnp.concatenate([batch_per_type, batch_per_type], axis=0)

    params = init_params(kp)
    prep = prepare_params(params)

    out = hgt_forward(prep, x_stacked, mask_stacked, hom_adj, batch_hom, NUM_GRAPHS)
    out = jax.block_until_ready(out)
    assert out.shape == (NUM_GRAPHS * OUT_CHANNELS,)
    assert bool(jnp.all(jnp.isfinite(out)))
    print("KERNEL_OK")
</pallas_src>

<mosaic_0001>
module attributes {stable_mosaic.version = 11 : i64} {
  func.func @_hgt_layer_kernel(%arg0: i32, %arg1: memref<1x8x32xf32, #tpu.memory_space<vmem>>, %arg2: memref<1x8x32xf32, #tpu.memory_space<vmem>>, %arg3: memref<1x32x32xf32, #tpu.memory_space<vmem>>, %arg4: memref<1x1x32xf32, #tpu.memory_space<vmem>>, %arg5: memref<1x32x32xf32, #tpu.memory_space<vmem>>, %arg6: memref<1x1x32xf32, #tpu.memory_space<vmem>>, %arg7: memref<1x32x32xf32, #tpu.memory_space<vmem>>, %arg8: memref<1x1x32xf32, #tpu.memory_space<vmem>>, %arg9: memref<1x8x8xf32, #tpu.memory_space<vmem>>, %arg10: memref<1x32x32xf32, #tpu.memory_space<vmem>>, %arg11: memref<1x1x32xf32, #tpu.memory_space<vmem>>, %arg12: memref<1x1x1xf32, #tpu.memory_space<vmem>>, %arg13: memref<1x8x32xf32, #tpu.memory_space<vmem>>) attributes {dimension_semantics = [#tpu.dimension_semantics<parallel>], iteration_bounds = array<i64: 2>, scalar_prefetch = 0 : i64, scratch_operands = 0 : i64, tpu.core_type = #tpu.core_type<tc>, window_params = [{transform_indices = @transform_0, window_bounds = array<i64: 1, 8, 32>}, {transform_indices = @transform_1, window_bounds = array<i64: 1, 8, 32>}, {transform_indices = @transform_2, window_bounds = array<i64: 1, 32, 32>}, {transform_indices = @transform_3, window_bounds = array<i64: 1, 1, 32>}, {transform_indices = @transform_4, window_bounds = array<i64: 1, 32, 32>}, {transform_indices = @transform_5, window_bounds = array<i64: 1, 1, 32>}, {transform_indices = @transform_6, window_bounds = array<i64: 1, 32, 32>}, {transform_indices = @transform_7, window_bounds = array<i64: 1, 1, 32>}, {transform_indices = @transform_8, window_bounds = array<i64: 1, 8, 8>}, {transform_indices = @transform_9, window_bounds = array<i64: 1, 32, 32>}, {transform_indices = @transform_10, window_bounds = array<i64: 1, 1, 32>}, {transform_indices = @transform_11, window_bounds = array<i64: 1, 1, 1>}, {transform_indices = @transform_12, window_bounds = array<i64: 1, 8, 32>}]} {
    %c0 = arith.constant 0 : index
    %c0_0 = arith.constant 0 : index
    %c0_1 = arith.constant 0 : index
    %0 = vector.load %arg1[%c0, %c0_0, %c0_1] : memref<1x8x32xf32, #tpu.memory_space<vmem>>, vector<1x8x32xf32>
    %1 = vector.shape_cast %0 : vector<1x8x32xf32> to vector<8x32xf32>
    %c0_2 = arith.constant 0 : index
    %c0_3 = arith.constant 0 : index
    %c0_4 = arith.constant 0 : index
    %2 = vector.load %arg2[%c0_2, %c0_3, %c0_4] : memref<1x8x32xf32, #tpu.memory_space<vmem>>, vector<1x8x32xf32>
    %3 = vector.shape_cast %2 : vector<1x8x32xf32> to vector<8x32xf32>
    %c0_5 = arith.constant 0 : index
    %c0_6 = arith.constant 0 : index
    %c0_7 = arith.constant 0 : index
    %4 = vector.load %arg3[%c0_5, %c0_6, %c0_7] : memref<1x32x32xf32, #tpu.memory_space<vmem>>, vector<1x32x32xf32>
    %5 = vector.shape_cast %4 : vector<1x32x32xf32> to vector<32x32xf32>
    %cst = arith.constant dense<0.000000e+00> : vector<8x32xf32>
    %6 = tpu.matmul %1, %5, %cst {dimension_numbers = #tpu.dot_dimension_numbers<[1], [0], [0], [1], [0, 0, 1, 1], [], []>} : vector<8x32xf32>, vector<32x32xf32>, vector<8x32xf32> -> vector<8x32xf32>
    %c0_8 = arith.constant 0 : index
    %c0_9 = arith.constant 0 : index
    %c0_10 = arith.constant 0 : index
    %7 = vector.load %arg4[%c0_8, %c0_9, %c0_10] : memref<1x1x32xf32, #tpu.memory_space<vmem>>, vector<1x1x32xf32>
    %8 = vector.shape_cast %7 : vector<1x1x32xf32> to vector<1x32xf32>
    %9 = vector.broadcast %8 : vector<1x32xf32> to vector<8x32xf32>
    %10 = arith.addf %6, %9 : vector<8x32xf32>
    %c0_11 = arith.constant 0 : index
    %c0_12 = arith.constant 0 : index
    %c0_13 = arith.constant 0 : index
    %11 = vector.load %arg5[%c0_11, %c0_12, %c0_13] : memref<1x32x32xf32, #tpu.memory_space<vmem>>, vector<1x32x32xf32>
    %12 = vector.shape_cast %11 : vector<1x32x32xf32> to vector<32x32xf32>
    %cst_14 = arith.constant dense<0.000000e+00> : vector<8x32xf32>
    %13 = tpu.matmul %3, %12, %cst_14 {dimension_numbers = #tpu.dot_dimension_numbers<[1], [0], [0], [1], [0, 0, 1, 1], [], []>} : vector<8x32xf32>, vector<32x32xf32>, vector<8x32xf32> -> vector<8x32xf32>
    %c0_15 = arith.constant 0 : index
    %c0_16 = arith.constant 0 : index
    %c0_17 = arith.constant 0 : index
    %14 = vector.load %arg6[%c0_15, %c0_16, %c0_17] : memref<1x1x32xf32, #tpu.memory_space<vmem>>, vector<1x1x32xf32>
    %15 = vector.shape_cast %14 : vector<1x1x32xf32> to vector<1x32xf32>
    %16 = vector.broadcast %15 : vector<1x32xf32> to vector<8x32xf32>
    %17 = arith.addf %13, %16 : vector<8x32xf32>
    %c0_18 = arith.constant 0 : index
    %c0_19 = arith.constant 0 : index
    %c0_20 = arith.constant 0 : index
    %18 = vector.load %arg7[%c0_18, %c0_19, %c0_20] : memref<1x32x32xf32, #tpu.memory_space<vmem>>, vector<1x32x32xf32>
    %19 = vector.shape_cast %18 : vector<1x32x32xf32> to vector<32x32xf32>
    %cst_21 = arith.constant dense<0.000000e+00> : vector<8x32xf32>
    %20 = tpu.matmul %3, %19, %cst_21 {dimension_numbers = #tpu.dot_dimension_numbers<[1], [0], [0], [1], [0, 0, 1, 1], [], []>} : vector<8x32xf32>, vector<32x32xf32>, vector<8x32xf32> -> vector<8x32xf32>
    %c0_22 = arith.constant 0 : index
    %c0_23 = arith.constant 0 : index
    %c0_24 = arith.constant 0 : index
    %21 = vector.load %arg8[%c0_22, %c0_23, %c0_24] : memref<1x1x32xf32, #tpu.memory_space<vmem>>, vector<1x1x32xf32>
    %22 = vector.shape_cast %21 : vector<1x1x32xf32> to vector<1x32xf32>
    %23 = vector.broadcast %22 : vector<1x32xf32> to vector<8x32xf32>
    %24 = arith.addf %20, %23 : vector<8x32xf32>
    %25 = tpu.transpose %17, [1, 0] : vector<8x32xf32> -> vector<32x8xf32>
    %cst_25 = arith.constant dense<0.000000e+00> : vector<8x8xf32>
    %26 = tpu.matmul %10, %25, %cst_25 {dimension_numbers = #tpu.dot_dimension_numbers<[1], [0], [0], [1], [0, 0, 1, 1], [], []>} : vector<8x32xf32>, vector<32x8xf32>, vector<8x8xf32> -> vector<8x8xf32>
    %c0_26 = arith.constant 0 : index
    %c0_27 = arith.constant 0 : index
    %c0_28 = arith.constant 0 : index
    %27 = vector.load %arg9[%c0_26, %c0_27, %c0_28] : memref<1x8x8xf32, #tpu.memory_space<vmem>>, vector<1x8x8xf32>
    %28 = vector.shape_cast %27 : vector<1x8x8xf32> to vector<8x8xf32>
    %cst_29 = arith.constant 0.000000e+00 : f32
    %29 = vector.broadcast %cst_29 : f32 to vector<8x8xf32>
    %30 = arith.cmpf ogt, %28, %29 : vector<8x8xf32>
    %cst_30 = arith.constant -1.000000e+30 : f32
    %31 = vector.broadcast %cst_30 : f32 to vector<8x8xf32>
    %32 = arith.select %30, %26, %31 : vector<8x8xi1>, vector<8x8xf32>
    %cst_31 = arith.constant dense<0xFF800000> : vector<8xf32>
    %33 = vector.multi_reduction <maximumf>, %32, %cst_31 [1] : vector<8x8xf32> to vector<8xf32>
    %34 = vector.shape_cast %33 : vector<8xf32> to vector<8x1xf32>
    %35 = vector.broadcast %34 : vector<8x1xf32> to vector<8x8xf32>
    %36 = arith.subf %32, %35 : vector<8x8xf32>
    %37 = math.exp %36 : vector<8x8xf32>
    %38 = arith.mulf %37, %28 : vector<8x8xf32>
    %cst_32 = arith.constant dense<0.000000e+00> : vector<8xf32>
    %39 = vector.multi_reduction <add>, %38, %cst_32 [1] : vector<8x8xf32> to vector<8xf32>
    %40 = vector.shape_cast %39 : vector<8xf32> to vector<8x1xf32>
    %cst_33 = arith.constant 1.000000e-30 : f32
    %41 = vector.broadcast %cst_33 : f32 to vector<8x1xf32>
    %42 = arith.maximumf %40, %41 : vector<8x1xf32>
    %43 = tpu.reciprocal %42 {approx = true} : vector<8x1xf32> -> vector<8x1xf32>
    %44 = vector.broadcast %43 : vector<8x1xf32> to vector<8x8xf32>
    %45 = arith.mulf %38, %44 : vector<8x8xf32>
    %cst_34 = arith.constant dense<0.000000e+00> : vector<8x32xf32>
    %46 = tpu.matmul %45, %24, %cst_34 {dimension_numbers = #tpu.dot_dimension_numbers<[1], [0], [0], [1], [0, 0, 1, 1], [], []>} : vector<8x8xf32>, vector<8x32xf32>, vector<8x32xf32> -> vector<8x32xf32>
    %cst_35 = arith.constant 5.000000e-01 : f32
    %47 = vector.broadcast %cst_35 : f32 to vector<8x32xf32>
    %48 = arith.mulf %47, %46 : vector<8x32xf32>
    %cst_36 = arith.constant 4.471500e-02 : f32
    %49 = vector.broadcast %cst_36 : f32 to vector<8x32xf32>
    %50 = arith.mulf %49, %46 : vector<8x32xf32>
    %51 = arith.mulf %50, %46 : vector<8x32xf32>
    %52 = arith.mulf %51, %46 : vector<8x32xf32>
    %53 = arith.addf %46, %52 : vector<8x32xf32>
    %cst_37 = arith.constant 0.797884583 : f32
    %54 = vector.broadcast %cst_37 : f32 to vector<8x32xf32>
    %55 = arith.mulf %54, %53 : vector<8x32xf32>
    %56 = math.tanh %55 : vector<8x32xf32>
    %cst_38 = arith.constant 1.000000e+00 : f32
    %57 = vector.broadcast %cst_38 : f32 to vector<8x32xf32>
    %58 = arith.addf %57, %56 : vector<8x32xf32>
    %59 = arith.mulf %48, %58 : vector<8x32xf32>
    %c0_39 = arith.constant 0 : index
    %c0_40 = arith.constant 0 : index
    %c0_41 = arith.constant 0 : index
    %60 = vector.load %arg10[%c0_39, %c0_40, %c0_41] : memref<1x32x32xf32, #tpu.memory_space<vmem>>, vector<1x32x32xf32>
    %61 = vector.shape_cast %60 : vector<1x32x32xf32> to vector<32x32xf32>
    %cst_42 = arith.constant dense<0.000000e+00> : vector<8x32xf32>
    %62 = tpu.matmul %59, %61, %cst_42 {dimension_numbers = #tpu.dot_dimension_numbers<[1], [0], [0], [1], [0, 0, 1, 1], [], []>} : vector<8x32xf32>, vector<32x32xf32>, vector<8x32xf32> -> vector<8x32xf32>
    %c0_43 = arith.constant 0 : index
    %c0_44 = arith.constant 0 : index
    %c0_45 = arith.constant 0 : index
    %63 = vector.load %arg11[%c0_43, %c0_44, %c0_45] : memref<1x1x32xf32, #tpu.memory_space<vmem>>, vector<1x1x32xf32>
    %64 = vector.shape_cast %63 : vector<1x1x32xf32> to vector<1x32xf32>
    %65 = vector.broadcast %64 : vector<1x32xf32> to vector<8x32xf32>
    %66 = arith.addf %62, %65 : vector<8x32xf32>
    %c0_46 = arith.constant 0 : index
    %c0_47 = arith.constant 0 : index
    %c0_48 = arith.constant 0 : index
    %67 = vector.load %arg12[%c0_46, %c0_47, %c0_48] : memref<1x1x1xf32, #tpu.memory_space<vmem>>, vector<1x1x1xf32>
    %68 = vector.shape_cast %67 : vector<1x1x1xf32> to vector<1x1xf32>
    %69 = vector.broadcast %68 : vector<1x1xf32> to vector<8x32xf32>
    %70 = arith.mulf %69, %66 : vector<8x32xf32>
    %cst_49 = arith.constant 1.000000e+00 : f32
    %71 = vector.broadcast %cst_49 : f32 to vector<1x1xf32>
    %72 = arith.subf %71, %68 : vector<1x1xf32>
    %73 = vector.broadcast %72 : vector<1x1xf32> to vector<8x32xf32>
    %74 = arith.mulf %73, %1 : vector<8x32xf32>
    %75 = arith.addf %70, %74 : vector<8x32xf32>
    %c0_50 = arith.constant 0 : index
    %c0_51 = arith.constant 0 : index
    %c0_52 = arith.constant 0 : index
    %76 = vector.load %arg13[%c0_50, %c0_51, %c0_52] : memref<1x8x32xf32, #tpu.memory_space<vmem>>, vector<1x8x32xf32>
    %77 = vector.shape_cast %76 : vector<1x8x32xf32> to vector<8x32xf32>
    %78 = vector.shape_cast %75 : vector<8x32xf32> to vector<1x8x32xf32>
    tpu.vector_store %arg13[%c0_50, %c0_51, %c0_52], %78 {strides = array<i32>} : memref<1x8x32xf32, #tpu.memory_space<vmem>>, vector<1x8x32xf32>,
    return
  }
  func.func @transform_0(%arg0: i32) -> (i32, i32, i32) {
    %c0_i32 = arith.constant 0 : i32
    %c0_i32_0 = arith.constant 0 : i32
    %c0_i32_1 = arith.constant 0 : i32
    return %arg0, %c0_i32, %c0_i32_0 : i32, i32, i32
  }
  func.func @transform_1(%arg0: i32) -> (i32, i32, i32) {
    %c1_i32 = arith.constant 1 : i32
    %0 = arith.subi %c1_i32, %arg0 : i32
    %c0_i32 = arith.constant 0 : i32
    %c0_i32_0 = arith.constant 0 : i32
    %c0_i32_1 = arith.constant 0 : i32
    return %0, %c0_i32, %c0_i32_0 : i32, i32, i32
  }
  func.func @transform_2(%arg0: i32) -> (i32, i32, i32) {
    %c0_i32 = arith.constant 0 : i32
    %c0_i32_0 = arith.constant 0 : i32
    %c0_i32_1 = arith.constant 0 : i32
    return %arg0, %c0_i32, %c0_i32_0 : i32, i32, i32
  }
  func.func @transform_3(%arg0: i32) -> (i32, i32, i32) {
    %c0_i32 = arith.constant 0 : i32
    %c0_i32_0 = arith.constant 0 : i32
    %c0_i32_1 = arith.constant 0 : i32
    return %arg0, %c0_i32, %c0_i32_0 : i32, i32, i32
  }
  func.func @transform_4(%arg0: i32) -> (i32, i32, i32) {
    %c0_i32 = arith.constant 0 : i32
    %c0_i32_0 = arith.constant 0 : i32
    %c0_i32_1 = arith.constant 0 : i32
    return %arg0, %c0_i32, %c0_i32_0 : i32, i32, i32
  }
  func.func @transform_5(%arg0: i32) -> (i32, i32, i32) {
    %c0_i32 = arith.constant 0 : i32
    %c0_i32_0 = arith.constant 0 : i32
    %c0_i32_1 = arith.constant 0 : i32
    return %arg0, %c0_i32, %c0_i32_0 : i32, i32, i32
  }
  func.func @transform_6(%arg0: i32) -> (i32, i32, i32) {
    %c0_i32 = arith.constant 0 : i32
    %c0_i32_0 = arith.constant 0 : i32
    %c0_i32_1 = arith.constant 0 : i32
    return %arg0, %c0_i32, %c0_i32_0 : i32, i32, i32
  }
  func.func @transform_7(%arg0: i32) -> (i32, i32, i32) {
    %c0_i32 = arith.constant 0 : i32
    %c0_i32_0 = arith.constant 0 : i32
    %c0_i32_1 = arith.constant 0 : i32
    return %arg0, %c0_i32, %c0_i32_0 : i32, i32, i32
  }
  func.func @transform_8(%arg0: i32) -> (i32, i32, i32) {
    %c0_i32 = arith.constant 0 : i32
    %c0_i32_0 = arith.constant 0 : i32
    %c0_i32_1 = arith.constant 0 : i32
    return %arg0, %c0_i32, %c0_i32_0 : i32, i32, i32
  }
  func.func @transform_9(%arg0: i32) -> (i32, i32, i32) {
    %c0_i32 = arith.constant 0 : i32
    %c0_i32_0 = arith.constant 0 : i32
    %c0_i32_1 = arith.constant 0 : i32
    return %arg0, %c0_i32, %c0_i32_0 : i32, i32, i32
  }
  func.func @transform_10(%arg0: i32) -> (i32, i32, i32) {
    %c0_i32 = arith.constant 0 : i32
    %c0_i32_0 = arith.constant 0 : i32
    %c0_i32_1 = arith.constant 0 : i32
    return %arg0, %c0_i32, %c0_i32_0 : i32, i32, i32
  }
  func.func @transform_11(%arg0: i32) -> (i32, i32, i32) {
    %c0_i32 = arith.constant 0 : i32
    %c0_i32_0 = arith.constant 0 : i32
    %c0_i32_1 = arith.constant 0 : i32
    return %arg0, %c0_i32, %c0_i32_0 : i32, i32, i32
  }
  func.func @transform_12(%arg0: i32) -> (i32, i32, i32) {
    %c0_i32 = arith.constant 0 : i32
    %c0_i32_0 = arith.constant 0 : i32
    %c0_i32_1 = arith.constant 0 : i32
    return %arg0, %c0_i32, %c0_i32_0 : i32, i32, i32
  }
}

module attributes {stable_mosaic.version = 11 : i64} {
  func.func @_hgt_layer_kernel(%arg0: i32, %arg1: memref<1x8x32xf32, #tpu.memory_space<vmem>>, %arg2: memref<1x8x32xf32, #tpu.memory_space<vmem>>, %arg3: memref<1x32x32xf32, #tpu.memory_space<vmem>>, %arg4: memref<1x1x32xf32, #tpu.memory_space<vmem>>, %arg5: memref<1x32x32xf32, #tpu.memory_space<vmem>>, %arg6: memref<1x1x32xf32, #tpu.memory_space<vmem>>, %arg7: memref<1x32x32xf32, #tpu.memory_space<vmem>>, %arg8: memref<1x1x32xf32, #tpu.memory_space<vmem>>, %arg9: memref<1x8x8xf32, #tpu.memory_space<vmem>>, %arg10: memref<1x32x32xf32, #tpu.memory_space<vmem>>, %arg11: memref<1x1x32xf32, #tpu.memory_space<vmem>>, %arg12: memref<1x1x1xf32, #tpu.memory_space<vmem>>, %arg13: memref<1x8x32xf32, #tpu.memory_space<vmem>>) attributes {dimension_semantics = [#tpu.dimension_semantics<parallel>], iteration_bounds = array<i64: 2>, scalar_prefetch = 0 : i64, scratch_operands = 0 : i64, tpu.core_type = #tpu.core_type<tc>, window_params = [{transform_indices = @transform_0, window_bounds = array<i64: 1, 8, 32>}, {transform_indices = @transform_1, window_bounds = array<i64: 1, 8, 32>}, {transform_indices = @transform_2, window_bounds = array<i64: 1, 32, 32>}, {transform_indices = @transform_3, window_bounds = array<i64: 1, 1, 32>}, {transform_indices = @transform_4, window_bounds = array<i64: 1, 32, 32>}, {transform_indices = @transform_5, window_bounds = array<i64: 1, 1, 32>}, {transform_indices = @transform_6, window_bounds = array<i64: 1, 32, 32>}, {transform_indices = @transform_7, window_bounds = array<i64: 1, 1, 32>}, {transform_indices = @transform_8, window_bounds = array<i64: 1, 8, 8>}, {transform_indices = @transform_9, window_bounds = array<i64: 1, 32, 32>}, {transform_indices = @transform_10, window_bounds = array<i64: 1, 1, 32>}, {transform_indices = @transform_11, window_bounds = array<i64: 1, 1, 1>}, {transform_indices = @transform_12, window_bounds = array<i64: 1, 8, 32>}]} {
    %c0 = arith.constant 0 : index
    %c0_0 = arith.constant 0 : index
    %c0_1 = arith.constant 0 : index
    %0 = vector.load %arg1[%c0, %c0_0, %c0_1] : memref<1x8x32xf32, #tpu.memory_space<vmem>>, vector<1x8x32xf32>
    %1 = vector.shape_cast %0 : vector<1x8x32xf32> to vector<8x32xf32>
    %c0_2 = arith.constant 0 : index
    %c0_3 = arith.constant 0 : index
    %c0_4 = arith.constant 0 : index
    %2 = vector.load %arg2[%c0_2, %c0_3, %c0_4] : memref<1x8x32xf32, #tpu.memory_space<vmem>>, vector<1x8x32xf32>
    %3 = vector.shape_cast %2 : vector<1x8x32xf32> to vector<8x32xf32>
    %c0_5 = arith.constant 0 : index
    %c0_6 = arith.constant 0 : index
    %c0_7 = arith.constant 0 : index
    %4 = vector.load %arg3[%c0_5, %c0_6, %c0_7] : memref<1x32x32xf32, #tpu.memory_space<vmem>>, vector<1x32x32xf32>
    %5 = vector.shape_cast %4 : vector<1x32x32xf32> to vector<32x32xf32>
    %cst = arith.constant dense<0.000000e+00> : vector<8x32xf32>
    %6 = tpu.matmul %1, %5, %cst {dimension_numbers = #tpu.dot_dimension_numbers<[1], [0], [0], [1], [0, 0, 1, 1], [], []>} : vector<8x32xf32>, vector<32x32xf32>, vector<8x32xf32> -> vector<8x32xf32>
    %c0_8 = arith.constant 0 : index
    %c0_9 = arith.constant 0 : index
    %c0_10 = arith.constant 0 : index
    %7 = vector.load %arg4[%c0_8, %c0_9, %c0_10] : memref<1x1x32xf32, #tpu.memory_space<vmem>>, vector<1x1x32xf32>
    %8 = vector.shape_cast %7 : vector<1x1x32xf32> to vector<1x32xf32>
    %9 = vector.broadcast %8 : vector<1x32xf32> to vector<8x32xf32>
    %10 = arith.addf %6, %9 : vector<8x32xf32>
    %c0_11 = arith.constant 0 : index
    %c0_12 = arith.constant 0 : index
    %c0_13 = arith.constant 0 : index
    %11 = vector.load %arg5[%c0_11, %c0_12, %c0_13] : memref<1x32x32xf32, #tpu.memory_space<vmem>>, vector<1x32x32xf32>
    %12 = vector.shape_cast %11 : vector<1x32x32xf32> to vector<32x32xf32>
    %cst_14 = arith.constant dense<0.000000e+00> : vector<8x32xf32>
    %13 = tpu.matmul %3, %12, %cst_14 {dimension_numbers = #tpu.dot_dimension_numbers<[1], [0], [0], [1], [0, 0, 1, 1], [], []>} : vector<8x32xf32>, vector<32x32xf32>, vector<8x32xf32> -> vector<8x32xf32>
    %c0_15 = arith.constant 0 : index
    %c0_16 = arith.constant 0 : index
    %c0_17 = arith.constant 0 : index
    %14 = vector.load %arg6[%c0_15, %c0_16, %c0_17] : memref<1x1x32xf32, #tpu.memory_space<vmem>>, vector<1x1x32xf32>
    %15 = vector.shape_cast %14 : vector<1x1x32xf32> to vector<1x32xf32>
    %16 = vector.broadcast %15 : vector<1x32xf32> to vector<8x32xf32>
    %17 = arith.addf %13, %16 : vector<8x32xf32>
    %c0_18 = arith.constant 0 : index
    %c0_19 = arith.constant 0 : index
    %c0_20 = arith.constant 0 : index
    %18 = vector.load %arg7[%c0_18, %c0_19, %c0_20] : memref<1x32x32xf32, #tpu.memory_space<vmem>>, vector<1x32x32xf32>
    %19 = vector.shape_cast %18 : vector<1x32x32xf32> to vector<32x32xf32>
    %cst_21 = arith.constant dense<0.000000e+00> : vector<8x32xf32>
    %20 = tpu.matmul %3, %19, %cst_21 {dimension_numbers = #tpu.dot_dimension_numbers<[1], [0], [0], [1], [0, 0, 1, 1], [], []>} : vector<8x32xf32>, vector<32x32xf32>, vector<8x32xf32> -> vector<8x32xf32>
    %c0_22 = arith.constant 0 : index
    %c0_23 = arith.constant 0 : index
    %c0_24 = arith.constant 0 : index
    %21 = vector.load %arg8[%c0_22, %c0_23, %c0_24] : memref<1x1x32xf32, #tpu.memory_space<vmem>>, vector<1x1x32xf32>
    %22 = vector.shape_cast %21 : vector<1x1x32xf32> to vector<1x32xf32>
    %23 = vector.broadcast %22 : vector<1x32xf32> to vector<8x32xf32>
    %24 = arith.addf %20, %23 : vector<8x32xf32>
    %25 = tpu.transpose %17, [1, 0] : vector<8x32xf32> -> vector<32x8xf32>
    %cst_25 = arith.constant dense<0.000000e+00> : vector<8x8xf32>
    %26 = tpu.matmul %10, %25, %cst_25 {dimension_numbers = #tpu.dot_dimension_numbers<[1], [0], [0], [1], [0, 0, 1, 1], [], []>} : vector<8x32xf32>, vector<32x8xf32>, vector<8x8xf32> -> vector<8x8xf32>
    %c0_26 = arith.constant 0 : index
    %c0_27 = arith.constant 0 : index
    %c0_28 = arith.constant 0 : index
    %27 = vector.load %arg9[%c0_26, %c0_27, %c0_28] : memref<1x8x8xf32, #tpu.memory_space<vmem>>, vector<1x8x8xf32>
    %28 = vector.shape_cast %27 : vector<1x8x8xf32> to vector<8x8xf32>
    %cst_29 = arith.constant 0.000000e+00 : f32
    %29 = vector.broadcast %cst_29 : f32 to vector<8x8xf32>
    %30 = arith.cmpf ogt, %28, %29 : vector<8x8xf32>
    %cst_30 = arith.constant -1.000000e+30 : f32
    %31 = vector.broadcast %cst_30 : f32 to vector<8x8xf32>
    %32 = arith.select %30, %26, %31 : vector<8x8xi1>, vector<8x8xf32>
    %cst_31 = arith.constant dense<0xFF800000> : vector<8xf32>
    %33 = vector.multi_reduction <maximumf>, %32, %cst_31 [1] : vector<8x8xf32> to vector<8xf32>
    %34 = vector.shape_cast %33 : vector<8xf32> to vector<8x1xf32>
    %35 = vector.broadcast %34 : vector<8x1xf32> to vector<8x8xf32>
    %36 = arith.subf %32, %35 : vector<8x8xf32>
    %37 = math.exp %36 : vector<8x8xf32>
    %38 = arith.mulf %37, %28 : vector<8x8xf32>
    %cst_32 = arith.constant dense<0.000000e+00> : vector<8xf32>
    %39 = vector.multi_reduction <add>, %38, %cst_32 [1] : vector<8x8xf32> to vector<8xf32>
    %40 = vector.shape_cast %39 : vector<8xf32> to vector<8x1xf32>
    %cst_33 = arith.constant 1.000000e-30 : f32
    %41 = vector.broadcast %cst_33 : f32 to vector<8x1xf32>
    %42 = arith.maximumf %40, %41 : vector<8x1xf32>
    %43 = tpu.reciprocal %42 {approx = true} : vector<8x1xf32> -> vector<8x1xf32>
    %44 = vector.broadcast %43 : vector<8x1xf32> to vector<8x8xf32>
    %45 = arith.mulf %38, %44 : vector<8x8xf32>
    %cst_34 = arith.constant dense<0.000000e+00> : vector<8x32xf32>
    %46 = tpu.matmul %45, %24, %cst_34 {dimension_numbers = #tpu.dot_dimension_numbers<[1], [0], [0], [1], [0, 0, 1, 1], [], []>} : vector<8x8xf32>, vector<8x32xf32>, vector<8x32xf32> -> vector<8x32xf32>
    %cst_35 = arith.constant 5.000000e-01 : f32
    %47 = vector.broadcast %cst_35 : f32 to vector<8x32xf32>
    %48 = arith.mulf %47, %46 : vector<8x32xf32>
    %cst_36 = arith.constant 4.471500e-02 : f32
    %49 = vector.broadcast %cst_36 : f32 to vector<8x32xf32>
    %50 = arith.mulf %49, %46 : vector<8x32xf32>
    %51 = arith.mulf %50, %46 : vector<8x32xf32>
    %52 = arith.mulf %51, %46 : vector<8x32xf32>
    %53 = arith.addf %46, %52 : vector<8x32xf32>
    %cst_37 = arith.constant 0.797884583 : f32
    %54 = vector.broadcast %cst_37 : f32 to vector<8x32xf32>
    %55 = arith.mulf %54, %53 : vector<8x32xf32>
    %56 = math.tanh %55 : vector<8x32xf32>
    %cst_38 = arith.constant 1.000000e+00 : f32
    %57 = vector.broadcast %cst_38 : f32 to vector<8x32xf32>
    %58 = arith.addf %57, %56 : vector<8x32xf32>
    %59 = arith.mulf %48, %58 : vector<8x32xf32>
    %c0_39 = arith.constant 0 : index
    %c0_40 = arith.constant 0 : index
    %c0_41 = arith.constant 0 : index
    %60 = vector.load %arg10[%c0_39, %c0_40, %c0_41] : memref<1x32x32xf32, #tpu.memory_space<vmem>>, vector<1x32x32xf32>
    %61 = vector.shape_cast %60 : vector<1x32x32xf32> to vector<32x32xf32>
    %cst_42 = arith.constant dense<0.000000e+00> : vector<8x32xf32>
    %62 = tpu.matmul %59, %61, %cst_42 {dimension_numbers = #tpu.dot_dimension_numbers<[1], [0], [0], [1], [0, 0, 1, 1], [], []>} : vector<8x32xf32>, vector<32x32xf32>, vector<8x32xf32> -> vector<8x32xf32>
    %c0_43 = arith.constant 0 : index
    %c0_44 = arith.constant 0 : index
    %c0_45 = arith.constant 0 : index
    %63 = vector.load %arg11[%c0_43, %c0_44, %c0_45] : memref<1x1x32xf32, #tpu.memory_space<vmem>>, vector<1x1x32xf32>
    %64 = vector.shape_cast %63 : vector<1x1x32xf32> to vector<1x32xf32>
    %65 = vector.broadcast %64 : vector<1x32xf32> to vector<8x32xf32>
    %66 = arith.addf %62, %65 : vector<8x32xf32>
    %c0_46 = arith.constant 0 : index
    %c0_47 = arith.constant 0 : index
    %c0_48 = arith.constant 0 : index
    %67 = vector.load %arg12[%c0_46, %c0_47, %c0_48] : memref<1x1x1xf32, #tpu.memory_space<vmem>>, vector<1x1x1xf32>
    %68 = vector.shape_cast %67 : vector<1x1x1xf32> to vector<1x1xf32>
    %69 = vector.broadcast %68 : vector<1x1xf32> to vector<8x32xf32>
    %70 = arith.mulf %69, %66 : vector<8x32xf32>
    %cst_49 = arith.constant 1.000000e+00 : f32
    %71 = vector.broadcast %cst_49 : f32 to vector<1x1xf32>
    %72 = arith.subf %71, %68 : vector<1x1xf32>
    %73 = vector.broadcast %72 : vector<1x1xf32> to vector<8x32xf32>
    %74 = arith.mulf %73, %1 : vector<8x32xf32>
    %75 = arith.addf %70, %74 : vector<8x32xf32>
    %c0_50 = arith.constant 0 : index
    %c0_51 = arith.constant 0 : index
    %c0_52 = arith.constant 0 : index
    %76 = vector.load %arg13[%c0_50, %c0_51, %c0_52] : memref<1x8x32xf32, #tpu.memory_space<vmem>>, vector<1x8x32xf32>
    %77 = vector.shape_cast %76 : vector<1x8x32xf32> to vector<8x32xf32>
    %78 = vector.shape_cast %75 : vector<8x32xf32> to vector<1x8x32xf32>
    tpu.vector_store %arg13[%c0_50, %c0_51, %c0_52], %78 {strides = array<i32>} : memref<1x8x32xf32, #tpu.memory_space<vmem>>, vector<1x8x32xf32>,
    return
  }
  func.func @transform_0(%arg0: i32) -> (i32, i32, i32) {
    %c0_i32 = arith.constant 0 : i32
    %c0_i32_0 = arith.constant 0 : i32
    %c0_i32_1 = arith.constant 0 : i32
    return %arg0, %c0_i32, %c0_i32_0 : i32, i32, i32
  }
  func.func @transform_1(%arg0: i32) -> (i32, i32, i32) {
    %c1_i32 = arith.constant 1 : i32
    %0 = arith.subi %c1_i32, %arg0 : i32
    %c0_i32 = arith.constant 0 : i32
    %c0_i32_0 = arith.constant 0 : i32
    %c0_i32_1 = arith.constant 0 : i32
    return %0, %c0_i32, %c0_i32_0 : i32, i32, i32
  }
  func.func @transform_2(%arg0: i32) -> (i32, i32, i32) {
    %c0_i32 = arith.constant 0 : i32
    %c0_i32_0 = arith.constant 0 : i32
    %c0_i32_1 = arith.constant 0 : i32
    return %arg0, %c0_i32, %c0_i32_0 : i32, i32, i32
  }
  func.func @transform_3(%arg0: i32) -> (i32, i32, i32) {
    %c0_i32 = arith.constant 0 : i32
    %c0_i32_0 = arith.constant 0 : i32
    %c0_i32_1 = arith.constant 0 : i32
    return %arg0, %c0_i32, %c0_i32_0 : i32, i32, i32
  }
  func.func @transform_4(%arg0: i32) -> (i32, i32, i32) {
    %c0_i32 = arith.constant 0 : i32
    %c0_i32_0 = arith.constant 0 : i32
    %c0_i32_1 = arith.constant 0 : i32
    return %arg0, %c0_i32, %c0_i32_0 : i32, i32, i32
  }
  func.func @transform_5(%arg0: i32) -> (i32, i32, i32) {
    %c0_i32 = arith.constant 0 : i32
    %c0_i32_0 = arith.constant 0 : i32
    %c0_i32_1 = arith.constant 0 : i32
    return %arg0, %c0_i32, %c0_i32_0 : i32, i32, i32
  }
  func.func @transform_6(%arg0: i32) -> (i32, i32, i32) {
    %c0_i32 = arith.constant 0 : i32
    %c0_i32_0 = arith.constant 0 : i32
    %c0_i32_1 = arith.constant 0 : i32
    return %arg0, %c0_i32, %c0_i32_0 : i32, i32, i32
  }
  func.func @transform_7(%arg0: i32) -> (i32, i32, i32) {
    %c0_i32 = arith.constant 0 : i32
    %c0_i32_0 = arith.constant 0 : i32
    %c0_i32_1 = arith.constant 0 : i32
    return %arg0, %c0_i32, %c0_i32_0 : i32, i32, i32
  }
  func.func @transform_8(%arg0: i32) -> (i32, i32, i32) {
    %c0_i32 = arith.constant 0 : i32
    %c0_i32_0 = arith.constant 0 : i32
    %c0_i32_1 = arith.constant 0 : i32
    return %arg0, %c0_i32, %c0_i32_0 : i32, i32, i32
  }
  func.func @transform_9(%arg0: i32) -> (i32, i32, i32) {
    %c0_i32 = arith.constant 0 : i32
    %c0_i32_0 = arith.constant 0 : i32
    %c0_i32_1 = arith.constant 0 : i32
    return %arg0, %c0_i32, %c0_i32_0 : i32, i32, i32
  }
  func.func @transform_10(%arg0: i32) -> (i32, i32, i32) {
    %c0_i32 = arith.constant 0 : i32
    %c0_i32_0 = arith.constant 0 : i32
    %c0_i32_1 = arith.constant 0 : i32
    return %arg0, %c0_i32, %c0_i32_0 : i32, i32, i32
  }
  func.func @transform_11(%arg0: i32) -> (i32, i32, i32) {
    %c0_i32 = arith.constant 0 : i32
    %c0_i32_0 = arith.constant 0 : i32
    %c0_i32_1 = arith.constant 0 : i32
    return %arg0, %c0_i32, %c0_i32_0 : i32, i32, i32
  }
  func.func @transform_12(%arg0: i32) -> (i32, i32, i32) {
    %c0_i32 = arith.constant 0 : i32
    %c0_i32_0 = arith.constant 0 : i32
    %c0_i32_1 = arith.constant 0 : i32
    return %arg0, %c0_i32, %c0_i32_0 : i32, i32, i32
  }
}

module attributes {stable_mosaic.version = 11 : i64} {
  func.func @_hgt_layer_kernel(%arg0: i32, %arg1: memref<1x8x16xf32, #tpu.memory_space<vmem>>, %arg2: memref<1x8x16xf32, #tpu.memory_space<vmem>>, %arg3: memref<1x16x32xf32, #tpu.memory_space<vmem>>, %arg4: memref<1x1x32xf32, #tpu.memory_space<vmem>>, %arg5: memref<1x16x32xf32, #tpu.memory_space<vmem>>, %arg6: memref<1x1x32xf32, #tpu.memory_space<vmem>>, %arg7: memref<1x16x32xf32, #tpu.memory_space<vmem>>, %arg8: memref<1x1x32xf32, #tpu.memory_space<vmem>>, %arg9: memref<1x8x8xf32, #tpu.memory_space<vmem>>, %arg10: memref<1x32x32xf32, #tpu.memory_space<vmem>>, %arg11: memref<1x1x32xf32, #tpu.memory_space<vmem>>, %arg12: memref<1x8x32xf32, #tpu.memory_space<vmem>>) attributes {dimension_semantics = [#tpu.dimension_semantics<parallel>], iteration_bounds = array<i64: 2>, scalar_prefetch = 0 : i64, scratch_operands = 0 : i64, tpu.core_type = #tpu.core_type<tc>, window_params = [{transform_indices = @transform_0, window_bounds = array<i64: 1, 8, 16>}, {transform_indices = @transform_1, window_bounds = array<i64: 1, 8, 16>}, {transform_indices = @transform_2, window_bounds = array<i64: 1, 16, 32>}, {transform_indices = @transform_3, window_bounds = array<i64: 1, 1, 32>}, {transform_indices = @transform_4, window_bounds = array<i64: 1, 16, 32>}, {transform_indices = @transform_5, window_bounds = array<i64: 1, 1, 32>}, {transform_indices = @transform_6, window_bounds = array<i64: 1, 16, 32>}, {transform_indices = @transform_7, window_bounds = array<i64: 1, 1, 32>}, {transform_indices = @transform_8, window_bounds = array<i64: 1, 8, 8>}, {transform_indices = @transform_9, window_bounds = array<i64: 1, 32, 32>}, {transform_indices = @transform_10, window_bounds = array<i64: 1, 1, 32>}, {transform_indices = @transform_11, window_bounds = array<i64: 1, 8, 32>}]} {
    %c0 = arith.constant 0 : index
    %c0_0 = arith.constant 0 : index
    %c0_1 = arith.constant 0 : index
    %0 = vector.load %arg1[%c0, %c0_0, %c0_1] : memref<1x8x16xf32, #tpu.memory_space<vmem>>, vector<1x8x16xf32>
    %1 = vector.shape_cast %0 : vector<1x8x16xf32> to vector<8x16xf32>
    %c0_2 = arith.constant 0 : index
    %c0_3 = arith.constant 0 : index
    %c0_4 = arith.constant 0 : index
    %2 = vector.load %arg2[%c0_2, %c0_3, %c0_4] : memref<1x8x16xf32, #tpu.memory_space<vmem>>, vector<1x8x16xf32>
    %3 = vector.shape_cast %2 : vector<1x8x16xf32> to vector<8x16xf32>
    %c0_5 = arith.constant 0 : index
    %c0_6 = arith.constant 0 : index
    %c0_7 = arith.constant 0 : index
    %4 = vector.load %arg3[%c0_5, %c0_6, %c0_7] : memref<1x16x32xf32, #tpu.memory_space<vmem>>, vector<1x16x32xf32>
    %5 = vector.shape_cast %4 : vector<1x16x32xf32> to vector<16x32xf32>
    %cst = arith.constant dense<0.000000e+00> : vector<8x32xf32>
    %6 = tpu.matmul %1, %5, %cst {dimension_numbers = #tpu.dot_dimension_numbers<[1], [0], [0], [1], [0, 0, 1, 1], [], []>} : vector<8x16xf32>, vector<16x32xf32>, vector<8x32xf32> -> vector<8x32xf32>
    %c0_8 = arith.constant 0 : index
    %c0_9 = arith.constant 0 : index
    %c0_10 = arith.constant 0 : index
    %7 = vector.load %arg4[%c0_8, %c0_9, %c0_10] : memref<1x1x32xf32, #tpu.memory_space<vmem>>, vector<1x1x32xf32>
    %8 = vector.shape_cast %7 : vector<1x1x32xf32> to vector<1x32xf32>
    %9 = vector.broadcast %8 : vector<1x32xf32> to vector<8x32xf32>
    %10 = arith.addf %6, %9 : vector<8x32xf32>
    %c0_11 = arith.constant 0 : index
    %c0_12 = arith.constant 0 : index
    %c0_13 = arith.constant 0 : index
    %11 = vector.load %arg5[%c0_11, %c0_12, %c0_13] : memref<1x16x32xf32, #tpu.memory_space<vmem>>, vector<1x16x32xf32>
    %12 = vector.shape_cast %11 : vector<1x16x32xf32> to vector<16x32xf32>
    %cst_14 = arith.constant dense<0.000000e+00> : vector<8x32xf32>
    %13 = tpu.matmul %3, %12, %cst_14 {dimension_numbers = #tpu.dot_dimension_numbers<[1], [0], [0], [1], [0, 0, 1, 1], [], []>} : vector<8x16xf32>, vector<16x32xf32>, vector<8x32xf32> -> vector<8x32xf32>
    %c0_15 = arith.constant 0 : index
    %c0_16 = arith.constant 0 : index
    %c0_17 = arith.constant 0 : index
    %14 = vector.load %arg6[%c0_15, %c0_16, %c0_17] : memref<1x1x32xf32, #tpu.memory_space<vmem>>, vector<1x1x32xf32>
    %15 = vector.shape_cast %14 : vector<1x1x32xf32> to vector<1x32xf32>
    %16 = vector.broadcast %15 : vector<1x32xf32> to vector<8x32xf32>
    %17 = arith.addf %13, %16 : vector<8x32xf32>
    %c0_18 = arith.constant 0 : index
    %c0_19 = arith.constant 0 : index
    %c0_20 = arith.constant 0 : index
    %18 = vector.load %arg7[%c0_18, %c0_19, %c0_20] : memref<1x16x32xf32, #tpu.memory_space<vmem>>, vector<1x16x32xf32>
    %19 = vector.shape_cast %18 : vector<1x16x32xf32> to vector<16x32xf32>
    %cst_21 = arith.constant dense<0.000000e+00> : vector<8x32xf32>
    %20 = tpu.matmul %3, %19, %cst_21 {dimension_numbers = #tpu.dot_dimension_numbers<[1], [0], [0], [1], [0, 0, 1, 1], [], []>} : vector<8x16xf32>, vector<16x32xf32>, vector<8x32xf32> -> vector<8x32xf32>
    %c0_22 = arith.constant 0 : index
    %c0_23 = arith.constant 0 : index
    %c0_24 = arith.constant 0 : index
    %21 = vector.load %arg8[%c0_22, %c0_23, %c0_24] : memref<1x1x32xf32, #tpu.memory_space<vmem>>, vector<1x1x32xf32>
    %22 = vector.shape_cast %21 : vector<1x1x32xf32> to vector<1x32xf32>
    %23 = vector.broadcast %22 : vector<1x32xf32> to vector<8x32xf32>
    %24 = arith.addf %20, %23 : vector<8x32xf32>
    %25 = tpu.transpose %17, [1, 0] : vector<8x32xf32> -> vector<32x8xf32>
    %cst_25 = arith.constant dense<0.000000e+00> : vector<8x8xf32>
    %26 = tpu.matmul %10, %25, %cst_25 {dimension_numbers = #tpu.dot_dimension_numbers<[1], [0], [0], [1], [0, 0, 1, 1], [], []>} : vector<8x32xf32>, vector<32x8xf32>, vector<8x8xf32> -> vector<8x8xf32>
    %c0_26 = arith.constant 0 : index
    %c0_27 = arith.constant 0 : index
    %c0_28 = arith.constant 0 : index
    %27 = vector.load %arg9[%c0_26, %c0_27, %c0_28] : memref<1x8x8xf32, #tpu.memory_space<vmem>>, vector<1x8x8xf32>
    %28 = vector.shape_cast %27 : vector<1x8x8xf32> to vector<8x8xf32>
    %cst_29 = arith.constant 0.000000e+00 : f32
    %29 = vector.broadcast %cst_29 : f32 to vector<8x8xf32>
    %30 = arith.cmpf ogt, %28, %29 : vector<8x8xf32>
    %cst_30 = arith.constant -1.000000e+30 : f32
    %31 = vector.broadcast %cst_30 : f32 to vector<8x8xf32>
    %32 = arith.select %30, %26, %31 : vector<8x8xi1>, vector<8x8xf32>
    %cst_31 = arith.constant dense<0xFF800000> : vector<8xf32>
    %33 = vector.multi_reduction <maximumf>, %32, %cst_31 [1] : vector<8x8xf32> to vector<8xf32>
    %34 = vector.shape_cast %33 : vector<8xf32> to vector<8x1xf32>
    %35 = vector.broadcast %34 : vector<8x1xf32> to vector<8x8xf32>
    %36 = arith.subf %32, %35 : vector<8x8xf32>
    %37 = math.exp %36 : vector<8x8xf32>
    %38 = arith.mulf %37, %28 : vector<8x8xf32>
    %cst_32 = arith.constant dense<0.000000e+00> : vector<8xf32>
    %39 = vector.multi_reduction <add>, %38, %cst_32 [1] : vector<8x8xf32> to vector<8xf32>
    %40 = vector.shape_cast %39 : vector<8xf32> to vector<8x1xf32>
    %cst_33 = arith.constant 1.000000e-30 : f32
    %41 = vector.broadcast %cst_33 : f32 to vector<8x1xf32>
    %42 = arith.maximumf %40, %41 : vector<8x1xf32>
    %43 = tpu.reciprocal %42 {approx = true} : vector<8x1xf32> -> vector<8x1xf32>
    %44 = vector.broadcast %43 : vector<8x1xf32> to vector<8x8xf32>
    %45 = arith.mulf %38, %44 : vector<8x8xf32>
    %cst_34 = arith.constant dense<0.000000e+00> : vector<8x32xf32>
    %46 = tpu.matmul %45, %24, %cst_34 {dimension_numbers = #tpu.dot_dimension_numbers<[1], [0], [0], [1], [0, 0, 1, 1], [], []>} : vector<8x8xf32>, vector<8x32xf32>, vector<8x32xf32> -> vector<8x32xf32>
    %cst_35 = arith.constant 5.000000e-01 : f32
    %47 = vector.broadcast %cst_35 : f32 to vector<8x32xf32>
    %48 = arith.mulf %47, %46 : vector<8x32xf32>
    %cst_36 = arith.constant 4.471500e-02 : f32
    %49 = vector.broadcast %cst_36 : f32 to vector<8x32xf32>
    %50 = arith.mulf %49, %46 : vector<8x32xf32>
    %51 = arith.mulf %50, %46 : vector<8x32xf32>
    %52 = arith.mulf %51, %46 : vector<8x32xf32>
    %53 = arith.addf %46, %52 : vector<8x32xf32>
    %cst_37 = arith.constant 0.797884583 : f32
    %54 = vector.broadcast %cst_37 : f32 to vector<8x32xf32>
    %55 = arith.mulf %54, %53 : vector<8x32xf32>
    %56 = math.tanh %55 : vector<8x32xf32>
    %cst_38 = arith.constant 1.000000e+00 : f32
    %57 = vector.broadcast %cst_38 : f32 to vector<8x32xf32>
    %58 = arith.addf %57, %56 : vector<8x32xf32>
    %59 = arith.mulf %48, %58 : vector<8x32xf32>
    %c0_39 = arith.constant 0 : index
    %c0_40 = arith.constant 0 : index
    %c0_41 = arith.constant 0 : index
    %60 = vector.load %arg10[%c0_39, %c0_40, %c0_41] : memref<1x32x32xf32, #tpu.memory_space<vmem>>, vector<1x32x32xf32>
    %61 = vector.shape_cast %60 : vector<1x32x32xf32> to vector<32x32xf32>
    %cst_42 = arith.constant dense<0.000000e+00> : vector<8x32xf32>
    %62 = tpu.matmul %59, %61, %cst_42 {dimension_numbers = #tpu.dot_dimension_numbers<[1], [0], [0], [1], [0, 0, 1, 1], [], []>} : vector<8x32xf32>, vector<32x32xf32>, vector<8x32xf32> -> vector<8x32xf32>
    %c0_43 = arith.constant 0 : index
    %c0_44 = arith.constant 0 : index
    %c0_45 = arith.constant 0 : index
    %63 = vector.load %arg11[%c0_43, %c0_44, %c0_45] : memref<1x1x32xf32, #tpu.memory_space<vmem>>, vector<1x1x32xf32>
    %64 = vector.shape_cast %63 : vector<1x1x32xf32> to vector<1x32xf32>
    %65 = vector.broadcast %64 : vector<1x32xf32> to vector<8x32xf32>
    %66 = arith.addf %62, %65 : vector<8x32xf32>
    %c0_46 = arith.constant 0 : index
    %c0_47 = arith.constant 0 : index
    %c0_48 = arith.constant 0 : index
    %67 = vector.load %arg12[%c0_46, %c0_47, %c0_48] : memref<1x8x32xf32, #tpu.memory_space<vmem>>, vector<1x8x32xf32>
    %68 = vector.shape_cast %67 : vector<1x8x32xf32> to vector<8x32xf32>
    %69 = vector.shape_cast %66 : vector<8x32xf32> to vector<1x8x32xf32>
    tpu.vector_store %arg12[%c0_46, %c0_47, %c0_48], %69 {strides = array<i32>} : memref<1x8x32xf32, #tpu.memory_space<vmem>>, vector<1x8x32xf32>,
    return
  }
  func.func @transform_0(%arg0: i32) -> (i32, i32, i32) {
    %c0_i32 = arith.constant 0 : i32
    %c0_i32_0 = arith.constant 0 : i32
    %c0_i32_1 = arith.constant 0 : i32
    return %arg0, %c0_i32, %c0_i32_0 : i32, i32, i32
  }
  func.func @transform_1(%arg0: i32) -> (i32, i32, i32) {
    %c1_i32 = arith.constant 1 : i32
    %0 = arith.subi %c1_i32, %arg0 : i32
    %c0_i32 = arith.constant 0 : i32
    %c0_i32_0 = arith.constant 0 : i32
    %c0_i32_1 = arith.constant 0 : i32
    return %0, %c0_i32, %c0_i32_0 : i32, i32, i32
  }
  func.func @transform_2(%arg0: i32) -> (i32, i32, i32) {
    %c0_i32 = arith.constant 0 : i32
    %c0_i32_0 = arith.constant 0 : i32
    %c0_i32_1 = arith.constant 0 : i32
    return %arg0, %c0_i32, %c0_i32_0 : i32, i32, i32
  }
  func.func @transform_3(%arg0: i32) -> (i32, i32, i32) {
    %c0_i32 = arith.constant 0 : i32
    %c0_i32_0 = arith.constant 0 : i32
    %c0_i32_1 = arith.constant 0 : i32
    return %arg0, %c0_i32, %c0_i32_0 : i32, i32, i32
  }
  func.func @transform_4(%arg0: i32) -> (i32, i32, i32) {
    %c0_i32 = arith.constant 0 : i32
    %c0_i32_0 = arith.constant 0 : i32
    %c0_i32_1 = arith.constant 0 : i32
    return %arg0, %c0_i32, %c0_i32_0 : i32, i32, i32
  }
  func.func @transform_5(%arg0: i32) -> (i32, i32, i32) {
    %c0_i32 = arith.constant 0 : i32
    %c0_i32_0 = arith.constant 0 : i32
    %c0_i32_1 = arith.constant 0 : i32
    return %arg0, %c0_i32, %c0_i32_0 : i32, i32, i32
  }
  func.func @transform_6(%arg0: i32) -> (i32, i32, i32) {
    %c0_i32 = arith.constant 0 : i32
    %c0_i32_0 = arith.constant 0 : i32
    %c0_i32_1 = arith.constant 0 : i32
    return %arg0, %c0_i32, %c0_i32_0 : i32, i32, i32
  }
  func.func @transform_7(%arg0: i32) -> (i32, i32, i32) {
    %c0_i32 = arith.constant 0 : i32
    %c0_i32_0 = arith.constant 0 : i32
    %c0_i32_1 = arith.constant 0 : i32
    return %arg0, %c0_i32, %c0_i32_0 : i32, i32, i32
  }
  func.func @transform_8(%arg0: i32) -> (i32, i32, i32) {
    %c0_i32 = arith.constant 0 : i32
    %c0_i32_0 = arith.constant 0 : i32
    %c0_i32_1 = arith.constant 0 : i32
    return %arg0, %c0_i32, %c0_i32_0 : i32, i32, i32
  }
  func.func @transform_9(%arg0: i32) -> (i32, i32, i32) {
    %c0_i32 = arith.constant 0 : i32
    %c0_i32_0 = arith.constant 0 : i32
    %c0_i32_1 = arith.constant 0 : i32
    return %arg0, %c0_i32, %c0_i32_0 : i32, i32, i32
  }
  func.func @transform_10(%arg0: i32) -> (i32, i32, i32) {
    %c0_i32 = arith.constant 0 : i32
    %c0_i32_0 = arith.constant 0 : i32
    %c0_i32_1 = arith.constant 0 : i32
    return %arg0, %c0_i32, %c0_i32_0 : i32, i32, i32
  }
  func.func @transform_11(%arg0: i32) -> (i32, i32, i32) {
    %c0_i32 = arith.constant 0 : i32
    %c0_i32_0 = arith.constant 0 : i32
    %c0_i32_1 = arith.constant 0 : i32
    return %arg0, %c0_i32, %c0_i32_0 : i32, i32, i32
  }
}

module attributes {stable_mosaic.version = 11 : i64} {
  func.func @_jk_pool_kernel(%arg0: i32, %arg1: memref<3x16x32xf32, #tpu.memory_space<vmem>>, %arg2: memref<32x192xf32, #tpu.memory_space<vmem>>, %arg3: memref<48x192xf32, #tpu.memory_space<vmem>>, %arg4: memref<1x192xf32, #tpu.memory_space<vmem>>, %arg5: memref<32x192xf32, #tpu.memory_space<vmem>>, %arg6: memref<48x192xf32, #tpu.memory_space<vmem>>, %arg7: memref<1x192xf32, #tpu.memory_space<vmem>>, %arg8: memref<96x1xf32, #tpu.memory_space<vmem>>, %arg9: memref<1x1xf32, #tpu.memory_space<vmem>>, %arg10: memref<16x16xf32, #tpu.memory_space<vmem>>, %arg11: memref<32x1xf32, #tpu.memory_space<vmem>>, %arg12: memref<32x1xf32, #tpu.memory_space<vmem>>, %arg13: memref<1x1xf32, #tpu.memory_space<vmem>>, %arg14: memref<16x32xf32, #tpu.memory_space<vmem>>, %arg15: memref<16x1xf32, #tpu.memory_space<vmem>>) attributes {dimension_semantics = [#tpu.dimension_semantics<arbitrary>], iteration_bounds = array<i64: 1>, scalar_prefetch = 0 : i64, scratch_operands = 0 : i64, tpu.core_type = #tpu.core_type<tc>, window_params = [{pipeline_mode = #tpu.pipeline_mode<synchronous>, transform_indices = @transform_0, window_bounds = array<i64: 3, 16, 32>}, {pipeline_mode = #tpu.pipeline_mode<synchronous>, transform_indices = @transform_1, window_bounds = array<i64: 32, 192>}, {pipeline_mode = #tpu.pipeline_mode<synchronous>, transform_indices = @transform_2, window_bounds = array<i64: 48, 192>}, {pipeline_mode = #tpu.pipeline_mode<synchronous>, transform_indices = @transform_3, window_bounds = array<i64: 1, 192>}, {pipeline_mode = #tpu.pipeline_mode<synchronous>, transform_indices = @transform_4, window_bounds = array<i64: 32, 192>}, {pipeline_mode = #tpu.pipeline_mode<synchronous>, transform_indices = @transform_5, window_bounds = array<i64: 48, 192>}, {pipeline_mode = #tpu.pipeline_mode<synchronous>, transform_indices = @transform_6, window_bounds = array<i64: 1, 192>}, {pipeline_mode = #tpu.pipeline_mode<synchronous>, transform_indices = @transform_7, window_bounds = array<i64: 96, 1>}, {pipeline_mode = #tpu.pipeline_mode<synchronous>, transform_indices = @transform_8, window_bounds = array<i64: 1, 1>}, {pipeline_mode = #tpu.pipeline_mode<synchronous>, transform_indices = @transform_9, window_bounds = array<i64: 16, 16>}, {pipeline_mode = #tpu.pipeline_mode<synchronous>, transform_indices = @transform_10, window_bounds = array<i64: 32, 1>}, {pipeline_mode = #tpu.pipeline_mode<synchronous>, transform_indices = @transform_11, window_bounds = array<i64: 32, 1>}, {pipeline_mode = #tpu.pipeline_mode<synchronous>, transform_indices = @transform_12, window_bounds = array<i64: 1, 1>}, {pipeline_mode = #tpu.pipeline_mode<synchronous>, transform_indices = @transform_13, window_bounds = array<i64: 16, 32>}, {pipeline_mode = #tpu.pipeline_mode<synchronous>, transform_indices = @transform_14, window_bounds = array<i64: 16, 1>}]} {
    %c0 = arith.constant 0 : index
    %c0_0 = arith.constant 0 : index
    %0 = vector.load %arg2[%c0, %c0_0] : memref<32x192xf32, #tpu.memory_space<vmem>>, vector<32x192xf32>
    %c0_1 = arith.constant 0 : index
    %c0_2 = arith.constant 0 : index
    %1 = vector.load %arg3[%c0_1, %c0_2] : memref<48x192xf32, #tpu.memory_space<vmem>>, vector<48x192xf32>
    %c0_3 = arith.constant 0 : index
    %c0_4 = arith.constant 0 : index
    %2 = vector.load %arg4[%c0_3, %c0_4] : memref<1x192xf32, #tpu.memory_space<vmem>>, vector<1x192xf32>
    %cst = arith.constant 0.000000e+00 : f32
    %3 = vector.broadcast %cst : f32 to vector<16x48xf32>
    %cst_5 = arith.constant 0.000000e+00 : f32
    %4 = vector.broadcast %cst_5 : f32 to vector<16x48xf32>
    %c0_6 = arith.constant 0 : index
    %c0_7 = arith.constant 0 : index
    %c0_8 = arith.constant 0 : index
    %5 = vector.load %arg1[%c0_6, %c0_7, %c0_8] : memref<3x16x32xf32, #tpu.memory_space<vmem>>, vector<1x16x32xf32>
    %6 = vector.shape_cast %5 : vector<1x16x32xf32> to vector<16x32xf32>
    %cst_9 = arith.constant dense<0.000000e+00> : vector<16x192xf32>
    %7 = tpu.matmul %6, %0, %cst_9 {dimension_numbers = #tpu.dot_dimension_numbers<[1], [0], [0], [1], [0, 0, 1, 1], [], []>} : vector<16x32xf32>, vector<32x192xf32>, vector<16x192xf32> -> vector<16x192xf32>
    %cst_10 = arith.constant dense<0.000000e+00> : vector<16x192xf32>
    %8 = tpu.matmul %3, %1, %cst_10 {dimension_numbers = #tpu.dot_dimension_numbers<[1], [0], [0], [1], [0, 0, 1, 1], [], []>} : vector<16x48xf32>, vector<48x192xf32>, vector<16x192xf32> -> vector<16x192xf32>
    %9 = arith.addf %7, %8 : vector<16x192xf32>
    %10 = vector.broadcast %2 : vector<1x192xf32> to vector<16x192xf32>
    %11 = arith.addf %9, %10 : vector<16x192xf32>
    %12 = vector.extract_strided_slice %11 {offsets = [0, 0], sizes = [16, 48], strides = [1, 1]} : vector<16x192xf32> to vector<16x48xf32>
    %13 = arith.negf %12 : vector<16x48xf32>
    %14 = math.exp %13 : vector<16x48xf32>
    %cst_11 = arith.constant 1.000000e+00 : f32
    %15 = vector.broadcast %cst_11 : f32 to vector<16x48xf32>
    %16 = arith.addf %15, %14 : vector<16x48xf32>
    %17 = arith.divf %15, %16 : vector<16x48xf32>
    %18 = vector.extract_strided_slice %11 {offsets = [0, 48], sizes = [16, 48], strides = [1, 1]} : vector<16x192xf32> to vector<16x48xf32>
    %19 = arith.negf %18 : vector<16x48xf32>
    %20 = math.exp %19 : vector<16x48xf32>
    %cst_12 = arith.constant 1.000000e+00 : f32
    %21 = vector.broadcast %cst_12 : f32 to vector<16x48xf32>
    %22 = arith.addf %21, %20 : vector<16x48xf32>
    %23 = arith.divf %21, %22 : vector<16x48xf32>
    %24 = vector.extract_strided_slice %11 {offsets = [0, 96], sizes = [16, 48], strides = [1, 1]} : vector<16x192xf32> to vector<16x48xf32>
    %25 = math.tanh %24 : vector<16x48xf32>
    %26 = vector.extract_strided_slice %11 {offsets = [0, 144], sizes = [16, 48], strides = [1, 1]} : vector<16x192xf32> to vector<16x48xf32>
    %27 = arith.negf %26 : vector<16x48xf32>
    %28 = math.exp %27 : vector<16x48xf32>
    %cst_13 = arith.constant 1.000000e+00 : f32
    %29 = vector.broadcast %cst_13 : f32 to vector<16x48xf32>
    %30 = arith.addf %29, %28 : vector<16x48xf32>
    %31 = arith.divf %29, %30 : vector<16x48xf32>
    %32 = arith.mulf %23, %4 : vector<16x48xf32>
    %33 = arith.mulf %17, %25 : vector<16x48xf32>
    %34 = arith.addf %32, %33 : vector<16x48xf32>
    %35 = math.tanh %34 : vector<16x48xf32>
    %36 = arith.mulf %31, %35 : vector<16x48xf32>
    %c1 = arith.constant 1 : index
    %c0_14 = arith.constant 0 : index
    %c0_15 = arith.constant 0 : index
    %37 = vector.load %arg1[%c1, %c0_14, %c0_15] : memref<3x16x32xf32, #tpu.memory_space<vmem>>, vector<1x16x32xf32>
    %38 = vector.shape_cast %37 : vector<1x16x32xf32> to vector<16x32xf32>
    %cst_16 = arith.constant dense<0.000000e+00> : vector<16x192xf32>
    %39 = tpu.matmul %38, %0, %cst_16 {dimension_numbers = #tpu.dot_dimension_numbers<[1], [0], [0], [1], [0, 0, 1, 1], [], []>} : vector<16x32xf32>, vector<32x192xf32>, vector<16x192xf32> -> vector<16x192xf32>
    %cst_17 = arith.constant dense<0.000000e+00> : vector<16x192xf32>
    %40 = tpu.matmul %36, %1, %cst_17 {dimension_numbers = #tpu.dot_dimension_numbers<[1], [0], [0], [1], [0, 0, 1, 1], [], []>} : vector<16x48xf32>, vector<48x192xf32>, vector<16x192xf32> -> vector<16x192xf32>
    %41 = arith.addf %39, %40 : vector<16x192xf32>
    %42 = vector.broadcast %2 : vector<1x192xf32> to vector<16x192xf32>
    %43 = arith.addf %41, %42 : vector<16x192xf32>
    %44 = vector.extract_strided_slice %43 {offsets = [0, 0], sizes = [16, 48], strides = [1, 1]} : vector<16x192xf32> to vector<16x48xf32>
    %45 = arith.negf %44 : vector<16x48xf32>
    %46 = math.exp %45 : vector<16x48xf32>
    %cst_18 = arith.constant 1.000000e+00 : f32
    %47 = vector.broadcast %cst_18 : f32 to vector<16x48xf32>
    %48 = arith.addf %47, %46 : vector<16x48xf32>
    %49 = arith.divf %47, %48 : vector<16x48xf32>
    %50 = vector.extract_strided_slice %43 {offsets = [0, 48], sizes = [16, 48], strides = [1, 1]} : vector<16x192xf32> to vector<16x48xf32>
    %51 = arith.negf %50 : vector<16x48xf32>
    %52 = math.exp %51 : vector<16x48xf32>
    %cst_19 = arith.constant 1.000000e+00 : f32
    %53 = vector.broadcast %cst_19 : f32 to vector<16x48xf32>
    %54 = arith.addf %53, %52 : vector<16x48xf32>
    %55 = arith.divf %53, %54 : vector<16x48xf32>
    %56 = vector.extract_strided_slice %43 {offsets = [0, 96], sizes = [16, 48], strides = [1, 1]} : vector<16x192xf32> to vector<16x48xf32>
    %57 = math.tanh %56 : vector<16x48xf32>
    %58 = vector.extract_strided_slice %43 {offsets = [0, 144], sizes = [16, 48], strides = [1, 1]} : vector<16x192xf32> to vector<16x48xf32>
    %59 = arith.negf %58 : vector<16x48xf32>
    %60 = math.exp %59 : vector<16x48xf32>
    %cst_20 = arith.constant 1.000000e+00 : f32
    %61 = vector.broadcast %cst_20 : f32 to vector<16x48xf32>
    %62 = arith.addf %61, %60 : vector<16x48xf32>
    %63 = arith.divf %61, %62 : vector<16x48xf32>
    %64 = arith.mulf %55, %34 : vector<16x48xf32>
    %65 = arith.mulf %49, %57 : vector<16x48xf32>
    %66 = arith.addf %64, %65 : vector<16x48xf32>
    %67 = math.tanh %66 : vector<16x48xf32>
    %68 = arith.mulf %63, %67 : vector<16x48xf32>
    %c2 = arith.constant 2 : index
    %c0_21 = arith.constant 0 : index
    %c0_22 = arith.constant 0 : index
    %69 = vector.load %arg1[%c2, %c0_21, %c0_22] : memref<3x16x32xf32, #tpu.memory_space<vmem>>, vector<1x16x32xf32>
    %70 = vector.shape_cast %69 : vector<1x16x32xf32> to vector<16x32xf32>
    %cst_23 = arith.constant dense<0.000000e+00> : vector<16x192xf32>
    %71 = tpu.matmul %70, %0, %cst_23 {dimension_numbers = #tpu.dot_dimension_numbers<[1], [0], [0], [1], [0, 0, 1, 1], [], []>} : vector<16x32xf32>, vector<32x192xf32>, vector<16x192xf32> -> vector<16x192xf32>
    %cst_24 = arith.constant dense<0.000000e+00> : vector<16x192xf32>
    %72 = tpu.matmul %68, %1, %cst_24 {dimension_numbers = #tpu.dot_dimension_numbers<[1], [0], [0], [1], [0, 0, 1, 1], [], []>} : vector<16x48xf32>, vector<48x192xf32>, vector<16x192xf32> -> vector<16x192xf32>
    %73 = arith.addf %71, %72 : vector<16x192xf32>
    %74 = vector.broadcast %2 : vector<1x192xf32> to vector<16x192xf32>
    %75 = arith.addf %73, %74 : vector<16x192xf32>
    %76 = vector.extract_strided_slice %75 {offsets = [0, 0], sizes = [16, 48], strides = [1, 1]} : vector<16x192xf32> to vector<16x48xf32>
    %77 = arith.negf %76 : vector<16x48xf32>
    %78 = math.exp %77 : vector<16x48xf32>
    %cst_25 = arith.constant 1.000000e+00 : f32
    %79 = vector.broadcast %cst_25 : f32 to vector<16x48xf32>
    %80 = arith.addf %79, %78 : vector<16x48xf32>
    %81 = arith.divf %79, %80 : vector<16x48xf32>
    %82 = vector.extract_strided_slice %75 {offsets = [0, 48], sizes = [16, 48], strides = [1, 1]} : vector<16x192xf32> to vector<16x48xf32>
    %83 = arith.negf %82 : vector<16x48xf32>
    %84 = math.exp %83 : vector<16x48xf32>
    %cst_26 = arith.constant 1.000000e+00 : f32
    %85 = vector.broadcast %cst_26 : f32 to vector<16x48xf32>
    %86 = arith.addf %85, %84 : vector<16x48xf32>
    %87 = arith.divf %85, %86 : vector<16x48xf32>
    %88 = vector.extract_strided_slice %75 {offsets = [0, 96], sizes = [16, 48], strides = [1, 1]} : vector<16x192xf32> to vector<16x48xf32>
    %89 = math.tanh %88 : vector<16x48xf32>
    %90 = vector.extract_strided_slice %75 {offsets = [0, 144], sizes = [16, 48], strides = [1, 1]} : vector<16x192xf32> to vector<16x48xf32>
    %91 = arith.negf %90 : vector<16x48xf32>
    %92 = math.exp %91 : vector<16x48xf32>
    %cst_27 = arith.constant 1.000000e+00 : f32
    %93 = vector.broadcast %cst_27 : f32 to vector<16x48xf32>
    %94 = arith.addf %93, %92 : vector<16x48xf32>
    %95 = arith.divf %93, %94 : vector<16x48xf32>
    %96 = arith.mulf %87, %66 : vector<16x48xf32>
    %97 = arith.mulf %81, %89 : vector<16x48xf32>
    %98 = arith.addf %96, %97 : vector<16x48xf32>
    %99 = math.tanh %98 : vector<16x48xf32>
    %100 = arith.mulf %95, %99 : vector<16x48xf32>
    %c0_28 = arith.constant 0 : index
    %c0_29 = arith.constant 0 : index
    %101 = vector.load %arg5[%c0_28, %c0_29] : memref<32x192xf32, #tpu.memory_space<vmem>>, vector<32x192xf32>
    %c0_30 = arith.constant 0 : index
    %c0_31 = arith.constant 0 : index
    %102 = vector.load %arg6[%c0_30, %c0_31] : memref<48x192xf32, #tpu.memory_space<vmem>>, vector<48x192xf32>
    %c0_32 = arith.constant 0 : index
    %c0_33 = arith.constant 0 : index
    %103 = vector.load %arg7[%c0_32, %c0_33] : memref<1x192xf32, #tpu.memory_space<vmem>>, vector<1x192xf32>
    %cst_34 = arith.constant 0.000000e+00 : f32
    %104 = vector.broadcast %cst_34 : f32 to vector<16x48xf32>
    %cst_35 = arith.constant 0.000000e+00 : f32
    %105 = vector.broadcast %cst_35 : f32 to vector<16x48xf32>
    %c2_36 = arith.constant 2 : index
    %c0_37 = arith.constant 0 : index
    %c0_38 = arith.constant 0 : index
    %106 = vector.load %arg1[%c2_36, %c0_37, %c0_38] : memref<3x16x32xf32, #tpu.memory_space<vmem>>, vector<1x16x32xf32>
    %107 = vector.shape_cast %106 : vector<1x16x32xf32> to vector<16x32xf32>
    %cst_39 = arith.constant dense<0.000000e+00> : vector<16x192xf32>
    %108 = tpu.matmul %107, %101, %cst_39 {dimension_numbers = #tpu.dot_dimension_numbers<[1], [0], [0], [1], [0, 0, 1, 1], [], []>} : vector<16x32xf32>, vector<32x192xf32>, vector<16x192xf32> -> vector<16x192xf32>
    %cst_40 = arith.constant dense<0.000000e+00> : vector<16x192xf32>
    %109 = tpu.matmul %104, %102, %cst_40 {dimension_numbers = #tpu.dot_dimension_numbers<[1], [0], [0], [1], [0, 0, 1, 1], [], []>} : vector<16x48xf32>, vector<48x192xf32>, vector<16x192xf32> -> vector<16x192xf32>
    %110 = arith.addf %108, %109 : vector<16x192xf32>
    %111 = vector.broadcast %103 : vector<1x192xf32> to vector<16x192xf32>
    %112 = arith.addf %110, %111 : vector<16x192xf32>
    %113 = vector.extract_strided_slice %112 {offsets = [0, 0], sizes = [16, 48], strides = [1, 1]} : vector<16x192xf32> to vector<16x48xf32>
    %114 = arith.negf %113 : vector<16x48xf32>
    %115 = math.exp %114 : vector<16x48xf32>
    %cst_41 = arith.constant 1.000000e+00 : f32
    %116 = vector.broadcast %cst_41 : f32 to vector<16x48xf32>
    %117 = arith.addf %116, %115 : vector<16x48xf32>
    %118 = arith.divf %116, %117 : vector<16x48xf32>
    %119 = vector.extract_strided_slice %112 {offsets = [0, 48], sizes = [16, 48], strides = [1, 1]} : vector<16x192xf32> to vector<16x48xf32>
    %120 = arith.negf %119 : vector<16x48xf32>
    %121 = math.exp %120 : vector<16x48xf32>
    %cst_42 = arith.constant 1.000000e+00 : f32
    %122 = vector.broadcast %cst_42 : f32 to vector<16x48xf32>
    %123 = arith.addf %122, %121 : vector<16x48xf32>
    %124 = arith.divf %122, %123 : vector<16x48xf32>
    %125 = vector.extract_strided_slice %112 {offsets = [0, 96], sizes = [16, 48], strides = [1, 1]} : vector<16x192xf32> to vector<16x48xf32>
    %126 = math.tanh %125 : vector<16x48xf32>
    %127 = vector.extract_strided_slice %112 {offsets = [0, 144], sizes = [16, 48], strides = [1, 1]} : vector<16x192xf32> to vector<16x48xf32>
    %128 = arith.negf %127 : vector<16x48xf32>
    %129 = math.exp %128 : vector<16x48xf32>
    %cst_43 = arith.constant 1.000000e+00 : f32
    %130 = vector.broadcast %cst_43 : f32 to vector<16x48xf32>
    %131 = arith.addf %130, %129 : vector<16x48xf32>
    %132 = arith.divf %130, %131 : vector<16x48xf32>
    %133 = arith.mulf %124, %105 : vector<16x48xf32>
    %134 = arith.mulf %118, %126 : vector<16x48xf32>
    %135 = arith.addf %133, %134 : vector<16x48xf32>
    %136 = math.tanh %135 : vector<16x48xf32>
    %137 = arith.mulf %132, %136 : vector<16x48xf32>
    %c1_44 = arith.constant 1 : index
    %c0_45 = arith.constant 0 : index
    %c0_46 = arith.constant 0 : index
    %138 = vector.load %arg1[%c1_44, %c0_45, %c0_46] : memref<3x16x32xf32, #tpu.memory_space<vmem>>, vector<1x16x32xf32>
    %139 = vector.shape_cast %138 : vector<1x16x32xf32> to vector<16x32xf32>
    %cst_47 = arith.constant dense<0.000000e+00> : vector<16x192xf32>
    %140 = tpu.matmul %139, %101, %cst_47 {dimension_numbers = #tpu.dot_dimension_numbers<[1], [0], [0], [1], [0, 0, 1, 1], [], []>} : vector<16x32xf32>, vector<32x192xf32>, vector<16x192xf32> -> vector<16x192xf32>
    %cst_48 = arith.constant dense<0.000000e+00> : vector<16x192xf32>
    %141 = tpu.matmul %137, %102, %cst_48 {dimension_numbers = #tpu.dot_dimension_numbers<[1], [0], [0], [1], [0, 0, 1, 1], [], []>} : vector<16x48xf32>, vector<48x192xf32>, vector<16x192xf32> -> vector<16x192xf32>
    %142 = arith.addf %140, %141 : vector<16x192xf32>
    %143 = vector.broadcast %103 : vector<1x192xf32> to vector<16x192xf32>
    %144 = arith.addf %142, %143 : vector<16x192xf32>
    %145 = vector.extract_strided_slice %144 {offsets = [0, 0], sizes = [16, 48], strides = [1, 1]} : vector<16x192xf32> to vector<16x48xf32>
    %146 = arith.negf %145 : vector<16x48xf32>
    %147 = math.exp %146 : vector<16x48xf32>
    %cst_49 = arith.constant 1.000000e+00 : f32
    %148 = vector.broadcast %cst_49 : f32 to vector<16x48xf32>
    %149 = arith.addf %148, %147 : vector<16x48xf32>
    %150 = arith.divf %148, %149 : vector<16x48xf32>
    %151 = vector.extract_strided_slice %144 {offsets = [0, 48], sizes = [16, 48], strides = [1, 1]} : vector<16x192xf32> to vector<16x48xf32>
    %152 = arith.negf %151 : vector<16x48xf32>
    %153 = math.exp %152 : vector<16x48xf32>
    %cst_50 = arith.constant 1.000000e+00 : f32
    %154 = vector.broadcast %cst_50 : f32 to vector<16x48xf32>
    %155 = arith.addf %154, %153 : vector<16x48xf32>
    %156 = arith.divf %154, %155 : vector<16x48xf32>
    %157 = vector.extract_strided_slice %144 {offsets = [0, 96], sizes = [16, 48], strides = [1, 1]} : vector<16x192xf32> to vector<16x48xf32>
    %158 = math.tanh %157 : vector<16x48xf32>
    %159 = vector.extract_strided_slice %144 {offsets = [0, 144], sizes = [16, 48], strides = [1, 1]} : vector<16x192xf32> to vector<16x48xf32>
    %160 = arith.negf %159 : vector<16x48xf32>
    %161 = math.exp %160 : vector<16x48xf32>
    %cst_51 = arith.constant 1.000000e+00 : f32
    %162 = vector.broadcast %cst_51 : f32 to vector<16x48xf32>
    %163 = arith.addf %162, %161 : vector<16x48xf32>
    %164 = arith.divf %162, %163 : vector<16x48xf32>
    %165 = arith.mulf %156, %135 : vector<16x48xf32>
    %166 = arith.mulf %150, %158 : vector<16x48xf32>
    %167 = arith.addf %165, %166 : vector<16x48xf32>
    %168 = math.tanh %167 : vector<16x48xf32>
    %169 = arith.mulf %164, %168 : vector<16x48xf32>
    %c0_52 = arith.constant 0 : index
    %c0_53 = arith.constant 0 : index
    %c0_54 = arith.constant 0 : index
    %170 = vector.load %arg1[%c0_52, %c0_53, %c0_54] : memref<3x16x32xf32, #tpu.memory_space<vmem>>, vector<1x16x32xf32>
    %171 = vector.shape_cast %170 : vector<1x16x32xf32> to vector<16x32xf32>
    %cst_55 = arith.constant dense<0.000000e+00> : vector<16x192xf32>
    %172 = tpu.matmul %171, %101, %cst_55 {dimension_numbers = #tpu.dot_dimension_numbers<[1], [0], [0], [1], [0, 0, 1, 1], [], []>} : vector<16x32xf32>, vector<32x192xf32>, vector<16x192xf32> -> vector<16x192xf32>
    %cst_56 = arith.constant dense<0.000000e+00> : vector<16x192xf32>
    %173 = tpu.matmul %169, %102, %cst_56 {dimension_numbers = #tpu.dot_dimension_numbers<[1], [0], [0], [1], [0, 0, 1, 1], [], []>} : vector<16x48xf32>, vector<48x192xf32>, vector<16x192xf32> -> vector<16x192xf32>
    %174 = arith.addf %172, %173 : vector<16x192xf32>
    %175 = vector.broadcast %103 : vector<1x192xf32> to vector<16x192xf32>
    %176 = arith.addf %174, %175 : vector<16x192xf32>
    %177 = vector.extract_strided_slice %176 {offsets = [0, 0], sizes = [16, 48], strides = [1, 1]} : vector<16x192xf32> to vector<16x48xf32>
    %178 = arith.negf %177 : vector<16x48xf32>
    %179 = math.exp %178 : vector<16x48xf32>
    %cst_57 = arith.constant 1.000000e+00 : f32
    %180 = vector.broadcast %cst_57 : f32 to vector<16x48xf32>
    %181 = arith.addf %180, %179 : vector<16x48xf32>
    %182 = arith.divf %180, %181 : vector<16x48xf32>
    %183 = vector.extract_strided_slice %176 {offsets = [0, 48], sizes = [16, 48], strides = [1, 1]} : vector<16x192xf32> to vector<16x48xf32>
    %184 = arith.negf %183 : vector<16x48xf32>
    %185 = math.exp %184 : vector<16x48xf32>
    %cst_58 = arith.constant 1.000000e+00 : f32
    %186 = vector.broadcast %cst_58 : f32 to vector<16x48xf32>
    %187 = arith.addf %186, %185 : vector<16x48xf32>
    %188 = arith.divf %186, %187 : vector<16x48xf32>
    %189 = vector.extract_strided_slice %176 {offsets = [0, 96], sizes = [16, 48], strides = [1, 1]} : vector<16x192xf32> to vector<16x48xf32>
    %190 = math.tanh %189 : vector<16x48xf32>
    %191 = vector.extract_strided_slice %176 {offsets = [0, 144], sizes = [16, 48], strides = [1, 1]} : vector<16x192xf32> to vector<16x48xf32>
    %192 = arith.negf %191 : vector<16x48xf32>
    %193 = math.exp %192 : vector<16x48xf32>
    %cst_59 = arith.constant 1.000000e+00 : f32
    %194 = vector.broadcast %cst_59 : f32 to vector<16x48xf32>
    %195 = arith.addf %194, %193 : vector<16x48xf32>
    %196 = arith.divf %194, %195 : vector<16x48xf32>
    %197 = arith.mulf %188, %167 : vector<16x48xf32>
    %198 = arith.mulf %182, %190 : vector<16x48xf32>
    %199 = arith.addf %197, %198 : vector<16x48xf32>
    %200 = math.tanh %199 : vector<16x48xf32>
    %201 = arith.mulf %196, %200 : vector<16x48xf32>
    %c0_60 = arith.constant 0 : index
    %c0_61 = arith.constant 0 : index
    %202 = vector.load %arg8[%c0_60, %c0_61] : memref<96x1xf32, #tpu.memory_space<vmem>>, vector<96x1xf32>
    %c0_62 = arith.constant 0 : index
    %c0_63 = arith.constant 0 : index
    %203 = vector.load %arg9[%c0_62, %c0_63] : memref<1x1xf32, #tpu.memory_space<vmem>>, vector<1x1xf32>
    %204 = vector.extract_strided_slice %202 {offsets = [0, 0], sizes = [48, 1], strides = [1, 1]} : vector<96x1xf32> to vector<48x1xf32>
    %205 = vector.extract_strided_slice %202 {offsets = [48, 0], sizes = [48, 1], strides = [1, 1]} : vector<96x1xf32> to vector<48x1xf32>
    %cst_64 = arith.constant dense<0.000000e+00> : vector<16x1xf32>
    %206 = tpu.matmul %36, %204, %cst_64 {dimension_numbers = #tpu.dot_dimension_numbers<[1], [0], [0], [1], [0, 0, 1, 1], [], []>} : vector<16x48xf32>, vector<48x1xf32>, vector<16x1xf32> -> vector<16x1xf32>
    %cst_65 = arith.constant dense<0.000000e+00> : vector<16x1xf32>
    %207 = tpu.matmul %201, %205, %cst_65 {dimension_numbers = #tpu.dot_dimension_numbers<[1], [0], [0], [1], [0, 0, 1, 1], [], []>} : vector<16x48xf32>, vector<48x1xf32>, vector<16x1xf32> -> vector<16x1xf32>
    %208 = arith.addf %206, %207 : vector<16x1xf32>
    %209 = vector.broadcast %203 : vector<1x1xf32> to vector<16x1xf32>
    %210 = arith.addf %208, %209 : vector<16x1xf32>
    %cst_66 = arith.constant dense<0.000000e+00> : vector<16x1xf32>
    %211 = tpu.matmul %68, %204, %cst_66 {dimension_numbers = #tpu.dot_dimension_numbers<[1], [0], [0], [1], [0, 0, 1, 1], [], []>} : vector<16x48xf32>, vector<48x1xf32>, vector<16x1xf32> -> vector<16x1xf32>
    %cst_67 = arith.constant dense<0.000000e+00> : vector<16x1xf32>
    %212 = tpu.matmul %169, %205, %cst_67 {dimension_numbers = #tpu.dot_dimension_numbers<[1], [0], [0], [1], [0, 0, 1, 1], [], []>} : vector<16x48xf32>, vector<48x1xf32>, vector<16x1xf32> -> vector<16x1xf32>
    %213 = arith.addf %211, %212 : vector<16x1xf32>
    %214 = vector.broadcast %203 : vector<1x1xf32> to vector<16x1xf32>
    %215 = arith.addf %213, %214 : vector<16x1xf32>
    %cst_68 = arith.constant dense<0.000000e+00> : vector<16x1xf32>
    %216 = tpu.matmul %100, %204, %cst_68 {dimension_numbers = #tpu.dot_dimension_numbers<[1], [0], [0], [1], [0, 0, 1, 1], [], []>} : vector<16x48xf32>, vector<48x1xf32>, vector<16x1xf32> -> vector<16x1xf32>
    %cst_69 = arith.constant dense<0.000000e+00> : vector<16x1xf32>
    %217 = tpu.matmul %137, %205, %cst_69 {dimension_numbers = #tpu.dot_dimension_numbers<[1], [0], [0], [1], [0, 0, 1, 1], [], []>} : vector<16x48xf32>, vector<48x1xf32>, vector<16x1xf32> -> vector<16x1xf32>
    %218 = arith.addf %216, %217 : vector<16x1xf32>
    %219 = vector.broadcast %203 : vector<1x1xf32> to vector<16x1xf32>
    %220 = arith.addf %218, %219 : vector<16x1xf32>
    %221 = arith.maximumf %210, %215 : vector<16x1xf32>
    %222 = arith.maximumf %221, %220 : vector<16x1xf32>
    %223 = arith.subf %210, %222 : vector<16x1xf32>
    %224 = math.exp %223 : vector<16x1xf32>
    %225 = arith.subf %215, %222 : vector<16x1xf32>
    %226 = math.exp %225 : vector<16x1xf32>
    %227 = arith.subf %220, %222 : vector<16x1xf32>
    %228 = math.exp %227 : vector<16x1xf32>
    %229 = arith.addf %224, %226 : vector<16x1xf32>
    %230 = arith.addf %229, %228 : vector<16x1xf32>
    %231 = tpu.reciprocal %230 {approx = true} : vector<16x1xf32> -> vector<16x1xf32>
    %cst_70 = arith.constant 0.000000e+00 : f32
    %232 = vector.broadcast %cst_70 : f32 to vector<16x32xf32>
    %233 = arith.mulf %224, %231 : vector<16x1xf32>
    %c0_71 = arith.constant 0 : index
    %c0_72 = arith.constant 0 : index
    %c0_73 = arith.constant 0 : index
    %234 = vector.load %arg1[%c0_71, %c0_72, %c0_73] : memref<3x16x32xf32, #tpu.memory_space<vmem>>, vector<1x16x32xf32>
    %235 = vector.shape_cast %234 : vector<1x16x32xf32> to vector<16x32xf32>
    %236 = vector.broadcast %233 : vector<16x1xf32> to vector<16x32xf32>
    %237 = arith.mulf %236, %235 : vector<16x32xf32>
    %238 = arith.addf %232, %237 : vector<16x32xf32>
    %239 = arith.mulf %226, %231 : vector<16x1xf32>
    %c1_74 = arith.constant 1 : index
    %c0_75 = arith.constant 0 : index
    %c0_76 = arith.constant 0 : index
    %240 = vector.load %arg1[%c1_74, %c0_75, %c0_76] : memref<3x16x32xf32, #tpu.memory_space<vmem>>, vector<1x16x32xf32>
    %241 = vector.shape_cast %240 : vector<1x16x32xf32> to vector<16x32xf32>
    %242 = vector.broadcast %239 : vector<16x1xf32> to vector<16x32xf32>
    %243 = arith.mulf %242, %241 : vector<16x32xf32>
    %244 = arith.addf %238, %243 : vector<16x32xf32>
    %245 = arith.mulf %228, %231 : vector<16x1xf32>
    %c2_77 = arith.constant 2 : index
    %c0_78 = arith.constant 0 : index
    %c0_79 = arith.constant 0 : index
    %246 = vector.load %arg1[%c2_77, %c0_78, %c0_79] : memref<3x16x32xf32, #tpu.memory_space<vmem>>, vector<1x16x32xf32>
    %247 = vector.shape_cast %246 : vector<1x16x32xf32> to vector<16x32xf32>
    %248 = vector.broadcast %245 : vector<16x1xf32> to vector<16x32xf32>
    %249 = arith.mulf %248, %247 : vector<16x32xf32>
    %250 = arith.addf %244, %249 : vector<16x32xf32>
    %c0_80 = arith.constant 0 : index
    %c0_81 = arith.constant 0 : index
    %251 = vector.load %arg10[%c0_80, %c0_81] : memref<16x16xf32, #tpu.memory_space<vmem>>, vector<16x16xf32>
    %cst_82 = arith.constant dense<0.000000e+00> : vector<16x32xf32>
    %252 = tpu.matmul %251, %250, %cst_82 {dimension_numbers = #tpu.dot_dimension_numbers<[1], [0], [0], [1], [0, 0, 1, 1], [], []>} : vector<16x16xf32>, vector<16x32xf32>, vector<16x32xf32> -> vector<16x32xf32>
    %c0_83 = arith.constant 0 : index
    %c0_84 = arith.constant 0 : index
    %253 = vector.load %arg11[%c0_83, %c0_84] : memref<32x1xf32, #tpu.memory_space<vmem>>, vector<32x1xf32>
    %cst_85 = arith.constant dense<0.000000e+00> : vector<16x1xf32>
    %254 = tpu.matmul %252, %253, %cst_85 {dimension_numbers = #tpu.dot_dimension_numbers<[1], [0], [0], [1], [0, 0, 1, 1], [], []>} : vector<16x32xf32>, vector<32x1xf32>, vector<16x1xf32> -> vector<16x1xf32>
    %c0_86 = arith.constant 0 : index
    %c0_87 = arith.constant 0 : index
    %255 = vector.load %arg12[%c0_86, %c0_87] : memref<32x1xf32, #tpu.memory_space<vmem>>, vector<32x1xf32>
    %cst_88 = arith.constant dense<0.000000e+00> : vector<16x1xf32>
    %256 = tpu.matmul %250, %255, %cst_88 {dimension_numbers = #tpu.dot_dimension_numbers<[1], [0], [0], [1], [0, 0, 1, 1], [], []>} : vector<16x32xf32>, vector<32x1xf32>, vector<16x1xf32> -> vector<16x1xf32>
    %257 = arith.addf %254, %256 : vector<16x1xf32>
    %c0_89 = arith.constant 0 : index
    %c0_90 = arith.constant 0 : index
    %258 = vector.load %arg13[%c0_89, %c0_90] : memref<1x1xf32, #tpu.memory_space<vmem>>, vector<1x1xf32>
    %259 = vector.broadcast %258 : vector<1x1xf32> to vector<16x1xf32>
    %260 = arith.addf %257, %259 : vector<16x1xf32>
    %261 = math.tanh %260 : vector<16x1xf32>
    %262 = vector.broadcast %261 : vector<16x1xf32> to vector<16x32xf32>
    %263 = arith.mulf %250, %262 : vector<16x32xf32>
    %c0_91 = arith.constant 0 : index
    %c0_92 = arith.constant 0 : index
    %264 = vector.load %arg14[%c0_91, %c0_92] : memref<16x32xf32, #tpu.memory_space<vmem>>, vector<16x32xf32>
    tpu.vector_store %arg14[%c0_91, %c0_92], %263 {strides = array<i32>} : memref<16x32xf32, #tpu.memory_space<vmem>>, vector<16x32xf32>,
    %c0_93 = arith.constant 0 : index
    %c0_94 = arith.constant 0 : index
    %265 = vector.load %arg15[%c0_93, %c0_94] : memref<16x1xf32, #tpu.memory_space<vmem>>, vector<16x1xf32>
    tpu.vector_store %arg15[%c0_93, %c0_94], %261 {strides = array<i32>} : memref<16x1xf32, #tpu.memory_space<vmem>>, vector<16x1xf32>,
    return
  }
  func.func @transform_0(%arg0: i32) -> (i32, i32, i32) {
    %c0_i32 = arith.constant 0 : i32
    %c0_i32_0 = arith.constant 0 : i32
    %c0_i32_1 = arith.constant 0 : i32
    %c0_i32_2 = arith.constant 0 : i32
    return %c0_i32, %c0_i32_0, %c0_i32_1 : i32, i32, i32
  }
  func.func @transform_1(%arg0: i32) -> (i32, i32) {
    %c0_i32 = arith.constant 0 : i32
    %c0_i32_0 = arith.constant 0 : i32
    %c0_i32_1 = arith.constant 0 : i32
    return %c0_i32, %c0_i32_0 : i32, i32
  }
  func.func @transform_2(%arg0: i32) -> (i32, i32) {
    %c0_i32 = arith.constant 0 : i32
    %c0_i32_0 = arith.constant 0 : i32
    %c0_i32_1 = arith.constant 0 : i32
    return %c0_i32, %c0_i32_0 : i32, i32
  }
  func.func @transform_3(%arg0: i32) -> (i32, i32) {
    %c0_i32 = arith.constant 0 : i32
    %c0_i32_0 = arith.constant 0 : i32
    %c0_i32_1 = arith.constant 0 : i32
    return %c0_i32, %c0_i32_0 : i32, i32
  }
  func.func @transform_4(%arg0: i32) -> (i32, i32) {
    %c0_i32 = arith.constant 0 : i32
    %c0_i32_0 = arith.constant 0 : i32
    %c0_i32_1 = arith.constant 0 : i32
    return %c0_i32, %c0_i32_0 : i32, i32
  }
  func.func @transform_5(%arg0: i32) -> (i32, i32) {
    %c0_i32 = arith.constant 0 : i32
    %c0_i32_0 = arith.constant 0 : i32
    %c0_i32_1 = arith.constant 0 : i32
    return %c0_i32, %c0_i32_0 : i32, i32
  }
  func.func @transform_6(%arg0: i32) -> (i32, i32) {
    %c0_i32 = arith.constant 0 : i32
    %c0_i32_0 = arith.constant 0 : i32
    %c0_i32_1 = arith.constant 0 : i32
    return %c0_i32, %c0_i32_0 : i32, i32
  }
  func.func @transform_7(%arg0: i32) -> (i32, i32) {
    %c0_i32 = arith.constant 0 : i32
    %c0_i32_0 = arith.constant 0 : i32
    %c0_i32_1 = arith.constant 0 : i32
    return %c0_i32, %c0_i32_0 : i32, i32
  }
  func.func @transform_8(%arg0: i32) -> (i32, i32) {
    %c0_i32 = arith.constant 0 : i32
    %c0_i32_0 = arith.constant 0 : i32
    %c0_i32_1 = arith.constant 0 : i32
    return %c0_i32, %c0_i32_0 : i32, i32
  }
  func.func @transform_9(%arg0: i32) -> (i32, i32) {
    %c0_i32 = arith.constant 0 : i32
    %c0_i32_0 = arith.constant 0 : i32
    %c0_i32_1 = arith.constant 0 : i32
    return %c0_i32, %c0_i32_0 : i32, i32
  }
  func.func @transform_10(%arg0: i32) -> (i32, i32) {
    %c0_i32 = arith.constant 0 : i32
    %c0_i32_0 = arith.constant 0 : i32
    %c0_i32_1 = arith.constant 0 : i32
    return %c0_i32, %c0_i32_0 : i32, i32
  }
  func.func @transform_11(%arg0: i32) -> (i32, i32) {
    %c0_i32 = arith.constant 0 : i32
    %c0_i32_0 = arith.constant 0 : i32
    %c0_i32_1 = arith.constant 0 : i32
    return %c0_i32, %c0_i32_0 : i32, i32
  }
  func.func @transform_12(%arg0: i32) -> (i32, i32) {
    %c0_i32 = arith.constant 0 : i32
    %c0_i32_0 = arith.constant 0 : i32
    %c0_i32_1 = arith.constant 0 : i32
    return %c0_i32, %c0_i32_0 : i32, i32
  }
  func.func @transform_13(%arg0: i32) -> (i32, i32) {
    %c0_i32 = arith.constant 0 : i32
    %c0_i32_0 = arith.constant 0 : i32
    %c0_i32_1 = arith.constant 0 : i32
    return %c0_i32, %c0_i32_0 : i32, i32
  }
  func.func @transform_14(%arg0: i32) -> (i32, i32) {
    %c0_i32 = arith.constant 0 : i32
    %c0_i32_0 = arith.constant 0 : i32
    %c0_i32_1 = arith.constant 0 : i32
    return %c0_i32, %c0_i32_0 : i32, i32
  }
}

module attributes {stable_mosaic.version = 11 : i64} {
  func.func @_mlp_kernel(%arg0: i32, %arg1: memref<2x128xf32, #tpu.memory_space<vmem>>, %arg2: memref<128x64xf32, #tpu.memory_space<vmem>>, %arg3: memref<1x64xf32, #tpu.memory_space<vmem>>, %arg4: memref<64x32xf32, #tpu.memory_space<vmem>>, %arg5: memref<1x32xf32, #tpu.memory_space<vmem>>, %arg6: memref<32x16xf32, #tpu.memory_space<vmem>>, %arg7: memref<1x16xf32, #tpu.memory_space<vmem>>, %arg8: memref<16x8xf32, #tpu.memory_space<vmem>>, %arg9: memref<1x8xf32, #tpu.memory_space<vmem>>, %arg10: memref<8x4xf32, #tpu.memory_space<vmem>>, %arg11: memref<1x4xf32, #tpu.memory_space<vmem>>, %arg12: memref<2x4xf32, #tpu.memory_space<vmem>>) attributes {dimension_semantics = [#tpu.dimension_semantics<arbitrary>], iteration_bounds = array<i64: 1>, scalar_prefetch = 0 : i64, scratch_operands = 0 : i64, tpu.core_type = #tpu.core_type<tc>, window_params = [{pipeline_mode = #tpu.pipeline_mode<synchronous>, transform_indices = @transform_0, window_bounds = array<i64: 2, 128>}, {pipeline_mode = #tpu.pipeline_mode<synchronous>, transform_indices = @transform_1, window_bounds = array<i64: 128, 64>}, {pipeline_mode = #tpu.pipeline_mode<synchronous>, transform_indices = @transform_2, window_bounds = array<i64: 1, 64>}, {pipeline_mode = #tpu.pipeline_mode<synchronous>, transform_indices = @transform_3, window_bounds = array<i64: 64, 32>}, {pipeline_mode = #tpu.pipeline_mode<synchronous>, transform_indices = @transform_4, window_bounds = array<i64: 1, 32>}, {pipeline_mode = #tpu.pipeline_mode<synchronous>, transform_indices = @transform_5, window_bounds = array<i64: 32, 16>}, {pipeline_mode = #tpu.pipeline_mode<synchronous>, transform_indices = @transform_6, window_bounds = array<i64: 1, 16>}, {pipeline_mode = #tpu.pipeline_mode<synchronous>, transform_indices = @transform_7, window_bounds = array<i64: 16, 8>}, {pipeline_mode = #tpu.pipeline_mode<synchronous>, transform_indices = @transform_8, window_bounds = array<i64: 1, 8>}, {pipeline_mode = #tpu.pipeline_mode<synchronous>, transform_indices = @transform_9, window_bounds = array<i64: 8, 4>}, {pipeline_mode = #tpu.pipeline_mode<synchronous>, transform_indices = @transform_10, window_bounds = array<i64: 1, 4>}, {pipeline_mode = #tpu.pipeline_mode<synchronous>, transform_indices = @transform_11, window_bounds = array<i64: 2, 4>}]} {
    %c0 = arith.constant 0 : index
    %c0_0 = arith.constant 0 : index
    %0 = vector.load %arg1[%c0, %c0_0] : memref<2x128xf32, #tpu.memory_space<vmem>>, vector<2x128xf32>
    %c0_1 = arith.constant 0 : index
    %c0_2 = arith.constant 0 : index
    %1 = vector.load %arg2[%c0_1, %c0_2] : memref<128x64xf32, #tpu.memory_space<vmem>>, vector<128x64xf32>
    %c0_3 = arith.constant 0 : index
    %c0_4 = arith.constant 0 : index
    %2 = vector.load %arg3[%c0_3, %c0_4] : memref<1x64xf32, #tpu.memory_space<vmem>>, vector<1x64xf32>
    %cst = arith.constant dense<0.000000e+00> : vector<2x64xf32>
    %3 = tpu.matmul %0, %1, %cst {dimension_numbers = #tpu.dot_dimension_numbers<[1], [0], [0], [1], [0, 0, 1, 1], [], []>} : vector<2x128xf32>, vector<128x64xf32>, vector<2x64xf32> -> vector<2x64xf32>
    %4 = vector.broadcast %2 : vector<1x64xf32> to vector<2x64xf32>
    %5 = arith.addf %3, %4 : vector<2x64xf32>
    %cst_5 = arith.constant 5.000000e-01 : f32
    %6 = vector.broadcast %cst_5 : f32 to vector<2x64xf32>
    %7 = arith.mulf %6, %5 : vector<2x64xf32>
    %cst_6 = arith.constant 4.471500e-02 : f32
    %8 = vector.broadcast %cst_6 : f32 to vector<2x64xf32>
    %9 = arith.mulf %8, %5 : vector<2x64xf32>
    %10 = arith.mulf %9, %5 : vector<2x64xf32>
    %11 = arith.mulf %10, %5 : vector<2x64xf32>
    %12 = arith.addf %5, %11 : vector<2x64xf32>
    %cst_7 = arith.constant 0.797884583 : f32
    %13 = vector.broadcast %cst_7 : f32 to vector<2x64xf32>
    %14 = arith.mulf %13, %12 : vector<2x64xf32>
    %15 = math.tanh %14 : vector<2x64xf32>
    %cst_8 = arith.constant 1.000000e+00 : f32
    %16 = vector.broadcast %cst_8 : f32 to vector<2x64xf32>
    %17 = arith.addf %16, %15 : vector<2x64xf32>
    %18 = arith.mulf %7, %17 : vector<2x64xf32>
    %c0_9 = arith.constant 0 : index
    %c0_10 = arith.constant 0 : index
    %19 = vector.load %arg4[%c0_9, %c0_10] : memref<64x32xf32, #tpu.memory_space<vmem>>, vector<64x32xf32>
    %c0_11 = arith.constant 0 : index
    %c0_12 = arith.constant 0 : index
    %20 = vector.load %arg5[%c0_11, %c0_12] : memref<1x32xf32, #tpu.memory_space<vmem>>, vector<1x32xf32>
    %cst_13 = arith.constant dense<0.000000e+00> : vector<2x32xf32>
    %21 = tpu.matmul %18, %19, %cst_13 {dimension_numbers = #tpu.dot_dimension_numbers<[1], [0], [0], [1], [0, 0, 1, 1], [], []>} : vector<2x64xf32>, vector<64x32xf32>, vector<2x32xf32> -> vector<2x32xf32>
    %22 = vector.broadcast %20 : vector<1x32xf32> to vector<2x32xf32>
    %23 = arith.addf %21, %22 : vector<2x32xf32>
    %cst_14 = arith.constant 5.000000e-01 : f32
    %24 = vector.broadcast %cst_14 : f32 to vector<2x32xf32>
    %25 = arith.mulf %24, %23 : vector<2x32xf32>
    %cst_15 = arith.constant 4.471500e-02 : f32
    %26 = vector.broadcast %cst_15 : f32 to vector<2x32xf32>
    %27 = arith.mulf %26, %23 : vector<2x32xf32>
    %28 = arith.mulf %27, %23 : vector<2x32xf32>
    %29 = arith.mulf %28, %23 : vector<2x32xf32>
    %30 = arith.addf %23, %29 : vector<2x32xf32>
    %cst_16 = arith.constant 0.797884583 : f32
    %31 = vector.broadcast %cst_16 : f32 to vector<2x32xf32>
    %32 = arith.mulf %31, %30 : vector<2x32xf32>
    %33 = math.tanh %32 : vector<2x32xf32>
    %cst_17 = arith.constant 1.000000e+00 : f32
    %34 = vector.broadcast %cst_17 : f32 to vector<2x32xf32>
    %35 = arith.addf %34, %33 : vector<2x32xf32>
    %36 = arith.mulf %25, %35 : vector<2x32xf32>
    %c0_18 = arith.constant 0 : index
    %c0_19 = arith.constant 0 : index
    %37 = vector.load %arg6[%c0_18, %c0_19] : memref<32x16xf32, #tpu.memory_space<vmem>>, vector<32x16xf32>
    %c0_20 = arith.constant 0 : index
    %c0_21 = arith.constant 0 : index
    %38 = vector.load %arg7[%c0_20, %c0_21] : memref<1x16xf32, #tpu.memory_space<vmem>>, vector<1x16xf32>
    %cst_22 = arith.constant dense<0.000000e+00> : vector<2x16xf32>
    %39 = tpu.matmul %36, %37, %cst_22 {dimension_numbers = #tpu.dot_dimension_numbers<[1], [0], [0], [1], [0, 0, 1, 1], [], []>} : vector<2x32xf32>, vector<32x16xf32>, vector<2x16xf32> -> vector<2x16xf32>
    %40 = vector.broadcast %38 : vector<1x16xf32> to vector<2x16xf32>
    %41 = arith.addf %39, %40 : vector<2x16xf32>
    %cst_23 = arith.constant 5.000000e-01 : f32
    %42 = vector.broadcast %cst_23 : f32 to vector<2x16xf32>
    %43 = arith.mulf %42, %41 : vector<2x16xf32>
    %cst_24 = arith.constant 4.471500e-02 : f32
    %44 = vector.broadcast %cst_24 : f32 to vector<2x16xf32>
    %45 = arith.mulf %44, %41 : vector<2x16xf32>
    %46 = arith.mulf %45, %41 : vector<2x16xf32>
    %47 = arith.mulf %46, %41 : vector<2x16xf32>
    %48 = arith.addf %41, %47 : vector<2x16xf32>
    %cst_25 = arith.constant 0.797884583 : f32
    %49 = vector.broadcast %cst_25 : f32 to vector<2x16xf32>
    %50 = arith.mulf %49, %48 : vector<2x16xf32>
    %51 = math.tanh %50 : vector<2x16xf32>
    %cst_26 = arith.constant 1.000000e+00 : f32
    %52 = vector.broadcast %cst_26 : f32 to vector<2x16xf32>
    %53 = arith.addf %52, %51 : vector<2x16xf32>
    %54 = arith.mulf %43, %53 : vector<2x16xf32>
    %c0_27 = arith.constant 0 : index
    %c0_28 = arith.constant 0 : index
    %55 = vector.load %arg8[%c0_27, %c0_28] : memref<16x8xf32, #tpu.memory_space<vmem>>, vector<16x8xf32>
    %c0_29 = arith.constant 0 : index
    %c0_30 = arith.constant 0 : index
    %56 = vector.load %arg9[%c0_29, %c0_30] : memref<1x8xf32, #tpu.memory_space<vmem>>, vector<1x8xf32>
    %cst_31 = arith.constant dense<0.000000e+00> : vector<2x8xf32>
    %57 = tpu.matmul %54, %55, %cst_31 {dimension_numbers = #tpu.dot_dimension_numbers<[1], [0], [0], [1], [0, 0, 1, 1], [], []>} : vector<2x16xf32>, vector<16x8xf32>, vector<2x8xf32> -> vector<2x8xf32>
    %58 = vector.broadcast %56 : vector<1x8xf32> to vector<2x8xf32>
    %59 = arith.addf %57, %58 : vector<2x8xf32>
    %cst_32 = arith.constant 5.000000e-01 : f32
    %60 = vector.broadcast %cst_32 : f32 to vector<2x8xf32>
    %61 = arith.mulf %60, %59 : vector<2x8xf32>
    %cst_33 = arith.constant 4.471500e-02 : f32
    %62 = vector.broadcast %cst_33 : f32 to vector<2x8xf32>
    %63 = arith.mulf %62, %59 : vector<2x8xf32>
    %64 = arith.mulf %63, %59 : vector<2x8xf32>
    %65 = arith.mulf %64, %59 : vector<2x8xf32>
    %66 = arith.addf %59, %65 : vector<2x8xf32>
    %cst_34 = arith.constant 0.797884583 : f32
    %67 = vector.broadcast %cst_34 : f32 to vector<2x8xf32>
    %68 = arith.mulf %67, %66 : vector<2x8xf32>
    %69 = math.tanh %68 : vector<2x8xf32>
    %cst_35 = arith.constant 1.000000e+00 : f32
    %70 = vector.broadcast %cst_35 : f32 to vector<2x8xf32>
    %71 = arith.addf %70, %69 : vector<2x8xf32>
    %72 = arith.mulf %61, %71 : vector<2x8xf32>
    %c0_36 = arith.constant 0 : index
    %c0_37 = arith.constant 0 : index
    %73 = vector.load %arg10[%c0_36, %c0_37] : memref<8x4xf32, #tpu.memory_space<vmem>>, vector<8x4xf32>
    %c0_38 = arith.constant 0 : index
    %c0_39 = arith.constant 0 : index
    %74 = vector.load %arg11[%c0_38, %c0_39] : memref<1x4xf32, #tpu.memory_space<vmem>>, vector<1x4xf32>
    %cst_40 = arith.constant dense<0.000000e+00> : vector<2x4xf32>
    %75 = tpu.matmul %72, %73, %cst_40 {dimension_numbers = #tpu.dot_dimension_numbers<[1], [0], [0], [1], [0, 0, 1, 1], [], []>} : vector<2x8xf32>, vector<8x4xf32>, vector<2x4xf32> -> vector<2x4xf32>
    %76 = vector.broadcast %74 : vector<1x4xf32> to vector<2x4xf32>
    %77 = arith.addf %75, %76 : vector<2x4xf32>
    %c0_41 = arith.constant 0 : index
    %c0_42 = arith.constant 0 : index
    %78 = vector.load %arg12[%c0_41, %c0_42] : memref<2x4xf32, #tpu.memory_space<vmem>>, vector<2x4xf32>
    tpu.vector_store %arg12[%c0_41, %c0_42], %77 {strides = array<i32>} : memref<2x4xf32, #tpu.memory_space<vmem>>, vector<2x4xf32>,
    return
  }
  func.func @transform_0(%arg0: i32) -> (i32, i32) {
    %c0_i32 = arith.constant 0 : i32
    %c0_i32_0 = arith.constant 0 : i32
    %c0_i32_1 = arith.constant 0 : i32
    return %c0_i32, %c0_i32_0 : i32, i32
  }
  func.func @transform_1(%arg0: i32) -> (i32, i32) {
    %c0_i32 = arith.constant 0 : i32
    %c0_i32_0 = arith.constant 0 : i32
    %c0_i32_1 = arith.constant 0 : i32
    return %c0_i32, %c0_i32_0 : i32, i32
  }
  func.func @transform_2(%arg0: i32) -> (i32, i32) {
    %c0_i32 = arith.constant 0 : i32
    %c0_i32_0 = arith.constant 0 : i32
    %c0_i32_1 = arith.constant 0 : i32
    return %c0_i32, %c0_i32_0 : i32, i32
  }
  func.func @transform_3(%arg0: i32) -> (i32, i32) {
    %c0_i32 = arith.constant 0 : i32
    %c0_i32_0 = arith.constant 0 : i32
    %c0_i32_1 = arith.constant 0 : i32
    return %c0_i32, %c0_i32_0 : i32, i32
  }
  func.func @transform_4(%arg0: i32) -> (i32, i32) {
    %c0_i32 = arith.constant 0 : i32
    %c0_i32_0 = arith.constant 0 : i32
    %c0_i32_1 = arith.constant 0 : i32
    return %c0_i32, %c0_i32_0 : i32, i32
  }
  func.func @transform_5(%arg0: i32) -> (i32, i32) {
    %c0_i32 = arith.constant 0 : i32
    %c0_i32_0 = arith.constant 0 : i32
    %c0_i32_1 = arith.constant 0 : i32
    return %c0_i32, %c0_i32_0 : i32, i32
  }
  func.func @transform_6(%arg0: i32) -> (i32, i32) {
    %c0_i32 = arith.constant 0 : i32
    %c0_i32_0 = arith.constant 0 : i32
    %c0_i32_1 = arith.constant 0 : i32
    return %c0_i32, %c0_i32_0 : i32, i32
  }
  func.func @transform_7(%arg0: i32) -> (i32, i32) {
    %c0_i32 = arith.constant 0 : i32
    %c0_i32_0 = arith.constant 0 : i32
    %c0_i32_1 = arith.constant 0 : i32
    return %c0_i32, %c0_i32_0 : i32, i32
  }
  func.func @transform_8(%arg0: i32) -> (i32, i32) {
    %c0_i32 = arith.constant 0 : i32
    %c0_i32_0 = arith.constant 0 : i32
    %c0_i32_1 = arith.constant 0 : i32
    return %c0_i32, %c0_i32_0 : i32, i32
  }
  func.func @transform_9(%arg0: i32) -> (i32, i32) {
    %c0_i32 = arith.constant 0 : i32
    %c0_i32_0 = arith.constant 0 : i32
    %c0_i32_1 = arith.constant 0 : i32
    return %c0_i32, %c0_i32_0 : i32, i32
  }
  func.func @transform_10(%arg0: i32) -> (i32, i32) {
    %c0_i32 = arith.constant 0 : i32
    %c0_i32_0 = arith.constant 0 : i32
    %c0_i32_1 = arith.constant 0 : i32
    return %c0_i32, %c0_i32_0 : i32, i32
  }
  func.func @transform_11(%arg0: i32) -> (i32, i32) {
    %c0_i32 = arith.constant 0 : i32
    %c0_i32_0 = arith.constant 0 : i32
    %c0_i32_1 = arith.constant 0 : i32
    return %c0_i32, %c0_i32_0 : i32, i32
  }
}

</mosaic_0001>

<llo_original>
// kernel: hgt_forward.7
$region0: #{hgt_forward.7}
  #allocation0 [shape = 'u32[]', space=smem, size = 0x4, offset = 0x4, fixed_abs, tag = 'smem constant byte address 0x4 - core index']
  #allocation1 [shape = 'u32[144,128]{1,0:T(1,128)}', space=vmem, size = 0x12000, scoped, tag = 'internal scratch']
  %s0 = inlined_call_operand.vmem [shape: f32[2,8,32], index: 0, kind: input, shape index: {}, may-alias: {0,1}]
  %s1 = inlined_call_operand.vmem [shape: f32[2,8,32], index: 1, kind: input, shape index: {}, may-alias: {0,1}]
  %s2 = inlined_call_operand.vmem [shape: f32[2,32,32], index: 2, kind: input, shape index: {}]
  %s3 = inlined_call_operand.vmem [shape: f32[2,1,32], index: 3, kind: input, shape index: {}]
  %s4 = inlined_call_operand.vmem [shape: f32[2,32,32], index: 4, kind: input, shape index: {}]
  %s5 = inlined_call_operand.vmem [shape: f32[2,1,32], index: 5, kind: input, shape index: {}]
  %s6 = inlined_call_operand.vmem [shape: f32[2,32,32], index: 6, kind: input, shape index: {}]
  %s7 = inlined_call_operand.vmem [shape: f32[2,1,32], index: 7, kind: input, shape index: {}]
  %s8 = inlined_call_operand.vmem [shape: f32[2,8,8], index: 8, kind: input, shape index: {}]
  %s9 = inlined_call_operand.vmem [shape: f32[2,32,32], index: 9, kind: input, shape index: {}]
  %s10 = inlined_call_operand.vmem [shape: f32[2,1,32], index: 10, kind: input, shape index: {}]
  %s11 = inlined_call_operand.vmem [shape: f32[2,1,1], index: 11, kind: input, shape index: {}]
  %s12 = inlined_call_operand.vmem [shape: f32[2,8,32], index: 12, kind: output, shape index: {}]
  %s13 = sld [smem:[#allocation0]]
  $region81: #{hgt_forward.7} parent=0
    _
  %s15 = ssub.s32 1, %s13
  %s16 = scalar_select 0, %s15, %s13
  loop: start=0, step=1, limit=4
  $region2: #{hgt_forward.7} parent=0 // loop_pre_header
    _
  $region3: #{hgt_forward.7} parent=0 // loop_header
    %s18 = sphi 0, %s22
    %p19 = scmp.ge.s32.totalorder %s18, 4
    %s28 = sphi 0, %s30
    %s31 = sphi 0, %s28
    %s32 = sphi 0, %s31
    %s48 = sphi 0, %s32
    %s56 = sphi 0, %s58
    %s59 = sphi 0, %s56
    %s60 = sphi 0, %s59
    %s76 = sphi 0, %s60
    %s82 = sphi 0, %s84
    %s85 = sphi 0, %s82
    %s86 = sphi 0, %s85
    %s102 = sphi 0, %s86
    %s108 = sphi 0, %s110
    %s111 = sphi 0, %s108
    %s112 = sphi 0, %s111
    %s128 = sphi 0, %s112
    %s134 = sphi 0, %s136
    %s137 = sphi 0, %s134
    %s138 = sphi 0, %s137
    %s154 = sphi 0, %s138
    %s160 = sphi 0, %s162
    %s163 = sphi 0, %s160
    %s164 = sphi 0, %s163
    %s180 = sphi 0, %s164
    %s186 = sphi 0, %s188
    %s189 = sphi 0, %s186
    %s190 = sphi 0, %s189
    %s206 = sphi 0, %s190
    %s212 = sphi 0, %s214
    %s215 = sphi 0, %s212
    %s216 = sphi 0, %s215
    %s232 = sphi 0, %s216
    %s238 = sphi 0, %s240
    %s241 = sphi 0, %s238
    %s242 = sphi 0, %s241
    %s258 = sphi 0, %s242
    %s264 = sphi 0, %s266
    %s267 = sphi 0, %s264
    %s268 = sphi 0, %s267
    %s284 = sphi 0, %s268
    %s290 = sphi 0, %s292
    %s293 = sphi 0, %s290
    %s294 = sphi 0, %s293
    %s310 = sphi 0, %s294
    %s316 = sphi 0, %s318
    %s319 = sphi 0, %s316
    %s320 = sphi 0, %s319
    %s336 = sphi 0, %s320
    %s342 = sphi 0, %s344
    %s345 = sphi 0, %s342
    %s346 = sphi 0, %s345
    %s362 = sphi 0, %s346
  $region4: #{hgt_forward.7} parent=0 // loop_header_branch
    %21 = sbr.rel (%p19) target = $region8
  $region5: #{hgt_forward.7} parent=0 // loop_body
    %s23 = ssub.s32 %s18, 1
    %s24 = ssub.s32 %s18, 2
    %s25 = sadd.s32 %s18, 1
    %s26 = ssub.s32 %s18, %s25
    %p27 = scmp.eq.s32.totalorder %s26, 0
    %s29 = sadd.s32 %s28, 1
    %s30 = scalar_select %p27, %s28, %s29
    %p33 = pneg %p27
    %p34 = scmp.eq.s32.totalorder %s18, 1
    %p35 = por %p33, %p34
    %p36 = scmp.ne.s32.totalorder %s28, %s31
    %p37 = scmp.eq.s32.totalorder %s18, 0
    %p38 = por %p36, %p37
    %p39 = scmp.ne.s32.totalorder %s28, %s31
    %p40 = scmp.eq.s32.totalorder %s23, 1
    %p41 = por %p39, %p40
    %p42 = scmp.ne.s32.totalorder %s31, %s32
    %p43 = scmp.eq.s32.totalorder %s23, 0
    %p44 = por %p42, %p43
    %p45 = scmp.ne.s32.totalorder %s31, %s32
    %p46 = scmp.eq.s32.totalorder %s24, 1
    %p47 = por %p45, %p46
    %p49 = scmp.ne.s32.totalorder %s32, %s48
    %p50 = scmp.eq.s32.totalorder %s24, 0
    %p51 = por %p49, %p50
    %s52 = ssub.s32 1, %s18
    %s53 = ssub.s32 1, %s25
    %s54 = ssub.s32 %s52, %s53
    %p55 = scmp.eq.s32.totalorder %s54, 0
    %s57 = sadd.s32 %s56, 1
    %s58 = scalar_select %p55, %s56, %s57
    %p61 = pneg %p55
    %p62 = scmp.eq.s32.totalorder %s18, 1
    %p63 = por %p61, %p62
    %p64 = scmp.ne.s32.totalorder %s56, %s59
    %p65 = scmp.eq.s32.totalorder %s18, 0
    %p66 = por %p64, %p65
    %p67 = scmp.ne.s32.totalorder %s56, %s59
    %p68 = scmp.eq.s32.totalorder %s23, 1
    %p69 = por %p67, %p68
    %p70 = scmp.ne.s32.totalorder %s59, %s60
    %p71 = scmp.eq.s32.totalorder %s23, 0
    %p72 = por %p70, %p71
    %p73 = scmp.ne.s32.totalorder %s59, %s60
    %p74 = scmp.eq.s32.totalorder %s24, 1
    %p75 = por %p73, %p74
    %p77 = scmp.ne.s32.totalorder %s60, %s76
    %p78 = scmp.eq.s32.totalorder %s24, 0
    %p79 = por %p77, %p78
    %s80 = ssub.s32 %s18, %s25
    %p81 = scmp.eq.s32.totalorder %s80, 0
    %s83 = sadd.s32 %s82, 1
    %s84 = scalar_select %p81, %s82, %s83
    %p87 = pneg %p81
    %p88 = scmp.eq.s32.totalorder %s18, 1
    %p89 = por %p87, %p88
    %p90 = scmp.ne.s32.totalorder %s82, %s85
    %p91 = scmp.eq.s32.totalorder %s18, 0
    %p92 = por %p90, %p91
    %p93 = scmp.ne.s32.totalorder %s82, %s85
    %p94 = scmp.eq.s32.totalorder %s23, 1
    %p95 = por %p93, %p94
    %p96 = scmp.ne.s32.totalorder %s85, %s86
    %p97 = scmp.eq.s32.totalorder %s23, 0
    %p98 = por %p96, %p97
    %p99 = scmp.ne.s32.totalorder %s85, %s86
    %p100 = scmp.eq.s32.totalorder %s24, 1
    %p101 = por %p99, %p100
    %p103 = scmp.ne.s32.totalorder %s86, %s102
    %p104 = scmp.eq.s32.totalorder %s24, 0
    %p105 = por %p103, %p104
    %s106 = ssub.s32 %s18, %s25
    %p107 = scmp.eq.s32.totalorder %s106, 0
    %s109 = sadd.s32 %s108, 1
    %s110 = scalar_select %p107, %s108, %s109
    %p113 = pneg %p107
    %p114 = scmp.eq.s32.totalorder %s18, 1
    %p115 = por %p113, %p114
    %p116 = scmp.ne.s32.totalorder %s108, %s111
    %p117 = scmp.eq.s32.totalorder %s18, 0
    %p118 = por %p116, %p117
    %p119 = scmp.ne.s32.totalorder %s108, %s111
    %p120 = scmp.eq.s32.totalorder %s23, 1
    %p121 = por %p119, %p120
    %p122 = scmp.ne.s32.totalorder %s111, %s112
    %p123 = scmp.eq.s32.totalorder %s23, 0
    %p124 = por %p122, %p123
    %p125 = scmp.ne.s32.totalorder %s111, %s112
    %p126 = scmp.eq.s32.totalorder %s24, 1
    %p127 = por %p125, %p126
    %p129 = scmp.ne.s32.totalorder %s112, %s128
    %p130 = scmp.eq.s32.totalorder %s24, 0
    %p131 = por %p129, %p130
    %s132 = ssub.s32 %s18, %s25
    %p133 = scmp.eq.s32.totalorder %s132, 0
    %s135 = sadd.s32 %s134, 1
    %s136 = scalar_select %p133, %s134, %s135
    %p139 = pneg %p133
    %p140 = scmp.eq.s32.totalorder %s18, 1
    %p141 = por %p139, %p140
    %p142 = scmp.ne.s32.totalorder %s134, %s137
    %p143 = scmp.eq.s32.totalorder %s18, 0
    %p144 = por %p142, %p143
    %p145 = scmp.ne.s32.totalorder %s134, %s137
    %p146 = scmp.eq.s32.totalorder %s23, 1
    %p147 = por %p145, %p146
    %p148 = scmp.ne.s32.totalorder %s137, %s138
    %p149 = scmp.eq.s32.totalorder %s23, 0
    %p150 = por %p148, %p149
    %p151 = scmp.ne.s32.totalorder %s137, %s138
    %p152 = scmp.eq.s32.totalorder %s24, 1
    %p153 = por %p151, %p152
    %p155 = scmp.ne.s32.totalorder %s138, %s154
    %p156 = scmp.eq.s32.totalorder %s24, 0
    %p157 = por %p155, %p156
    %s158 = ssub.s32 %s18, %s25
    %p159 = scmp.eq.s32.totalorder %s158, 0
    %s161 = sadd.s32 %s160, 1
    %s162 = scalar_select %p159, %s160, %s161
    %p165 = pneg %p159
    %p166 = scmp.eq.s32.totalorder %s18, 1
    %p167 = por %p165, %p166
    %p168 = scmp.ne.s32.totalorder %s160, %s163
    %p169 = scmp.eq.s32.totalorder %s18, 0
    %p170 = por %p168, %p169
    %p171 = scmp.ne.s32.totalorder %s160, %s163
    %p172 = scmp.eq.s32.totalorder %s23, 1
    %p173 = por %p171, %p172
    %p174 = scmp.ne.s32.totalorder %s163, %s164
    %p175 = scmp.eq.s32.totalorder %s23, 0
    %p176 = por %p174, %p175
    %p177 = scmp.ne.s32.totalorder %s163, %s164
    %p178 = scmp.eq.s32.totalorder %s24, 1
    %p179 = por %p177, %p178
    %p181 = scmp.ne.s32.totalorder %s164, %s180
    %p182 = scmp.eq.s32.totalorder %s24, 0
    %p183 = por %p181, %p182
    %s184 = ssub.s32 %s18, %s25
    %p185 = scmp.eq.s32.totalorder %s184, 0
    %s187 = sadd.s32 %s186, 1
    %s188 = scalar_select %p185, %s186, %s187
    %p191 = pneg %p185
    %p192 = scmp.eq.s32.totalorder %s18, 1
    %p193 = por %p191, %p192
    %p194 = scmp.ne.s32.totalorder %s186, %s189
    %p195 = scmp.eq.s32.totalorder %s18, 0
    %p196 = por %p194, %p195
    %p197 = scmp.ne.s32.totalorder %s186, %s189
    %p198 = scmp.eq.s32.totalorder %s23, 1
    %p199 = por %p197, %p198
    %p200 = scmp.ne.s32.totalorder %s189, %s190
    %p201 = scmp.eq.s32.totalorder %s23, 0
    %p202 = por %p200, %p201
    %p203 = scmp.ne.s32.totalorder %s189, %s190
    %p204 = scmp.eq.s32.totalorder %s24, 1
    %p205 = por %p203, %p204
    %p207 = scmp.ne.s32.totalorder %s190, %s206
    %p208 = scmp.eq.s32.totalorder %s24, 0
    %p209 = por %p207, %p208
    %s210 = ssub.s32 %s18, %s25
    %p211 = scmp.eq.s32.totalorder %s210, 0
    %s213 = sadd.s32 %s212, 1
    %s214 = scalar_select %p211, %s212, %s213
    %p217 = pneg %p211
    %p218 = scmp.eq.s32.totalorder %s18, 1
    %p219 = por %p217, %p218
    %p220 = scmp.ne.s32.totalorder %s212, %s215
    %p221 = scmp.eq.s32.totalorder %s18, 0
    %p222 = por %p220, %p221
    %p223 = scmp.ne.s32.totalorder %s212, %s215
    %p224 = scmp.eq.s32.totalorder %s23, 1
    %p225 = por %p223, %p224
    %p226 = scmp.ne.s32.totalorder %s215, %s216
    %p227 = scmp.eq.s32.totalorder %s23, 0
    %p228 = por %p226, %p227
    %p229 = scmp.ne.s32.totalorder %s215, %s216
    %p230 = scmp.eq.s32.totalorder %s24, 1
    %p231 = por %p229, %p230
    %p233 = scmp.ne.s32.totalorder %s216, %s232
    %p234 = scmp.eq.s32.totalorder %s24, 0
    %p235 = por %p233, %p234
    %s236 = ssub.s32 %s18, %s25
    %p237 = scmp.eq.s32.totalorder %s236, 0
    %s239 = sadd.s32 %s238, 1
    %s240 = scalar_select %p237, %s238, %s239
    %p243 = pneg %p237
    %p244 = scmp.eq.s32.totalorder %s18, 1
    %p245 = por %p243, %p244
    %p246 = scmp.ne.s32.totalorder %s238, %s241
    %p247 = scmp.eq.s32.totalorder %s18, 0
    %p248 = por %p246, %p247
    %p249 = scmp.ne.s32.totalorder %s238, %s241
    %p250 = scmp.eq.s32.totalorder %s23, 1
    %p251 = por %p249, %p250
    %p252 = scmp.ne.s32.totalorder %s241, %s242
    %p253 = scmp.eq.s32.totalorder %s23, 0
    %p254 = por %p252, %p253
    %p255 = scmp.ne.s32.totalorder %s241, %s242
    %p256 = scmp.eq.s32.totalorder %s24, 1
    %p257 = por %p255, %p256
    %p259 = scmp.ne.s32.totalorder %s242, %s258
    %p260 = scmp.eq.s32.totalorder %s24, 0
    %p261 = por %p259, %p260
    %s262 = ssub.s32 %s18, %s25
    %p263 = scmp.eq.s32.totalorder %s262, 0
    %s265 = sadd.s32 %s264, 1
    %s266 = scalar_select %p263, %s264, %s265
    %p269 = pneg %p263
    %p270 = scmp.eq.s32.totalorder %s18, 1
    %p271 = por %p269, %p270
    %p272 = scmp.ne.s32.totalorder %s264, %s267
    %p273 = scmp.eq.s32.totalorder %s18, 0
    %p274 = por %p272, %p273
    %p275 = scmp.ne.s32.totalorder %s264, %s267
    %p276 = scmp.eq.s32.totalorder %s23, 1
    %p277 = por %p275, %p276
    %p278 = scmp.ne.s32.totalorder %s267, %s268
    %p279 = scmp.eq.s32.totalorder %s23, 0
    %p280 = por %p278, %p279
    %p281 = scmp.ne.s32.totalorder %s267, %s268
    %p282 = scmp.eq.s32.totalorder %s24, 1
    %p283 = por %p281, %p282
    %p285 = scmp.ne.s32.totalorder %s268, %s284
    %p286 = scmp.eq.s32.totalorder %s24, 0
    %p287 = por %p285, %p286
    %s288 = ssub.s32 %s18, %s25
    %p289 = scmp.eq.s32.totalorder %s288, 0
    %s291 = sadd.s32 %s290, 1
    %s292 = scalar_select %p289, %s290, %s291
    %p295 = pneg %p289
    %p296 = scmp.eq.s32.totalorder %s18, 1
    %p297 = por %p295, %p296
    %p298 = scmp.ne.s32.totalorder %s290, %s293
    %p299 = scmp.eq.s32.totalorder %s18, 0
    %p300 = por %p298, %p299
    %p301 = scmp.ne.s32.totalorder %s290, %s293
    %p302 = scmp.eq.s32.totalorder %s23, 1
    %p303 = por %p301, %p302
    %p304 = scmp.ne.s32.totalorder %s293, %s294
    %p305 = scmp.eq.s32.totalorder %s23, 0
    %p306 = por %p304, %p305
    %p307 = scmp.ne.s32.totalorder %s293, %s294
    %p308 = scmp.eq.s32.totalorder %s24, 1
    %p309 = por %p307, %p308
    %p311 = scmp.ne.s32.totalorder %s294, %s310
    %p312 = scmp.eq.s32.totalorder %s24, 0
    %p313 = por %p311, %p312
    %s314 = ssub.s32 %s18, %s25
    %p315 = scmp.eq.s32.totalorder %s314, 0
    %s317 = sadd.s32 %s316, 1
    %s318 = scalar_select %p315, %s316, %s317
    %p321 = pneg %p315
    %p322 = scmp.eq.s32.totalorder %s18, 1
    %p323 = por %p321, %p322
    %p324 = scmp.ne.s32.totalorder %s316, %s319
    %p325 = scmp.eq.s32.totalorder %s18, 0
    %p326 = por %p324, %p325
    %p327 = scmp.ne.s32.totalorder %s316, %s319
    %p328 = scmp.eq.s32.totalorder %s23, 1
    %p329 = por %p327, %p328
    %p330 = scmp.ne.s32.totalorder %s319, %s320
    %p331 = scmp.eq.s32.totalorder %s23, 0
    %p332 = por %p330, %p331
    %p333 = scmp.ne.s32.totalorder %s319, %s320
    %p334 = scmp.eq.s32.totalorder %s24, 1
    %p335 = por %p333, %p334
    %p337 = scmp.ne.s32.totalorder %s320, %s336
    %p338 = scmp.eq.s32.totalorder %s24, 0
    %p339 = por %p337, %p338
    %s340 = ssub.s32 %s18, %s25
    %p341 = scmp.eq.s32.totalorder %s340, 0
    %s343 = sadd.s32 %s342, 1
    %s344 = scalar_select %p341, %s342, %s343
    %p347 = pneg %p341
    %p348 = scmp.eq.s32.totalorder %s18, 1
    %p349 = por %p347, %p348
    %p350 = scmp.ne.s32.totalorder %s342, %s345
    %p351 = scmp.eq.s32.totalorder %s18, 0
    %p352 = por %p350, %p351
    %p353 = scmp.ne.s32.totalorder %s342, %s345
    %p354 = scmp.eq.s32.totalorder %s23, 1
    %p355 = por %p353, %p354
    %p356 = scmp.ne.s32.totalorder %s345, %s346
    %p357 = scmp.eq.s32.totalorder %s23, 0
    %p358 = por %p356, %p357
    %p359 = scmp.ne.s32.totalorder %s345, %s346
    %p360 = scmp.eq.s32.totalorder %s24, 1
    %p361 = por %p359, %p360
    %p363 = scmp.ne.s32.totalorder %s346, %s362
    %p364 = scmp.eq.s32.totalorder %s24, 0
    %p365 = por %p363, %p364
    %p366 = scmp.le.s32.totalorder 1, %s18
    %p367 = scmp.lt.s32.totalorder %s18, 3
    %p368 = pnand %p366, %p367
    %p369 = pneg %p368
    // Predicated region
    $region9: #{hgt_forward.7} parent=5 // pred_check
      _
    $region10: #{hgt_forward.7} parent=5 // pred_check_branch
      %371 = sbr.rel (%p368) target = $region12
    $region11: #{hgt_forward.7} parent=5 // pred_region
      %s372 = ssub.s32 %s18, 1
    $region12: #{hgt_forward.7} parent=5 // pred_fallthru
      _
    %p373 = scmp.lt.s32.totalorder %s18, 2
    // Predicated region
    $region13: #{hgt_forward.7} parent=5 // pred_check
      %p374 = pneg %p373
    $region14: #{hgt_forward.7} parent=5 // pred_check_branch
      %376 = sbr.rel (%p374) target = $region16
    $region15: #{hgt_forward.7} parent=5 // pred_region
      // Predicated region
      $region17: #{hgt_forward.7} parent=15 // pred_check
        %p377 = pneg %p38
      $region18: #{hgt_forward.7} parent=15 // pred_check_branch
        %379 = sbr.rel (%p377) target = $region20
      $region19: #{hgt_forward.7} parent=15 // pred_region
        %p380 = scmp.lt.s32.totalorder %s18, 1
        %s381 = scalar_select %p380, %s18, 1
        %s382 = smul.addr %s381, 8
        %s383 = scalar_lea.vmem %s0, %s382
      $region20: #{hgt_forward.7} parent=15 // pred_fallthru
        _
      // Predicated region
      $region21: #{hgt_forward.7} parent=15 // pred_check
        %p384 = pneg %p66
      $region22: #{hgt_forward.7} parent=15 // pred_check_branch
        %386 = sbr.rel (%p384) target = $region24
      $region23: #{hgt_forward.7} parent=15 // pred_region
        %s387 = ssub.s32 1, %s18
        %p388 = scmp.lt.s32.totalorder %s387, 1
        %s389 = scalar_select %p388, %s387, 1
        %s390 = smul.addr %s389, 8
        %s391 = scalar_lea.vmem %s1, %s390
        %s392 = ssub.s32 1, %s18
      $region24: #{hgt_forward.7} parent=15 // pred_fallthru
        _
      // Predicated region
      $region25: #{hgt_forward.7} parent=15 // pred_check
        %p393 = pneg %p92
      $region26: #{hgt_forward.7} parent=15 // pred_check_branch
        %395 = sbr.rel (%p393) target = $region28
      $region27: #{hgt_forward.7} parent=15 // pred_region
        %p396 = scmp.lt.s32.totalorder %s18, 1
        %s397 = scalar_select %p396, %s18, 1
        %s398 = smul.addr %s397, 4
        %s399 = smul.addr %s398, 8
        %s400 = scalar_lea.vmem %s2, %s399
      $region28: #{hgt_forward.7} parent=15 // pred_fallthru
        _
      // Predicated region
      $region29: #{hgt_forward.7} parent=15 // pred_check
        %p401 = pneg %p118
      $region30: #{hgt_forward.7} parent=15 // pred_check_branch
        %403 = sbr.rel (%p401) target = $region32
      $region31: #{hgt_forward.7} parent=15 // pred_region
        %p404 = scmp.lt.s32.totalorder %s18, 1
        %s405 = scalar_select %p404, %s18, 1
        %s406 = scalar_lea.vmem %s3, %s405
      $region32: #{hgt_forward.7} parent=15 // pred_fallthru
        _
      // Predicated region
      $region33: #{hgt_forward.7} parent=15 // pred_check
        %p407 = pneg %p144
      $region34: #{hgt_forward.7} parent=15 // pred_check_branch
        %409 = sbr.rel (%p407) target = $region36
      $region35: #{hgt_forward.7} parent=15 // pred_region
        %p410 = scmp.lt.s32.totalorder %s18, 1
        %s411 = scalar_select %p410, %s18, 1
        %s412 = smul.addr %s411, 4
        %s413 = smul.addr %s412, 8
        %s414 = scalar_lea.vmem %s4, %s413
      $region36: #{hgt_forward.7} parent=15 // pred_fallthru
        _
      // Predicated region
      $region37: #{hgt_forward.7} parent=15 // pred_check
        %p415 = pneg %p170
      $region38: #{hgt_forward.7} parent=15 // pred_check_branch
        %417 = sbr.rel (%p415) target = $region40
      $region39: #{hgt_forward.7} parent=15 // pred_region
        %p418 = scmp.lt.s32.totalorder %s18, 1
        %s419 = scalar_select %p418, %s18, 1
        %s420 = scalar_lea.vmem %s5, %s419
      $region40: #{hgt_forward.7} parent=15 // pred_fallthru
        _
      // Predicated region
      $region41: #{hgt_forward.7} parent=15 // pred_check
        %p421 = pneg %p196
      $region42: #{hgt_forward.7} parent=15 // pred_check_branch
        %423 = sbr.rel (%p421) target = $region44
      $region43: #{hgt_forward.7} parent=15 // pred_region
        %p424 = scmp.lt.s32.totalorder %s18, 1
        %s425 = scalar_select %p424, %s18, 1
        %s426 = smul.addr %s425, 4
        %s427 = smul.addr %s426, 8
        %s428 = scalar_lea.vmem %s6, %s427
      $region44: #{hgt_forward.7} parent=15 // pred_fallthru
        _
      // Predicated region
      $region45: #{hgt_forward.7} parent=15 // pred_check
        %p429 = pneg %p222
      $region46: #{hgt_forward.7} parent=15 // pred_check_branch
        %431 = sbr.rel (%p429) target = $region48
      $region47: #{hgt_forward.7} parent=15 // pred_region
        %p432 = scmp.lt.s32.totalorder %s18, 1
        %s433 = scalar_select %p432, %s18, 1
        %s434 = scalar_lea.vmem %s7, %s433
      $region48: #{hgt_forward.7} parent=15 // pred_fallthru
        _
      // Predicated region
      $region49: #{hgt_forward.7} parent=15 // pred_check
        %p435 = pneg %p248
      $region50: #{hgt_forward.7} parent=15 // pred_check_branch
        %437 = sbr.rel (%p435) target = $region52
      $region51: #{hgt_forward.7} parent=15 // pred_region
        %p438 = scmp.lt.s32.totalorder %s18, 1
        %s439 = scalar_select %p438, %s18, 1
        %s440 = smul.addr %s439, 8
        %s441 = scalar_lea.vmem %s8, %s440
      $region52: #{hgt_forward.7} parent=15 // pred_fallthru
        _
      // Predicated region
      $region53: #{hgt_forward.7} parent=15 // pred_check
        %p442 = pneg %p274
      $region54: #{hgt_forward.7} parent=15 // pred_check_branch
        %444 = sbr.rel (%p442) target = $region56
      $region55: #{hgt_forward.7} parent=15 // pred_region
        %p445 = scmp.lt.s32.totalorder %s18, 1
        %s446 = scalar_select %p445, %s18, 1
        %s447 = smul.addr %s446, 4
        %s448 = smul.addr %s447, 8
        %s449 = scalar_lea.vmem %s9, %s448
      $region56: #{hgt_forward.7} parent=15 // pred_fallthru
        _
      // Predicated region
      $region57: #{hgt_forward.7} parent=15 // pred_check
        %p450 = pneg %p300
      $region58: #{hgt_forward.7} parent=15 // pred_check_branch
        %452 = sbr.rel (%p450) target = $region60
      $region59: #{hgt_forward.7} parent=15 // pred_region
        %p453 = scmp.lt.s32.totalorder %s18, 1
        %s454 = scalar_select %p453, %s18, 1
        %s455 = scalar_lea.vmem %s10, %s454
      $region60: #{hgt_forward.7} parent=15 // pred_fallthru
        _
      // Predicated region
      $region61: #{hgt_forward.7} parent=15 // pred_check
        %p456 = pneg %p326
      $region62: #{hgt_forward.7} parent=15 // pred_check_branch
        %458 = sbr.rel (%p456) target = $region64
      $region63: #{hgt_forward.7} parent=15 // pred_region
        %p459 = scmp.lt.s32.totalorder %s18, 1
        %s460 = scalar_select %p459, %s18, 1
        %s461 = scalar_lea.vmem %s11, %s460
      $region64: #{hgt_forward.7} parent=15 // pred_fallthru
        _
    $region16: #{hgt_forward.7} parent=5 // pred_fallthru
      _
    %p462 = scmp.le.s32.totalorder 1, %s18
    %p463 = scmp.lt.s32.totalorder %s18, 3
    %p464 = pnand %p462, %p463
    %p465 = pneg %p464
    // Predicated region
    $region65: #{hgt_forward.7} parent=5 // pred_check
      _
    $region66: #{hgt_forward.7} parent=5 // pred_check_branch
      %467 = sbr.rel (%p464) target = $region68
    $region67: #{hgt_forward.7} parent=5 // pred_region
      %s468 = ssub.s32 %s18, 1
      %p469 = scmp.lt.s32.totalorder %s23, 1
      %s470 = scalar_select %p469, %s23, 1
      %s471 = smul.addr %s470, 8
      %s472 = scalar_lea.vmem %s0, %s471
      %p473 = pneg %p44
      %p474 = pneg %p41
      %s475 = ssub.s32 1, %s23
      %p476 = scmp.lt.s32.totalorder %s475, 1
      %s477 = scalar_select %p476, %s475, 1
      %s478 = smul.addr %s477, 8
      %s479 = scalar_lea.vmem %s1, %s478
      %p480 = pneg %p72
      %p481 = pneg %p69
      %p482 = scmp.lt.s32.totalorder %s23, 1
      %s483 = scalar_select %p482, %s23, 1
      %s484 = smul.addr %s483, 4
      %s485 = smul.addr %s484, 8
      %s486 = scalar_lea.vmem %s2, %s485
      %p487 = pneg %p98
      %p488 = pneg %p95
      %p489 = scmp.lt.s32.totalorder %s23, 1
      %s490 = scalar_select %p489, %s23, 1
      %s491 = scalar_lea.vmem %s3, %s490
      %p492 = pneg %p124
      %p493 = pneg %p121
      %p494 = scmp.lt.s32.totalorder %s23, 1
      %s495 = scalar_select %p494, %s23, 1
      %s496 = smul.addr %s495, 4
      %s497 = smul.addr %s496, 8
      %s498 = scalar_lea.vmem %s4, %s497
      %p499 = pneg %p150
      %p500 = pneg %p147
      %p501 = scmp.lt.s32.totalorder %s23, 1
      %s502 = scalar_select %p501, %s23, 1
      %s503 = scalar_lea.vmem %s5, %s502
      %p504 = pneg %p176
      %p505 = pneg %p173
      %p506 = scmp.lt.s32.totalorder %s23, 1
      %s507 = scalar_select %p506, %s23, 1
      %s508 = smul.addr %s507, 4
      %s509 = smul.addr %s508, 8
      %s510 = scalar_lea.vmem %s6, %s509
      %p511 = pneg %p202
      %p512 = pneg %p199
      %p513 = scmp.lt.s32.totalorder %s23, 1
      %s514 = scalar_select %p513, %s23, 1
      %s515 = scalar_lea.vmem %s7, %s514
      %p516 = pneg %p228
      %p517 = pneg %p225
      %p518 = scmp.lt.s32.totalorder %s23, 1
      %s519 = scalar_select %p518, %s23, 1
      %s520 = smul.addr %s519, 8
      %s521 = scalar_lea.vmem %s8, %s520
      %p522 = pneg %p254
      %p523 = pneg %p251
      %p524 = scmp.lt.s32.totalorder %s23, 1
      %s525 = scalar_select %p524, %s23, 1
      %s526 = smul.addr %s525, 4
      %s527 = smul.addr %s526, 8
      %s528 = scalar_lea.vmem %s9, %s527
      %p529 = pneg %p280
      %p530 = pneg %p277
      %p531 = scmp.lt.s32.totalorder %s23, 1
      %s532 = scalar_select %p531, %s23, 1
      %s533 = scalar_lea.vmem %s10, %s532
      %p534 = pneg %p306
      %p535 = pneg %p303
      %p536 = scmp.lt.s32.totalorder %s23, 1
      %s537 = scalar_select %p536, %s23, 1
      %s538 = scalar_lea.vmem %s11, %s537
      %p539 = pneg %p332
      %p540 = pneg %p329
      %p541 = pneg %p358
      %p542 = pneg %p355
      %p543 = scmp.lt.s32.totalorder %s23, 1
      %s544 = scalar_select %p543, %s23, 1
      %s545 = smul.addr %s544, 8
      %s546 = scalar_lea.vmem %s12, %s545
      %p547 = scmp.lt.s32.totalorder %s23, 1
      %s548 = scalar_select %p547, %s23, 1
      %s549 = smul.addr %s548, 8
      %s550 = scalar_lea.vmem %s0, %s549
      %s551 = ssub.s32 1, %s23
      %p552 = scmp.lt.s32.totalorder %s551, 1
      %s553 = scalar_select %p552, %s551, 1
      %s554 = smul.addr %s553, 8
      %s555 = scalar_lea.vmem %s1, %s554
      %s556 = ssub.s32 1, %s23
      %p557 = scmp.lt.s32.totalorder %s23, 1
      %s558 = scalar_select %p557, %s23, 1
      %s559 = smul.addr %s558, 4
      %s560 = smul.addr %s559, 8
      %s561 = scalar_lea.vmem %s2, %s560
      %p562 = scmp.lt.s32.totalorder %s23, 1
      %s563 = scalar_select %p562, %s23, 1
      %s564 = scalar_lea.vmem %s3, %s563
      %p565 = scmp.lt.s32.totalorder %s23, 1
      %s566 = scalar_select %p565, %s23, 1
      %s567 = smul.addr %s566, 4
      %s568 = smul.addr %s567, 8
      %s569 = scalar_lea.vmem %s4, %s568
      %p570 = scmp.lt.s32.totalorder %s23, 1
      %s571 = scalar_select %p570, %s23, 1
      %s572 = scalar_lea.vmem %s5, %s571
      %p573 = scmp.lt.s32.totalorder %s23, 1
      %s574 = scalar_select %p573, %s23, 1
      %s575 = smul.addr %s574, 4
      %s576 = smul.addr %s575, 8
      %s577 = scalar_lea.vmem %s6, %s576
      %p578 = scmp.lt.s32.totalorder %s23, 1
      %s579 = scalar_select %p578, %s23, 1
      %s580 = scalar_lea.vmem %s7, %s579
      %p581 = scmp.lt.s32.totalorder %s23, 1
      %s582 = scalar_select %p581, %s23, 1
      %s583 = smul.addr %s582, 8
      %s584 = scalar_lea.vmem %s8, %s583
      %p585 = scmp.lt.s32.totalorder %s23, 1
      %s586 = scalar_select %p585, %s23, 1
      %s587 = smul.addr %s586, 4
      %s588 = smul.addr %s587, 8
      %s589 = scalar_lea.vmem %s9, %s588
      %p590 = scmp.lt.s32.totalorder %s23, 1
      %s591 = scalar_select %p590, %s23, 1
      %s592 = scalar_lea.vmem %s10, %s591
      %p593 = scmp.lt.s32.totalorder %s23, 1
      %s594 = scalar_select %p593, %s23, 1
      %s595 = scalar_lea.vmem %s11, %s594
      %p596 = scmp.lt.s32.totalorder %s23, 1
      %s597 = scalar_select %p596, %s23, 1
      %s598 = smul.addr %s597, 8
      %s599 = scalar_lea.vmem %s12, %s598
      %v600 = vld [vmem:[%s550] sm:$0xff]
      %v601 = vld [vmem:[%s555] sm:$0xff]
      %v602 = vld [vmem:[%s561] sm:$0xff]
      %v603 = vld [vmem:[%s561 + $0x8] sm:$0xff]
      %v604 = vld [vmem:[%s561 + $0x10] sm:$0xff]
      %v605 = vld [vmem:[%s561 + $0x18] sm:$0xff]
      %v606 = vld [vmem:[%s564] sm:$0x1]
      %v608 = vlaneseq
      %v609 = vshrl.u32 %v608, 7
      %v610 = vsub.s32 0, %v609
      %v611 = vrot.slane %v606, %v610
      %vm613 = vcmask 261120
      %v615 = vsel %vm613, %v600, 0
      %617 = vmatprep.subr.mxu0 0.0
      %618 = vmatpush1.msra.mxu0 %v602
      %619 = vmatprep.subr.mxu0 0.0
      %620 = vmatpush1.msra.mxu0 %v603
      %621 = vmatprep.subr.mxu0 0.0
      %622 = vmatpush1.msra.mxu0 %v604
      %623 = vmatprep.subr.mxu0 0.0
      %624 = vmatpush1.msra.mxu0 %v605
      %625 = vmatprep.subr.mxu0 0.0
      %626 = vmatpush1.msra.mxu0 0.0
      %627 = vmatprep.subr.mxu0 0.0
      %628 = vmatpush1.msra.mxu0 0.0
      %629 = vmatprep.subr.mxu0 0.0
      %630 = vmatpush1.msra.mxu0 0.0
      %631 = vmatprep.subr.mxu0 0.0
      %632 = vmatpush1.msra.mxu0 0.0
      %633 = vmatprep.subr.mxu0 0.0
      %634 = vmatpush1.msra.mxu0 0.0
      %635 = vmatprep.subr.mxu0 0.0
      %636 = vmatpush1.msra.mxu0 0.0
      %637 = vmatprep.subr.mxu0 0.0
      %638 = vmatpush1.msra.mxu0 0.0
      %639 = vmatprep.subr.mxu0 0.0
      %640 = vmatpush1.msra.mxu0 0.0
      %641 = vmatprep.subr.mxu0 0.0
      %642 = vmatpush1.msra.mxu0 0.0
      %643 = vmatprep.subr.mxu0 0.0
      %644 = vmatpush1.msra.mxu0 0.0
      %645 = vmatprep.subr.mxu0 0.0
      %646 = vmatpush1.msra.mxu0 0.0
      %647 = vmatprep.subr.mxu0 0.0
      %648 = vmatpush1.msra.mxu0 0.0
      %649 = vmatprep.subr.mxu0 0.0
      %650 = vmatpush1.msra.mxu0 0.0
      %651 = vmatprep.subr.mxu0 0.0
      %652 = vmatpush1.msra.mxu0 0.0
      %653 = vmatprep.subr.mxu0 0.0
      %654 = vmatpush1.msra.mxu0 0.0
      %655 = vmatprep.subr.mxu0 0.0
      %656 = vmatpush1.msra.mxu0 0.0
      %657 = vmatprep.subr.mxu0 0.0
      %658 = vmatpush1.msra.mxu0 0.0
      %659 = vmatprep.subr.mxu0 0.0
      %660 = vmatpush1.msra.mxu0 0.0
      %661 = vmatprep.subr.mxu0 0.0
      %662 = vmatpush1.msra.mxu0 0.0
      %663 = vmatprep.subr.mxu0 0.0
      %664 = vmatpush1.msra.mxu0 0.0
      %665 = vmatprep.subr.mxu0 0.0
      %666 = vmatpush1.msra.mxu0 0.0
      %667 = vmatprep.subr.mxu0 0.0
      %668 = vmatpush1.msra.mxu0 0.0
      %669 = vmatprep.subr.mxu0 0.0
      %670 = vmatpush1.msra.mxu0 0.0
      %671 = vmatprep.subr.mxu0 0.0
      %672 = vmatpush1.msra.mxu0 0.0
      %673 = vmatprep.subr.mxu0 0.0
      %674 = vmatpush1.msra.mxu0 0.0
      %675 = vmatprep.subr.mxu0 0.0
      %676 = vmatpush1.msra.mxu0 0.0
      %677 = vmatprep.subr.mxu0 0.0
      %678 = vmatpush1.msra.mxu0 0.0
      %679 = vmatprep.subr.mxu0 0.0
      %680 = vmatpush1.msra.mxu0 0.0
      %681 = vmatprep.mubr.f32.mxu0 0.0
      %682 = vmatmul.mubr.f32.gmra.mrb[0].mxu0 %v615
      %v683 = vpop.f32.mrb[0].mxu0
      %v684 = vadd.f32 %v611, %v683
      %v685 = vpop.f32.mrb[0].mxu0
      %686 = vdwg.mxu0
      %v687 = vld [vmem:[%s569] sm:$0xff]
      %v688 = vld [vmem:[%s569 + $0x8] sm:$0xff]
      %v689 = vld [vmem:[%s569 + $0x10] sm:$0xff]
      %v690 = vld [vmem:[%s569 + $0x18] sm:$0xff]
      %v691 = vld [vmem:[%s572] sm:$0x1]
      %v693 = vlaneseq
      %v694 = vshrl.u32 %v693, 7
      %v695 = vsub.s32 0, %v694
      %v696 = vrot.slane %v691, %v695
      %v699 = vsel %vm613, %v601, 0
      %701 = vmatprep.subr.mxu0 0.0
      %702 = vmatpush1.msra.mxu0 %v687
      %703 = vmatprep.subr.mxu0 0.0
      %704 = vmatpush1.msra.mxu0 %v688
      %705 = vmatprep.subr.mxu0 0.0
      %706 = vmatpush1.msra.mxu0 %v689
      %707 = vmatprep.subr.mxu0 0.0
      %708 = vmatpush1.msra.mxu0 %v690
      %709 = vmatprep.subr.mxu0 0.0
      %710 = vmatpush1.msra.mxu0 0.0
      %711 = vmatprep.subr.mxu0 0.0
      %712 = vmatpush1.msra.mxu0 0.0
      %713 = vmatprep.subr.mxu0 0.0
      %714 = vmatpush1.msra.mxu0 0.0
      %715 = vmatprep.subr.mxu0 0.0
      %716 = vmatpush1.msra.mxu0 0.0
      %717 = vmatprep.subr.mxu0 0.0
      %718 = vmatpush1.msra.mxu0 0.0
      %719 = vmatprep.subr.mxu0 0.0
      %720 = vmatpush1.msra.mxu0 0.0
      %721 = vmatprep.subr.mxu0 0.0
      %722 = vmatpush1.msra.mxu0 0.0
      %723 = vmatprep.subr.mxu0 0.0
      %724 = vmatpush1.msra.mxu0 0.0
      %725 = vmatprep.subr.mxu0 0.0
      %726 = vmatpush1.msra.mxu0 0.0
      %727 = vmatprep.subr.mxu0 0.0
      %728 = vmatpush1.msra.mxu0 0.0
      %729 = vmatprep.subr.mxu0 0.0
      %730 = vmatpush1.msra.mxu0 0.0
      %731 = vmatprep.subr.mxu0 0.0
      %732 = vmatpush1.msra.mxu0 0.0
      %733 = vmatprep.subr.mxu0 0.0
      %734 = vmatpush1.msra.mxu0 0.0
      %735 = vmatprep.subr.mxu0 0.0
      %736 = vmatpush1.msra.mxu0 0.0
      %737 = vmatprep.subr.mxu0 0.0
      %738 = vmatpush1.msra.mxu0 0.0
      %739 = vmatprep.subr.mxu0 0.0
      %740 = vmatpush1.msra.mxu0 0.0
      %741 = vmatprep.subr.mxu0 0.0
      %742 = vmatpush1.msra.mxu0 0.0
      %743 = vmatprep.subr.mxu0 0.0
      %744 = vmatpush1.msra.mxu0 0.0
      %745 = vmatprep.subr.mxu0 0.0
      %746 = vmatpush1.msra.mxu0 0.0
      %747 = vmatprep.subr.mxu0 0.0
      %748 = vmatpush1.msra.mxu0 0.0
      %749 = vmatprep.subr.mxu0 0.0
      %750 = vmatpush1.msra.mxu0 0.0
      %751 = vmatprep.subr.mxu0 0.0
      %752 = vmatpush1.msra.mxu0 0.0
      %753 = vmatprep.subr.mxu0 0.0
      %754 = vmatpush1.msra.mxu0 0.0
      %755 = vmatprep.subr.mxu0 0.0
      %756 = vmatpush1.msra.mxu0 0.0
      %757 = vmatprep.subr.mxu0 0.0
      %758 = vmatpush1.msra.mxu0 0.0
      %759 = vmatprep.subr.mxu0 0.0
      %760 = vmatpush1.msra.mxu0 0.0
      %761 = vmatprep.subr.mxu0 0.0
      %762 = vmatpush1.msra.mxu0 0.0
      %763 = vmatprep.subr.mxu0 0.0
      %764 = vmatpush1.msra.mxu0 0.0
      %765 = vmatprep.mubr.f32.mxu0 0.0
      %766 = vmatmul.mubr.f32.gmra.mrb[0].mxu0 %v699
      %v767 = vpop.f32.mrb[0].mxu0
      %v768 = vadd.f32 %v696, %v767
      %v769 = vpop.f32.mrb[0].mxu0
      %770 = vdwg.mxu0
      %v771 = vld [vmem:[%s577] sm:$0xff]
      %v772 = vld [vmem:[%s577 + $0x8] sm:$0xff]
      %v773 = vld [vmem:[%s577 + $0x10] sm:$0xff]
      %v774 = vld [vmem:[%s577 + $0x18] sm:$0xff]
      %v775 = vld [vmem:[%s580] sm:$0x1]
      %v777 = vlaneseq
      %v778 = vshrl.u32 %v777, 7
      %v779 = vsub.s32 0, %v778
      %v780 = vrot.slane %v775, %v779
      %782 = vmatprep.subr.mxu0 0.0
      %783 = vmatpush1.msra.mxu0 %v771
      %784 = vmatprep.subr.mxu0 0.0
      %785 = vmatpush1.msra.mxu0 %v772
      %786 = vmatprep.subr.mxu0 0.0
      %787 = vmatpush1.msra.mxu0 %v773
      %788 = vmatprep.subr.mxu0 0.0
      %789 = vmatpush1.msra.mxu0 %v774
      %790 = vmatprep.subr.mxu0 0.0
      %791 = vmatpush1.msra.mxu0 0.0
      %792 = vmatprep.subr.mxu0 0.0
      %793 = vmatpush1.msra.mxu0 0.0
      %794 = vmatprep.subr.mxu0 0.0
      %795 = vmatpush1.msra.mxu0 0.0
      %796 = vmatprep.subr.mxu0 0.0
      %797 = vmatpush1.msra.mxu0 0.0
      %798 = vmatprep.subr.mxu0 0.0
      %799 = vmatpush1.msra.mxu0 0.0
      %800 = vmatprep.subr.mxu0 0.0
      %801 = vmatpush1.msra.mxu0 0.0
      %802 = vmatprep.subr.mxu0 0.0
      %803 = vmatpush1.msra.mxu0 0.0
      %804 = vmatprep.subr.mxu0 0.0
      %805 = vmatpush1.msra.mxu0 0.0
      %806 = vmatprep.subr.mxu0 0.0
      %807 = vmatpush1.msra.mxu0 0.0
      %808 = vmatprep.subr.mxu0 0.0
      %809 = vmatpush1.msra.mxu0 0.0
      %810 = vmatprep.subr.mxu0 0.0
      %811 = vmatpush1.msra.mxu0 0.0
      %812 = vmatprep.subr.mxu0 0.0
      %813 = vmatpush1.msra.mxu0 0.0
      %814 = vmatprep.subr.mxu0 0.0
      %815 = vmatpush1.msra.mxu0 0.0
      %816 = vmatprep.subr.mxu0 0.0
      %817 = vmatpush1.msra.mxu0 0.0
      %818 = vmatprep.subr.mxu0 0.0
      %819 = vmatpush1.msra.mxu0 0.0
      %820 = vmatprep.subr.mxu0 0.0
      %821 = vmatpush1.msra.mxu0 0.0
      %822 = vmatprep.subr.mxu0 0.0
      %823 = vmatpush1.msra.mxu0 0.0
      %824 = vmatprep.subr.mxu0 0.0
      %825 = vmatpush1.msra.mxu0 0.0
      %826 = vmatprep.subr.mxu0 0.0
      %827 = vmatpush1.msra.mxu0 0.0
      %828 = vmatprep.subr.mxu0 0.0
      %829 = vmatpush1.msra.mxu0 0.0
      %830 = vmatprep.subr.mxu0 0.0
      %831 = vmatpush1.msra.mxu0 0.0
      %832 = vmatprep.subr.mxu0 0.0
      %833 = vmatpush1.msra.mxu0 0.0
      %834 = vmatprep.subr.mxu0 0.0
      %835 = vmatpush1.msra.mxu0 0.0
      %836 = vmatprep.subr.mxu0 0.0
      %837 = vmatpush1.msra.mxu0 0.0
      %838 = vmatprep.subr.mxu0 0.0
      %839 = vmatpush1.msra.mxu0 0.0
      %840 = vmatprep.subr.mxu0 0.0
      %841 = vmatpush1.msra.mxu0 0.0
      %842 = vmatprep.subr.mxu0 0.0
      %843 = vmatpush1.msra.mxu0 0.0
      %844 = vmatprep.subr.mxu0 0.0
      %845 = vmatpush1.msra.mxu0 0.0
      %846 = vmatprep.mubr.f32.mxu0 0.0
      %847 = vmatmul.mubr.f32.gmra.mrb[0].mxu0 %v699
      %v848 = vpop.f32.mrb[0].mxu0
      %v849 = vadd.f32 %v780, %v848
      %v850 = vpop.f32.mrb[0].mxu0
      %851 = vdwg.mxu0
      %v853 = vsel %vm613, %v684, 0
      %v856 = vsel %vm613, %v768, 0
      %858 = vmatprep.subr.mxu0 0.0
      %859 = vmatpush1.xpose.msra.mxu0 %v856
      %860 = vmatprep.subr.mxu0 0.0
      %861 = vmatpush1.xpose.msra.mxu0 0.0
      %862 = vmatprep.subr.mxu0 0.0
      %863 = vmatpush1.xpose.msra.mxu0 0.0
      %864 = vmatprep.subr.mxu0 0.0
      %865 = vmatpush1.xpose.msra.mxu0 0.0
      %866 = vmatprep.subr.mxu0 0.0
      %867 = vmatpush1.xpose.msra.mxu0 0.0
      %868 = vmatprep.subr.mxu0 0.0
      %869 = vmatpush1.xpose.msra.mxu0 0.0
      %870 = vmatprep.subr.mxu0 0.0
      %871 = vmatpush1.xpose.msra.mxu0 0.0
      %872 = vmatprep.subr.mxu0 0.0
      %873 = vmatpush1.xpose.msra.mxu0 0.0
      %874 = vmatprep.subr.mxu0 0.0
      %875 = vmatpush1.xpose.msra.mxu0 0.0
      %876 = vmatprep.subr.mxu0 0.0
      %877 = vmatpush1.xpose.msra.mxu0 0.0
      %878 = vmatprep.subr.mxu0 0.0
      %879 = vmatpush1.xpose.msra.mxu0 0.0
      %880 = vmatprep.subr.mxu0 0.0
      %881 = vmatpush1.xpose.msra.mxu0 0.0
      %882 = vmatprep.subr.mxu0 0.0
      %883 = vmatpush1.xpose.msra.mxu0 0.0
      %884 = vmatprep.subr.mxu0 0.0
      %885 = vmatpush1.xpose.msra.mxu0 0.0
      %886 = vmatprep.subr.mxu0 0.0
      %887 = vmatpush1.xpose.msra.mxu0 0.0
      %888 = vmatprep.subr.mxu0 0.0
      %889 = vmatpush1.xpose.msra.mxu0 0.0
      %890 = vmatprep.subr.mxu0 0.0
      %891 = vmatpush1.xpose.msra.mxu0 0.0
      %892 = vmatprep.subr.mxu0 0.0
      %893 = vmatpush1.xpose.msra.mxu0 0.0
      %894 = vmatprep.subr.mxu0 0.0
      %895 = vmatpush1.xpose.msra.mxu0 0.0
      %896 = vmatprep.subr.mxu0 0.0
      %897 = vmatpush1.xpose.msra.mxu0 0.0
      %898 = vmatprep.subr.mxu0 0.0
      %899 = vmatpush1.xpose.msra.mxu0 0.0
      %900 = vmatprep.subr.mxu0 0.0
      %901 = vmatpush1.xpose.msra.mxu0 0.0
      %902 = vmatprep.subr.mxu0 0.0
      %903 = vmatpush1.xpose.msra.mxu0 0.0
      %904 = vmatprep.subr.mxu0 0.0
      %905 = vmatpush1.xpose.msra.mxu0 0.0
      %906 = vmatprep.subr.mxu0 0.0
      %907 = vmatpush1.xpose.msra.mxu0 0.0
      %908 = vmatprep.subr.mxu0 0.0
      %909 = vmatpush1.xpose.msra.mxu0 0.0
      %910 = vmatprep.subr.mxu0 0.0
      %911 = vmatpush1.xpose.msra.mxu0 0.0
      %912 = vmatprep.subr.mxu0 0.0
      %913 = vmatpush1.xpose.msra.mxu0 0.0
      %914 = vmatprep.subr.mxu0 0.0
      %915 = vmatpush1.xpose.msra.mxu0 0.0
      %916 = vmatprep.subr.mxu0 0.0
      %917 = vmatpush1.xpose.msra.mxu0 0.0
      %918 = vmatprep.subr.mxu0 0.0
      %919 = vmatpush1.xpose.msra.mxu0 0.0
      %920 = vmatprep.subr.mxu0 0.0
      %921 = vmatpush1.xpose.msra.mxu0 0.0
      %922 = vmatprep.mubr.f32.mxu0 0.0
      %923 = vmatmul.mubr.f32.gmra.mrb[0].mxu0 %v853
      %v924 = vpop.f32.mrb[0].mxu0
      %v925 = vadd.f32 0.0, %v924
      %v926 = vpop.f32.mrb[0].mxu0
      %927 = vdwg.mxu0
      %v928 = vld [vmem:[%s584] sm:$0xff]
      %vm929 = vcmp.gt.f32.partialorder %v928, 0.0
      %v930 = vsel %vm929, %v925, -1e+30
      %vm931 = vcmask 64512
      %v932 = vsel %vm931, %v930, -inf
      %933 = vmax.xlane.f32.xlu0 %v932
      %v934 = vpop.xlane.xlu0 %933
      %v935 = vsub.f32 %v930, %v934
      %v936 = vmul.f32 %v935, 1.442695
      %v937 = vpow.pop %v936
      %v938 = vmul.f32 %v937, %v928
      %v939 = vsel %vm931, %v938, 0.0
      %940 = vadd.xlane.f32.xlu0 %v939
      %v941 = vpop.xlane.xlu0 %940
      %v942 = vmax.f32 %v941, 1e-30
      %v943 = vrcp.pop %v942
      %v944 = vmul.f32 %v938, %v943
      %v946 = vsel %vm931, %v944, 0
      %948 = vmatprep.subr.mxu0 0.0
      %949 = vmatpush1.msra.mxu0 %v849
      %950 = vmatprep.subr.mxu0 0.0
      %951 = vmatpush1.msra.mxu0 0.0
      %952 = vmatprep.subr.mxu0 0.0
      %953 = vmatpush1.msra.mxu0 0.0
      %954 = vmatprep.subr.mxu0 0.0
      %955 = vmatpush1.msra.mxu0 0.0
      %956 = vmatprep.subr.mxu0 0.0
      %957 = vmatpush1.msra.mxu0 0.0
      %958 = vmatprep.subr.mxu0 0.0
      %959 = vmatpush1.msra.mxu0 0.0
      %960 = vmatprep.subr.mxu0 0.0
      %961 = vmatpush1.msra.mxu0 0.0
      %962 = vmatprep.subr.mxu0 0.0
      %963 = vmatpush1.msra.mxu0 0.0
      %964 = vmatprep.subr.mxu0 0.0
      %965 = vmatpush1.msra.mxu0 0.0
      %966 = vmatprep.subr.mxu0 0.0
      %967 = vmatpush1.msra.mxu0 0.0
      %968 = vmatprep.subr.mxu0 0.0
      %969 = vmatpush1.msra.mxu0 0.0
      %970 = vmatprep.subr.mxu0 0.0
      %971 = vmatpush1.msra.mxu0 0.0
      %972 = vmatprep.subr.mxu0 0.0
      %973 = vmatpush1.msra.mxu0 0.0
      %974 = vmatprep.subr.mxu0 0.0
      %975 = vmatpush1.msra.mxu0 0.0
      %976 = vmatprep.subr.mxu0 0.0
      %977 = vmatpush1.msra.mxu0 0.0
      %978 = vmatprep.subr.mxu0 0.0
      %979 = vmatpush1.msra.mxu0 0.0
      %980 = vmatprep.subr.mxu0 0.0
      %981 = vmatpush1.msra.mxu0 0.0
      %982 = vmatprep.subr.mxu0 0.0
      %983 = vmatpush1.msra.mxu0 0.0
      %984 = vmatprep.subr.mxu0 0.0
      %985 = vmatpush1.msra.mxu0 0.0
      %986 = vmatprep.subr.mxu0 0.0
      %987 = vmatpush1.msra.mxu0 0.0
      %988 = vmatprep.subr.mxu0 0.0
      %989 = vmatpush1.msra.mxu0 0.0
      %990 = vmatprep.subr.mxu0 0.0
      %991 = vmatpush1.msra.mxu0 0.0
      %992 = vmatprep.subr.mxu0 0.0
      %993 = vmatpush1.msra.mxu0 0.0
      %994 = vmatprep.subr.mxu0 0.0
      %995 = vmatpush1.msra.mxu0 0.0
      %996 = vmatprep.subr.mxu0 0.0
      %997 = vmatpush1.msra.mxu0 0.0
      %998 = vmatprep.subr.mxu0 0.0
      %999 = vmatpush1.msra.mxu0 0.0
      %1000 = vmatprep.subr.mxu0 0.0
      %1001 = vmatpush1.msra.mxu0 0.0
      %1002 = vmatprep.subr.mxu0 0.0
      %1003 = vmatpush1.msra.mxu0 0.0
      %1004 = vmatprep.subr.mxu0 0.0
      %1005 = vmatpush1.msra.mxu0 0.0
      %1006 = vmatprep.subr.mxu0 0.0
      %1007 = vmatpush1.msra.mxu0 0.0
      %1008 = vmatprep.subr.mxu0 0.0
      %1009 = vmatpush1.msra.mxu0 0.0
      %1010 = vmatprep.subr.mxu0 0.0
      %1011 = vmatpush1.msra.mxu0 0.0
      %1012 = vmatprep.mubr.f32.mxu0 0.0
      %1013 = vmatmul.mubr.f32.gmra.mrb[0].mxu0 %v946
      %v1014 = vpop.f32.mrb[0].mxu0
      %v1015 = vadd.f32 0.0, %v1014
      %v1016 = vpop.f32.mrb[0].mxu0
      %1017 = vdwg.mxu0
      %v1018 = vmul.f32 %v1015, 0.5
      %v1019 = vmul.f32 %v1015, 0.044715
      %v1020 = vmul.f32 %v1019, %v1015
      %v1021 = vmul.f32 %v1020, %v1015
      %v1022 = vadd.f32 %v1015, %v1021
      %v1023 = vmul.f32 %v1022, 0.7978846
      %v1024 = vtanh.pop %v1023
      %v1025 = vadd.f32 %v1024, 1.0
      %v1026 = vmul.f32 %v1018, %v1025
      %v1027 = vld [vmem:[%s589] sm:$0xff]
      %v1028 = vld [vmem:[%s589 + $0x8] sm:$0xff]
      %v1029 = vld [vmem:[%s589 + $0x10] sm:$0xff]
      %v1030 = vld [vmem:[%s589 + $0x18] sm:$0xff]
      %v1031 = vld [vmem:[%s592] sm:$0x1]
      %v1033 = vlaneseq
      %v1034 = vshrl.u32 %v1033, 7
      %v1035 = vsub.s32 0, %v1034
      %v1036 = vrot.slane %v1031, %v1035
      %v1039 = vsel %vm613, %v1026, 0
      %1041 = vmatprep.subr.mxu0 0.0
      %1042 = vmatpush1.msra.mxu0 %v1027
      %1043 = vmatprep.subr.mxu0 0.0
      %1044 = vmatpush1.msra.mxu0 %v1028
      %1045 = vmatprep.subr.mxu0 0.0
      %1046 = vmatpush1.msra.mxu0 %v1029
      %1047 = vmatprep.subr.mxu0 0.0
      %1048 = vmatpush1.msra.mxu0 %v1030
      %1049 = vmatprep.subr.mxu0 0.0
      %1050 = vmatpush1.msra.mxu0 0.0
      %1051 = vmatprep.subr.mxu0 0.0
      %1052 = vmatpush1.msra.mxu0 0.0
      %1053 = vmatprep.subr.mxu0 0.0
      %1054 = vmatpush1.msra.mxu0 0.0
      %1055 = vmatprep.subr.mxu0 0.0
      %1056 = vmatpush1.msra.mxu0 0.0
      %1057 = vmatprep.subr.mxu0 0.0
      %1058 = vmatpush1.msra.mxu0 0.0
      %1059 = vmatprep.subr.mxu0 0.0
      %1060 = vmatpush1.msra.mxu0 0.0
      %1061 = vmatprep.subr.mxu0 0.0
      %1062 = vmatpush1.msra.mxu0 0.0
      %1063 = vmatprep.subr.mxu0 0.0
      %1064 = vmatpush1.msra.mxu0 0.0
      %1065 = vmatprep.subr.mxu0 0.0
      %1066 = vmatpush1.msra.mxu0 0.0
      %1067 = vmatprep.subr.mxu0 0.0
      %1068 = vmatpush1.msra.mxu0 0.0
      %1069 = vmatprep.subr.mxu0 0.0
      %1070 = vmatpush1.msra.mxu0 0.0
      %1071 = vmatprep.subr.mxu0 0.0
      %1072 = vmatpush1.msra.mxu0 0.0
      %1073 = vmatprep.subr.mxu0 0.0
      %1074 = vmatpush1.msra.mxu0 0.0
      %1075 = vmatprep.subr.mxu0 0.0
      %1076 = vmatpush1.msra.mxu0 0.0
      %1077 = vmatprep.subr.mxu0 0.0
      %1078 = vmatpush1.msra.mxu0 0.0
      %1079 = vmatprep.subr.mxu0 0.0
      %1080 = vmatpush1.msra.mxu0 0.0
      %1081 = vmatprep.subr.mxu0 0.0
      %1082 = vmatpush1.msra.mxu0 0.0
      %1083 = vmatprep.subr.mxu0 0.0
      %1084 = vmatpush1.msra.mxu0 0.0
      %1085 = vmatprep.subr.mxu0 0.0
      %1086 = vmatpush1.msra.mxu0 0.0
      %1087 = vmatprep.subr.mxu0 0.0
      %1088 = vmatpush1.msra.mxu0 0.0
      %1089 = vmatprep.subr.mxu0 0.0
      %1090 = vmatpush1.msra.mxu0 0.0
      %1091 = vmatprep.subr.mxu0 0.0
      %1092 = vmatpush1.msra.mxu0 0.0
      %1093 = vmatprep.subr.mxu0 0.0
      %1094 = vmatpush1.msra.mxu0 0.0
      %1095 = vmatprep.subr.mxu0 0.0
      %1096 = vmatpush1.msra.mxu0 0.0
      %1097 = vmatprep.subr.mxu0 0.0
      %1098 = vmatpush1.msra.mxu0 0.0
      %1099 = vmatprep.subr.mxu0 0.0
      %1100 = vmatpush1.msra.mxu0 0.0
      %1101 = vmatprep.subr.mxu0 0.0
      %1102 = vmatpush1.msra.mxu0 0.0
      %1103 = vmatprep.subr.mxu0 0.0
      %1104 = vmatpush1.msra.mxu0 0.0
      %1105 = vmatprep.mubr.f32.mxu0 0.0
      %1106 = vmatmul.mubr.f32.gmra.mrb[0].mxu0 %v1039
      %v1107 = vpop.f32.mrb[0].mxu0
      %v1108 = vadd.f32 %v1036, %v1107
      %v1109 = vpop.f32.mrb[0].mxu0
      %1110 = vdwg.mxu0
      %v1111 = vld [vmem:[%s595] sm:$0x1]
      %v1113 = vlaneseq
      %v1114 = vshrl.u32 %v1113, 7
      %v1115 = vsub.s32 0, %v1114
      %v1116 = vrot.slane %v1111, %v1115
      %1117 = vset.pattern.permute.xlu0 0
      %1118 = vperm.xlu0 %1117, %v1116
      %v1119 = vpop.permute.xlu0 %1118
      %v1121 = vmul.f32 %v1119, %v1108
      %v1122 = vsub.f32 1.0, %v1111
      %v1124 = vlaneseq
      %v1125 = vshrl.u32 %v1124, 7
      %v1126 = vsub.s32 0, %v1125
      %v1127 = vrot.slane %v1122, %v1126
      %1128 = vset.pattern.permute.xlu0 0
      %1129 = vperm.xlu0 %1128, %v1127
      %v1130 = vpop.permute.xlu0 %1129
      %v1132 = vmul.f32 %v1130, %v600
      %v1133 = vadd.f32 %v1121, %v1132
      %1134 = vst.msk [vmem:[%s599] sm:$0xff] %vm613, %v1133
      %p1135 = scmp.lt.s32.totalorder %s23, 1
      %s1136 = scalar_select %p1135, %s23, 1
      %s1137 = smul.addr %s1136, 8
      %s1138 = scalar_lea.vmem %s12, %s1137
      // Predicated region
      $region69: #{hgt_forward.7} parent=67 // pred_check
        %p1139 = pneg %p355
      $region70: #{hgt_forward.7} parent=67 // pred_check_branch
        %1141 = sbr.rel (%p1139) target = $region72
      $region71: #{hgt_forward.7} parent=67 // pred_region
        _
      $region72: #{hgt_forward.7} parent=67 // pred_fallthru
        _
    $region68: #{hgt_forward.7} parent=5 // pred_fallthru
      _
    %p1142 = scmp.le.s32.totalorder 2, %s18
    // Predicated region
    $region73: #{hgt_forward.7} parent=5 // pred_check
      %p1143 = pneg %p1142
    $region74: #{hgt_forward.7} parent=5 // pred_check_branch
      %1145 = sbr.rel (%p1143) target = $region76
    $region75: #{hgt_forward.7} parent=5 // pred_region
      %s1146 = ssub.s32 %s18, 2
      // Predicated region
      $region77: #{hgt_forward.7} parent=75 // pred_check
        %p1147 = pneg %p361
      $region78: #{hgt_forward.7} parent=75 // pred_check_branch
        %1149 = sbr.rel (%p1147) target = $region80
      $region79: #{hgt_forward.7} parent=75 // pred_region
        %p1150 = scmp.lt.s32.totalorder %s24, 1
        %s1151 = scalar_select %p1150, %s24, 1
        %s1152 = smul.addr %s1151, 8
        %s1153 = scalar_lea.vmem %s12, %s1152
      $region80: #{hgt_forward.7} parent=75 // pred_fallthru
        _
    $region76: #{hgt_forward.7} parent=5 // pred_fallthru
      _
  $region6: #{hgt_forward.7} parent=0 // loop_footer
    %s22 = sadd.s32 1, %s18
  $region7: #{hgt_forward.7} parent=0 // loop_footer_branch
    %17 = sbr.rel target = $region3
  $region8: #{hgt_forward.7} parent=0 // loop_exit
    _

// kernel: hgt_forward.5
$region0: #{hgt_forward.5}
  #allocation0 [shape = 'u32[]', space=smem, size = 0x4, offset = 0x4, fixed_abs, tag = 'smem constant byte address 0x4 - core index']
  #allocation1 [shape = 'u32[144,128]{1,0:T(1,128)}', space=vmem, size = 0x12000, scoped, tag = 'internal scratch']
  %s0 = inlined_call_operand.vmem [shape: f32[2,8,16], index: 0, kind: input, shape index: {}, may-alias: {0,1}]
  %s1 = inlined_call_operand.vmem [shape: f32[2,8,16], index: 1, kind: input, shape index: {}, may-alias: {0,1}]
  %s2 = inlined_call_operand.vmem [shape: f32[2,16,32], index: 2, kind: input, shape index: {}]
  %s3 = inlined_call_operand.vmem [shape: f32[2,1,32], index: 3, kind: input, shape index: {}]
  %s4 = inlined_call_operand.vmem [shape: f32[2,16,32], index: 4, kind: input, shape index: {}]
  %s5 = inlined_call_operand.vmem [shape: f32[2,1,32], index: 5, kind: input, shape index: {}]
  %s6 = inlined_call_operand.hbm [shape: f32[2,16,32], index: 6, kind: input, shape index: {}]
  %s7 = inlined_call_operand.vmem [shape: f32[2,1,32], index: 7, kind: input, shape index: {}]
  %s8 = inlined_call_operand.vmem [shape: f32[2,8,8], index: 8, kind: input, shape index: {}]
  %s9 = inlined_call_operand.vmem [shape: f32[2,32,32], index: 9, kind: input, shape index: {}]
  %s10 = inlined_call_operand.vmem [shape: f32[2,1,32], index: 10, kind: input, shape index: {}]
  %s11 = inlined_call_operand.vmem [shape: f32[2,8,32], index: 11, kind: output, shape index: {}]
  %s12 = sld [smem:[#allocation0]]
  $region81: #{hgt_forward.5} parent=0
    _
  %s14 = ssub.s32 1, %s12
  %s15 = scalar_select 0, %s14, %s12
  $region1: #{hgt_forward.5} parent=0
    #allocation2 [shape = 'u8[16384]{0}', space=vmem, size = 0x4000, scoped, tag = 'input window, operand 6']
    #allocation3 [shape = 's32[2]{0}', space=sflag, size = 0x8, scoped, tag = 'scoped memory for hgt_forward.5']
    %16 = vsyncpa [#allocation3], 0
    %s17 = scalar_lea.sflag [#allocation3], 1
    %18 = vsyncpa %s17, 0
    loop: start=0, step=1, limit=4
    $region2: #{hgt_forward.5} parent=1 // loop_pre_header
      _
    $region3: #{hgt_forward.5} parent=1 // loop_header
      %s20 = sphi 0, %s24
      %p21 = scmp.ge.s32.totalorder %s20, 4
      %s30 = sphi 0, %s32
      %s33 = sphi 0, %s30
      %s34 = sphi 0, %s33
      %s50 = sphi 0, %s34
      %s58 = sphi 0, %s60
      %s61 = sphi 0, %s58
      %s62 = sphi 0, %s61
      %s78 = sphi 0, %s62
      %s84 = sphi 0, %s86
      %s87 = sphi 0, %s84
      %s88 = sphi 0, %s87
      %s104 = sphi 0, %s88
      %s110 = sphi 0, %s112
      %s113 = sphi 0, %s110
      %s114 = sphi 0, %s113
      %s130 = sphi 0, %s114
      %s136 = sphi 0, %s138
      %s139 = sphi 0, %s136
      %s140 = sphi 0, %s139
      %s156 = sphi 0, %s140
      %s162 = sphi 0, %s164
      %s165 = sphi 0, %s162
      %s166 = sphi 0, %s165
      %s182 = sphi 0, %s166
      %s188 = sphi 0, %s190
      %s191 = sphi 0, %s188
      %s192 = sphi 0, %s191
      %s208 = sphi 0, %s192
      %s214 = sphi 0, %s216
      %s217 = sphi 0, %s214
      %s218 = sphi 0, %s217
      %s234 = sphi 0, %s218
      %s240 = sphi 0, %s242
      %s243 = sphi 0, %s240
      %s244 = sphi 0, %s243
      %s260 = sphi 0, %s244
      %s266 = sphi 0, %s268
      %s269 = sphi 0, %s266
      %s270 = sphi 0, %s269
      %s286 = sphi 0, %s270
      %s292 = sphi 0, %s294
      %s295 = sphi 0, %s292
      %s296 = sphi 0, %s295
      %s312 = sphi 0, %s296
      %s318 = sphi 0, %s320
      %s321 = sphi 0, %s318
      %s322 = sphi 0, %s321
      %s338 = sphi 0, %s322
    $region4: #{hgt_forward.5} parent=1 // loop_header_branch
      %23 = sbr.rel (%p21) target = $region8
    $region5: #{hgt_forward.5} parent=1 // loop_body
      %s25 = ssub.s32 %s20, 1
      %s26 = ssub.s32 %s20, 2
      %s27 = sadd.s32 %s20, 1
      %s28 = ssub.s32 %s20, %s27
      %p29 = scmp.eq.s32.totalorder %s28, 0
      %s31 = sadd.s32 %s30, 1
      %s32 = scalar_select %p29, %s30, %s31
      %p35 = pneg %p29
      %p36 = scmp.eq.s32.totalorder %s20, 1
      %p37 = por %p35, %p36
      %p38 = scmp.ne.s32.totalorder %s30, %s33
      %p39 = scmp.eq.s32.totalorder %s20, 0
      %p40 = por %p38, %p39
      %p41 = scmp.ne.s32.totalorder %s30, %s33
      %p42 = scmp.eq.s32.totalorder %s25, 1
      %p43 = por %p41, %p42
      %p44 = scmp.ne.s32.totalorder %s33, %s34
      %p45 = scmp.eq.s32.totalorder %s25, 0
      %p46 = por %p44, %p45
      %p47 = scmp.ne.s32.totalorder %s33, %s34
      %p48 = scmp.eq.s32.totalorder %s26, 1
      %p49 = por %p47, %p48
      %p51 = scmp.ne.s32.totalorder %s34, %s50
      %p52 = scmp.eq.s32.totalorder %s26, 0
      %p53 = por %p51, %p52
      %s54 = ssub.s32 1, %s20
      %s55 = ssub.s32 1, %s27
      %s56 = ssub.s32 %s54, %s55
      %p57 = scmp.eq.s32.totalorder %s56, 0
      %s59 = sadd.s32 %s58, 1
      %s60 = scalar_select %p57, %s58, %s59
      %p63 = pneg %p57
      %p64 = scmp.eq.s32.totalorder %s20, 1
      %p65 = por %p63, %p64
      %p66 = scmp.ne.s32.totalorder %s58, %s61
      %p67 = scmp.eq.s32.totalorder %s20, 0
      %p68 = por %p66, %p67
      %p69 = scmp.ne.s32.totalorder %s58, %s61
      %p70 = scmp.eq.s32.totalorder %s25, 1
      %p71 = por %p69, %p70
      %p72 = scmp.ne.s32.totalorder %s61, %s62
      %p73 = scmp.eq.s32.totalorder %s25, 0
      %p74 = por %p72, %p73
      %p75 = scmp.ne.s32.totalorder %s61, %s62
      %p76 = scmp.eq.s32.totalorder %s26, 1
      %p77 = por %p75, %p76
      %p79 = scmp.ne.s32.totalorder %s62, %s78
      %p80 = scmp.eq.s32.totalorder %s26, 0
      %p81 = por %p79, %p80
      %s82 = ssub.s32 %s20, %s27
      %p83 = scmp.eq.s32.totalorder %s82, 0
      %s85 = sadd.s32 %s84, 1
      %s86 = scalar_select %p83, %s84, %s85
      %p89 = pneg %p83
      %p90 = scmp.eq.s32.totalorder %s20, 1
      %p91 = por %p89, %p90
      %p92 = scmp.ne.s32.totalorder %s84, %s87
      %p93 = scmp.eq.s32.totalorder %s20, 0
      %p94 = por %p92, %p93
      %p95 = scmp.ne.s32.totalorder %s84, %s87
      %p96 = scmp.eq.s32.totalorder %s25, 1
      %p97 = por %p95, %p96
      %p98 = scmp.ne.s32.totalorder %s87, %s88
      %p99 = scmp.eq.s32.totalorder %s25, 0
      %p100 = por %p98, %p99
      %p101 = scmp.ne.s32.totalorder %s87, %s88
      %p102 = scmp.eq.s32.totalorder %s26, 1
      %p103 = por %p101, %p102
      %p105 = scmp.ne.s32.totalorder %s88, %s104
      %p106 = scmp.eq.s32.totalorder %s26, 0
      %p107 = por %p105, %p106
      %s108 = ssub.s32 %s20, %s27
      %p109 = scmp.eq.s32.totalorder %s108, 0
      %s111 = sadd.s32 %s110, 1
      %s112 = scalar_select %p109, %s110, %s111
      %p115 = pneg %p109
      %p116 = scmp.eq.s32.totalorder %s20, 1
      %p117 = por %p115, %p116
      %p118 = scmp.ne.s32.totalorder %s110, %s113
      %p119 = scmp.eq.s32.totalorder %s20, 0
      %p120 = por %p118, %p119
      %p121 = scmp.ne.s32.totalorder %s110, %s113
      %p122 = scmp.eq.s32.totalorder %s25, 1
      %p123 = por %p121, %p122
      %p124 = scmp.ne.s32.totalorder %s113, %s114
      %p125 = scmp.eq.s32.totalorder %s25, 0
      %p126 = por %p124, %p125
      %p127 = scmp.ne.s32.totalorder %s113, %s114
      %p128 = scmp.eq.s32.totalorder %s26, 1
      %p129 = por %p127, %p128
      %p131 = scmp.ne.s32.totalorder %s114, %s130
      %p132 = scmp.eq.s32.totalorder %s26, 0
      %p133 = por %p131, %p132
      %s134 = ssub.s32 %s20, %s27
      %p135 = scmp.eq.s32.totalorder %s134, 0
      %s137 = sadd.s32 %s136, 1
      %s138 = scalar_select %p135, %s136, %s137
      %p141 = pneg %p135
      %p142 = scmp.eq.s32.totalorder %s20, 1
      %p143 = por %p141, %p142
      %p144 = scmp.ne.s32.totalorder %s136, %s139
      %p145 = scmp.eq.s32.totalorder %s20, 0
      %p146 = por %p144, %p145
      %p147 = scmp.ne.s32.totalorder %s136, %s139
      %p148 = scmp.eq.s32.totalorder %s25, 1
      %p149 = por %p147, %p148
      %p150 = scmp.ne.s32.totalorder %s139, %s140
      %p151 = scmp.eq.s32.totalorder %s25, 0
      %p152 = por %p150, %p151
      %p153 = scmp.ne.s32.totalorder %s139, %s140
      %p154 = scmp.eq.s32.totalorder %s26, 1
      %p155 = por %p153, %p154
      %p157 = scmp.ne.s32.totalorder %s140, %s156
      %p158 = scmp.eq.s32.totalorder %s26, 0
      %p159 = por %p157, %p158
      %s160 = ssub.s32 %s20, %s27
      %p161 = scmp.eq.s32.totalorder %s160, 0
      %s163 = sadd.s32 %s162, 1
      %s164 = scalar_select %p161, %s162, %s163
      %p167 = pneg %p161
      %p168 = scmp.eq.s32.totalorder %s20, 1
      %p169 = por %p167, %p168
      %p170 = scmp.ne.s32.totalorder %s162, %s165
      %p171 = scmp.eq.s32.totalorder %s20, 0
      %p172 = por %p170, %p171
      %p173 = scmp.ne.s32.totalorder %s162, %s165
      %p174 = scmp.eq.s32.totalorder %s25, 1
      %p175 = por %p173, %p174
      %p176 = scmp.ne.s32.totalorder %s165, %s166
      %p177 = scmp.eq.s32.totalorder %s25, 0
      %p178 = por %p176, %p177
      %p179 = scmp.ne.s32.totalorder %s165, %s166
      %p180 = scmp.eq.s32.totalorder %s26, 1
      %p181 = por %p179, %p180
      %p183 = scmp.ne.s32.totalorder %s166, %s182
      %p184 = scmp.eq.s32.totalorder %s26, 0
      %p185 = por %p183, %p184
      %s186 = ssub.s32 %s20, %s27
      %p187 = scmp.eq.s32.totalorder %s186, 0
      %s189 = sadd.s32 %s188, 1
      %s190 = scalar_select %p187, %s188, %s189
      %p193 = pneg %p187
      %p194 = scmp.eq.s32.totalorder %s20, 1
      %p195 = por %p193, %p194
      %p196 = scmp.ne.s32.totalorder %s188, %s191
      %p197 = scmp.eq.s32.totalorder %s20, 0
      %p198 = por %p196, %p197
      %p199 = scmp.ne.s32.totalorder %s188, %s191
      %p200 = scmp.eq.s32.totalorder %s25, 1
      %p201 = por %p199, %p200
      %p202 = scmp.ne.s32.totalorder %s191, %s192
      %p203 = scmp.eq.s32.totalorder %s25, 0
      %p204 = por %p202, %p203
      %p205 = scmp.ne.s32.totalorder %s191, %s192
      %p206 = scmp.eq.s32.totalorder %s26, 1
      %p207 = por %p205, %p206
      %p209 = scmp.ne.s32.totalorder %s192, %s208
      %p210 = scmp.eq.s32.totalorder %s26, 0
      %p211 = por %p209, %p210
      %s212 = ssub.s32 %s20, %s27
      %p213 = scmp.eq.s32.totalorder %s212, 0
      %s215 = sadd.s32 %s214, 1
      %s216 = scalar_select %p213, %s214, %s215
      %p219 = pneg %p213
      %p220 = scmp.eq.s32.totalorder %s20, 1
      %p221 = por %p219, %p220
      %p222 = scmp.ne.s32.totalorder %s214, %s217
      %p223 = scmp.eq.s32.totalorder %s20, 0
      %p224 = por %p222, %p223
      %p225 = scmp.ne.s32.totalorder %s214, %s217
      %p226 = scmp.eq.s32.totalorder %s25, 1
      %p227 = por %p225, %p226
      %p228 = scmp.ne.s32.totalorder %s217, %s218
      %p229 = scmp.eq.s32.totalorder %s25, 0
      %p230 = por %p228, %p229
      %p231 = scmp.ne.s32.totalorder %s217, %s218
      %p232 = scmp.eq.s32.totalorder %s26, 1
      %p233 = por %p231, %p232
      %p235 = scmp.ne.s32.totalorder %s218, %s234
      %p236 = scmp.eq.s32.totalorder %s26, 0
      %p237 = por %p235, %p236
      %s238 = ssub.s32 %s20, %s27
      %p239 = scmp.eq.s32.totalorder %s238, 0
      %s241 = sadd.s32 %s240, 1
      %s242 = scalar_select %p239, %s240, %s241
      %p245 = pneg %p239
      %p246 = scmp.eq.s32.totalorder %s20, 1
      %p247 = por %p245, %p246
      %p248 = scmp.ne.s32.totalorder %s240, %s243
      %p249 = scmp.eq.s32.totalorder %s20, 0
      %p250 = por %p248, %p249
      %p251 = scmp.ne.s32.totalorder %s240, %s243
      %p252 = scmp.eq.s32.totalorder %s25, 1
      %p253 = por %p251, %p252
      %p254 = scmp.ne.s32.totalorder %s243, %s244
      %p255 = scmp.eq.s32.totalorder %s25, 0
      %p256 = por %p254, %p255
      %p257 = scmp.ne.s32.totalorder %s243, %s244
      %p258 = scmp.eq.s32.totalorder %s26, 1
      %p259 = por %p257, %p258
      %p261 = scmp.ne.s32.totalorder %s244, %s260
      %p262 = scmp.eq.s32.totalorder %s26, 0
      %p263 = por %p261, %p262
      %s264 = ssub.s32 %s20, %s27
      %p265 = scmp.eq.s32.totalorder %s264, 0
      %s267 = sadd.s32 %s266, 1
      %s268 = scalar_select %p265, %s266, %s267
      %p271 = pneg %p265
      %p272 = scmp.eq.s32.totalorder %s20, 1
      %p273 = por %p271, %p272
      %p274 = scmp.ne.s32.totalorder %s266, %s269
      %p275 = scmp.eq.s32.totalorder %s20, 0
      %p276 = por %p274, %p275
      %p277 = scmp.ne.s32.totalorder %s266, %s269
      %p278 = scmp.eq.s32.totalorder %s25, 1
      %p279 = por %p277, %p278
      %p280 = scmp.ne.s32.totalorder %s269, %s270
      %p281 = scmp.eq.s32.totalorder %s25, 0
      %p282 = por %p280, %p281
      %p283 = scmp.ne.s32.totalorder %s269, %s270
      %p284 = scmp.eq.s32.totalorder %s26, 1
      %p285 = por %p283, %p284
      %p287 = scmp.ne.s32.totalorder %s270, %s286
      %p288 = scmp.eq.s32.totalorder %s26, 0
      %p289 = por %p287, %p288
      %s290 = ssub.s32 %s20, %s27
      %p291 = scmp.eq.s32.totalorder %s290, 0
      %s293 = sadd.s32 %s292, 1
      %s294 = scalar_select %p291, %s292, %s293
      %p297 = pneg %p291
      %p298 = scmp.eq.s32.totalorder %s20, 1
      %p299 = por %p297, %p298
      %p300 = scmp.ne.s32.totalorder %s292, %s295
      %p301 = scmp.eq.s32.totalorder %s20, 0
      %p302 = por %p300, %p301
      %p303 = scmp.ne.s32.totalorder %s292, %s295
      %p304 = scmp.eq.s32.totalorder %s25, 1
      %p305 = por %p303, %p304
      %p306 = scmp.ne.s32.totalorder %s295, %s296
      %p307 = scmp.eq.s32.totalorder %s25, 0
      %p308 = por %p306, %p307
      %p309 = scmp.ne.s32.totalorder %s295, %s296
      %p310 = scmp.eq.s32.totalorder %s26, 1
      %p311 = por %p309, %p310
      %p313 = scmp.ne.s32.totalorder %s296, %s312
      %p314 = scmp.eq.s32.totalorder %s26, 0
      %p315 = por %p313, %p314
      %s316 = ssub.s32 %s20, %s27
      %p317 = scmp.eq.s32.totalorder %s316, 0
      %s319 = sadd.s32 %s318, 1
      %s320 = scalar_select %p317, %s318, %s319
      %p323 = pneg %p317
      %p324 = scmp.eq.s32.totalorder %s20, 1
      %p325 = por %p323, %p324
      %p326 = scmp.ne.s32.totalorder %s318, %s321
      %p327 = scmp.eq.s32.totalorder %s20, 0
      %p328 = por %p326, %p327
      %p329 = scmp.ne.s32.totalorder %s318, %s321
      %p330 = scmp.eq.s32.totalorder %s25, 1
      %p331 = por %p329, %p330
      %p332 = scmp.ne.s32.totalorder %s321, %s322
      %p333 = scmp.eq.s32.totalorder %s25, 0
      %p334 = por %p332, %p333
      %p335 = scmp.ne.s32.totalorder %s321, %s322
      %p336 = scmp.eq.s32.totalorder %s26, 1
      %p337 = por %p335, %p336
      %p339 = scmp.ne.s32.totalorder %s322, %s338
      %p340 = scmp.eq.s32.totalorder %s26, 0
      %p341 = por %p339, %p340
      %p342 = scmp.le.s32.totalorder 1, %s20
      %p343 = scmp.lt.s32.totalorder %s20, 3
      %p344 = pnand %p342, %p343
      %p345 = pneg %p344
      // Predicated region
      $region9: #{hgt_forward.5} parent=5 // pred_check
        _
      $region10: #{hgt_forward.5} parent=5 // pred_check_branch
        %347 = sbr.rel (%p344) target = $region12
      $region11: #{hgt_forward.5} parent=5 // pred_region
        %s348 = ssub.s32 %s20, 1
      $region12: #{hgt_forward.5} parent=5 // pred_fallthru
        _
      %p349 = scmp.lt.s32.totalorder %s20, 2
      // Predicated region
      $region13: #{hgt_forward.5} parent=5 // pred_check
        %p350 = pneg %p349
      $region14: #{hgt_forward.5} parent=5 // pred_check_branch
        %352 = sbr.rel (%p350) target = $region16
      $region15: #{hgt_forward.5} parent=5 // pred_region
        // Predicated region
        $region17: #{hgt_forward.5} parent=15 // pred_check
          %p353 = pneg %p40
        $region18: #{hgt_forward.5} parent=15 // pred_check_branch
          %355 = sbr.rel (%p353) target = $region20
        $region19: #{hgt_forward.5} parent=15 // pred_region
          %p356 = scmp.lt.s32.totalorder %s20, 1
          %s357 = scalar_select %p356, %s20, 1
          %s358 = smul.addr %s357, 8
          %s359 = scalar_lea.vmem %s0, %s358
        $region20: #{hgt_forward.5} parent=15 // pred_fallthru
          _
        // Predicated region
        $region21: #{hgt_forward.5} parent=15 // pred_check
          %p360 = pneg %p68
        $region22: #{hgt_forward.5} parent=15 // pred_check_branch
          %362 = sbr.rel (%p360) target = $region24
        $region23: #{hgt_forward.5} parent=15 // pred_region
          %s363 = ssub.s32 1, %s20
          %p364 = scmp.lt.s32.totalorder %s363, 1
          %s365 = scalar_select %p364, %s363, 1
          %s366 = smul.addr %s365, 8
          %s367 = scalar_lea.vmem %s1, %s366
          %s368 = ssub.s32 1, %s20
        $region24: #{hgt_forward.5} parent=15 // pred_fallthru
          _
        // Predicated region
        $region25: #{hgt_forward.5} parent=15 // pred_check
          %p369 = pneg %p94
        $region26: #{hgt_forward.5} parent=15 // pred_check_branch
          %371 = sbr.rel (%p369) target = $region28
        $region27: #{hgt_forward.5} parent=15 // pred_region
          %p372 = scmp.lt.s32.totalorder %s20, 1
          %s373 = scalar_select %p372, %s20, 1
          %s374 = smul.addr %s373, 2
          %s375 = smul.addr %s374, 8
          %s376 = scalar_lea.vmem %s2, %s375
        $region28: #{hgt_forward.5} parent=15 // pred_fallthru
          _
        // Predicated region
        $region29: #{hgt_forward.5} parent=15 // pred_check
          %p377 = pneg %p120
        $region30: #{hgt_forward.5} parent=15 // pred_check_branch
          %379 = sbr.rel (%p377) target = $region32
        $region31: #{hgt_forward.5} parent=15 // pred_region
          %p380 = scmp.lt.s32.totalorder %s20, 1
          %s381 = scalar_select %p380, %s20, 1
          %s382 = scalar_lea.vmem %s3, %s381
        $region32: #{hgt_forward.5} parent=15 // pred_fallthru
          _
        // Predicated region
        $region33: #{hgt_forward.5} parent=15 // pred_check
          %p383 = pneg %p146
        $region34: #{hgt_forward.5} parent=15 // pred_check_branch
          %385 = sbr.rel (%p383) target = $region36
        $region35: #{hgt_forward.5} parent=15 // pred_region
          %p386 = scmp.lt.s32.totalorder %s20, 1
          %s387 = scalar_select %p386, %s20, 1
          %s388 = smul.addr %s387, 2
          %s389 = smul.addr %s388, 8
          %s390 = scalar_lea.vmem %s4, %s389
        $region36: #{hgt_forward.5} parent=15 // pred_fallthru
          _
        // Predicated region
        $region37: #{hgt_forward.5} parent=15 // pred_check
          %p391 = pneg %p172
        $region38: #{hgt_forward.5} parent=15 // pred_check_branch
          %393 = sbr.rel (%p391) target = $region40
        $region39: #{hgt_forward.5} parent=15 // pred_region
          %p394 = scmp.lt.s32.totalorder %s20, 1
          %s395 = scalar_select %p394, %s20, 1
          %s396 = scalar_lea.vmem %s5, %s395
        $region40: #{hgt_forward.5} parent=15 // pred_fallthru
          _
        // Predicated region
        $region41: #{hgt_forward.5} parent=15 // pred_check
          %p397 = pneg %p198
        $region42: #{hgt_forward.5} parent=15 // pred_check_branch
          %399 = sbr.rel (%p397) target = $region44
        $region43: #{hgt_forward.5} parent=15 // pred_region
          %s400 = sand.u32 %s188, 1
          %s401 = scalar_lea.sflag [#allocation3], %s400
          %s402 = sand.u32 %s188, 1
          %s403 = smul.addr %s402, 16
          %s404 = scalar_lea.vmem [#allocation2], %s403
          %s406 = ssub.s32 256, 256
          %407 = vsyncadd %s401, %s406
          %s408 = smul.addr %s20, 2
          %s409 = smul.addr %s408, 128
          %s410 = scalar_lea.hbm %s6, %s409
          %s411 = sshll.u32 %s404, 4
          %s412 = int_to_ptr.vmem [resolvable:$true] %s411
          %417 = dma.hbm_to_vmem [thread:$0]  %s410, 256, %s412, %s401, 128, 128, 8
        $region44: #{hgt_forward.5} parent=15 // pred_fallthru
          _
        // Predicated region
        $region45: #{hgt_forward.5} parent=15 // pred_check
          %p418 = pneg %p224
        $region46: #{hgt_forward.5} parent=15 // pred_check_branch
          %420 = sbr.rel (%p418) target = $region48
        $region47: #{hgt_forward.5} parent=15 // pred_region
          %p421 = scmp.lt.s32.totalorder %s20, 1
          %s422 = scalar_select %p421, %s20, 1
          %s423 = scalar_lea.vmem %s7, %s422
        $region48: #{hgt_forward.5} parent=15 // pred_fallthru
          _
        // Predicated region
        $region49: #{hgt_forward.5} parent=15 // pred_check
          %p424 = pneg %p250
        $region50: #{hgt_forward.5} parent=15 // pred_check_branch
          %426 = sbr.rel (%p424) target = $region52
        $region51: #{hgt_forward.5} parent=15 // pred_region
          %p427 = scmp.lt.s32.totalorder %s20, 1
          %s428 = scalar_select %p427, %s20, 1
          %s429 = smul.addr %s428, 8
          %s430 = scalar_lea.vmem %s8, %s429
        $region52: #{hgt_forward.5} parent=15 // pred_fallthru
          _
        // Predicated region
        $region53: #{hgt_forward.5} parent=15 // pred_check
          %p431 = pneg %p276
        $region54: #{hgt_forward.5} parent=15 // pred_check_branch
          %433 = sbr.rel (%p431) target = $region56
        $region55: #{hgt_forward.5} parent=15 // pred_region
          %p434 = scmp.lt.s32.totalorder %s20, 1
          %s435 = scalar_select %p434, %s20, 1
          %s436 = smul.addr %s435, 4
          %s437 = smul.addr %s436, 8
          %s438 = scalar_lea.vmem %s9, %s437
        $region56: #{hgt_forward.5} parent=15 // pred_fallthru
          _
        // Predicated region
        $region57: #{hgt_forward.5} parent=15 // pred_check
          %p439 = pneg %p302
        $region58: #{hgt_forward.5} parent=15 // pred_check_branch
          %441 = sbr.rel (%p439) target = $region60
        $region59: #{hgt_forward.5} parent=15 // pred_region
          %p442 = scmp.lt.s32.totalorder %s20, 1
          %s443 = scalar_select %p442, %s20, 1
          %s444 = scalar_lea.vmem %s10, %s443
        $region60: #{hgt_forward.5} parent=15 // pred_fallthru
          _
      $region16: #{hgt_forward.5} parent=5 // pred_fallthru
        _
      %p445 = scmp.le.s32.totalorder 1, %s20
      %p446 = scmp.lt.s32.totalorder %s20, 3
      %p447 = pnand %p445, %p446
      %p448 = pneg %p447
      // Predicated region
      $region61: #{hgt_forward.5} parent=5 // pred_check
        _
      $region62: #{hgt_forward.5} parent=5 // pred_check_branch
        %450 = sbr.rel (%p447) target = $region64
      $region63: #{hgt_forward.5} parent=5 // pred_region
        %s451 = ssub.s32 %s20, 1
        %s452 = sand.u32 %s191, 1
        %s453 = scalar_lea.sflag [#allocation3], %s452
        %s454 = sand.u32 %s191, 1
        %s455 = smul.addr %s454, 16
        %s456 = scalar_lea.vmem [#allocation2], %s455
        // Predicated region
        $region65: #{hgt_forward.5} parent=63 // pred_check
          %p457 = pneg %p204
        $region66: #{hgt_forward.5} parent=63 // pred_check_branch
          %459 = sbr.rel (%p457) target = $region68
        $region67: #{hgt_forward.5} parent=63 // pred_region
          %460 = dma.done %s453, 256
        $region68: #{hgt_forward.5} parent=63 // pred_fallthru
          _
        %p461 = scmp.lt.s32.totalorder %s25, 1
        %s462 = scalar_select %p461, %s25, 1
        %s463 = smul.addr %s462, 8
        %s464 = scalar_lea.vmem %s0, %s463
        %p465 = pneg %p46
        %p466 = pneg %p43
        %s467 = ssub.s32 1, %s25
        %p468 = scmp.lt.s32.totalorder %s467, 1
        %s469 = scalar_select %p468, %s467, 1
        %s470 = smul.addr %s469, 8
        %s471 = scalar_lea.vmem %s1, %s470
        %p472 = pneg %p74
        %p473 = pneg %p71
        %p474 = scmp.lt.s32.totalorder %s25, 1
        %s475 = scalar_select %p474, %s25, 1
        %s476 = smul.addr %s475, 2
        %s477 = smul.addr %s476, 8
        %s478 = scalar_lea.vmem %s2, %s477
        %p479 = pneg %p100
        %p480 = pneg %p97
        %p481 = scmp.lt.s32.totalorder %s25, 1
        %s482 = scalar_select %p481, %s25, 1
        %s483 = scalar_lea.vmem %s3, %s482
        %p484 = pneg %p126
        %p485 = pneg %p123
        %p486 = scmp.lt.s32.totalorder %s25, 1
        %s487 = scalar_select %p486, %s25, 1
        %s488 = smul.addr %s487, 2
        %s489 = smul.addr %s488, 8
        %s490 = scalar_lea.vmem %s4, %s489
        %p491 = pneg %p152
        %p492 = pneg %p149
        %p493 = scmp.lt.s32.totalorder %s25, 1
        %s494 = scalar_select %p493, %s25, 1
        %s495 = scalar_lea.vmem %s5, %s494
        %p496 = pneg %p178
        %p497 = pneg %p175
        %s498 = sand.u32 %s191, 1
        %s499 = scalar_lea.sflag [#allocation3], %s498
        %s500 = sand.u32 %s191, 1
        %s501 = smul.addr %s500, 16
        %s502 = scalar_lea.vmem [#allocation2], %s501
        %p503 = pneg %p204
        %p504 = pneg %p201
        %p505 = scmp.lt.s32.totalorder %s25, 1
        %s506 = scalar_select %p505, %s25, 1
        %s507 = scalar_lea.vmem %s7, %s506
        %p508 = pneg %p230
        %p509 = pneg %p227
        %p510 = scmp.lt.s32.totalorder %s25, 1
        %s511 = scalar_select %p510, %s25, 1
        %s512 = smul.addr %s511, 8
        %s513 = scalar_lea.vmem %s8, %s512
        %p514 = pneg %p256
        %p515 = pneg %p253
        %p516 = scmp.lt.s32.totalorder %s25, 1
        %s517 = scalar_select %p516, %s25, 1
        %s518 = smul.addr %s517, 4
        %s519 = smul.addr %s518, 8
        %s520 = scalar_lea.vmem %s9, %s519
        %p521 = pneg %p282
        %p522 = pneg %p279
        %p523 = scmp.lt.s32.totalorder %s25, 1
        %s524 = scalar_select %p523, %s25, 1
        %s525 = scalar_lea.vmem %s10, %s524
        %p526 = pneg %p308
        %p527 = pneg %p305
        %p528 = pneg %p334
        %p529 = pneg %p331
        %p530 = scmp.lt.s32.totalorder %s25, 1
        %s531 = scalar_select %p530, %s25, 1
        %s532 = smul.addr %s531, 8
        %s533 = scalar_lea.vmem %s11, %s532
        %p534 = scmp.lt.s32.totalorder %s25, 1
        %s535 = scalar_select %p534, %s25, 1
        %s536 = smul.addr %s535, 8
        %s537 = scalar_lea.vmem %s0, %s536
        %s538 = ssub.s32 1, %s25
        %p539 = scmp.lt.s32.totalorder %s538, 1
        %s540 = scalar_select %p539, %s538, 1
        %s541 = smul.addr %s540, 8
        %s542 = scalar_lea.vmem %s1, %s541
        %s543 = ssub.s32 1, %s25
        %p544 = scmp.lt.s32.totalorder %s25, 1
        %s545 = scalar_select %p544, %s25, 1
        %s546 = smul.addr %s545, 2
        %s547 = smul.addr %s546, 8
        %s548 = scalar_lea.vmem %s2, %s547
        %p549 = scmp.lt.s32.totalorder %s25, 1
        %s550 = scalar_select %p549, %s25, 1
        %s551 = scalar_lea.vmem %s3, %s550
        %p552 = scmp.lt.s32.totalorder %s25, 1
        %s553 = scalar_select %p552, %s25, 1
        %s554 = smul.addr %s553, 2
        %s555 = smul.addr %s554, 8
        %s556 = scalar_lea.vmem %s4, %s555
        %p557 = scmp.lt.s32.totalorder %s25, 1
        %s558 = scalar_select %p557, %s25, 1
        %s559 = scalar_lea.vmem %s5, %s558
        %p560 = scmp.lt.s32.totalorder %s25, 1
        %s561 = scalar_select %p560, %s25, 1
        %s562 = scalar_lea.vmem %s7, %s561
        %p563 = scmp.lt.s32.totalorder %s25, 1
        %s564 = scalar_select %p563, %s25, 1
        %s565 = smul.addr %s564, 8
        %s566 = scalar_lea.vmem %s8, %s565
        %p567 = scmp.lt.s32.totalorder %s25, 1
        %s568 = scalar_select %p567, %s25, 1
        %s569 = smul.addr %s568, 4
        %s570 = smul.addr %s569, 8
        %s571 = scalar_lea.vmem %s9, %s570
        %p572 = scmp.lt.s32.totalorder %s25, 1
        %s573 = scalar_select %p572, %s25, 1
        %s574 = scalar_lea.vmem %s10, %s573
        %p575 = scmp.lt.s32.totalorder %s25, 1
        %s576 = scalar_select %p575, %s25, 1
        %s577 = smul.addr %s576, 8
        %s578 = scalar_lea.vmem %s11, %s577
        %v579 = vld [vmem:[%s537] sm:$0xff]
        %v580 = vld [vmem:[%s542] sm:$0xff]
        %v581 = vld [vmem:[%s548] sm:$0xff]
        %v582 = vld [vmem:[%s548 + $0x8] sm:$0xff]
        %v583 = vld [vmem:[%s551] sm:$0x1]
        %v585 = vlaneseq
        %v586 = vshrl.u32 %v585, 7
        %v587 = vsub.s32 0, %v586
        %v588 = vrot.slane %v583, %v587
        %vm590 = vcmask 130048
        %v592 = vsel %vm590, %v579, 0
        %594 = vmatprep.subr.mxu0 0.0
        %595 = vmatpush1.msra.mxu0 %v581
        %596 = vmatprep.subr.mxu0 0.0
        %597 = vmatpush1.msra.mxu0 %v582
        %598 = vmatprep.subr.mxu0 0.0
        %599 = vmatpush1.msra.mxu0 0.0
        %600 = vmatprep.subr.mxu0 0.0
        %601 = vmatpush1.msra.mxu0 0.0
        %602 = vmatprep.subr.mxu0 0.0
        %603 = vmatpush1.msra.mxu0 0.0
        %604 = vmatprep.subr.mxu0 0.0
        %605 = vmatpush1.msra.mxu0 0.0
        %606 = vmatprep.subr.mxu0 0.0
        %607 = vmatpush1.msra.mxu0 0.0
        %608 = vmatprep.subr.mxu0 0.0
        %609 = vmatpush1.msra.mxu0 0.0
        %610 = vmatprep.subr.mxu0 0.0
        %611 = vmatpush1.msra.mxu0 0.0
        %612 = vmatprep.subr.mxu0 0.0
        %613 = vmatpush1.msra.mxu0 0.0
        %614 = vmatprep.subr.mxu0 0.0
        %615 = vmatpush1.msra.mxu0 0.0
        %616 = vmatprep.subr.mxu0 0.0
        %617 = vmatpush1.msra.mxu0 0.0
        %618 = vmatprep.subr.mxu0 0.0
        %619 = vmatpush1.msra.mxu0 0.0
        %620 = vmatprep.subr.mxu0 0.0
        %621 = vmatpush1.msra.mxu0 0.0
        %622 = vmatprep.subr.mxu0 0.0
        %623 = vmatpush1.msra.mxu0 0.0
        %624 = vmatprep.subr.mxu0 0.0
        %625 = vmatpush1.msra.mxu0 0.0
        %626 = vmatprep.subr.mxu0 0.0
        %627 = vmatpush1.msra.mxu0 0.0
        %628 = vmatprep.subr.mxu0 0.0
        %629 = vmatpush1.msra.mxu0 0.0
        %630 = vmatprep.subr.mxu0 0.0
        %631 = vmatpush1.msra.mxu0 0.0
        %632 = vmatprep.subr.mxu0 0.0
        %633 = vmatpush1.msra.mxu0 0.0
        %634 = vmatprep.subr.mxu0 0.0
        %635 = vmatpush1.msra.mxu0 0.0
        %636 = vmatprep.subr.mxu0 0.0
        %637 = vmatpush1.msra.mxu0 0.0
        %638 = vmatprep.subr.mxu0 0.0
        %639 = vmatpush1.msra.mxu0 0.0
        %640 = vmatprep.subr.mxu0 0.0
        %641 = vmatpush1.msra.mxu0 0.0
        %642 = vmatprep.subr.mxu0 0.0
        %643 = vmatpush1.msra.mxu0 0.0
        %644 = vmatprep.subr.mxu0 0.0
        %645 = vmatpush1.msra.mxu0 0.0
        %646 = vmatprep.subr.mxu0 0.0
        %647 = vmatpush1.msra.mxu0 0.0
        %648 = vmatprep.subr.mxu0 0.0
        %649 = vmatpush1.msra.mxu0 0.0
        %650 = vmatprep.subr.mxu0 0.0
        %651 = vmatpush1.msra.mxu0 0.0
        %652 = vmatprep.subr.mxu0 0.0
        %653 = vmatpush1.msra.mxu0 0.0
        %654 = vmatprep.subr.mxu0 0.0
        %655 = vmatpush1.msra.mxu0 0.0
        %656 = vmatprep.subr.mxu0 0.0
        %657 = vmatpush1.msra.mxu0 0.0
        %658 = vmatprep.mubr.f32.mxu0 0.0
        %659 = vmatmul.mubr.f32.gmra.mrb[0].mxu0 %v592
        %v660 = vpop.f32.mrb[0].mxu0
        %v661 = vadd.f32 %v588, %v660
        %v662 = vpop.f32.mrb[0].mxu0
        %663 = vdwg.mxu0
        %v664 = vld [vmem:[%s556] sm:$0xff]
        %v665 = vld [vmem:[%s556 + $0x8] sm:$0xff]
        %v666 = vld [vmem:[%s559] sm:$0x1]
        %v668 = vlaneseq
        %v669 = vshrl.u32 %v668, 7
        %v670 = vsub.s32 0, %v669
        %v671 = vrot.slane %v666, %v670
        %v674 = vsel %vm590, %v580, 0
        %676 = vmatprep.subr.mxu0 0.0
        %677 = vmatpush1.msra.mxu0 %v664
        %678 = vmatprep.subr.mxu0 0.0
        %679 = vmatpush1.msra.mxu0 %v665
        %680 = vmatprep.subr.mxu0 0.0
        %681 = vmatpush1.msra.mxu0 0.0
        %682 = vmatprep.subr.mxu0 0.0
        %683 = vmatpush1.msra.mxu0 0.0
        %684 = vmatprep.subr.mxu0 0.0
        %685 = vmatpush1.msra.mxu0 0.0
        %686 = vmatprep.subr.mxu0 0.0
        %687 = vmatpush1.msra.mxu0 0.0
        %688 = vmatprep.subr.mxu0 0.0
        %689 = vmatpush1.msra.mxu0 0.0
        %690 = vmatprep.subr.mxu0 0.0
        %691 = vmatpush1.msra.mxu0 0.0
        %692 = vmatprep.subr.mxu0 0.0
        %693 = vmatpush1.msra.mxu0 0.0
        %694 = vmatprep.subr.mxu0 0.0
        %695 = vmatpush1.msra.mxu0 0.0
        %696 = vmatprep.subr.mxu0 0.0
        %697 = vmatpush1.msra.mxu0 0.0
        %698 = vmatprep.subr.mxu0 0.0
        %699 = vmatpush1.msra.mxu0 0.0
        %700 = vmatprep.subr.mxu0 0.0
        %701 = vmatpush1.msra.mxu0 0.0
        %702 = vmatprep.subr.mxu0 0.0
        %703 = vmatpush1.msra.mxu0 0.0
        %704 = vmatprep.subr.mxu0 0.0
        %705 = vmatpush1.msra.mxu0 0.0
        %706 = vmatprep.subr.mxu0 0.0
        %707 = vmatpush1.msra.mxu0 0.0
        %708 = vmatprep.subr.mxu0 0.0
        %709 = vmatpush1.msra.mxu0 0.0
        %710 = vmatprep.subr.mxu0 0.0
        %711 = vmatpush1.msra.mxu0 0.0
        %712 = vmatprep.subr.mxu0 0.0
        %713 = vmatpush1.msra.mxu0 0.0
        %714 = vmatprep.subr.mxu0 0.0
        %715 = vmatpush1.msra.mxu0 0.0
        %716 = vmatprep.subr.mxu0 0.0
        %717 = vmatpush1.msra.mxu0 0.0
        %718 = vmatprep.subr.mxu0 0.0
        %719 = vmatpush1.msra.mxu0 0.0
        %720 = vmatprep.subr.mxu0 0.0
        %721 = vmatpush1.msra.mxu0 0.0
        %722 = vmatprep.subr.mxu0 0.0
        %723 = vmatpush1.msra.mxu0 0.0
        %724 = vmatprep.subr.mxu0 0.0
        %725 = vmatpush1.msra.mxu0 0.0
        %726 = vmatprep.subr.mxu0 0.0
        %727 = vmatpush1.msra.mxu0 0.0
        %728 = vmatprep.subr.mxu0 0.0
        %729 = vmatpush1.msra.mxu0 0.0
        %730 = vmatprep.subr.mxu0 0.0
        %731 = vmatpush1.msra.mxu0 0.0
        %732 = vmatprep.subr.mxu0 0.0
        %733 = vmatpush1.msra.mxu0 0.0
        %734 = vmatprep.subr.mxu0 0.0
        %735 = vmatpush1.msra.mxu0 0.0
        %736 = vmatprep.subr.mxu0 0.0
        %737 = vmatpush1.msra.mxu0 0.0
        %738 = vmatprep.subr.mxu0 0.0
        %739 = vmatpush1.msra.mxu0 0.0
        %740 = vmatprep.mubr.f32.mxu0 0.0
        %741 = vmatmul.mubr.f32.gmra.mrb[0].mxu0 %v674
        %v742 = vpop.f32.mrb[0].mxu0
        %v743 = vadd.f32 %v671, %v742
        %v744 = vpop.f32.mrb[0].mxu0
        %745 = vdwg.mxu0
        %v746 = vld [vmem:[%s456] sm:$0xff]
        %v747 = vld [vmem:[%s456 + $0x8] sm:$0xff]
        %v748 = vld [vmem:[%s562] sm:$0x1]
        %v750 = vlaneseq
        %v751 = vshrl.u32 %v750, 7
        %v752 = vsub.s32 0, %v751
        %v753 = vrot.slane %v748, %v752
        %755 = vmatprep.subr.mxu0 0.0
        %756 = vmatpush1.msra.mxu0 %v746
        %757 = vmatprep.subr.mxu0 0.0
        %758 = vmatpush1.msra.mxu0 %v747
        %759 = vmatprep.subr.mxu0 0.0
        %760 = vmatpush1.msra.mxu0 0.0
        %761 = vmatprep.subr.mxu0 0.0
        %762 = vmatpush1.msra.mxu0 0.0
        %763 = vmatprep.subr.mxu0 0.0
        %764 = vmatpush1.msra.mxu0 0.0
        %765 = vmatprep.subr.mxu0 0.0
        %766 = vmatpush1.msra.mxu0 0.0
        %767 = vmatprep.subr.mxu0 0.0
        %768 = vmatpush1.msra.mxu0 0.0
        %769 = vmatprep.subr.mxu0 0.0
        %770 = vmatpush1.msra.mxu0 0.0
        %771 = vmatprep.subr.mxu0 0.0
        %772 = vmatpush1.msra.mxu0 0.0
        %773 = vmatprep.subr.mxu0 0.0
        %774 = vmatpush1.msra.mxu0 0.0
        %775 = vmatprep.subr.mxu0 0.0
        %776 = vmatpush1.msra.mxu0 0.0
        %777 = vmatprep.subr.mxu0 0.0
        %778 = vmatpush1.msra.mxu0 0.0
        %779 = vmatprep.subr.mxu0 0.0
        %780 = vmatpush1.msra.mxu0 0.0
        %781 = vmatprep.subr.mxu0 0.0
        %782 = vmatpush1.msra.mxu0 0.0
        %783 = vmatprep.subr.mxu0 0.0
        %784 = vmatpush1.msra.mxu0 0.0
        %785 = vmatprep.subr.mxu0 0.0
        %786 = vmatpush1.msra.mxu0 0.0
        %787 = vmatprep.subr.mxu0 0.0
        %788 = vmatpush1.msra.mxu0 0.0
        %789 = vmatprep.subr.mxu0 0.0
        %790 = vmatpush1.msra.mxu0 0.0
        %791 = vmatprep.subr.mxu0 0.0
        %792 = vmatpush1.msra.mxu0 0.0
        %793 = vmatprep.subr.mxu0 0.0
        %794 = vmatpush1.msra.mxu0 0.0
        %795 = vmatprep.subr.mxu0 0.0
        %796 = vmatpush1.msra.mxu0 0.0
        %797 = vmatprep.subr.mxu0 0.0
        %798 = vmatpush1.msra.mxu0 0.0
        %799 = vmatprep.subr.mxu0 0.0
        %800 = vmatpush1.msra.mxu0 0.0
        %801 = vmatprep.subr.mxu0 0.0
        %802 = vmatpush1.msra.mxu0 0.0
        %803 = vmatprep.subr.mxu0 0.0
        %804 = vmatpush1.msra.mxu0 0.0
        %805 = vmatprep.subr.mxu0 0.0
        %806 = vmatpush1.msra.mxu0 0.0
        %807 = vmatprep.subr.mxu0 0.0
        %808 = vmatpush1.msra.mxu0 0.0
        %809 = vmatprep.subr.mxu0 0.0
        %810 = vmatpush1.msra.mxu0 0.0
        %811 = vmatprep.subr.mxu0 0.0
        %812 = vmatpush1.msra.mxu0 0.0
        %813 = vmatprep.subr.mxu0 0.0
        %814 = vmatpush1.msra.mxu0 0.0
        %815 = vmatprep.subr.mxu0 0.0
        %816 = vmatpush1.msra.mxu0 0.0
        %817 = vmatprep.subr.mxu0 0.0
        %818 = vmatpush1.msra.mxu0 0.0
        %819 = vmatprep.mubr.f32.mxu0 0.0
        %820 = vmatmul.mubr.f32.gmra.mrb[0].mxu0 %v674
        %v821 = vpop.f32.mrb[0].mxu0
        %v822 = vadd.f32 %v753, %v821
        %v823 = vpop.f32.mrb[0].mxu0
        %824 = vdwg.mxu0
        %vm825 = vcmask 261120
        %v827 = vsel %vm825, %v661, 0
        %v830 = vsel %vm825, %v743, 0
        %832 = vmatprep.subr.mxu0 0.0
        %833 = vmatpush1.xpose.msra.mxu0 %v830
        %834 = vmatprep.subr.mxu0 0.0
        %835 = vmatpush1.xpose.msra.mxu0 0.0
        %836 = vmatprep.subr.mxu0 0.0
        %837 = vmatpush1.xpose.msra.mxu0 0.0
        %838 = vmatprep.subr.mxu0 0.0
        %839 = vmatpush1.xpose.msra.mxu0 0.0
        %840 = vmatprep.subr.mxu0 0.0
        %841 = vmatpush1.xpose.msra.mxu0 0.0
        %842 = vmatprep.subr.mxu0 0.0
        %843 = vmatpush1.xpose.msra.mxu0 0.0
        %844 = vmatprep.subr.mxu0 0.0
        %845 = vmatpush1.xpose.msra.mxu0 0.0
        %846 = vmatprep.subr.mxu0 0.0
        %847 = vmatpush1.xpose.msra.mxu0 0.0
        %848 = vmatprep.subr.mxu0 0.0
        %849 = vmatpush1.xpose.msra.mxu0 0.0
        %850 = vmatprep.subr.mxu0 0.0
        %851 = vmatpush1.xpose.msra.mxu0 0.0
        %852 = vmatprep.subr.mxu0 0.0
        %853 = vmatpush1.xpose.msra.mxu0 0.0
        %854 = vmatprep.subr.mxu0 0.0
        %855 = vmatpush1.xpose.msra.mxu0 0.0
        %856 = vmatprep.subr.mxu0 0.0
        %857 = vmatpush1.xpose.msra.mxu0 0.0
        %858 = vmatprep.subr.mxu0 0.0
        %859 = vmatpush1.xpose.msra.mxu0 0.0
        %860 = vmatprep.subr.mxu0 0.0
        %861 = vmatpush1.xpose.msra.mxu0 0.0
        %862 = vmatprep.subr.mxu0 0.0
        %863 = vmatpush1.xpose.msra.mxu0 0.0
        %864 = vmatprep.subr.mxu0 0.0
        %865 = vmatpush1.xpose.msra.mxu0 0.0
        %866 = vmatprep.subr.mxu0 0.0
        %867 = vmatpush1.xpose.msra.mxu0 0.0
        %868 = vmatprep.subr.mxu0 0.0
        %869 = vmatpush1.xpose.msra.mxu0 0.0
        %870 = vmatprep.subr.mxu0 0.0
        %871 = vmatpush1.xpose.msra.mxu0 0.0
        %872 = vmatprep.subr.mxu0 0.0
        %873 = vmatpush1.xpose.msra.mxu0 0.0
        %874 = vmatprep.subr.mxu0 0.0
        %875 = vmatpush1.xpose.msra.mxu0 0.0
        %876 = vmatprep.subr.mxu0 0.0
        %877 = vmatpush1.xpose.msra.mxu0 0.0
        %878 = vmatprep.subr.mxu0 0.0
        %879 = vmatpush1.xpose.msra.mxu0 0.0
        %880 = vmatprep.subr.mxu0 0.0
        %881 = vmatpush1.xpose.msra.mxu0 0.0
        %882 = vmatprep.subr.mxu0 0.0
        %883 = vmatpush1.xpose.msra.mxu0 0.0
        %884 = vmatprep.subr.mxu0 0.0
        %885 = vmatpush1.xpose.msra.mxu0 0.0
        %886 = vmatprep.subr.mxu0 0.0
        %887 = vmatpush1.xpose.msra.mxu0 0.0
        %888 = vmatprep.subr.mxu0 0.0
        %889 = vmatpush1.xpose.msra.mxu0 0.0
        %890 = vmatprep.subr.mxu0 0.0
        %891 = vmatpush1.xpose.msra.mxu0 0.0
        %892 = vmatprep.subr.mxu0 0.0
        %893 = vmatpush1.xpose.msra.mxu0 0.0
        %894 = vmatprep.subr.mxu0 0.0
        %895 = vmatpush1.xpose.msra.mxu0 0.0
        %896 = vmatprep.mubr.f32.mxu0 0.0
        %897 = vmatmul.mubr.f32.gmra.mrb[0].mxu0 %v827
        %v898 = vpop.f32.mrb[0].mxu0
        %v899 = vadd.f32 0.0, %v898
        %v900 = vpop.f32.mrb[0].mxu0
        %901 = vdwg.mxu0
        %v902 = vld [vmem:[%s566] sm:$0xff]
        %vm903 = vcmp.gt.f32.partialorder %v902, 0.0
        %v904 = vsel %vm903, %v899, -1e+30
        %vm905 = vcmask 64512
        %v906 = vsel %vm905, %v904, -inf
        %907 = vmax.xlane.f32.xlu0 %v906
        %v908 = vpop.xlane.xlu0 %907
        %v909 = vsub.f32 %v904, %v908
        %v910 = vmul.f32 %v909, 1.442695
        %v911 = vpow.pop %v910
        %v912 = vmul.f32 %v911, %v902
        %v913 = vsel %vm905, %v912, 0.0
        %914 = vadd.xlane.f32.xlu0 %v913
        %v915 = vpop.xlane.xlu0 %914
        %v916 = vmax.f32 %v915, 1e-30
        %v917 = vrcp.pop %v916
        %v918 = vmul.f32 %v912, %v917
        %v920 = vsel %vm905, %v918, 0
        %922 = vmatprep.subr.mxu0 0.0
        %923 = vmatpush1.msra.mxu0 %v822
        %924 = vmatprep.subr.mxu0 0.0
        %925 = vmatpush1.msra.mxu0 0.0
        %926 = vmatprep.subr.mxu0 0.0
        %927 = vmatpush1.msra.mxu0 0.0
        %928 = vmatprep.subr.mxu0 0.0
        %929 = vmatpush1.msra.mxu0 0.0
        %930 = vmatprep.subr.mxu0 0.0
        %931 = vmatpush1.msra.mxu0 0.0
        %932 = vmatprep.subr.mxu0 0.0
        %933 = vmatpush1.msra.mxu0 0.0
        %934 = vmatprep.subr.mxu0 0.0
        %935 = vmatpush1.msra.mxu0 0.0
        %936 = vmatprep.subr.mxu0 0.0
        %937 = vmatpush1.msra.mxu0 0.0
        %938 = vmatprep.subr.mxu0 0.0
        %939 = vmatpush1.msra.mxu0 0.0
        %940 = vmatprep.subr.mxu0 0.0
        %941 = vmatpush1.msra.mxu0 0.0
        %942 = vmatprep.subr.mxu0 0.0
        %943 = vmatpush1.msra.mxu0 0.0
        %944 = vmatprep.subr.mxu0 0.0
        %945 = vmatpush1.msra.mxu0 0.0
        %946 = vmatprep.subr.mxu0 0.0
        %947 = vmatpush1.msra.mxu0 0.0
        %948 = vmatprep.subr.mxu0 0.0
        %949 = vmatpush1.msra.mxu0 0.0
        %950 = vmatprep.subr.mxu0 0.0
        %951 = vmatpush1.msra.mxu0 0.0
        %952 = vmatprep.subr.mxu0 0.0
        %953 = vmatpush1.msra.mxu0 0.0
        %954 = vmatprep.subr.mxu0 0.0
        %955 = vmatpush1.msra.mxu0 0.0
        %956 = vmatprep.subr.mxu0 0.0
        %957 = vmatpush1.msra.mxu0 0.0
        %958 = vmatprep.subr.mxu0 0.0
        %959 = vmatpush1.msra.mxu0 0.0
        %960 = vmatprep.subr.mxu0 0.0
        %961 = vmatpush1.msra.mxu0 0.0
        %962 = vmatprep.subr.mxu0 0.0
        %963 = vmatpush1.msra.mxu0 0.0
        %964 = vmatprep.subr.mxu0 0.0
        %965 = vmatpush1.msra.mxu0 0.0
        %966 = vmatprep.subr.mxu0 0.0
        %967 = vmatpush1.msra.mxu0 0.0
        %968 = vmatprep.subr.mxu0 0.0
        %969 = vmatpush1.msra.mxu0 0.0
        %970 = vmatprep.subr.mxu0 0.0
        %971 = vmatpush1.msra.mxu0 0.0
        %972 = vmatprep.subr.mxu0 0.0
        %973 = vmatpush1.msra.mxu0 0.0
        %974 = vmatprep.subr.mxu0 0.0
        %975 = vmatpush1.msra.mxu0 0.0
        %976 = vmatprep.subr.mxu0 0.0
        %977 = vmatpush1.msra.mxu0 0.0
        %978 = vmatprep.subr.mxu0 0.0
        %979 = vmatpush1.msra.mxu0 0.0
        %980 = vmatprep.subr.mxu0 0.0
        %981 = vmatpush1.msra.mxu0 0.0
        %982 = vmatprep.subr.mxu0 0.0
        %983 = vmatpush1.msra.mxu0 0.0
        %984 = vmatprep.subr.mxu0 0.0
        %985 = vmatpush1.msra.mxu0 0.0
        %986 = vmatprep.mubr.f32.mxu0 0.0
        %987 = vmatmul.mubr.f32.gmra.mrb[0].mxu0 %v920
        %v988 = vpop.f32.mrb[0].mxu0
        %v989 = vadd.f32 0.0, %v988
        %v990 = vpop.f32.mrb[0].mxu0
        %991 = vdwg.mxu0
        %v992 = vmul.f32 %v989, 0.5
        %v993 = vmul.f32 %v989, 0.044715
        %v994 = vmul.f32 %v993, %v989
        %v995 = vmul.f32 %v994, %v989
        %v996 = vadd.f32 %v989, %v995
        %v997 = vmul.f32 %v996, 0.7978846
        %v998 = vtanh.pop %v997
        %v999 = vadd.f32 %v998, 1.0
        %v1000 = vmul.f32 %v992, %v999
        %v1001 = vld [vmem:[%s571] sm:$0xff]
        %v1002 = vld [vmem:[%s571 + $0x8] sm:$0xff]
        %v1003 = vld [vmem:[%s571 + $0x10] sm:$0xff]
        %v1004 = vld [vmem:[%s571 + $0x18] sm:$0xff]
        %v1005 = vld [vmem:[%s574] sm:$0x1]
        %v1007 = vlaneseq
        %v1008 = vshrl.u32 %v1007, 7
        %v1009 = vsub.s32 0, %v1008
        %v1010 = vrot.slane %v1005, %v1009
        %v1013 = vsel %vm825, %v1000, 0
        %1015 = vmatprep.subr.mxu0 0.0
        %1016 = vmatpush1.msra.mxu0 %v1001
        %1017 = vmatprep.subr.mxu0 0.0
        %1018 = vmatpush1.msra.mxu0 %v1002
        %1019 = vmatprep.subr.mxu0 0.0
        %1020 = vmatpush1.msra.mxu0 %v1003
        %1021 = vmatprep.subr.mxu0 0.0
        %1022 = vmatpush1.msra.mxu0 %v1004
        %1023 = vmatprep.subr.mxu0 0.0
        %1024 = vmatpush1.msra.mxu0 0.0
        %1025 = vmatprep.subr.mxu0 0.0
        %1026 = vmatpush1.msra.mxu0 0.0
        %1027 = vmatprep.subr.mxu0 0.0
        %1028 = vmatpush1.msra.mxu0 0.0
        %1029 = vmatprep.subr.mxu0 0.0
        %1030 = vmatpush1.msra.mxu0 0.0
        %1031 = vmatprep.subr.mxu0 0.0
        %1032 = vmatpush1.msra.mxu0 0.0
        %1033 = vmatprep.subr.mxu0 0.0
        %1034 = vmatpush1.msra.mxu0 0.0
        %1035 = vmatprep.subr.mxu0 0.0
        %1036 = vmatpush1.msra.mxu0 0.0
        %1037 = vmatprep.subr.mxu0 0.0
        %1038 = vmatpush1.msra.mxu0 0.0
        %1039 = vmatprep.subr.mxu0 0.0
        %1040 = vmatpush1.msra.mxu0 0.0
        %1041 = vmatprep.subr.mxu0 0.0
        %1042 = vmatpush1.msra.mxu0 0.0
        %1043 = vmatprep.subr.mxu0 0.0
        %1044 = vmatpush1.msra.mxu0 0.0
        %1045 = vmatprep.subr.mxu0 0.0
        %1046 = vmatpush1.msra.mxu0 0.0
        %1047 = vmatprep.subr.mxu0 0.0
        %1048 = vmatpush1.msra.mxu0 0.0
        %1049 = vmatprep.subr.mxu0 0.0
        %1050 = vmatpush1.msra.mxu0 0.0
        %1051 = vmatprep.subr.mxu0 0.0
        %1052 = vmatpush1.msra.mxu0 0.0
        %1053 = vmatprep.subr.mxu0 0.0
        %1054 = vmatpush1.msra.mxu0 0.0
        %1055 = vmatprep.subr.mxu0 0.0
        %1056 = vmatpush1.msra.mxu0 0.0
        %1057 = vmatprep.subr.mxu0 0.0
        %1058 = vmatpush1.msra.mxu0 0.0
        %1059 = vmatprep.subr.mxu0 0.0
        %1060 = vmatpush1.msra.mxu0 0.0
        %1061 = vmatprep.subr.mxu0 0.0
        %1062 = vmatpush1.msra.mxu0 0.0
        %1063 = vmatprep.subr.mxu0 0.0
        %1064 = vmatpush1.msra.mxu0 0.0
        %1065 = vmatprep.subr.mxu0 0.0
        %1066 = vmatpush1.msra.mxu0 0.0
        %1067 = vmatprep.subr.mxu0 0.0
        %1068 = vmatpush1.msra.mxu0 0.0
        %1069 = vmatprep.subr.mxu0 0.0
        %1070 = vmatpush1.msra.mxu0 0.0
        %1071 = vmatprep.subr.mxu0 0.0
        %1072 = vmatpush1.msra.mxu0 0.0
        %1073 = vmatprep.subr.mxu0 0.0
        %1074 = vmatpush1.msra.mxu0 0.0
        %1075 = vmatprep.subr.mxu0 0.0
        %1076 = vmatpush1.msra.mxu0 0.0
        %1077 = vmatprep.subr.mxu0 0.0
        %1078 = vmatpush1.msra.mxu0 0.0
        %1079 = vmatprep.mubr.f32.mxu0 0.0
        %1080 = vmatmul.mubr.f32.gmra.mrb[0].mxu0 %v1013
        %v1081 = vpop.f32.mrb[0].mxu0
        %v1082 = vadd.f32 %v1010, %v1081
        %v1083 = vpop.f32.mrb[0].mxu0
        %1084 = vdwg.mxu0
        %1085 = vst.msk [vmem:[%s578] sm:$0xff] %vm825, %v1082
        %p1086 = scmp.lt.s32.totalorder %s25, 1
        %s1087 = scalar_select %p1086, %s25, 1
        %s1088 = smul.addr %s1087, 8
        %s1089 = scalar_lea.vmem %s11, %s1088
        // Predicated region
        $region69: #{hgt_forward.5} parent=63 // pred_check
          %p1090 = pneg %p331
        $region70: #{hgt_forward.5} parent=63 // pred_check_branch
          %1092 = sbr.rel (%p1090) target = $region72
        $region71: #{hgt_forward.5} parent=63 // pred_region
          _
        $region72: #{hgt_forward.5} parent=63 // pred_fallthru
          _
      $region64: #{hgt_forward.5} parent=5 // pred_fallthru
        _
      %p1093 = scmp.le.s32.totalorder 2, %s20
      // Predicated region
      $region73: #{hgt_forward.5} parent=5 // pred_check
        %p1094 = pneg %p1093
      $region74: #{hgt_forward.5} parent=5 // pred_check_branch
        %1096 = sbr.rel (%p1094) target = $region76
      $region75: #{hgt_forward.5} parent=5 // pred_region
        %s1097 = ssub.s32 %s20, 2
        // Predicated region
        $region77: #{hgt_forward.5} parent=75 // pred_check
          %p1098 = pneg %p337
        $region78: #{hgt_forward.5} parent=75 // pred_check_branch
          %1100 = sbr.rel (%p1098) target = $region80
        $region79: #{hgt_forward.5} parent=75 // pred_region
          %p1101 = scmp.lt.s32.totalorder %s26, 1
          %s1102 = scalar_select %p1101, %s26, 1
          %s1103 = smul.addr %s1102, 8
          %s1104 = scalar_lea.vmem %s11, %s1103
        $region80: #{hgt_forward.5} parent=75 // pred_fallthru
          _
      $region76: #{hgt_forward.5} parent=5 // pred_fallthru
        _
    $region6: #{hgt_forward.5} parent=1 // loop_footer
      %s24 = sadd.s32 1, %s20
    $region7: #{hgt_forward.5} parent=1 // loop_footer_branch
      %19 = sbr.rel target = $region3
    $region8: #{hgt_forward.5} parent=1 // loop_exit
      _
    %1105 = vsyncpa [#allocation3], 1
    %s1106 = scalar_lea.sflag [#allocation3], 1
    %1107 = vsyncpa %s1106, 1

// kernel: hgt_forward.6
$region0: #{hgt_forward.6}
  #allocation0 [shape = 'u32[]', space=smem, size = 0x4, offset = 0x4, fixed_abs, tag = 'smem constant byte address 0x4 - core index']
  #allocation1 [shape = 'u32[144,128]{1,0:T(1,128)}', space=vmem, size = 0x12000, scoped, tag = 'internal scratch']
  %s0 = inlined_call_operand.vmem [shape: f32[2,8,32], index: 0, kind: input, shape index: {}, may-alias: {0,1}]
  %s1 = inlined_call_operand.vmem [shape: f32[2,8,32], index: 1, kind: input, shape index: {}, may-alias: {0,1}]
  %s2 = inlined_call_operand.vmem [shape: f32[2,32,32], index: 2, kind: input, shape index: {}]
  %s3 = inlined_call_operand.vmem [shape: f32[2,1,32], index: 3, kind: input, shape index: {}]
  %s4 = inlined_call_operand.vmem [shape: f32[2,32,32], index: 4, kind: input, shape index: {}]
  %s5 = inlined_call_operand.vmem [shape: f32[2,1,32], index: 5, kind: input, shape index: {}]
  %s6 = inlined_call_operand.vmem [shape: f32[2,32,32], index: 6, kind: input, shape index: {}]
  %s7 = inlined_call_operand.vmem [shape: f32[2,1,32], index: 7, kind: input, shape index: {}]
  %s8 = inlined_call_operand.vmem [shape: f32[2,8,8], index: 8, kind: input, shape index: {}]
  %s9 = inlined_call_operand.hbm [shape: f32[2,32,32], index: 9, kind: input, shape index: {}]
  %s10 = inlined_call_operand.vmem [shape: f32[2,1,32], index: 10, kind: input, shape index: {}]
  %s11 = inlined_call_operand.vmem [shape: f32[2,1,1], index: 11, kind: input, shape index: {}]
  %s12 = inlined_call_operand.vmem [shape: f32[2,8,32], index: 12, kind: output, shape index: {}]
  %s13 = sld [smem:[#allocation0]]
  $region85: #{hgt_forward.6} parent=0
    _
  %s15 = ssub.s32 1, %s13
  %s16 = scalar_select 0, %s15, %s13
  $region1: #{hgt_forward.6} parent=0
    #allocation2 [shape = 'u8[32768]{0}', space=vmem, size = 0x8000, scoped, tag = 'input window, operand 9']
    #allocation3 [shape = 's32[2]{0}', space=sflag, size = 0x8, scoped, tag = 'scoped memory for hgt_forward.6']
    %17 = vsyncpa [#allocation3], 0
    %s18 = scalar_lea.sflag [#allocation3], 1
    %19 = vsyncpa %s18, 0
    loop: start=0, step=1, limit=4
    $region2: #{hgt_forward.6} parent=1 // loop_pre_header
      _
    $region3: #{hgt_forward.6} parent=1 // loop_header
      %s21 = sphi 0, %s25
      %p22 = scmp.ge.s32.totalorder %s21, 4
      %s31 = sphi 0, %s33
      %s34 = sphi 0, %s31
      %s35 = sphi 0, %s34
      %s51 = sphi 0, %s35
      %s59 = sphi 0, %s61
      %s62 = sphi 0, %s59
      %s63 = sphi 0, %s62
      %s79 = sphi 0, %s63
      %s85 = sphi 0, %s87
      %s88 = sphi 0, %s85
      %s89 = sphi 0, %s88
      %s105 = sphi 0, %s89
      %s111 = sphi 0, %s113
      %s114 = sphi 0, %s111
      %s115 = sphi 0, %s114
      %s131 = sphi 0, %s115
      %s137 = sphi 0, %s139
      %s140 = sphi 0, %s137
      %s141 = sphi 0, %s140
      %s157 = sphi 0, %s141
      %s163 = sphi 0, %s165
      %s166 = sphi 0, %s163
      %s167 = sphi 0, %s166
      %s183 = sphi 0, %s167
      %s189 = sphi 0, %s191
      %s192 = sphi 0, %s189
      %s193 = sphi 0, %s192
      %s209 = sphi 0, %s193
      %s215 = sphi 0, %s217
      %s218 = sphi 0, %s215
      %s219 = sphi 0, %s218
      %s235 = sphi 0, %s219
      %s241 = sphi 0, %s243
      %s244 = sphi 0, %s241
      %s245 = sphi 0, %s244
      %s261 = sphi 0, %s245
      %s267 = sphi 0, %s269
      %s270 = sphi 0, %s267
      %s271 = sphi 0, %s270
      %s287 = sphi 0, %s271
      %s293 = sphi 0, %s295
      %s296 = sphi 0, %s293
      %s297 = sphi 0, %s296
      %s313 = sphi 0, %s297
      %s319 = sphi 0, %s321
      %s322 = sphi 0, %s319
      %s323 = sphi 0, %s322
      %s339 = sphi 0, %s323
      %s345 = sphi 0, %s347
      %s348 = sphi 0, %s345
      %s349 = sphi 0, %s348
      %s365 = sphi 0, %s349
    $region4: #{hgt_forward.6} parent=1 // loop_header_branch
      %24 = sbr.rel (%p22) target = $region8
    $region5: #{hgt_forward.6} parent=1 // loop_body
      %s26 = ssub.s32 %s21, 1
      %s27 = ssub.s32 %s21, 2
      %s28 = sadd.s32 %s21, 1
      %s29 = ssub.s32 %s21, %s28
      %p30 = scmp.eq.s32.totalorder %s29, 0
      %s32 = sadd.s32 %s31, 1
      %s33 = scalar_select %p30, %s31, %s32
      %p36 = pneg %p30
      %p37 = scmp.eq.s32.totalorder %s21, 1
      %p38 = por %p36, %p37
      %p39 = scmp.ne.s32.totalorder %s31, %s34
      %p40 = scmp.eq.s32.totalorder %s21, 0
      %p41 = por %p39, %p40
      %p42 = scmp.ne.s32.totalorder %s31, %s34
      %p43 = scmp.eq.s32.totalorder %s26, 1
      %p44 = por %p42, %p43
      %p45 = scmp.ne.s32.totalorder %s34, %s35
      %p46 = scmp.eq.s32.totalorder %s26, 0
      %p47 = por %p45, %p46
      %p48 = scmp.ne.s32.totalorder %s34, %s35
      %p49 = scmp.eq.s32.totalorder %s27, 1
      %p50 = por %p48, %p49
      %p52 = scmp.ne.s32.totalorder %s35, %s51
      %p53 = scmp.eq.s32.totalorder %s27, 0
      %p54 = por %p52, %p53
      %s55 = ssub.s32 1, %s21
      %s56 = ssub.s32 1, %s28
      %s57 = ssub.s32 %s55, %s56
      %p58 = scmp.eq.s32.totalorder %s57, 0
      %s60 = sadd.s32 %s59, 1
      %s61 = scalar_select %p58, %s59, %s60
      %p64 = pneg %p58
      %p65 = scmp.eq.s32.totalorder %s21, 1
      %p66 = por %p64, %p65
      %p67 = scmp.ne.s32.totalorder %s59, %s62
      %p68 = scmp.eq.s32.totalorder %s21, 0
      %p69 = por %p67, %p68
      %p70 = scmp.ne.s32.totalorder %s59, %s62
      %p71 = scmp.eq.s32.totalorder %s26, 1
      %p72 = por %p70, %p71
      %p73 = scmp.ne.s32.totalorder %s62, %s63
      %p74 = scmp.eq.s32.totalorder %s26, 0
      %p75 = por %p73, %p74
      %p76 = scmp.ne.s32.totalorder %s62, %s63
      %p77 = scmp.eq.s32.totalorder %s27, 1
      %p78 = por %p76, %p77
      %p80 = scmp.ne.s32.totalorder %s63, %s79
      %p81 = scmp.eq.s32.totalorder %s27, 0
      %p82 = por %p80, %p81
      %s83 = ssub.s32 %s21, %s28
      %p84 = scmp.eq.s32.totalorder %s83, 0
      %s86 = sadd.s32 %s85, 1
      %s87 = scalar_select %p84, %s85, %s86
      %p90 = pneg %p84
      %p91 = scmp.eq.s32.totalorder %s21, 1
      %p92 = por %p90, %p91
      %p93 = scmp.ne.s32.totalorder %s85, %s88
      %p94 = scmp.eq.s32.totalorder %s21, 0
      %p95 = por %p93, %p94
      %p96 = scmp.ne.s32.totalorder %s85, %s88
      %p97 = scmp.eq.s32.totalorder %s26, 1
      %p98 = por %p96, %p97
      %p99 = scmp.ne.s32.totalorder %s88, %s89
      %p100 = scmp.eq.s32.totalorder %s26, 0
      %p101 = por %p99, %p100
      %p102 = scmp.ne.s32.totalorder %s88, %s89
      %p103 = scmp.eq.s32.totalorder %s27, 1
      %p104 = por %p102, %p103
      %p106 = scmp.ne.s32.totalorder %s89, %s105
      %p107 = scmp.eq.s32.totalorder %s27, 0
      %p108 = por %p106, %p107
      %s109 = ssub.s32 %s21, %s28
      %p110 = scmp.eq.s32.totalorder %s109, 0
      %s112 = sadd.s32 %s111, 1
      %s113 = scalar_select %p110, %s111, %s112
      %p116 = pneg %p110
      %p117 = scmp.eq.s32.totalorder %s21, 1
      %p118 = por %p116, %p117
      %p119 = scmp.ne.s32.totalorder %s111, %s114
      %p120 = scmp.eq.s32.totalorder %s21, 0
      %p121 = por %p119, %p120
      %p122 = scmp.ne.s32.totalorder %s111, %s114
      %p123 = scmp.eq.s32.totalorder %s26, 1
      %p124 = por %p122, %p123
      %p125 = scmp.ne.s32.totalorder %s114, %s115
      %p126 = scmp.eq.s32.totalorder %s26, 0
      %p127 = por %p125, %p126
      %p128 = scmp.ne.s32.totalorder %s114, %s115
      %p129 = scmp.eq.s32.totalorder %s27, 1
      %p130 = por %p128, %p129
      %p132 = scmp.ne.s32.totalorder %s115, %s131
      %p133 = scmp.eq.s32.totalorder %s27, 0
      %p134 = por %p132, %p133
      %s135 = ssub.s32 %s21, %s28
      %p136 = scmp.eq.s32.totalorder %s135, 0
      %s138 = sadd.s32 %s137, 1
      %s139 = scalar_select %p136, %s137, %s138
      %p142 = pneg %p136
      %p143 = scmp.eq.s32.totalorder %s21, 1
      %p144 = por %p142, %p143
      %p145 = scmp.ne.s32.totalorder %s137, %s140
      %p146 = scmp.eq.s32.totalorder %s21, 0
      %p147 = por %p145, %p146
      %p148 = scmp.ne.s32.totalorder %s137, %s140
      %p149 = scmp.eq.s32.totalorder %s26, 1
      %p150 = por %p148, %p149
      %p151 = scmp.ne.s32.totalorder %s140, %s141
      %p152 = scmp.eq.s32.totalorder %s26, 0
      %p153 = por %p151, %p152
      %p154 = scmp.ne.s32.totalorder %s140, %s141
      %p155 = scmp.eq.s32.totalorder %s27, 1
      %p156 = por %p154, %p155
      %p158 = scmp.ne.s32.totalorder %s141, %s157
      %p159 = scmp.eq.s32.totalorder %s27, 0
      %p160 = por %p158, %p159
      %s161 = ssub.s32 %s21, %s28
      %p162 = scmp.eq.s32.totalorder %s161, 0
      %s164 = sadd.s32 %s163, 1
      %s165 = scalar_select %p162, %s163, %s164
      %p168 = pneg %p162
      %p169 = scmp.eq.s32.totalorder %s21, 1
      %p170 = por %p168, %p169
      %p171 = scmp.ne.s32.totalorder %s163, %s166
      %p172 = scmp.eq.s32.totalorder %s21, 0
      %p173 = por %p171, %p172
      %p174 = scmp.ne.s32.totalorder %s163, %s166
      %p175 = scmp.eq.s32.totalorder %s26, 1
      %p176 = por %p174, %p175
      %p177 = scmp.ne.s32.totalorder %s166, %s167
      %p178 = scmp.eq.s32.totalorder %s26, 0
      %p179 = por %p177, %p178
      %p180 = scmp.ne.s32.totalorder %s166, %s167
      %p181 = scmp.eq.s32.totalorder %s27, 1
      %p182 = por %p180, %p181
      %p184 = scmp.ne.s32.totalorder %s167, %s183
      %p185 = scmp.eq.s32.totalorder %s27, 0
      %p186 = por %p184, %p185
      %s187 = ssub.s32 %s21, %s28
      %p188 = scmp.eq.s32.totalorder %s187, 0
      %s190 = sadd.s32 %s189, 1
      %s191 = scalar_select %p188, %s189, %s190
      %p194 = pneg %p188
      %p195 = scmp.eq.s32.totalorder %s21, 1
      %p196 = por %p194, %p195
      %p197 = scmp.ne.s32.totalorder %s189, %s192
      %p198 = scmp.eq.s32.totalorder %s21, 0
      %p199 = por %p197, %p198
      %p200 = scmp.ne.s32.totalorder %s189, %s192
      %p201 = scmp.eq.s32.totalorder %s26, 1
      %p202 = por %p200, %p201
      %p203 = scmp.ne.s32.totalorder %s192, %s193
      %p204 = scmp.eq.s32.totalorder %s26, 0
      %p205 = por %p203, %p204
      %p206 = scmp.ne.s32.totalorder %s192, %s193
      %p207 = scmp.eq.s32.totalorder %s27, 1
      %p208 = por %p206, %p207
      %p210 = scmp.ne.s32.totalorder %s193, %s209
      %p211 = scmp.eq.s32.totalorder %s27, 0
      %p212 = por %p210, %p211
      %s213 = ssub.s32 %s21, %s28
      %p214 = scmp.eq.s32.totalorder %s213, 0
      %s216 = sadd.s32 %s215, 1
      %s217 = scalar_select %p214, %s215, %s216
      %p220 = pneg %p214
      %p221 = scmp.eq.s32.totalorder %s21, 1
      %p222 = por %p220, %p221
      %p223 = scmp.ne.s32.totalorder %s215, %s218
      %p224 = scmp.eq.s32.totalorder %s21, 0
      %p225 = por %p223, %p224
      %p226 = scmp.ne.s32.totalorder %s215, %s218
      %p227 = scmp.eq.s32.totalorder %s26, 1
      %p228 = por %p226, %p227
      %p229 = scmp.ne.s32.totalorder %s218, %s219
      %p230 = scmp.eq.s32.totalorder %s26, 0
      %p231 = por %p229, %p230
      %p232 = scmp.ne.s32.totalorder %s218, %s219
      %p233 = scmp.eq.s32.totalorder %s27, 1
      %p234 = por %p232, %p233
      %p236 = scmp.ne.s32.totalorder %s219, %s235
      %p237 = scmp.eq.s32.totalorder %s27, 0
      %p238 = por %p236, %p237
      %s239 = ssub.s32 %s21, %s28
      %p240 = scmp.eq.s32.totalorder %s239, 0
      %s242 = sadd.s32 %s241, 1
      %s243 = scalar_select %p240, %s241, %s242
      %p246 = pneg %p240
      %p247 = scmp.eq.s32.totalorder %s21, 1
      %p248 = por %p246, %p247
      %p249 = scmp.ne.s32.totalorder %s241, %s244
      %p250 = scmp.eq.s32.totalorder %s21, 0
      %p251 = por %p249, %p250
      %p252 = scmp.ne.s32.totalorder %s241, %s244
      %p253 = scmp.eq.s32.totalorder %s26, 1
      %p254 = por %p252, %p253
      %p255 = scmp.ne.s32.totalorder %s244, %s245
      %p256 = scmp.eq.s32.totalorder %s26, 0
      %p257 = por %p255, %p256
      %p258 = scmp.ne.s32.totalorder %s244, %s245
      %p259 = scmp.eq.s32.totalorder %s27, 1
      %p260 = por %p258, %p259
      %p262 = scmp.ne.s32.totalorder %s245, %s261
      %p263 = scmp.eq.s32.totalorder %s27, 0
      %p264 = por %p262, %p263
      %s265 = ssub.s32 %s21, %s28
      %p266 = scmp.eq.s32.totalorder %s265, 0
      %s268 = sadd.s32 %s267, 1
      %s269 = scalar_select %p266, %s267, %s268
      %p272 = pneg %p266
      %p273 = scmp.eq.s32.totalorder %s21, 1
      %p274 = por %p272, %p273
      %p275 = scmp.ne.s32.totalorder %s267, %s270
      %p276 = scmp.eq.s32.totalorder %s21, 0
      %p277 = por %p275, %p276
      %p278 = scmp.ne.s32.totalorder %s267, %s270
      %p279 = scmp.eq.s32.totalorder %s26, 1
      %p280 = por %p278, %p279
      %p281 = scmp.ne.s32.totalorder %s270, %s271
      %p282 = scmp.eq.s32.totalorder %s26, 0
      %p283 = por %p281, %p282
      %p284 = scmp.ne.s32.totalorder %s270, %s271
      %p285 = scmp.eq.s32.totalorder %s27, 1
      %p286 = por %p284, %p285
      %p288 = scmp.ne.s32.totalorder %s271, %s287
      %p289 = scmp.eq.s32.totalorder %s27, 0
      %p290 = por %p288, %p289
      %s291 = ssub.s32 %s21, %s28
      %p292 = scmp.eq.s32.totalorder %s291, 0
      %s294 = sadd.s32 %s293, 1
      %s295 = scalar_select %p292, %s293, %s294
      %p298 = pneg %p292
      %p299 = scmp.eq.s32.totalorder %s21, 1
      %p300 = por %p298, %p299
      %p301 = scmp.ne.s32.totalorder %s293, %s296
      %p302 = scmp.eq.s32.totalorder %s21, 0
      %p303 = por %p301, %p302
      %p304 = scmp.ne.s32.totalorder %s293, %s296
      %p305 = scmp.eq.s32.totalorder %s26, 1
      %p306 = por %p304, %p305
      %p307 = scmp.ne.s32.totalorder %s296, %s297
      %p308 = scmp.eq.s32.totalorder %s26, 0
      %p309 = por %p307, %p308
      %p310 = scmp.ne.s32.totalorder %s296, %s297
      %p311 = scmp.eq.s32.totalorder %s27, 1
      %p312 = por %p310, %p311
      %p314 = scmp.ne.s32.totalorder %s297, %s313
      %p315 = scmp.eq.s32.totalorder %s27, 0
      %p316 = por %p314, %p315
      %s317 = ssub.s32 %s21, %s28
      %p318 = scmp.eq.s32.totalorder %s317, 0
      %s320 = sadd.s32 %s319, 1
      %s321 = scalar_select %p318, %s319, %s320
      %p324 = pneg %p318
      %p325 = scmp.eq.s32.totalorder %s21, 1
      %p326 = por %p324, %p325
      %p327 = scmp.ne.s32.totalorder %s319, %s322
      %p328 = scmp.eq.s32.totalorder %s21, 0
      %p329 = por %p327, %p328
      %p330 = scmp.ne.s32.totalorder %s319, %s322
      %p331 = scmp.eq.s32.totalorder %s26, 1
      %p332 = por %p330, %p331
      %p333 = scmp.ne.s32.totalorder %s322, %s323
      %p334 = scmp.eq.s32.totalorder %s26, 0
      %p335 = por %p333, %p334
      %p336 = scmp.ne.s32.totalorder %s322, %s323
      %p337 = scmp.eq.s32.totalorder %s27, 1
      %p338 = por %p336, %p337
      %p340 = scmp.ne.s32.totalorder %s323, %s339
      %p341 = scmp.eq.s32.totalorder %s27, 0
      %p342 = por %p340, %p341
      %s343 = ssub.s32 %s21, %s28
      %p344 = scmp.eq.s32.totalorder %s343, 0
      %s346 = sadd.s32 %s345, 1
      %s347 = scalar_select %p344, %s345, %s346
      %p350 = pneg %p344
      %p351 = scmp.eq.s32.totalorder %s21, 1
      %p352 = por %p350, %p351
      %p353 = scmp.ne.s32.totalorder %s345, %s348
      %p354 = scmp.eq.s32.totalorder %s21, 0
      %p355 = por %p353, %p354
      %p356 = scmp.ne.s32.totalorder %s345, %s348
      %p357 = scmp.eq.s32.totalorder %s26, 1
      %p358 = por %p356, %p357
      %p359 = scmp.ne.s32.totalorder %s348, %s349
      %p360 = scmp.eq.s32.totalorder %s26, 0
      %p361 = por %p359, %p360
      %p362 = scmp.ne.s32.totalorder %s348, %s349
      %p363 = scmp.eq.s32.totalorder %s27, 1
      %p364 = por %p362, %p363
      %p366 = scmp.ne.s32.totalorder %s349, %s365
      %p367 = scmp.eq.s32.totalorder %s27, 0
      %p368 = por %p366, %p367
      %p369 = scmp.le.s32.totalorder 1, %s21
      %p370 = scmp.lt.s32.totalorder %s21, 3
      %p371 = pnand %p369, %p370
      %p372 = pneg %p371
      // Predicated region
      $region9: #{hgt_forward.6} parent=5 // pred_check
        _
      $region10: #{hgt_forward.6} parent=5 // pred_check_branch
        %374 = sbr.rel (%p371) target = $region12
      $region11: #{hgt_forward.6} parent=5 // pred_region
        %s375 = ssub.s32 %s21, 1
      $region12: #{hgt_forward.6} parent=5 // pred_fallthru
        _
      %p376 = scmp.lt.s32.totalorder %s21, 2
      // Predicated region
      $region13: #{hgt_forward.6} parent=5 // pred_check
        %p377 = pneg %p376
      $region14: #{hgt_forward.6} parent=5 // pred_check_branch
        %379 = sbr.rel (%p377) target = $region16
      $region15: #{hgt_forward.6} parent=5 // pred_region
        // Predicated region
        $region17: #{hgt_forward.6} parent=15 // pred_check
          %p380 = pneg %p41
        $region18: #{hgt_forward.6} parent=15 // pred_check_branch
          %382 = sbr.rel (%p380) target = $region20
        $region19: #{hgt_forward.6} parent=15 // pred_region
          %p383 = scmp.lt.s32.totalorder %s21, 1
          %s384 = scalar_select %p383, %s21, 1
          %s385 = smul.addr %s384, 8
          %s386 = scalar_lea.vmem %s0, %s385
        $region20: #{hgt_forward.6} parent=15 // pred_fallthru
          _
        // Predicated region
        $region21: #{hgt_forward.6} parent=15 // pred_check
          %p387 = pneg %p69
        $region22: #{hgt_forward.6} parent=15 // pred_check_branch
          %389 = sbr.rel (%p387) target = $region24
        $region23: #{hgt_forward.6} parent=15 // pred_region
          %s390 = ssub.s32 1, %s21
          %p391 = scmp.lt.s32.totalorder %s390, 1
          %s392 = scalar_select %p391, %s390, 1
          %s393 = smul.addr %s392, 8
          %s394 = scalar_lea.vmem %s1, %s393
          %s395 = ssub.s32 1, %s21
        $region24: #{hgt_forward.6} parent=15 // pred_fallthru
          _
        // Predicated region
        $region25: #{hgt_forward.6} parent=15 // pred_check
          %p396 = pneg %p95
        $region26: #{hgt_forward.6} parent=15 // pred_check_branch
          %398 = sbr.rel (%p396) target = $region28
        $region27: #{hgt_forward.6} parent=15 // pred_region
          %p399 = scmp.lt.s32.totalorder %s21, 1
          %s400 = scalar_select %p399, %s21, 1
          %s401 = smul.addr %s400, 4
          %s402 = smul.addr %s401, 8
          %s403 = scalar_lea.vmem %s2, %s402
        $region28: #{hgt_forward.6} parent=15 // pred_fallthru
          _
        // Predicated region
        $region29: #{hgt_forward.6} parent=15 // pred_check
          %p404 = pneg %p121
        $region30: #{hgt_forward.6} parent=15 // pred_check_branch
          %406 = sbr.rel (%p404) target = $region32
        $region31: #{hgt_forward.6} parent=15 // pred_region
          %p407 = scmp.lt.s32.totalorder %s21, 1
          %s408 = scalar_select %p407, %s21, 1
          %s409 = scalar_lea.vmem %s3, %s408
        $region32: #{hgt_forward.6} parent=15 // pred_fallthru
          _
        // Predicated region
        $region33: #{hgt_forward.6} parent=15 // pred_check
          %p410 = pneg %p147
        $region34: #{hgt_forward.6} parent=15 // pred_check_branch
          %412 = sbr.rel (%p410) target = $region36
        $region35: #{hgt_forward.6} parent=15 // pred_region
          %p413 = scmp.lt.s32.totalorder %s21, 1
          %s414 = scalar_select %p413, %s21, 1
          %s415 = smul.addr %s414, 4
          %s416 = smul.addr %s415, 8
          %s417 = scalar_lea.vmem %s4, %s416
        $region36: #{hgt_forward.6} parent=15 // pred_fallthru
          _
        // Predicated region
        $region37: #{hgt_forward.6} parent=15 // pred_check
          %p418 = pneg %p173
        $region38: #{hgt_forward.6} parent=15 // pred_check_branch
          %420 = sbr.rel (%p418) target = $region40
        $region39: #{hgt_forward.6} parent=15 // pred_region
          %p421 = scmp.lt.s32.totalorder %s21, 1
          %s422 = scalar_select %p421, %s21, 1
          %s423 = scalar_lea.vmem %s5, %s422
        $region40: #{hgt_forward.6} parent=15 // pred_fallthru
          _
        // Predicated region
        $region41: #{hgt_forward.6} parent=15 // pred_check
          %p424 = pneg %p199
        $region42: #{hgt_forward.6} parent=15 // pred_check_branch
          %426 = sbr.rel (%p424) target = $region44
        $region43: #{hgt_forward.6} parent=15 // pred_region
          %p427 = scmp.lt.s32.totalorder %s21, 1
          %s428 = scalar_select %p427, %s21, 1
          %s429 = smul.addr %s428, 4
          %s430 = smul.addr %s429, 8
          %s431 = scalar_lea.vmem %s6, %s430
        $region44: #{hgt_forward.6} parent=15 // pred_fallthru
          _
        // Predicated region
        $region45: #{hgt_forward.6} parent=15 // pred_check
          %p432 = pneg %p225
        $region46: #{hgt_forward.6} parent=15 // pred_check_branch
          %434 = sbr.rel (%p432) target = $region48
        $region47: #{hgt_forward.6} parent=15 // pred_region
          %p435 = scmp.lt.s32.totalorder %s21, 1
          %s436 = scalar_select %p435, %s21, 1
          %s437 = scalar_lea.vmem %s7, %s436
        $region48: #{hgt_forward.6} parent=15 // pred_fallthru
          _
        // Predicated region
        $region49: #{hgt_forward.6} parent=15 // pred_check
          %p438 = pneg %p251
        $region50: #{hgt_forward.6} parent=15 // pred_check_branch
          %440 = sbr.rel (%p438) target = $region52
        $region51: #{hgt_forward.6} parent=15 // pred_region
          %p441 = scmp.lt.s32.totalorder %s21, 1
          %s442 = scalar_select %p441, %s21, 1
          %s443 = smul.addr %s442, 8
          %s444 = scalar_lea.vmem %s8, %s443
        $region52: #{hgt_forward.6} parent=15 // pred_fallthru
          _
        // Predicated region
        $region53: #{hgt_forward.6} parent=15 // pred_check
          %p445 = pneg %p277
        $region54: #{hgt_forward.6} parent=15 // pred_check_branch
          %447 = sbr.rel (%p445) target = $region56
        $region55: #{hgt_forward.6} parent=15 // pred_region
          %s448 = sand.u32 %s267, 1
          %s449 = scalar_lea.sflag [#allocation3], %s448
          %s450 = sand.u32 %s267, 1
          %s451 = smul.addr %s450, 32
          %s452 = scalar_lea.vmem [#allocation2], %s451
          %s454 = ssub.s32 512, 512
          %455 = vsyncadd %s449, %s454
          %s456 = smul.addr %s21, 4
          %s457 = smul.addr %s456, 128
          %s458 = scalar_lea.hbm %s9, %s457
          %s459 = sshll.u32 %s452, 4
          %s460 = int_to_ptr.vmem [resolvable:$true] %s459
          %465 = dma.hbm_to_vmem [thread:$0]  %s458, 512, %s460, %s449, 128, 128, 8
        $region56: #{hgt_forward.6} parent=15 // pred_fallthru
          _
        // Predicated region
        $region57: #{hgt_forward.6} parent=15 // pred_check
          %p466 = pneg %p303
        $region58: #{hgt_forward.6} parent=15 // pred_check_branch
          %468 = sbr.rel (%p466) target = $region60
        $region59: #{hgt_forward.6} parent=15 // pred_region
          %p469 = scmp.lt.s32.totalorder %s21, 1
          %s470 = scalar_select %p469, %s21, 1
          %s471 = scalar_lea.vmem %s10, %s470
        $region60: #{hgt_forward.6} parent=15 // pred_fallthru
          _
        // Predicated region
        $region61: #{hgt_forward.6} parent=15 // pred_check
          %p472 = pneg %p329
        $region62: #{hgt_forward.6} parent=15 // pred_check_branch
          %474 = sbr.rel (%p472) target = $region64
        $region63: #{hgt_forward.6} parent=15 // pred_region
          %p475 = scmp.lt.s32.totalorder %s21, 1
          %s476 = scalar_select %p475, %s21, 1
          %s477 = scalar_lea.vmem %s11, %s476
        $region64: #{hgt_forward.6} parent=15 // pred_fallthru
          _
      $region16: #{hgt_forward.6} parent=5 // pred_fallthru
        _
      %p478 = scmp.le.s32.totalorder 1, %s21
      %p479 = scmp.lt.s32.totalorder %s21, 3
      %p480 = pnand %p478, %p479
      %p481 = pneg %p480
      // Predicated region
      $region65: #{hgt_forward.6} parent=5 // pred_check
        _
      $region66: #{hgt_forward.6} parent=5 // pred_check_branch
        %483 = sbr.rel (%p480) target = $region68
      $region67: #{hgt_forward.6} parent=5 // pred_region
        %s484 = ssub.s32 %s21, 1
        %s485 = sand.u32 %s270, 1
        %s486 = scalar_lea.sflag [#allocation3], %s485
        %s487 = sand.u32 %s270, 1
        %s488 = smul.addr %s487, 32
        %s489 = scalar_lea.vmem [#allocation2], %s488
        // Predicated region
        $region69: #{hgt_forward.6} parent=67 // pred_check
          %p490 = pneg %p283
        $region70: #{hgt_forward.6} parent=67 // pred_check_branch
          %492 = sbr.rel (%p490) target = $region72
        $region71: #{hgt_forward.6} parent=67 // pred_region
          %493 = dma.done %s486, 512
        $region72: #{hgt_forward.6} parent=67 // pred_fallthru
          _
        %p494 = scmp.lt.s32.totalorder %s26, 1
        %s495 = scalar_select %p494, %s26, 1
        %s496 = smul.addr %s495, 8
        %s497 = scalar_lea.vmem %s0, %s496
        %p498 = pneg %p47
        %p499 = pneg %p44
        %s500 = ssub.s32 1, %s26
        %p501 = scmp.lt.s32.totalorder %s500, 1
        %s502 = scalar_select %p501, %s500, 1
        %s503 = smul.addr %s502, 8
        %s504 = scalar_lea.vmem %s1, %s503
        %p505 = pneg %p75
        %p506 = pneg %p72
        %p507 = scmp.lt.s32.totalorder %s26, 1
        %s508 = scalar_select %p507, %s26, 1
        %s509 = smul.addr %s508, 4
        %s510 = smul.addr %s509, 8
        %s511 = scalar_lea.vmem %s2, %s510
        %p512 = pneg %p101
        %p513 = pneg %p98
        %p514 = scmp.lt.s32.totalorder %s26, 1
        %s515 = scalar_select %p514, %s26, 1
        %s516 = scalar_lea.vmem %s3, %s515
        %p517 = pneg %p127
        %p518 = pneg %p124
        %p519 = scmp.lt.s32.totalorder %s26, 1
        %s520 = scalar_select %p519, %s26, 1
        %s521 = smul.addr %s520, 4
        %s522 = smul.addr %s521, 8
        %s523 = scalar_lea.vmem %s4, %s522
        %p524 = pneg %p153
        %p525 = pneg %p150
        %p526 = scmp.lt.s32.totalorder %s26, 1
        %s527 = scalar_select %p526, %s26, 1
        %s528 = scalar_lea.vmem %s5, %s527
        %p529 = pneg %p179
        %p530 = pneg %p176
        %p531 = scmp.lt.s32.totalorder %s26, 1
        %s532 = scalar_select %p531, %s26, 1
        %s533 = smul.addr %s532, 4
        %s534 = smul.addr %s533, 8
        %s535 = scalar_lea.vmem %s6, %s534
        %p536 = pneg %p205
        %p537 = pneg %p202
        %p538 = scmp.lt.s32.totalorder %s26, 1
        %s539 = scalar_select %p538, %s26, 1
        %s540 = scalar_lea.vmem %s7, %s539
        %p541 = pneg %p231
        %p542 = pneg %p228
        %p543 = scmp.lt.s32.totalorder %s26, 1
        %s544 = scalar_select %p543, %s26, 1
        %s545 = smul.addr %s544, 8
        %s546 = scalar_lea.vmem %s8, %s545
        %p547 = pneg %p257
        %p548 = pneg %p254
        %s549 = sand.u32 %s270, 1
        %s550 = scalar_lea.sflag [#allocation3], %s549
        %s551 = sand.u32 %s270, 1
        %s552 = smul.addr %s551, 32
        %s553 = scalar_lea.vmem [#allocation2], %s552
        %p554 = pneg %p283
        %p555 = pneg %p280
        %p556 = scmp.lt.s32.totalorder %s26, 1
        %s557 = scalar_select %p556, %s26, 1
        %s558 = scalar_lea.vmem %s10, %s557
        %p559 = pneg %p309
        %p560 = pneg %p306
        %p561 = scmp.lt.s32.totalorder %s26, 1
        %s562 = scalar_select %p561, %s26, 1
        %s563 = scalar_lea.vmem %s11, %s562
        %p564 = pneg %p335
        %p565 = pneg %p332
        %p566 = pneg %p361
        %p567 = pneg %p358
        %p568 = scmp.lt.s32.totalorder %s26, 1
        %s569 = scalar_select %p568, %s26, 1
        %s570 = smul.addr %s569, 8
        %s571 = scalar_lea.vmem %s12, %s570
        %p572 = scmp.lt.s32.totalorder %s26, 1
        %s573 = scalar_select %p572, %s26, 1
        %s574 = smul.addr %s573, 8
        %s575 = scalar_lea.vmem %s0, %s574
        %s576 = ssub.s32 1, %s26
        %p577 = scmp.lt.s32.totalorder %s576, 1
        %s578 = scalar_select %p577, %s576, 1
        %s579 = smul.addr %s578, 8
        %s580 = scalar_lea.vmem %s1, %s579
        %s581 = ssub.s32 1, %s26
        %p582 = scmp.lt.s32.totalorder %s26, 1
        %s583 = scalar_select %p582, %s26, 1
        %s584 = smul.addr %s583, 4
        %s585 = smul.addr %s584, 8
        %s586 = scalar_lea.vmem %s2, %s585
        %p587 = scmp.lt.s32.totalorder %s26, 1
        %s588 = scalar_select %p587, %s26, 1
        %s589 = scalar_lea.vmem %s3, %s588
        %p590 = scmp.lt.s32.totalorder %s26, 1
        %s591 = scalar_select %p590, %s26, 1
        %s592 = smul.addr %s591, 4
        %s593 = smul.addr %s592, 8
        %s594 = scalar_lea.vmem %s4, %s593
        %p595 = scmp.lt.s32.totalorder %s26, 1
        %s596 = scalar_select %p595, %s26, 1
        %s597 = scalar_lea.vmem %s5, %s596
        %p598 = scmp.lt.s32.totalorder %s26, 1
        %s599 = scalar_select %p598, %s26, 1
        %s600 = smul.addr %s599, 4
        %s601 = smul.addr %s600, 8
        %s602 = scalar_lea.vmem %s6, %s601
        %p603 = scmp.lt.s32.totalorder %s26, 1
        %s604 = scalar_select %p603, %s26, 1
        %s605 = scalar_lea.vmem %s7, %s604
        %p606 = scmp.lt.s32.totalorder %s26, 1
        %s607 = scalar_select %p606, %s26, 1
        %s608 = smul.addr %s607, 8
        %s609 = scalar_lea.vmem %s8, %s608
        %p610 = scmp.lt.s32.totalorder %s26, 1
        %s611 = scalar_select %p610, %s26, 1
        %s612 = scalar_lea.vmem %s10, %s611
        %p613 = scmp.lt.s32.totalorder %s26, 1
        %s614 = scalar_select %p613, %s26, 1
        %s615 = scalar_lea.vmem %s11, %s614
        %p616 = scmp.lt.s32.totalorder %s26, 1
        %s617 = scalar_select %p616, %s26, 1
        %s618 = smul.addr %s617, 8
        %s619 = scalar_lea.vmem %s12, %s618
        %v620 = vld [vmem:[%s575] sm:$0xff]
        %v621 = vld [vmem:[%s580] sm:$0xff]
        %v622 = vld [vmem:[%s586] sm:$0xff]
        %v623 = vld [vmem:[%s586 + $0x8] sm:$0xff]
        %v624 = vld [vmem:[%s586 + $0x10] sm:$0xff]
        %v625 = vld [vmem:[%s586 + $0x18] sm:$0xff]
        %v626 = vld [vmem:[%s589] sm:$0x1]
        %v628 = vlaneseq
        %v629 = vshrl.u32 %v628, 7
        %v630 = vsub.s32 0, %v629
        %v631 = vrot.slane %v626, %v630
        %vm633 = vcmask 261120
        %v635 = vsel %vm633, %v620, 0
        %637 = vmatprep.subr.mxu0 0.0
        %638 = vmatpush1.msra.mxu0 %v622
        %639 = vmatprep.subr.mxu0 0.0
        %640 = vmatpush1.msra.mxu0 %v623
        %641 = vmatprep.subr.mxu0 0.0
        %642 = vmatpush1.msra.mxu0 %v624
        %643 = vmatprep.subr.mxu0 0.0
        %644 = vmatpush1.msra.mxu0 %v625
        %645 = vmatprep.subr.mxu0 0.0
        %646 = vmatpush1.msra.mxu0 0.0
        %647 = vmatprep.subr.mxu0 0.0
        %648 = vmatpush1.msra.mxu0 0.0
        %649 = vmatprep.subr.mxu0 0.0
        %650 = vmatpush1.msra.mxu0 0.0
        %651 = vmatprep.subr.mxu0 0.0
        %652 = vmatpush1.msra.mxu0 0.0
        %653 = vmatprep.subr.mxu0 0.0
        %654 = vmatpush1.msra.mxu0 0.0
        %655 = vmatprep.subr.mxu0 0.0
        %656 = vmatpush1.msra.mxu0 0.0
        %657 = vmatprep.subr.mxu0 0.0
        %658 = vmatpush1.msra.mxu0 0.0
        %659 = vmatprep.subr.mxu0 0.0
        %660 = vmatpush1.msra.mxu0 0.0
        %661 = vmatprep.subr.mxu0 0.0
        %662 = vmatpush1.msra.mxu0 0.0
        %663 = vmatprep.subr.mxu0 0.0
        %664 = vmatpush1.msra.mxu0 0.0
        %665 = vmatprep.subr.mxu0 0.0
        %666 = vmatpush1.msra.mxu0 0.0
        %667 = vmatprep.subr.mxu0 0.0
        %668 = vmatpush1.msra.mxu0 0.0
        %669 = vmatprep.subr.mxu0 0.0
        %670 = vmatpush1.msra.mxu0 0.0
        %671 = vmatprep.subr.mxu0 0.0
        %672 = vmatpush1.msra.mxu0 0.0
        %673 = vmatprep.subr.mxu0 0.0
        %674 = vmatpush1.msra.mxu0 0.0
        %675 = vmatprep.subr.mxu0 0.0
        %676 = vmatpush1.msra.mxu0 0.0
        %677 = vmatprep.subr.mxu0 0.0
        %678 = vmatpush1.msra.mxu0 0.0
        %679 = vmatprep.subr.mxu0 0.0
        %680 = vmatpush1.msra.mxu0 0.0
        %681 = vmatprep.subr.mxu0 0.0
        %682 = vmatpush1.msra.mxu0 0.0
        %683 = vmatprep.subr.mxu0 0.0
        %684 = vmatpush1.msra.mxu0 0.0
        %685 = vmatprep.subr.mxu0 0.0
        %686 = vmatpush1.msra.mxu0 0.0
        %687 = vmatprep.subr.mxu0 0.0
        %688 = vmatpush1.msra.mxu0 0.0
        %689 = vmatprep.subr.mxu0 0.0
        %690 = vmatpush1.msra.mxu0 0.0
        %691 = vmatprep.subr.mxu0 0.0
        %692 = vmatpush1.msra.mxu0 0.0
        %693 = vmatprep.subr.mxu0 0.0
        %694 = vmatpush1.msra.mxu0 0.0
        %695 = vmatprep.subr.mxu0 0.0
        %696 = vmatpush1.msra.mxu0 0.0
        %697 = vmatprep.subr.mxu0 0.0
        %698 = vmatpush1.msra.mxu0 0.0
        %699 = vmatprep.subr.mxu0 0.0
        %700 = vmatpush1.msra.mxu0 0.0
        %701 = vmatprep.mubr.f32.mxu0 0.0
        %702 = vmatmul.mubr.f32.gmra.mrb[0].mxu0 %v635
        %v703 = vpop.f32.mrb[0].mxu0
        %v704 = vadd.f32 %v631, %v703
        %v705 = vpop.f32.mrb[0].mxu0
        %706 = vdwg.mxu0
        %v707 = vld [vmem:[%s594] sm:$0xff]
        %v708 = vld [vmem:[%s594 + $0x8] sm:$0xff]
        %v709 = vld [vmem:[%s594 + $0x10] sm:$0xff]
        %v710 = vld [vmem:[%s594 + $0x18] sm:$0xff]
        %v711 = vld [vmem:[%s597] sm:$0x1]
        %v713 = vlaneseq
        %v714 = vshrl.u32 %v713, 7
        %v715 = vsub.s32 0, %v714
        %v716 = vrot.slane %v711, %v715
        %v719 = vsel %vm633, %v621, 0
        %721 = vmatprep.subr.mxu0 0.0
        %722 = vmatpush1.msra.mxu0 %v707
        %723 = vmatprep.subr.mxu0 0.0
        %724 = vmatpush1.msra.mxu0 %v708
        %725 = vmatprep.subr.mxu0 0.0
        %726 = vmatpush1.msra.mxu0 %v709
        %727 = vmatprep.subr.mxu0 0.0
        %728 = vmatpush1.msra.mxu0 %v710
        %729 = vmatprep.subr.mxu0 0.0
        %730 = vmatpush1.msra.mxu0 0.0
        %731 = vmatprep.subr.mxu0 0.0
        %732 = vmatpush1.msra.mxu0 0.0
        %733 = vmatprep.subr.mxu0 0.0
        %734 = vmatpush1.msra.mxu0 0.0
        %735 = vmatprep.subr.mxu0 0.0
        %736 = vmatpush1.msra.mxu0 0.0
        %737 = vmatprep.subr.mxu0 0.0
        %738 = vmatpush1.msra.mxu0 0.0
        %739 = vmatprep.subr.mxu0 0.0
        %740 = vmatpush1.msra.mxu0 0.0
        %741 = vmatprep.subr.mxu0 0.0
        %742 = vmatpush1.msra.mxu0 0.0
        %743 = vmatprep.subr.mxu0 0.0
        %744 = vmatpush1.msra.mxu0 0.0
        %745 = vmatprep.subr.mxu0 0.0
        %746 = vmatpush1.msra.mxu0 0.0
        %747 = vmatprep.subr.mxu0 0.0
        %748 = vmatpush1.msra.mxu0 0.0
        %749 = vmatprep.subr.mxu0 0.0
        %750 = vmatpush1.msra.mxu0 0.0
        %751 = vmatprep.subr.mxu0 0.0
        %752 = vmatpush1.msra.mxu0 0.0
        %753 = vmatprep.subr.mxu0 0.0
        %754 = vmatpush1.msra.mxu0 0.0
        %755 = vmatprep.subr.mxu0 0.0
        %756 = vmatpush1.msra.mxu0 0.0
        %757 = vmatprep.subr.mxu0 0.0
        %758 = vmatpush1.msra.mxu0 0.0
        %759 = vmatprep.subr.mxu0 0.0
        %760 = vmatpush1.msra.mxu0 0.0
        %761 = vmatprep.subr.mxu0 0.0
        %762 = vmatpush1.msra.mxu0 0.0
        %763 = vmatprep.subr.mxu0 0.0
        %764 = vmatpush1.msra.mxu0 0.0
        %765 = vmatprep.subr.mxu0 0.0
        %766 = vmatpush1.msra.mxu0 0.0
        %767 = vmatprep.subr.mxu0 0.0
        %768 = vmatpush1.msra.mxu0 0.0
        %769 = vmatprep.subr.mxu0 0.0
        %770 = vmatpush1.msra.mxu0 0.0
        %771 = vmatprep.subr.mxu0 0.0
        %772 = vmatpush1.msra.mxu0 0.0
        %773 = vmatprep.subr.mxu0 0.0
        %774 = vmatpush1.msra.mxu0 0.0
        %775 = vmatprep.subr.mxu0 0.0
        %776 = vmatpush1.msra.mxu0 0.0
        %777 = vmatprep.subr.mxu0 0.0
        %778 = vmatpush1.msra.mxu0 0.0
        %779 = vmatprep.subr.mxu0 0.0
        %780 = vmatpush1.msra.mxu0 0.0
        %781 = vmatprep.subr.mxu0 0.0
        %782 = vmatpush1.msra.mxu0 0.0
        %783 = vmatprep.subr.mxu0 0.0
        %784 = vmatpush1.msra.mxu0 0.0
        %785 = vmatprep.mubr.f32.mxu0 0.0
        %786 = vmatmul.mubr.f32.gmra.mrb[0].mxu0 %v719
        %v787 = vpop.f32.mrb[0].mxu0
        %v788 = vadd.f32 %v716, %v787
        %v789 = vpop.f32.mrb[0].mxu0
        %790 = vdwg.mxu0
        %v791 = vld [vmem:[%s602] sm:$0xff]
        %v792 = vld [vmem:[%s602 + $0x8] sm:$0xff]
        %v793 = vld [vmem:[%s602 + $0x10] sm:$0xff]
        %v794 = vld [vmem:[%s602 + $0x18] sm:$0xff]
        %v795 = vld [vmem:[%s605] sm:$0x1]
        %v797 = vlaneseq
        %v798 = vshrl.u32 %v797, 7
        %v799 = vsub.s32 0, %v798
        %v800 = vrot.slane %v795, %v799
        %802 = vmatprep.subr.mxu0 0.0
        %803 = vmatpush1.msra.mxu0 %v791
        %804 = vmatprep.subr.mxu0 0.0
        %805 = vmatpush1.msra.mxu0 %v792
        %806 = vmatprep.subr.mxu0 0.0
        %807 = vmatpush1.msra.mxu0 %v793
        %808 = vmatprep.subr.mxu0 0.0
        %809 = vmatpush1.msra.mxu0 %v794
        %810 = vmatprep.subr.mxu0 0.0
        %811 = vmatpush1.msra.mxu0 0.0
        %812 = vmatprep.subr.mxu0 0.0
        %813 = vmatpush1.msra.mxu0 0.0
        %814 = vmatprep.subr.mxu0 0.0
        %815 = vmatpush1.msra.mxu0 0.0
        %816 = vmatprep.subr.mxu0 0.0
        %817 = vmatpush1.msra.mxu0 0.0
        %818 = vmatprep.subr.mxu0 0.0
        %819 = vmatpush1.msra.mxu0 0.0
        %820 = vmatprep.subr.mxu0 0.0
        %821 = vmatpush1.msra.mxu0 0.0
        %822 = vmatprep.subr.mxu0 0.0
        %823 = vmatpush1.msra.mxu0 0.0
        %824 = vmatprep.subr.mxu0 0.0
        %825 = vmatpush1.msra.mxu0 0.0
        %826 = vmatprep.subr.mxu0 0.0
        %827 = vmatpush1.msra.mxu0 0.0
        %828 = vmatprep.subr.mxu0 0.0
        %829 = vmatpush1.msra.mxu0 0.0
        %830 = vmatprep.subr.mxu0 0.0
        %831 = vmatpush1.msra.mxu0 0.0
        %832 = vmatprep.subr.mxu0 0.0
        %833 = vmatpush1.msra.mxu0 0.0
        %834 = vmatprep.subr.mxu0 0.0
        %835 = vmatpush1.msra.mxu0 0.0
        %836 = vmatprep.subr.mxu0 0.0
        %837 = vmatpush1.msra.mxu0 0.0
        %838 = vmatprep.subr.mxu0 0.0
        %839 = vmatpush1.msra.mxu0 0.0
        %840 = vmatprep.subr.mxu0 0.0
        %841 = vmatpush1.msra.mxu0 0.0
        %842 = vmatprep.subr.mxu0 0.0
        %843 = vmatpush1.msra.mxu0 0.0
        %844 = vmatprep.subr.mxu0 0.0
        %845 = vmatpush1.msra.mxu0 0.0
        %846 = vmatprep.subr.mxu0 0.0
        %847 = vmatpush1.msra.mxu0 0.0
        %848 = vmatprep.subr.mxu0 0.0
        %849 = vmatpush1.msra.mxu0 0.0
        %850 = vmatprep.subr.mxu0 0.0
        %851 = vmatpush1.msra.mxu0 0.0
        %852 = vmatprep.subr.mxu0 0.0
        %853 = vmatpush1.msra.mxu0 0.0
        %854 = vmatprep.subr.mxu0 0.0
        %855 = vmatpush1.msra.mxu0 0.0
        %856 = vmatprep.subr.mxu0 0.0
        %857 = vmatpush1.msra.mxu0 0.0
        %858 = vmatprep.subr.mxu0 0.0
        %859 = vmatpush1.msra.mxu0 0.0
        %860 = vmatprep.subr.mxu0 0.0
        %861 = vmatpush1.msra.mxu0 0.0
        %862 = vmatprep.subr.mxu0 0.0
        %863 = vmatpush1.msra.mxu0 0.0
        %864 = vmatprep.subr.mxu0 0.0
        %865 = vmatpush1.msra.mxu0 0.0
        %866 = vmatprep.mubr.f32.mxu0 0.0
        %867 = vmatmul.mubr.f32.gmra.mrb[0].mxu0 %v719
        %v868 = vpop.f32.mrb[0].mxu0
        %v869 = vadd.f32 %v800, %v868
        %v870 = vpop.f32.mrb[0].mxu0
        %871 = vdwg.mxu0
        %v873 = vsel %vm633, %v704, 0
        %v876 = vsel %vm633, %v788, 0
        %878 = vmatprep.subr.mxu0 0.0
        %879 = vmatpush1.xpose.msra.mxu0 %v876
        %880 = vmatprep.subr.mxu0 0.0
        %881 = vmatpush1.xpose.msra.mxu0 0.0
        %882 = vmatprep.subr.mxu0 0.0
        %883 = vmatpush1.xpose.msra.mxu0 0.0
        %884 = vmatprep.subr.mxu0 0.0
        %885 = vmatpush1.xpose.msra.mxu0 0.0
        %886 = vmatprep.subr.mxu0 0.0
        %887 = vmatpush1.xpose.msra.mxu0 0.0
        %888 = vmatprep.subr.mxu0 0.0
        %889 = vmatpush1.xpose.msra.mxu0 0.0
        %890 = vmatprep.subr.mxu0 0.0
        %891 = vmatpush1.xpose.msra.mxu0 0.0
        %892 = vmatprep.subr.mxu0 0.0
        %893 = vmatpush1.xpose.msra.mxu0 0.0
        %894 = vmatprep.subr.mxu0 0.0
        %895 = vmatpush1.xpose.msra.mxu0 0.0
        %896 = vmatprep.subr.mxu0 0.0
        %897 = vmatpush1.xpose.msra.mxu0 0.0
        %898 = vmatprep.subr.mxu0 0.0
        %899 = vmatpush1.xpose.msra.mxu0 0.0
        %900 = vmatprep.subr.mxu0 0.0
        %901 = vmatpush1.xpose.msra.mxu0 0.0
        %902 = vmatprep.subr.mxu0 0.0
        %903 = vmatpush1.xpose.msra.mxu0 0.0
        %904 = vmatprep.subr.mxu0 0.0
        %905 = vmatpush1.xpose.msra.mxu0 0.0
        %906 = vmatprep.subr.mxu0 0.0
        %907 = vmatpush1.xpose.msra.mxu0 0.0
        %908 = vmatprep.subr.mxu0 0.0
        %909 = vmatpush1.xpose.msra.mxu0 0.0
        %910 = vmatprep.subr.mxu0 0.0
        %911 = vmatpush1.xpose.msra.mxu0 0.0
        %912 = vmatprep.subr.mxu0 0.0
        %913 = vmatpush1.xpose.msra.mxu0 0.0
        %914 = vmatprep.subr.mxu0 0.0
        %915 = vmatpush1.xpose.msra.mxu0 0.0
        %916 = vmatprep.subr.mxu0 0.0
        %917 = vmatpush1.xpose.msra.mxu0 0.0
        %918 = vmatprep.subr.mxu0 0.0
        %919 = vmatpush1.xpose.msra.mxu0 0.0
        %920 = vmatprep.subr.mxu0 0.0
        %921 = vmatpush1.xpose.msra.mxu0 0.0
        %922 = vmatprep.subr.mxu0 0.0
        %923 = vmatpush1.xpose.msra.mxu0 0.0
        %924 = vmatprep.subr.mxu0 0.0
        %925 = vmatpush1.xpose.msra.mxu0 0.0
        %926 = vmatprep.subr.mxu0 0.0
        %927 = vmatpush1.xpose.msra.mxu0 0.0
        %928 = vmatprep.subr.mxu0 0.0
        %929 = vmatpush1.xpose.msra.mxu0 0.0
        %930 = vmatprep.subr.mxu0 0.0
        %931 = vmatpush1.xpose.msra.mxu0 0.0
        %932 = vmatprep.subr.mxu0 0.0
        %933 = vmatpush1.xpose.msra.mxu0 0.0
        %934 = vmatprep.subr.mxu0 0.0
        %935 = vmatpush1.xpose.msra.mxu0 0.0
        %936 = vmatprep.subr.mxu0 0.0
        %937 = vmatpush1.xpose.msra.mxu0 0.0
        %938 = vmatprep.subr.mxu0 0.0
        %939 = vmatpush1.xpose.msra.mxu0 0.0
        %940 = vmatprep.subr.mxu0 0.0
        %941 = vmatpush1.xpose.msra.mxu0 0.0
        %942 = vmatprep.mubr.f32.mxu0 0.0
        %943 = vmatmul.mubr.f32.gmra.mrb[0].mxu0 %v873
        %v944 = vpop.f32.mrb[0].mxu0
        %v945 = vadd.f32 0.0, %v944
        %v946 = vpop.f32.mrb[0].mxu0
        %947 = vdwg.mxu0
        %v948 = vld [vmem:[%s609] sm:$0xff]
        %vm949 = vcmp.gt.f32.partialorder %v948, 0.0
        %v950 = vsel %vm949, %v945, -1e+30
        %vm951 = vcmask 64512
        %v952 = vsel %vm951, %v950, -inf
        %953 = vmax.xlane.f32.xlu0 %v952
        %v954 = vpop.xlane.xlu0 %953
        %v955 = vsub.f32 %v950, %v954
        %v956 = vmul.f32 %v955, 1.442695
        %v957 = vpow.pop %v956
        %v958 = vmul.f32 %v957, %v948
        %v959 = vsel %vm951, %v958, 0.0
        %960 = vadd.xlane.f32.xlu0 %v959
        %v961 = vpop.xlane.xlu0 %960
        %v962 = vmax.f32 %v961, 1e-30
        %v963 = vrcp.pop %v962
        %v964 = vmul.f32 %v958, %v963
        %v966 = vsel %vm951, %v964, 0
        %968 = vmatprep.subr.mxu0 0.0
        %969 = vmatpush1.msra.mxu0 %v869
        %970 = vmatprep.subr.mxu0 0.0
        %971 = vmatpush1.msra.mxu0 0.0
        %972 = vmatprep.subr.mxu0 0.0
        %973 = vmatpush1.msra.mxu0 0.0
        %974 = vmatprep.subr.mxu0 0.0
        %975 = vmatpush1.msra.mxu0 0.0
        %976 = vmatprep.subr.mxu0 0.0
        %977 = vmatpush1.msra.mxu0 0.0
        %978 = vmatprep.subr.mxu0 0.0
        %979 = vmatpush1.msra.mxu0 0.0
        %980 = vmatprep.subr.mxu0 0.0
        %981 = vmatpush1.msra.mxu0 0.0
        %982 = vmatprep.subr.mxu0 0.0
        %983 = vmatpush1.msra.mxu0 0.0
        %984 = vmatprep.subr.mxu0 0.0
        %985 = vmatpush1.msra.mxu0 0.0
        %986 = vmatprep.subr.mxu0 0.0
        %987 = vmatpush1.msra.mxu0 0.0
        %988 = vmatprep.subr.mxu0 0.0
        %989 = vmatpush1.msra.mxu0 0.0
        %990 = vmatprep.subr.mxu0 0.0
        %991 = vmatpush1.msra.mxu0 0.0
        %992 = vmatprep.subr.mxu0 0.0
        %993 = vmatpush1.msra.mxu0 0.0
        %994 = vmatprep.subr.mxu0 0.0
        %995 = vmatpush1.msra.mxu0 0.0
        %996 = vmatprep.subr.mxu0 0.0
        %997 = vmatpush1.msra.mxu0 0.0
        %998 = vmatprep.subr.mxu0 0.0
        %999 = vmatpush1.msra.mxu0 0.0
        %1000 = vmatprep.subr.mxu0 0.0
        %1001 = vmatpush1.msra.mxu0 0.0
        %1002 = vmatprep.subr.mxu0 0.0
        %1003 = vmatpush1.msra.mxu0 0.0
        %1004 = vmatprep.subr.mxu0 0.0
        %1005 = vmatpush1.msra.mxu0 0.0
        %1006 = vmatprep.subr.mxu0 0.0
        %1007 = vmatpush1.msra.mxu0 0.0
        %1008 = vmatprep.subr.mxu0 0.0
        %1009 = vmatpush1.msra.mxu0 0.0
        %1010 = vmatprep.subr.mxu0 0.0
        %1011 = vmatpush1.msra.mxu0 0.0
        %1012 = vmatprep.subr.mxu0 0.0
        %1013 = vmatpush1.msra.mxu0 0.0
        %1014 = vmatprep.subr.mxu0 0.0
        %1015 = vmatpush1.msra.mxu0 0.0
        %1016 = vmatprep.subr.mxu0 0.0
        %1017 = vmatpush1.msra.mxu0 0.0
        %1018 = vmatprep.subr.mxu0 0.0
        %1019 = vmatpush1.msra.mxu0 0.0
        %1020 = vmatprep.subr.mxu0 0.0
        %1021 = vmatpush1.msra.mxu0 0.0
        %1022 = vmatprep.subr.mxu0 0.0
        %1023 = vmatpush1.msra.mxu0 0.0
        %1024 = vmatprep.subr.mxu0 0.0
        %1025 = vmatpush1.msra.mxu0 0.0
        %1026 = vmatprep.subr.mxu0 0.0
        %1027 = vmatpush1.msra.mxu0 0.0
        %1028 = vmatprep.subr.mxu0 0.0
        %1029 = vmatpush1.msra.mxu0 0.0
        %1030 = vmatprep.subr.mxu0 0.0
        %1031 = vmatpush1.msra.mxu0 0.0
        %1032 = vmatprep.mubr.f32.mxu0 0.0
        %1033 = vmatmul.mubr.f32.gmra.mrb[0].mxu0 %v966
        %v1034 = vpop.f32.mrb[0].mxu0
        %v1035 = vadd.f32 0.0, %v1034
        %v1036 = vpop.f32.mrb[0].mxu0
        %1037 = vdwg.mxu0
        %v1038 = vmul.f32 %v1035, 0.5
        %v1039 = vmul.f32 %v1035, 0.044715
        %v1040 = vmul.f32 %v1039, %v1035
        %v1041 = vmul.f32 %v1040, %v1035
        %v1042 = vadd.f32 %v1035, %v1041
        %v1043 = vmul.f32 %v1042, 0.7978846
        %v1044 = vtanh.pop %v1043
        %v1045 = vadd.f32 %v1044, 1.0
        %v1046 = vmul.f32 %v1038, %v1045
        %v1047 = vld [vmem:[%s489] sm:$0xff]
        %v1048 = vld [vmem:[%s489 + $0x8] sm:$0xff]
        %v1049 = vld [vmem:[%s489 + $0x10] sm:$0xff]
        %v1050 = vld [vmem:[%s489 + $0x18] sm:$0xff]
        %v1051 = vld [vmem:[%s612] sm:$0x1]
        %v1053 = vlaneseq
        %v1054 = vshrl.u32 %v1053, 7
        %v1055 = vsub.s32 0, %v1054
        %v1056 = vrot.slane %v1051, %v1055
        %v1059 = vsel %vm633, %v1046, 0
        %1061 = vmatprep.subr.mxu0 0.0
        %1062 = vmatpush1.msra.mxu0 %v1047
        %1063 = vmatprep.subr.mxu0 0.0
        %1064 = vmatpush1.msra.mxu0 %v1048
        %1065 = vmatprep.subr.mxu0 0.0
        %1066 = vmatpush1.msra.mxu0 %v1049
        %1067 = vmatprep.subr.mxu0 0.0
        %1068 = vmatpush1.msra.mxu0 %v1050
        %1069 = vmatprep.subr.mxu0 0.0
        %1070 = vmatpush1.msra.mxu0 0.0
        %1071 = vmatprep.subr.mxu0 0.0
        %1072 = vmatpush1.msra.mxu0 0.0
        %1073 = vmatprep.subr.mxu0 0.0
        %1074 = vmatpush1.msra.mxu0 0.0
        %1075 = vmatprep.subr.mxu0 0.0
        %1076 = vmatpush1.msra.mxu0 0.0
        %1077 = vmatprep.subr.mxu0 0.0
        %1078 = vmatpush1.msra.mxu0 0.0
        %1079 = vmatprep.subr.mxu0 0.0
        %1080 = vmatpush1.msra.mxu0 0.0
        %1081 = vmatprep.subr.mxu0 0.0
        %1082 = vmatpush1.msra.mxu0 0.0
        %1083 = vmatprep.subr.mxu0 0.0
        %1084 = vmatpush1.msra.mxu0 0.0
        %1085 = vmatprep.subr.mxu0 0.0
        %1086 = vmatpush1.msra.mxu0 0.0
        %1087 = vmatprep.subr.mxu0 0.0
        %1088 = vmatpush1.msra.mxu0 0.0
        %1089 = vmatprep.subr.mxu0 0.0
        %1090 = vmatpush1.msra.mxu0 0.0
        %1091 = vmatprep.subr.mxu0 0.0
        %1092 = vmatpush1.msra.mxu0 0.0
        %1093 = vmatprep.subr.mxu0 0.0
        %1094 = vmatpush1.msra.mxu0 0.0
        %1095 = vmatprep.subr.mxu0 0.0
        %1096 = vmatpush1.msra.mxu0 0.0
        %1097 = vmatprep.subr.mxu0 0.0
        %1098 = vmatpush1.msra.mxu0 0.0
        %1099 = vmatprep.subr.mxu0 0.0
        %1100 = vmatpush1.msra.mxu0 0.0
        %1101 = vmatprep.subr.mxu0 0.0
        %1102 = vmatpush1.msra.mxu0 0.0
        %1103 = vmatprep.subr.mxu0 0.0
        %1104 = vmatpush1.msra.mxu0 0.0
        %1105 = vmatprep.subr.mxu0 0.0
        %1106 = vmatpush1.msra.mxu0 0.0
        %1107 = vmatprep.subr.mxu0 0.0
        %1108 = vmatpush1.msra.mxu0 0.0
        %1109 = vmatprep.subr.mxu0 0.0
        %1110 = vmatpush1.msra.mxu0 0.0
        %1111 = vmatprep.subr.mxu0 0.0
        %1112 = vmatpush1.msra.mxu0 0.0
        %1113 = vmatprep.subr.mxu0 0.0
        %1114 = vmatpush1.msra.mxu0 0.0
        %1115 = vmatprep.subr.mxu0 0.0
        %1116 = vmatpush1.msra.mxu0 0.0
        %1117 = vmatprep.subr.mxu0 0.0
        %1118 = vmatpush1.msra.mxu0 0.0
        %1119 = vmatprep.subr.mxu0 0.0
        %1120 = vmatpush1.msra.mxu0 0.0
        %1121 = vmatprep.subr.mxu0 0.0
        %1122 = vmatpush1.msra.mxu0 0.0
        %1123 = vmatprep.subr.mxu0 0.0
        %1124 = vmatpush1.msra.mxu0 0.0
        %1125 = vmatprep.mubr.f32.mxu0 0.0
        %1126 = vmatmul.mubr.f32.gmra.mrb[0].mxu0 %v1059
        %v1127 = vpop.f32.mrb[0].mxu0
        %v1128 = vadd.f32 %v1056, %v1127
        %v1129 = vpop.f32.mrb[0].mxu0
        %1130 = vdwg.mxu0
        %v1131 = vld [vmem:[%s615] sm:$0x1]
        %v1133 = vlaneseq
        %v1134 = vshrl.u32 %v1133, 7
        %v1135 = vsub.s32 0, %v1134
        %v1136 = vrot.slane %v1131, %v1135
        %1137 = vset.pattern.permute.xlu0 0
        %1138 = vperm.xlu0 %1137, %v1136
        %v1139 = vpop.permute.xlu0 %1138
        %v1141 = vmul.f32 %v1139, %v1128
        %v1142 = vsub.f32 1.0, %v1131
        %v1144 = vlaneseq
        %v1145 = vshrl.u32 %v1144, 7
        %v1146 = vsub.s32 0, %v1145
        %v1147 = vrot.slane %v1142, %v1146
        %1148 = vset.pattern.permute.xlu0 0
        %1149 = vperm.xlu0 %1148, %v1147
        %v1150 = vpop.permute.xlu0 %1149
        %v1152 = vmul.f32 %v1150, %v620
        %v1153 = vadd.f32 %v1141, %v1152
        %1154 = vst.msk [vmem:[%s619] sm:$0xff] %vm633, %v1153
        %p1155 = scmp.lt.s32.totalorder %s26, 1
        %s1156 = scalar_select %p1155, %s26, 1
        %s1157 = smul.addr %s1156, 8
        %s1158 = scalar_lea.vmem %s12, %s1157
        // Predicated region
        $region73: #{hgt_forward.6} parent=67 // pred_check
          %p1159 = pneg %p358
        $region74: #{hgt_forward.6} parent=67 // pred_check_branch
          %1161 = sbr.rel (%p1159) target = $region76
        $region75: #{hgt_forward.6} parent=67 // pred_region
          _
        $region76: #{hgt_forward.6} parent=67 // pred_fallthru
          _
      $region68: #{hgt_forward.6} parent=5 // pred_fallthru
        _
      %p1162 = scmp.le.s32.totalorder 2, %s21
      // Predicated region
      $region77: #{hgt_forward.6} parent=5 // pred_check
        %p1163 = pneg %p1162
      $region78: #{hgt_forward.6} parent=5 // pred_check_branch
        %1165 = sbr.rel (%p1163) target = $region80
      $region79: #{hgt_forward.6} parent=5 // pred_region
        %s1166 = ssub.s32 %s21, 2
        // Predicated region
        $region81: #{hgt_forward.6} parent=79 // pred_check
          %p1167 = pneg %p364
        $region82: #{hgt_forward.6} parent=79 // pred_check_branch
          %1169 = sbr.rel (%p1167) target = $region84
        $region83: #{hgt_forward.6} parent=79 // pred_region
          %p1170 = scmp.lt.s32.totalorder %s27, 1
          %s1171 = scalar_select %p1170, %s27, 1
          %s1172 = smul.addr %s1171, 8
          %s1173 = scalar_lea.vmem %s12, %s1172
        $region84: #{hgt_forward.6} parent=79 // pred_fallthru
          _
      $region80: #{hgt_forward.6} parent=5 // pred_fallthru
        _
    $region6: #{hgt_forward.6} parent=1 // loop_footer
      %s25 = sadd.s32 1, %s21
    $region7: #{hgt_forward.6} parent=1 // loop_footer_branch
      %20 = sbr.rel target = $region3
    $region8: #{hgt_forward.6} parent=1 // loop_exit
      _
    %1174 = vsyncpa [#allocation3], 1
    %s1175 = scalar_lea.sflag [#allocation3], 1
    %1176 = vsyncpa %s1175, 1

// kernel: hgt_forward.9
$region0: #{hgt_forward.9}
  #allocation0 [shape = 'u32[]', space=smem, size = 0x4, offset = 0x4, fixed_abs, tag = 'smem constant byte address 0x4 - core index']
  #allocation1 [shape = 'u32[144,128]{1,0:T(1,128)}', space=vmem, size = 0x12000, scoped, tag = 'internal scratch']
  %s0 = inlined_call_operand.vmem [shape: f32[2,128], index: 0, kind: input, shape index: {}]
  %s1 = inlined_call_operand.vmem [shape: f32[128,64], index: 1, kind: input, shape index: {}]
  %s2 = inlined_call_operand.vmem [shape: f32[1,64], index: 2, kind: input, shape index: {}]
  %s3 = inlined_call_operand.vmem [shape: f32[64,32], index: 3, kind: input, shape index: {}]
  %s4 = inlined_call_operand.vmem [shape: f32[1,32], index: 4, kind: input, shape index: {}]
  %s5 = inlined_call_operand.vmem [shape: f32[32,16], index: 5, kind: input, shape index: {}]
  %s6 = inlined_call_operand.vmem [shape: f32[1,16], index: 6, kind: input, shape index: {}]
  %s7 = inlined_call_operand.vmem [shape: f32[16,8], index: 7, kind: input, shape index: {}]
  %s8 = inlined_call_operand.vmem [shape: f32[1,8], index: 8, kind: input, shape index: {}]
  %s9 = inlined_call_operand.vmem [shape: f32[8,4], index: 9, kind: input, shape index: {}]
  %s10 = inlined_call_operand.vmem [shape: f32[1,4], index: 10, kind: input, shape index: {}]
  %s11 = inlined_call_operand.vmem [shape: f32[2,4], index: 11, kind: output, shape index: {}]
  %s12 = sld [smem:[#allocation0]]
  $region54: #{hgt_forward.9} parent=0
    _
  %s14 = ssub.s32 1, %s12
  %s15 = scalar_select 0, %s14, %s12
  // Predicated region
  $region2: #{hgt_forward.9} parent=0 // pred_check
    _
  $region3: #{hgt_forward.9} parent=0 // pred_check_branch
    %17 = sbr.rel (0) target = $region5
  $region4: #{hgt_forward.9} parent=0 // pred_region
    _
  $region5: #{hgt_forward.9} parent=0 // pred_fallthru
    _
  // Predicated region
  $region6: #{hgt_forward.9} parent=0 // pred_check
    _
  $region7: #{hgt_forward.9} parent=0 // pred_check_branch
    %19 = sbr.rel (0) target = $region9
  $region8: #{hgt_forward.9} parent=0 // pred_region
    _
  $region9: #{hgt_forward.9} parent=0 // pred_fallthru
    _
  // Predicated region
  $region10: #{hgt_forward.9} parent=0 // pred_check
    _
  $region11: #{hgt_forward.9} parent=0 // pred_check_branch
    %21 = sbr.rel (0) target = $region13
  $region12: #{hgt_forward.9} parent=0 // pred_region
    _
  $region13: #{hgt_forward.9} parent=0 // pred_fallthru
    _
  // Predicated region
  $region14: #{hgt_forward.9} parent=0 // pred_check
    _
  $region15: #{hgt_forward.9} parent=0 // pred_check_branch
    %23 = sbr.rel (0) target = $region17
  $region16: #{hgt_forward.9} parent=0 // pred_region
    _
  $region17: #{hgt_forward.9} parent=0 // pred_fallthru
    _
  // Predicated region
  $region18: #{hgt_forward.9} parent=0 // pred_check
    _
  $region19: #{hgt_forward.9} parent=0 // pred_check_branch
    %25 = sbr.rel (0) target = $region21
  $region20: #{hgt_forward.9} parent=0 // pred_region
    _
  $region21: #{hgt_forward.9} parent=0 // pred_fallthru
    _
  // Predicated region
  $region22: #{hgt_forward.9} parent=0 // pred_check
    _
  $region23: #{hgt_forward.9} parent=0 // pred_check_branch
    %27 = sbr.rel (0) target = $region25
  $region24: #{hgt_forward.9} parent=0 // pred_region
    _
  $region25: #{hgt_forward.9} parent=0 // pred_fallthru
    _
  // Predicated region
  $region26: #{hgt_forward.9} parent=0 // pred_check
    _
  $region27: #{hgt_forward.9} parent=0 // pred_check_branch
    %29 = sbr.rel (0) target = $region29
  $region28: #{hgt_forward.9} parent=0 // pred_region
    _
  $region29: #{hgt_forward.9} parent=0 // pred_fallthru
    _
  // Predicated region
  $region30: #{hgt_forward.9} parent=0 // pred_check
    _
  $region31: #{hgt_forward.9} parent=0 // pred_check_branch
    %31 = sbr.rel (0) target = $region33
  $region32: #{hgt_forward.9} parent=0 // pred_region
    _
  $region33: #{hgt_forward.9} parent=0 // pred_fallthru
    _
  // Predicated region
  $region34: #{hgt_forward.9} parent=0 // pred_check
    _
  $region35: #{hgt_forward.9} parent=0 // pred_check_branch
    %33 = sbr.rel (0) target = $region37
  $region36: #{hgt_forward.9} parent=0 // pred_region
    _
  $region37: #{hgt_forward.9} parent=0 // pred_fallthru
    _
  // Predicated region
  $region38: #{hgt_forward.9} parent=0 // pred_check
    _
  $region39: #{hgt_forward.9} parent=0 // pred_check_branch
    %35 = sbr.rel (0) target = $region41
  $region40: #{hgt_forward.9} parent=0 // pred_region
    _
  $region41: #{hgt_forward.9} parent=0 // pred_fallthru
    _
  // Predicated region
  $region42: #{hgt_forward.9} parent=0 // pred_check
    _
  $region43: #{hgt_forward.9} parent=0 // pred_check_branch
    %37 = sbr.rel (0) target = $region45
  $region44: #{hgt_forward.9} parent=0 // pred_region
    _
  $region45: #{hgt_forward.9} parent=0 // pred_fallthru
    _
  %v38 = vld [vmem:[%s0] sm:$0x3]
  %v39 = vld [vmem:[%s1] sm:$0xff]
  %v40 = vld [vmem:[%s1 + $0x8] sm:$0xff]
  %v41 = vld [vmem:[%s1 + $0x10] sm:$0xff]
  %v42 = vld [vmem:[%s1 + $0x18] sm:$0xff]
  %v43 = vld [vmem:[%s1 + $0x20] sm:$0xff]
  %v44 = vld [vmem:[%s1 + $0x28] sm:$0xff]
  %v45 = vld [vmem:[%s1 + $0x30] sm:$0xff]
  %v46 = vld [vmem:[%s1 + $0x38] sm:$0xff]
  %v47 = vld [vmem:[%s1 + $0x40] sm:$0xff]
  %v48 = vld [vmem:[%s1 + $0x48] sm:$0xff]
  %v49 = vld [vmem:[%s1 + $0x50] sm:$0xff]
  %v50 = vld [vmem:[%s1 + $0x58] sm:$0xff]
  %v51 = vld [vmem:[%s1 + $0x60] sm:$0xff]
  %v52 = vld [vmem:[%s1 + $0x68] sm:$0xff]
  %v53 = vld [vmem:[%s1 + $0x70] sm:$0xff]
  %v54 = vld [vmem:[%s1 + $0x78] sm:$0xff]
  %v55 = vld [vmem:[%s2] sm:$0x1]
  %v57 = vlaneseq
  %v58 = vshrl.u32 %v57, 7
  %v59 = vsub.s32 0, %v58
  %v60 = vrot.slane %v55, %v59
  %62 = vmatprep.subr.mxu0 0.0
  %63 = vmatpush1.msra.mxu0 %v39
  %64 = vmatprep.subr.mxu0 0.0
  %65 = vmatpush1.msra.mxu0 %v40
  %66 = vmatprep.subr.mxu0 0.0
  %67 = vmatpush1.msra.mxu0 %v41
  %68 = vmatprep.subr.mxu0 0.0
  %69 = vmatpush1.msra.mxu0 %v42
  %70 = vmatprep.subr.mxu0 0.0
  %71 = vmatpush1.msra.mxu0 %v43
  %72 = vmatprep.subr.mxu0 0.0
  %73 = vmatpush1.msra.mxu0 %v44
  %74 = vmatprep.subr.mxu0 0.0
  %75 = vmatpush1.msra.mxu0 %v45
  %76 = vmatprep.subr.mxu0 0.0
  %77 = vmatpush1.msra.mxu0 %v46
  %78 = vmatprep.subr.mxu0 0.0
  %79 = vmatpush1.msra.mxu0 %v47
  %80 = vmatprep.subr.mxu0 0.0
  %81 = vmatpush1.msra.mxu0 %v48
  %82 = vmatprep.subr.mxu0 0.0
  %83 = vmatpush1.msra.mxu0 %v49
  %84 = vmatprep.subr.mxu0 0.0
  %85 = vmatpush1.msra.mxu0 %v50
  %86 = vmatprep.subr.mxu0 0.0
  %87 = vmatpush1.msra.mxu0 %v51
  %88 = vmatprep.subr.mxu0 0.0
  %89 = vmatpush1.msra.mxu0 %v52
  %90 = vmatprep.subr.mxu0 0.0
  %91 = vmatpush1.msra.mxu0 %v53
  %92 = vmatprep.subr.mxu0 0.0
  %93 = vmatpush1.msra.mxu0 %v54
  %94 = vmatprep.subr.mxu0 0.0
  %95 = vmatpush1.msra.mxu0 0.0
  %96 = vmatprep.subr.mxu0 0.0
  %97 = vmatpush1.msra.mxu0 0.0
  %98 = vmatprep.subr.mxu0 0.0
  %99 = vmatpush1.msra.mxu0 0.0
  %100 = vmatprep.subr.mxu0 0.0
  %101 = vmatpush1.msra.mxu0 0.0
  %102 = vmatprep.subr.mxu0 0.0
  %103 = vmatpush1.msra.mxu0 0.0
  %104 = vmatprep.subr.mxu0 0.0
  %105 = vmatpush1.msra.mxu0 0.0
  %106 = vmatprep.subr.mxu0 0.0
  %107 = vmatpush1.msra.mxu0 0.0
  %108 = vmatprep.subr.mxu0 0.0
  %109 = vmatpush1.msra.mxu0 0.0
  %110 = vmatprep.subr.mxu0 0.0
  %111 = vmatpush1.msra.mxu0 0.0
  %112 = vmatprep.subr.mxu0 0.0
  %113 = vmatpush1.msra.mxu0 0.0
  %114 = vmatprep.subr.mxu0 0.0
  %115 = vmatpush1.msra.mxu0 0.0
  %116 = vmatprep.subr.mxu0 0.0
  %117 = vmatpush1.msra.mxu0 0.0
  %118 = vmatprep.subr.mxu0 0.0
  %119 = vmatpush1.msra.mxu0 0.0
  %120 = vmatprep.subr.mxu0 0.0
  %121 = vmatpush1.msra.mxu0 0.0
  %122 = vmatprep.subr.mxu0 0.0
  %123 = vmatpush1.msra.mxu0 0.0
  %124 = vmatprep.subr.mxu0 0.0
  %125 = vmatpush1.msra.mxu0 0.0
  %126 = vmatprep.mubr.f32.mxu0 0.0
  %127 = vmatmul.mubr.f32.gmra.mrb[0].mxu0 %v38
  %v128 = vpop.f32.mrb[0].mxu0
  %v129 = vadd.f32 %v60, %v128
  %v130 = vpop.f32.mrb[0].mxu0
  %131 = vdwg.mxu0
  %v132 = vmul.f32 %v129, 0.5
  %v133 = vmul.f32 %v129, 0.044715
  %v134 = vmul.f32 %v133, %v129
  %v135 = vmul.f32 %v134, %v129
  %v136 = vadd.f32 %v129, %v135
  %v137 = vmul.f32 %v136, 0.7978846
  %v138 = vtanh.pop %v137
  %v139 = vadd.f32 %v138, 1.0
  %v140 = vmul.f32 %v132, %v139
  %v141 = vld [vmem:[%s3] sm:$0xff]
  %v142 = vld [vmem:[%s3 + $0x8] sm:$0xff]
  %v143 = vld [vmem:[%s3 + $0x10] sm:$0xff]
  %v144 = vld [vmem:[%s3 + $0x18] sm:$0xff]
  %v145 = vld [vmem:[%s3 + $0x20] sm:$0xff]
  %v146 = vld [vmem:[%s3 + $0x28] sm:$0xff]
  %v147 = vld [vmem:[%s3 + $0x30] sm:$0xff]
  %v148 = vld [vmem:[%s3 + $0x38] sm:$0xff]
  %v149 = vld [vmem:[%s4] sm:$0x1]
  %v151 = vlaneseq
  %v152 = vshrl.u32 %v151, 7
  %v153 = vsub.s32 0, %v152
  %v154 = vrot.slane %v149, %v153
  %vm156 = vcmask 523264
  %v158 = vsel %vm156, %v140, 0
  %160 = vmatprep.subr.mxu0 0.0
  %161 = vmatpush1.msra.mxu0 %v141
  %162 = vmatprep.subr.mxu0 0.0
  %163 = vmatpush1.msra.mxu0 %v142
  %164 = vmatprep.subr.mxu0 0.0
  %165 = vmatpush1.msra.mxu0 %v143
  %166 = vmatprep.subr.mxu0 0.0
  %167 = vmatpush1.msra.mxu0 %v144
  %168 = vmatprep.subr.mxu0 0.0
  %169 = vmatpush1.msra.mxu0 %v145
  %170 = vmatprep.subr.mxu0 0.0
  %171 = vmatpush1.msra.mxu0 %v146
  %172 = vmatprep.subr.mxu0 0.0
  %173 = vmatpush1.msra.mxu0 %v147
  %174 = vmatprep.subr.mxu0 0.0
  %175 = vmatpush1.msra.mxu0 %v148
  %176 = vmatprep.subr.mxu0 0.0
  %177 = vmatpush1.msra.mxu0 0.0
  %178 = vmatprep.subr.mxu0 0.0
  %179 = vmatpush1.msra.mxu0 0.0
  %180 = vmatprep.subr.mxu0 0.0
  %181 = vmatpush1.msra.mxu0 0.0
  %182 = vmatprep.subr.mxu0 0.0
  %183 = vmatpush1.msra.mxu0 0.0
  %184 = vmatprep.subr.mxu0 0.0
  %185 = vmatpush1.msra.mxu0 0.0
  %186 = vmatprep.subr.mxu0 0.0
  %187 = vmatpush1.msra.mxu0 0.0
  %188 = vmatprep.subr.mxu0 0.0
  %189 = vmatpush1.msra.mxu0 0.0
  %190 = vmatprep.subr.mxu0 0.0
  %191 = vmatpush1.msra.mxu0 0.0
  %192 = vmatprep.subr.mxu0 0.0
  %193 = vmatpush1.msra.mxu0 0.0
  %194 = vmatprep.subr.mxu0 0.0
  %195 = vmatpush1.msra.mxu0 0.0
  %196 = vmatprep.subr.mxu0 0.0
  %197 = vmatpush1.msra.mxu0 0.0
  %198 = vmatprep.subr.mxu0 0.0
  %199 = vmatpush1.msra.mxu0 0.0
  %200 = vmatprep.subr.mxu0 0.0
  %201 = vmatpush1.msra.mxu0 0.0
  %202 = vmatprep.subr.mxu0 0.0
  %203 = vmatpush1.msra.mxu0 0.0
  %204 = vmatprep.subr.mxu0 0.0
  %205 = vmatpush1.msra.mxu0 0.0
  %206 = vmatprep.subr.mxu0 0.0
  %207 = vmatpush1.msra.mxu0 0.0
  %208 = vmatprep.subr.mxu0 0.0
  %209 = vmatpush1.msra.mxu0 0.0
  %210 = vmatprep.subr.mxu0 0.0
  %211 = vmatpush1.msra.mxu0 0.0
  %212 = vmatprep.subr.mxu0 0.0
  %213 = vmatpush1.msra.mxu0 0.0
  %214 = vmatprep.subr.mxu0 0.0
  %215 = vmatpush1.msra.mxu0 0.0
  %216 = vmatprep.subr.mxu0 0.0
  %217 = vmatpush1.msra.mxu0 0.0
  %218 = vmatprep.subr.mxu0 0.0
  %219 = vmatpush1.msra.mxu0 0.0
  %220 = vmatprep.subr.mxu0 0.0
  %221 = vmatpush1.msra.mxu0 0.0
  %222 = vmatprep.subr.mxu0 0.0
  %223 = vmatpush1.msra.mxu0 0.0
  %224 = vmatprep.mubr.f32.mxu0 0.0
  %225 = vmatmul.mubr.f32.gmra.mrb[0].mxu0 %v158
  %v226 = vpop.f32.mrb[0].mxu0
  %v227 = vadd.f32 %v154, %v226
  %v228 = vpop.f32.mrb[0].mxu0
  %229 = vdwg.mxu0
  %v230 = vmul.f32 %v227, 0.5
  %v231 = vmul.f32 %v227, 0.044715
  %v232 = vmul.f32 %v231, %v227
  %v233 = vmul.f32 %v232, %v227
  %v234 = vadd.f32 %v227, %v233
  %v235 = vmul.f32 %v234, 0.7978846
  %v236 = vtanh.pop %v235
  %v237 = vadd.f32 %v236, 1.0
  %v238 = vmul.f32 %v230, %v237
  %v239 = vld [vmem:[%s5] sm:$0xff]
  %v240 = vld [vmem:[%s5 + $0x8] sm:$0xff]
  %v241 = vld [vmem:[%s5 + $0x10] sm:$0xff]
  %v242 = vld [vmem:[%s5 + $0x18] sm:$0xff]
  %v243 = vld [vmem:[%s6] sm:$0x1]
  %v245 = vlaneseq
  %v246 = vshrl.u32 %v245, 7
  %v247 = vsub.s32 0, %v246
  %v248 = vrot.slane %v243, %v247
  %vm250 = vcmask 261120
  %v252 = vsel %vm250, %v238, 0
  %254 = vmatprep.subr.mxu0 0.0
  %255 = vmatpush1.msra.mxu0 %v239
  %256 = vmatprep.subr.mxu0 0.0
  %257 = vmatpush1.msra.mxu0 %v240
  %258 = vmatprep.subr.mxu0 0.0
  %259 = vmatpush1.msra.mxu0 %v241
  %260 = vmatprep.subr.mxu0 0.0
  %261 = vmatpush1.msra.mxu0 %v242
  %262 = vmatprep.subr.mxu0 0.0
  %263 = vmatpush1.msra.mxu0 0.0
  %264 = vmatprep.subr.mxu0 0.0
  %265 = vmatpush1.msra.mxu0 0.0
  %266 = vmatprep.subr.mxu0 0.0
  %267 = vmatpush1.msra.mxu0 0.0
  %268 = vmatprep.subr.mxu0 0.0
  %269 = vmatpush1.msra.mxu0 0.0
  %270 = vmatprep.subr.mxu0 0.0
  %271 = vmatpush1.msra.mxu0 0.0
  %272 = vmatprep.subr.mxu0 0.0
  %273 = vmatpush1.msra.mxu0 0.0
  %274 = vmatprep.subr.mxu0 0.0
  %275 = vmatpush1.msra.mxu0 0.0
  %276 = vmatprep.subr.mxu0 0.0
  %277 = vmatpush1.msra.mxu0 0.0
  %278 = vmatprep.subr.mxu0 0.0
  %279 = vmatpush1.msra.mxu0 0.0
  %280 = vmatprep.subr.mxu0 0.0
  %281 = vmatpush1.msra.mxu0 0.0
  %282 = vmatprep.subr.mxu0 0.0
  %283 = vmatpush1.msra.mxu0 0.0
  %284 = vmatprep.subr.mxu0 0.0
  %285 = vmatpush1.msra.mxu0 0.0
  %286 = vmatprep.subr.mxu0 0.0
  %287 = vmatpush1.msra.mxu0 0.0
  %288 = vmatprep.subr.mxu0 0.0
  %289 = vmatpush1.msra.mxu0 0.0
  %290 = vmatprep.subr.mxu0 0.0
  %291 = vmatpush1.msra.mxu0 0.0
  %292 = vmatprep.subr.mxu0 0.0
  %293 = vmatpush1.msra.mxu0 0.0
  %294 = vmatprep.subr.mxu0 0.0
  %295 = vmatpush1.msra.mxu0 0.0
  %296 = vmatprep.subr.mxu0 0.0
  %297 = vmatpush1.msra.mxu0 0.0
  %298 = vmatprep.subr.mxu0 0.0
  %299 = vmatpush1.msra.mxu0 0.0
  %300 = vmatprep.subr.mxu0 0.0
  %301 = vmatpush1.msra.mxu0 0.0
  %302 = vmatprep.subr.mxu0 0.0
  %303 = vmatpush1.msra.mxu0 0.0
  %304 = vmatprep.subr.mxu0 0.0
  %305 = vmatpush1.msra.mxu0 0.0
  %306 = vmatprep.subr.mxu0 0.0
  %307 = vmatpush1.msra.mxu0 0.0
  %308 = vmatprep.subr.mxu0 0.0
  %309 = vmatpush1.msra.mxu0 0.0
  %310 = vmatprep.subr.mxu0 0.0
  %311 = vmatpush1.msra.mxu0 0.0
  %312 = vmatprep.subr.mxu0 0.0
  %313 = vmatpush1.msra.mxu0 0.0
  %314 = vmatprep.subr.mxu0 0.0
  %315 = vmatpush1.msra.mxu0 0.0
  %316 = vmatprep.subr.mxu0 0.0
  %317 = vmatpush1.msra.mxu0 0.0
  %318 = vmatprep.mubr.f32.mxu0 0.0
  %319 = vmatmul.mubr.f32.gmra.mrb[0].mxu0 %v252
  %v320 = vpop.f32.mrb[0].mxu0
  %v321 = vadd.f32 %v248, %v320
  %v322 = vpop.f32.mrb[0].mxu0
  %323 = vdwg.mxu0
  %v324 = vmul.f32 %v321, 0.5
  %v325 = vmul.f32 %v321, 0.044715
  %v326 = vmul.f32 %v325, %v321
  %v327 = vmul.f32 %v326, %v321
  %v328 = vadd.f32 %v321, %v327
  %v329 = vmul.f32 %v328, 0.7978846
  %v330 = vtanh.pop %v329
  %v331 = vadd.f32 %v330, 1.0
  %v332 = vmul.f32 %v324, %v331
  %v333 = vld [vmem:[%s7] sm:$0xff]
  %v334 = vld [vmem:[%s7 + $0x8] sm:$0xff]
  %v335 = vld [vmem:[%s8] sm:$0x1]
  %v337 = vlaneseq
  %v338 = vshrl.u32 %v337, 7
  %v339 = vsub.s32 0, %v338
  %v340 = vrot.slane %v335, %v339
  %vm342 = vcmask 130048
  %v344 = vsel %vm342, %v332, 0
  %346 = vmatprep.subr.mxu0 0.0
  %347 = vmatpush1.msra.mxu0 %v333
  %348 = vmatprep.subr.mxu0 0.0
  %349 = vmatpush1.msra.mxu0 %v334
  %350 = vmatprep.subr.mxu0 0.0
  %351 = vmatpush1.msra.mxu0 0.0
  %352 = vmatprep.subr.mxu0 0.0
  %353 = vmatpush1.msra.mxu0 0.0
  %354 = vmatprep.subr.mxu0 0.0
  %355 = vmatpush1.msra.mxu0 0.0
  %356 = vmatprep.subr.mxu0 0.0
  %357 = vmatpush1.msra.mxu0 0.0
  %358 = vmatprep.subr.mxu0 0.0
  %359 = vmatpush1.msra.mxu0 0.0
  %360 = vmatprep.subr.mxu0 0.0
  %361 = vmatpush1.msra.mxu0 0.0
  %362 = vmatprep.subr.mxu0 0.0
  %363 = vmatpush1.msra.mxu0 0.0
  %364 = vmatprep.subr.mxu0 0.0
  %365 = vmatpush1.msra.mxu0 0.0
  %366 = vmatprep.subr.mxu0 0.0
  %367 = vmatpush1.msra.mxu0 0.0
  %368 = vmatprep.subr.mxu0 0.0
  %369 = vmatpush1.msra.mxu0 0.0
  %370 = vmatprep.subr.mxu0 0.0
  %371 = vmatpush1.msra.mxu0 0.0
  %372 = vmatprep.subr.mxu0 0.0
  %373 = vmatpush1.msra.mxu0 0.0
  %374 = vmatprep.subr.mxu0 0.0
  %375 = vmatpush1.msra.mxu0 0.0
  %376 = vmatprep.subr.mxu0 0.0
  %377 = vmatpush1.msra.mxu0 0.0
  %378 = vmatprep.subr.mxu0 0.0
  %379 = vmatpush1.msra.mxu0 0.0
  %380 = vmatprep.subr.mxu0 0.0
  %381 = vmatpush1.msra.mxu0 0.0
  %382 = vmatprep.subr.mxu0 0.0
  %383 = vmatpush1.msra.mxu0 0.0
  %384 = vmatprep.subr.mxu0 0.0
  %385 = vmatpush1.msra.mxu0 0.0
  %386 = vmatprep.subr.mxu0 0.0
  %387 = vmatpush1.msra.mxu0 0.0
  %388 = vmatprep.subr.mxu0 0.0
  %389 = vmatpush1.msra.mxu0 0.0
  %390 = vmatprep.subr.mxu0 0.0
  %391 = vmatpush1.msra.mxu0 0.0
  %392 = vmatprep.subr.mxu0 0.0
  %393 = vmatpush1.msra.mxu0 0.0
  %394 = vmatprep.subr.mxu0 0.0
  %395 = vmatpush1.msra.mxu0 0.0
  %396 = vmatprep.subr.mxu0 0.0
  %397 = vmatpush1.msra.mxu0 0.0
  %398 = vmatprep.subr.mxu0 0.0
  %399 = vmatpush1.msra.mxu0 0.0
  %400 = vmatprep.subr.mxu0 0.0
  %401 = vmatpush1.msra.mxu0 0.0
  %402 = vmatprep.subr.mxu0 0.0
  %403 = vmatpush1.msra.mxu0 0.0
  %404 = vmatprep.subr.mxu0 0.0
  %405 = vmatpush1.msra.mxu0 0.0
  %406 = vmatprep.subr.mxu0 0.0
  %407 = vmatpush1.msra.mxu0 0.0
  %408 = vmatprep.subr.mxu0 0.0
  %409 = vmatpush1.msra.mxu0 0.0
  %410 = vmatprep.mubr.f32.mxu0 0.0
  %411 = vmatmul.mubr.f32.gmra.mrb[0].mxu0 %v344
  %v412 = vpop.f32.mrb[0].mxu0
  %v413 = vadd.f32 %v340, %v412
  %v414 = vpop.f32.mrb[0].mxu0
  %415 = vdwg.mxu0
  %v416 = vmul.f32 %v413, 0.5
  %v417 = vmul.f32 %v413, 0.044715
  %v418 = vmul.f32 %v417, %v413
  %v419 = vmul.f32 %v418, %v413
  %v420 = vadd.f32 %v413, %v419
  %v421 = vmul.f32 %v420, 0.7978846
  %v422 = vtanh.pop %v421
  %v423 = vadd.f32 %v422, 1.0
  %v424 = vmul.f32 %v416, %v423
  %v425 = vld [vmem:[%s9] sm:$0xff]
  %v426 = vld [vmem:[%s10] sm:$0x1]
  %v428 = vlaneseq
  %v429 = vshrl.u32 %v428, 7
  %v430 = vsub.s32 0, %v429
  %v431 = vrot.slane %v426, %v430
  %vm433 = vcmask 64512
  %v435 = vsel %vm433, %v424, 0
  %437 = vmatprep.subr.mxu0 0.0
  %438 = vmatpush1.msra.mxu0 %v425
  %439 = vmatprep.subr.mxu0 0.0
  %440 = vmatpush1.msra.mxu0 0.0
  %441 = vmatprep.subr.mxu0 0.0
  %442 = vmatpush1.msra.mxu0 0.0
  %443 = vmatprep.subr.mxu0 0.0
  %444 = vmatpush1.msra.mxu0 0.0
  %445 = vmatprep.subr.mxu0 0.0
  %446 = vmatpush1.msra.mxu0 0.0
  %447 = vmatprep.subr.mxu0 0.0
  %448 = vmatpush1.msra.mxu0 0.0
  %449 = vmatprep.subr.mxu0 0.0
  %450 = vmatpush1.msra.mxu0 0.0
  %451 = vmatprep.subr.mxu0 0.0
  %452 = vmatpush1.msra.mxu0 0.0
  %453 = vmatprep.subr.mxu0 0.0
  %454 = vmatpush1.msra.mxu0 0.0
  %455 = vmatprep.subr.mxu0 0.0
  %456 = vmatpush1.msra.mxu0 0.0
  %457 = vmatprep.subr.mxu0 0.0
  %458 = vmatpush1.msra.mxu0 0.0
  %459 = vmatprep.subr.mxu0 0.0
  %460 = vmatpush1.msra.mxu0 0.0
  %461 = vmatprep.subr.mxu0 0.0
  %462 = vmatpush1.msra.mxu0 0.0
  %463 = vmatprep.subr.mxu0 0.0
  %464 = vmatpush1.msra.mxu0 0.0
  %465 = vmatprep.subr.mxu0 0.0
  %466 = vmatpush1.msra.mxu0 0.0
  %467 = vmatprep.subr.mxu0 0.0
  %468 = vmatpush1.msra.mxu0 0.0
  %469 = vmatprep.subr.mxu0 0.0
  %470 = vmatpush1.msra.mxu0 0.0
  %471 = vmatprep.subr.mxu0 0.0
  %472 = vmatpush1.msra.mxu0 0.0
  %473 = vmatprep.subr.mxu0 0.0
  %474 = vmatpush1.msra.mxu0 0.0
  %475 = vmatprep.subr.mxu0 0.0
  %476 = vmatpush1.msra.mxu0 0.0
  %477 = vmatprep.subr.mxu0 0.0
  %478 = vmatpush1.msra.mxu0 0.0
  %479 = vmatprep.subr.mxu0 0.0
  %480 = vmatpush1.msra.mxu0 0.0
  %481 = vmatprep.subr.mxu0 0.0
  %482 = vmatpush1.msra.mxu0 0.0
  %483 = vmatprep.subr.mxu0 0.0
  %484 = vmatpush1.msra.mxu0 0.0
  %485 = vmatprep.subr.mxu0 0.0
  %486 = vmatpush1.msra.mxu0 0.0
  %487 = vmatprep.subr.mxu0 0.0
  %488 = vmatpush1.msra.mxu0 0.0
  %489 = vmatprep.subr.mxu0 0.0
  %490 = vmatpush1.msra.mxu0 0.0
  %491 = vmatprep.subr.mxu0 0.0
  %492 = vmatpush1.msra.mxu0 0.0
  %493 = vmatprep.subr.mxu0 0.0
  %494 = vmatpush1.msra.mxu0 0.0
  %495 = vmatprep.subr.mxu0 0.0
  %496 = vmatpush1.msra.mxu0 0.0
  %497 = vmatprep.subr.mxu0 0.0
  %498 = vmatpush1.msra.mxu0 0.0
  %499 = vmatprep.subr.mxu0 0.0
  %500 = vmatpush1.msra.mxu0 0.0
  %501 = vmatprep.mubr.f32.mxu0 0.0
  %502 = vmatmul.mubr.f32.gmra.mrb[0].mxu0 %v435
  %v503 = vpop.f32.mrb[0].mxu0
  %v504 = vadd.f32 %v431, %v503
  %v505 = vpop.f32.mrb[0].mxu0
  %506 = vdwg.mxu0
  %vm507 = vcmask 25600
  %508 = vst.msk [vmem:[%s11] sm:$0x3] %vm507, %v504
  // Predicated region
  $region46: #{hgt_forward.9} parent=0 // pred_check
    _
  $region47: #{hgt_forward.9} parent=0 // pred_check_branch
    %510 = sbr.rel (0) target = $region49
  $region48: #{hgt_forward.9} parent=0 // pred_region
    _
  $region49: #{hgt_forward.9} parent=0 // pred_fallthru
    _
  // Predicated region
  $region50: #{hgt_forward.9} parent=0 // pred_check
    _
  $region51: #{hgt_forward.9} parent=0 // pred_check_branch
    %512 = sbr.rel (0) target = $region53
  $region52: #{hgt_forward.9} parent=0 // pred_region
    _
  $region53: #{hgt_forward.9} parent=0 // pred_fallthru
    _

// kernel: hgt_forward.8
$region0: #{hgt_forward.8}
  #allocation0 [shape = 'u32[]', space=smem, size = 0x4, offset = 0x4, fixed_abs, tag = 'smem constant byte address 0x4 - core index']
  #allocation1 [shape = 'u32[144,128]{1,0:T(1,128)}', space=vmem, size = 0x12000, scoped, tag = 'internal scratch']
  #allocation2 [shape = 'f32[1,1]{1,0:T(1,128)S(1)}', space=vmem, size = 0x200, scoped, tag = 'scoped memory for hgt_forward.8']
  #allocation3 [shape = 'f32[1,1]{1,0:T(1,128)S(1)}', space=vmem, size = 0x200, scoped, tag = 'scoped memory for hgt_forward.8']
  %s0 = inlined_call_operand.vmem [shape: f32[3,16,32], index: 0, kind: input, shape index: {}]
  %s1 = inlined_call_operand.vmem [shape: f32[32,192], index: 1, kind: input, shape index: {}]
  %s2 = inlined_call_operand.vmem [shape: f32[48,192], index: 2, kind: input, shape index: {}]
  %s3 = inlined_call_operand.vmem [shape: f32[1,192], index: 3, kind: input, shape index: {}]
  %s4 = inlined_call_operand.vmem [shape: f32[32,192], index: 4, kind: input, shape index: {}]
  %s5 = inlined_call_operand.vmem [shape: f32[48,192], index: 5, kind: input, shape index: {}]
  %s6 = inlined_call_operand.vmem [shape: f32[1,192], index: 6, kind: input, shape index: {}]
  %s7 = inlined_call_operand.vmem [shape: f32[96,1], index: 7, kind: input, shape index: {}]
  %s8 = inlined_call_operand.<no memory space> [shape: f32[1,1], index: 8, kind: input, shape index: {}]
  %s9 = inlined_call_operand.vmem [shape: f32[16,16], index: 9, kind: input, shape index: {}]
  %s10 = inlined_call_operand.vmem [shape: f32[32,1], index: 10, kind: input, shape index: {}]
  %s11 = inlined_call_operand.vmem [shape: f32[32,1], index: 11, kind: input, shape index: {}]
  %s12 = inlined_call_operand.<no memory space> [shape: f32[1,1], index: 12, kind: input, shape index: {}]
  %s13 = inlined_call_operand.vmem [shape: f32[16,32], index: 13, kind: output, shape index: {0}]
  %s14 = inlined_call_operand.vmem [shape: f32[16,1], index: 14, kind: output, shape index: {1}]
  %15 = xla_tuple %s13, %s14
  %s16 = sld [smem:[#allocation0]]
  $region70: #{hgt_forward.8} parent=0
    _
  %s18 = ssub.s32 1, %s16
  %s19 = scalar_select 0, %s18, %s16
  %v20 = vstv %s8
  %21 = vst [vmem:[#allocation2] sm:$0x1] %v20
  %v22 = vstv %s12
  %23 = vst [vmem:[#allocation3] sm:$0x1] %v22
  // Predicated region
  $region2: #{hgt_forward.8} parent=0 // pred_check
    _
  $region3: #{hgt_forward.8} parent=0 // pred_check_branch
    %25 = sbr.rel (0) target = $region5
  $region4: #{hgt_forward.8} parent=0 // pred_region
    _
  $region5: #{hgt_forward.8} parent=0 // pred_fallthru
    _
  // Predicated region
  $region6: #{hgt_forward.8} parent=0 // pred_check
    _
  $region7: #{hgt_forward.8} parent=0 // pred_check_branch
    %27 = sbr.rel (0) target = $region9
  $region8: #{hgt_forward.8} parent=0 // pred_region
    _
  $region9: #{hgt_forward.8} parent=0 // pred_fallthru
    _
  // Predicated region
  $region10: #{hgt_forward.8} parent=0 // pred_check
    _
  $region11: #{hgt_forward.8} parent=0 // pred_check_branch
    %29 = sbr.rel (0) target = $region13
  $region12: #{hgt_forward.8} parent=0 // pred_region
    _
  $region13: #{hgt_forward.8} parent=0 // pred_fallthru
    _
  // Predicated region
  $region14: #{hgt_forward.8} parent=0 // pred_check
    _
  $region15: #{hgt_forward.8} parent=0 // pred_check_branch
    %31 = sbr.rel (0) target = $region17
  $region16: #{hgt_forward.8} parent=0 // pred_region
    _
  $region17: #{hgt_forward.8} parent=0 // pred_fallthru
    _
  // Predicated region
  $region18: #{hgt_forward.8} parent=0 // pred_check
    _
  $region19: #{hgt_forward.8} parent=0 // pred_check_branch
    %33 = sbr.rel (0) target = $region21
  $region20: #{hgt_forward.8} parent=0 // pred_region
    _
  $region21: #{hgt_forward.8} parent=0 // pred_fallthru
    _
  // Predicated region
  $region22: #{hgt_forward.8} parent=0 // pred_check
    _
  $region23: #{hgt_forward.8} parent=0 // pred_check_branch
    %35 = sbr.rel (0) target = $region25
  $region24: #{hgt_forward.8} parent=0 // pred_region
    _
  $region25: #{hgt_forward.8} parent=0 // pred_fallthru
    _
  // Predicated region
  $region26: #{hgt_forward.8} parent=0 // pred_check
    _
  $region27: #{hgt_forward.8} parent=0 // pred_check_branch
    %37 = sbr.rel (0) target = $region29
  $region28: #{hgt_forward.8} parent=0 // pred_region
    _
  $region29: #{hgt_forward.8} parent=0 // pred_fallthru
    _
  // Predicated region
  $region30: #{hgt_forward.8} parent=0 // pred_check
    _
  $region31: #{hgt_forward.8} parent=0 // pred_check_branch
    %39 = sbr.rel (0) target = $region33
  $region32: #{hgt_forward.8} parent=0 // pred_region
    _
  $region33: #{hgt_forward.8} parent=0 // pred_fallthru
    _
  // Predicated region
  $region34: #{hgt_forward.8} parent=0 // pred_check
    _
  $region35: #{hgt_forward.8} parent=0 // pred_check_branch
    %41 = sbr.rel (0) target = $region37
  $region36: #{hgt_forward.8} parent=0 // pred_region
    _
  $region37: #{hgt_forward.8} parent=0 // pred_fallthru
    _
  // Predicated region
  $region38: #{hgt_forward.8} parent=0 // pred_check
    _
  $region39: #{hgt_forward.8} parent=0 // pred_check_branch
    %43 = sbr.rel (0) target = $region41
  $region40: #{hgt_forward.8} parent=0 // pred_region
    _
  $region41: #{hgt_forward.8} parent=0 // pred_fallthru
    _
  // Predicated region
  $region42: #{hgt_forward.8} parent=0 // pred_check
    _
  $region43: #{hgt_forward.8} parent=0 // pred_check_branch
    %45 = sbr.rel (0) target = $region45
  $region44: #{hgt_forward.8} parent=0 // pred_region
    _
  $region45: #{hgt_forward.8} parent=0 // pred_fallthru
    _
  // Predicated region
  $region46: #{hgt_forward.8} parent=0 // pred_check
    _
  $region47: #{hgt_forward.8} parent=0 // pred_check_branch
    %47 = sbr.rel (0) target = $region49
  $region48: #{hgt_forward.8} parent=0 // pred_region
    _
  $region49: #{hgt_forward.8} parent=0 // pred_fallthru
    _
  // Predicated region
  $region50: #{hgt_forward.8} parent=0 // pred_check
    _
  $region51: #{hgt_forward.8} parent=0 // pred_check_branch
    %49 = sbr.rel (0) target = $region53
  $region52: #{hgt_forward.8} parent=0 // pred_region
    _
  $region53: #{hgt_forward.8} parent=0 // pred_fallthru
    _
  %v50 = vld [vmem:[%s1] sm:$0xff]
  %v51 = vld [vmem:[%s1 + $0x8] sm:$0xff]
  %v52 = vld [vmem:[%s1 + $0x10] sm:$0xff]
  %v53 = vld [vmem:[%s1 + $0x18] sm:$0xff]
  %v54 = vld [vmem:[%s1 + $0x20] sm:$0xff]
  %v55 = vld [vmem:[%s1 + $0x28] sm:$0xff]
  %v56 = vld [vmem:[%s1 + $0x30] sm:$0xff]
  %v57 = vld [vmem:[%s1 + $0x38] sm:$0xff]
  %v58 = vld [vmem:[%s2] sm:$0xff]
  %v59 = vld [vmem:[%s2 + $0x8] sm:$0xff]
  %v60 = vld [vmem:[%s2 + $0x10] sm:$0xff]
  %v61 = vld [vmem:[%s2 + $0x18] sm:$0xff]
  %v62 = vld [vmem:[%s2 + $0x20] sm:$0xff]
  %v63 = vld [vmem:[%s2 + $0x28] sm:$0xff]
  %v64 = vld [vmem:[%s2 + $0x30] sm:$0xff]
  %v65 = vld [vmem:[%s2 + $0x38] sm:$0xff]
  %v66 = vld [vmem:[%s2 + $0x40] sm:$0xff]
  %v67 = vld [vmem:[%s2 + $0x48] sm:$0xff]
  %v68 = vld [vmem:[%s2 + $0x50] sm:$0xff]
  %v69 = vld [vmem:[%s2 + $0x58] sm:$0xff]
  %v70 = vld [vmem:[%s3] sm:$0x3]
  %v71 = vld [vmem:[%s0] sm:$0xff]
  %v72 = vld [vmem:[%s0 + $0x8] sm:$0xff]
  %vm73 = vcmask 392192
  %v75 = vsel %vm73, 0.0, 0
  %77 = vmatprep.subr.mxu0 %v59
  %78 = vmatpush1.msra.mxu0 %v58
  %79 = vmatprep.subr.mxu0 %v61
  %80 = vmatpush1.msra.mxu0 %v60
  %81 = vmatprep.subr.mxu0 %v63
  %82 = vmatpush1.msra.mxu0 %v62
  %83 = vmatprep.subr.mxu0 %v65
  %84 = vmatpush1.msra.mxu0 %v64
  %85 = vmatprep.subr.mxu0 %v67
  %86 = vmatpush1.msra.mxu0 %v66
  %87 = vmatprep.subr.mxu0 %v69
  %88 = vmatpush1.msra.mxu0 %v68
  %89 = vmatprep.subr.mxu0 0.0
  %90 = vmatpush1.msra.mxu0 0.0
  %91 = vmatprep.subr.mxu0 0.0
  %92 = vmatpush1.msra.mxu0 0.0
  %93 = vmatprep.subr.mxu0 0.0
  %94 = vmatpush1.msra.mxu0 0.0
  %95 = vmatprep.subr.mxu0 0.0
  %96 = vmatpush1.msra.mxu0 0.0
  %97 = vmatprep.subr.mxu0 0.0
  %98 = vmatpush1.msra.mxu0 0.0
  %99 = vmatprep.subr.mxu0 0.0
  %100 = vmatpush1.msra.mxu0 0.0
  %101 = vmatprep.subr.mxu0 0.0
  %102 = vmatpush1.msra.mxu0 0.0
  %103 = vmatprep.subr.mxu0 0.0
  %104 = vmatpush1.msra.mxu0 0.0
  %105 = vmatprep.subr.mxu0 0.0
  %106 = vmatpush1.msra.mxu0 0.0
  %107 = vmatprep.subr.mxu0 0.0
  %108 = vmatpush1.msra.mxu0 0.0
  %109 = vmatprep.subr.mxu0 0.0
  %110 = vmatpush1.msra.mxu0 0.0
  %111 = vmatprep.subr.mxu0 0.0
  %112 = vmatpush1.msra.mxu0 0.0
  %113 = vmatprep.subr.mxu0 0.0
  %114 = vmatpush1.msra.mxu0 0.0
  %115 = vmatprep.subr.mxu0 0.0
  %116 = vmatpush1.msra.mxu0 0.0
  %117 = vmatprep.subr.mxu0 0.0
  %118 = vmatpush1.msra.mxu0 0.0
  %119 = vmatprep.subr.mxu0 0.0
  %120 = vmatpush1.msra.mxu0 0.0
  %121 = vmatprep.subr.mxu0 0.0
  %122 = vmatpush1.msra.mxu0 0.0
  %123 = vmatprep.subr.mxu0 0.0
  %124 = vmatpush1.msra.mxu0 0.0
  %125 = vmatprep.subr.mxu0 0.0
  %126 = vmatpush1.msra.mxu0 0.0
  %127 = vmatprep.subr.mxu0 0.0
  %128 = vmatpush1.msra.mxu0 0.0
  %129 = vmatprep.subr.mxu0 0.0
  %130 = vmatpush1.msra.mxu0 0.0
  %131 = vmatprep.subr.mxu0 0.0
  %132 = vmatpush1.msra.mxu0 0.0
  %133 = vmatprep.subr.mxu0 0.0
  %134 = vmatpush1.msra.mxu0 0.0
  %135 = vmatprep.subr.mxu0 0.0
  %136 = vmatpush1.msra.mxu0 0.0
  %137 = vmatprep.subr.mxu0 0.0
  %138 = vmatpush1.msra.mxu0 0.0
  %139 = vmatprep.subr.mxu0 0.0
  %140 = vmatpush1.msra.mxu0 0.0
  %141 = vmatprep.mubr.f32.mxu0 0.0
  %142 = vmatmul.mubr.f32.gmra.mrb[0].mxu0 %v75
  %v143 = vpop.f32.mrb[0].mxu0
  %v144 = vadd.f32 0.0, %v143
  %v145 = vpop.f32.mrb[0].mxu0
  %v146 = vadd.f32 0.0, %v145
  %147 = vmatprep.mubr.f32.mxu0 0.0
  %148 = vmatmul.mubr.f32.gmra.mrb[0].mxu0 %v75
  %v149 = vpop.f32.mrb[0].mxu0
  %v150 = vadd.f32 0.0, %v149
  %v151 = vpop.f32.mrb[0].mxu0
  %v152 = vadd.f32 0.0, %v151
  %153 = vdwg.mxu0
  %vm154 = vcmask 261120
  %v156 = vsel %vm154, %v71, 0
  %v159 = vsel %vm154, %v72, 0
  %161 = vmatprep.subr.mxu0 %v51
  %162 = vmatpush1.msra.mxu0 %v50
  %163 = vmatprep.subr.mxu0 %v53
  %164 = vmatpush1.msra.mxu0 %v52
  %165 = vmatprep.subr.mxu0 %v55
  %166 = vmatpush1.msra.mxu0 %v54
  %167 = vmatprep.subr.mxu0 %v57
  %168 = vmatpush1.msra.mxu0 %v56
  %169 = vmatprep.subr.mxu0 0.0
  %170 = vmatpush1.msra.mxu0 0.0
  %171 = vmatprep.subr.mxu0 0.0
  %172 = vmatpush1.msra.mxu0 0.0
  %173 = vmatprep.subr.mxu0 0.0
  %174 = vmatpush1.msra.mxu0 0.0
  %175 = vmatprep.subr.mxu0 0.0
  %176 = vmatpush1.msra.mxu0 0.0
  %177 = vmatprep.subr.mxu0 0.0
  %178 = vmatpush1.msra.mxu0 0.0
  %179 = vmatprep.subr.mxu0 0.0
  %180 = vmatpush1.msra.mxu0 0.0
  %181 = vmatprep.subr.mxu0 0.0
  %182 = vmatpush1.msra.mxu0 0.0
  %183 = vmatprep.subr.mxu0 0.0
  %184 = vmatpush1.msra.mxu0 0.0
  %185 = vmatprep.subr.mxu0 0.0
  %186 = vmatpush1.msra.mxu0 0.0
  %187 = vmatprep.subr.mxu0 0.0
  %188 = vmatpush1.msra.mxu0 0.0
  %189 = vmatprep.subr.mxu0 0.0
  %190 = vmatpush1.msra.mxu0 0.0
  %191 = vmatprep.subr.mxu0 0.0
  %192 = vmatpush1.msra.mxu0 0.0
  %193 = vmatprep.subr.mxu0 0.0
  %194 = vmatpush1.msra.mxu0 0.0
  %195 = vmatprep.subr.mxu0 0.0
  %196 = vmatpush1.msra.mxu0 0.0
  %197 = vmatprep.subr.mxu0 0.0
  %198 = vmatpush1.msra.mxu0 0.0
  %199 = vmatprep.subr.mxu0 0.0
  %200 = vmatpush1.msra.mxu0 0.0
  %201 = vmatprep.subr.mxu0 0.0
  %202 = vmatpush1.msra.mxu0 0.0
  %203 = vmatprep.subr.mxu0 0.0
  %204 = vmatpush1.msra.mxu0 0.0
  %205 = vmatprep.subr.mxu0 0.0
  %206 = vmatpush1.msra.mxu0 0.0
  %207 = vmatprep.subr.mxu0 0.0
  %208 = vmatpush1.msra.mxu0 0.0
  %209 = vmatprep.subr.mxu0 0.0
  %210 = vmatpush1.msra.mxu0 0.0
  %211 = vmatprep.subr.mxu0 0.0
  %212 = vmatpush1.msra.mxu0 0.0
  %213 = vmatprep.subr.mxu0 0.0
  %214 = vmatpush1.msra.mxu0 0.0
  %215 = vmatprep.subr.mxu0 0.0
  %216 = vmatpush1.msra.mxu0 0.0
  %217 = vmatprep.subr.mxu0 0.0
  %218 = vmatpush1.msra.mxu0 0.0
  %219 = vmatprep.subr.mxu0 0.0
  %220 = vmatpush1.msra.mxu0 0.0
  %221 = vmatprep.subr.mxu0 0.0
  %222 = vmatpush1.msra.mxu0 0.0
  %223 = vmatprep.subr.mxu0 0.0
  %224 = vmatpush1.msra.mxu0 0.0
  %225 = vmatprep.mubr.f32.mxu0 0.0
  %226 = vmatmul.mubr.f32.gmra.mrb[0].mxu0 %v156
  %v227 = vpop.f32.mrb[0].mxu0
  %v228 = vadd.f32 %v144, %v227
  %v229 = vpop.f32.mrb[0].mxu0
  %v230 = vadd.f32 %v146, %v229
  %231 = vmatprep.mubr.f32.mxu0 0.0
  %232 = vmatmul.mubr.f32.gmra.mrb[0].mxu0 %v159
  %v233 = vpop.f32.mrb[0].mxu0
  %v234 = vadd.f32 %v150, %v233
  %v235 = vpop.f32.mrb[0].mxu0
  %v236 = vadd.f32 %v152, %v235
  %237 = vdwg.mxu0
  %v239 = vlaneseq
  %v240 = vshrl.u32 %v239, 7
  %v241 = vsub.s32 0, %v240
  %v242 = vrot.slane %v70, %v241
  %v243 = vlaneseq
  %v244 = vshrl.u32 %v243, 7
  %v245 = vsub.s32 1, %v244
  %v246 = vrot.slane %v70, %v245
  %v249 = vadd.f32 %v228, %v242
  %v250 = vadd.f32 %v230, %v246
  %v251 = vadd.f32 %v234, %v242
  %v252 = vadd.f32 %v236, %v246
  %v253 = vxor.u32 %v249, 2147483648
  %v254 = vxor.u32 %v251, 2147483648
  %v255 = vmul.f32 %v253, 1.442695
  %v256 = vpow.pop %v255
  %v257 = vmul.f32 %v254, 1.442695
  %v258 = vpow.pop %v257
  %v259 = vadd.f32 %v256, 1.0
  %v260 = vadd.f32 %v258, 1.0
  %v261 = vrcp.pop %v259
  %v262 = vmul.f32 1.0, %v261
  %v263 = vrcp.pop %v260
  %v264 = vmul.f32 1.0, %v263
  %v265 = vtanh.pop %v249
  %v266 = vtanh.pop %v250
  %v267 = vtanh.pop %v251
  %v268 = vtanh.pop %v252
  %v269 = vxor.u32 %v250, 2147483648
  %v270 = vxor.u32 %v252, 2147483648
  %v271 = vmul.f32 %v269, 1.442695
  %v272 = vpow.pop %v271
  %v273 = vmul.f32 %v270, 1.442695
  %v274 = vpow.pop %v273
  %v275 = vadd.f32 %v272, 1.0
  %v276 = vadd.f32 %v274, 1.0
  %v277 = vrcp.pop %v275
  %v278 = vmul.f32 1.0, %v277
  %v279 = vrcp.pop %v276
  %v280 = vmul.f32 1.0, %v279
  %v281 = vmul.f32 %v262, 0.0
  %v282 = vmul.f32 %v264, 0.0
  %287 = vrot.lane.b32.xlu0 %v265, 32
  %v288 = vpop.permute.xlu0 %287
  %289 = vrot.lane.b32.xlu0 %v266, 32
  %v290 = vpop.permute.xlu0 %289
  %291 = vrot.lane.b32.xlu0 %v267, 32
  %v292 = vpop.permute.xlu0 %291
  %293 = vrot.lane.b32.xlu0 %v268, 32
  %v294 = vpop.permute.xlu0 %293
  %v295 = vsel %vm154, %v288, %v290
  %v296 = vsel %vm154, %v292, %v294
  %v299 = vmul.f32 %v262, %v295
  %v300 = vmul.f32 %v264, %v296
  %303 = vrot.lane.b32.xlu0 %v299, 48
  %v304 = vpop.permute.xlu0 %303
  %305 = vrot.lane.b32.xlu0 %v300, 48
  %v306 = vpop.permute.xlu0 %305
  %v309 = vadd.f32 %v281, %v304
  %v310 = vadd.f32 %v282, %v306
  %v311 = vtanh.pop %v309
  %v312 = vtanh.pop %v310
  %315 = vrot.lane.b32.xlu0 %v311, 96
  %v316 = vpop.permute.xlu0 %315
  %317 = vrot.lane.b32.xlu0 %v312, 96
  %v318 = vpop.permute.xlu0 %317
  %v321 = vmul.f32 %v278, %v316
  %v322 = vmul.f32 %v280, %v318
  %s323 = scalar_lea.vmem %s0, 16
  %v324 = vld [vmem:[%s323] sm:$0xff]
  %v325 = vld [vmem:[%s323 + $0x8] sm:$0xff]
  %328 = vrot.lane.b32.xlu0 %v321, 112
  %v329 = vpop.permute.xlu0 %328
  %330 = vrot.lane.b32.xlu0 %v322, 112
  %v331 = vpop.permute.xlu0 %330
  %v332 = vsel %vm73, %v329, 0
  %v334 = vsel %vm73, %v331, 0
  %336 = vmatprep.subr.mxu0 %v59
  %337 = vmatpush1.msra.mxu0 %v58
  %338 = vmatprep.subr.mxu0 %v61
  %339 = vmatpush1.msra.mxu0 %v60
  %340 = vmatprep.subr.mxu0 %v63
  %341 = vmatpush1.msra.mxu0 %v62
  %342 = vmatprep.subr.mxu0 %v65
  %343 = vmatpush1.msra.mxu0 %v64
  %344 = vmatprep.subr.mxu0 %v67
  %345 = vmatpush1.msra.mxu0 %v66
  %346 = vmatprep.subr.mxu0 %v69
  %347 = vmatpush1.msra.mxu0 %v68
  %348 = vmatprep.subr.mxu0 0.0
  %349 = vmatpush1.msra.mxu0 0.0
  %350 = vmatprep.subr.mxu0 0.0
  %351 = vmatpush1.msra.mxu0 0.0
  %352 = vmatprep.subr.mxu0 0.0
  %353 = vmatpush1.msra.mxu0 0.0
  %354 = vmatprep.subr.mxu0 0.0
  %355 = vmatpush1.msra.mxu0 0.0
  %356 = vmatprep.subr.mxu0 0.0
  %357 = vmatpush1.msra.mxu0 0.0
  %358 = vmatprep.subr.mxu0 0.0
  %359 = vmatpush1.msra.mxu0 0.0
  %360 = vmatprep.subr.mxu0 0.0
  %361 = vmatpush1.msra.mxu0 0.0
  %362 = vmatprep.subr.mxu0 0.0
  %363 = vmatpush1.msra.mxu0 0.0
  %364 = vmatprep.subr.mxu0 0.0
  %365 = vmatpush1.msra.mxu0 0.0
  %366 = vmatprep.subr.mxu0 0.0
  %367 = vmatpush1.msra.mxu0 0.0
  %368 = vmatprep.subr.mxu0 0.0
  %369 = vmatpush1.msra.mxu0 0.0
  %370 = vmatprep.subr.mxu0 0.0
  %371 = vmatpush1.msra.mxu0 0.0
  %372 = vmatprep.subr.mxu0 0.0
  %373 = vmatpush1.msra.mxu0 0.0
  %374 = vmatprep.subr.mxu0 0.0
  %375 = vmatpush1.msra.mxu0 0.0
  %376 = vmatprep.subr.mxu0 0.0
  %377 = vmatpush1.msra.mxu0 0.0
  %378 = vmatprep.subr.mxu0 0.0
  %379 = vmatpush1.msra.mxu0 0.0
  %380 = vmatprep.subr.mxu0 0.0
  %381 = vmatpush1.msra.mxu0 0.0
  %382 = vmatprep.subr.mxu0 0.0
  %383 = vmatpush1.msra.mxu0 0.0
  %384 = vmatprep.subr.mxu0 0.0
  %385 = vmatpush1.msra.mxu0 0.0
  %386 = vmatprep.subr.mxu0 0.0
  %387 = vmatpush1.msra.mxu0 0.0
  %388 = vmatprep.subr.mxu0 0.0
  %389 = vmatpush1.msra.mxu0 0.0
  %390 = vmatprep.subr.mxu0 0.0
  %391 = vmatpush1.msra.mxu0 0.0
  %392 = vmatprep.subr.mxu0 0.0
  %393 = vmatpush1.msra.mxu0 0.0
  %394 = vmatprep.subr.mxu0 0.0
  %395 = vmatpush1.msra.mxu0 0.0
  %396 = vmatprep.subr.mxu0 0.0
  %397 = vmatpush1.msra.mxu0 0.0
  %398 = vmatprep.subr.mxu0 0.0
  %399 = vmatpush1.msra.mxu0 0.0
  %400 = vmatprep.mubr.f32.mxu0 0.0
  %401 = vmatmul.mubr.f32.gmra.mrb[0].mxu0 %v332
  %v402 = vpop.f32.mrb[0].mxu0
  %v403 = vadd.f32 0.0, %v402
  %v404 = vpop.f32.mrb[0].mxu0
  %v405 = vadd.f32 0.0, %v404
  %406 = vmatprep.mubr.f32.mxu0 0.0
  %407 = vmatmul.mubr.f32.gmra.mrb[0].mxu0 %v334
  %v408 = vpop.f32.mrb[0].mxu0
  %v409 = vadd.f32 0.0, %v408
  %v410 = vpop.f32.mrb[0].mxu0
  %v411 = vadd.f32 0.0, %v410
  %412 = vdwg.mxu0
  %v414 = vsel %vm154, %v324, 0
  %v417 = vsel %vm154, %v325, 0
  %419 = vmatprep.subr.mxu0 %v51
  %420 = vmatpush1.msra.mxu0 %v50
  %421 = vmatprep.subr.mxu0 %v53
  %422 = vmatpush1.msra.mxu0 %v52
  %423 = vmatprep.subr.mxu0 %v55
  %424 = vmatpush1.msra.mxu0 %v54
  %425 = vmatprep.subr.mxu0 %v57
  %426 = vmatpush1.msra.mxu0 %v56
  %427 = vmatprep.subr.mxu0 0.0
  %428 = vmatpush1.msra.mxu0 0.0
  %429 = vmatprep.subr.mxu0 0.0
  %430 = vmatpush1.msra.mxu0 0.0
  %431 = vmatprep.subr.mxu0 0.0
  %432 = vmatpush1.msra.mxu0 0.0
  %433 = vmatprep.subr.mxu0 0.0
  %434 = vmatpush1.msra.mxu0 0.0
  %435 = vmatprep.subr.mxu0 0.0
  %436 = vmatpush1.msra.mxu0 0.0
  %437 = vmatprep.subr.mxu0 0.0
  %438 = vmatpush1.msra.mxu0 0.0
  %439 = vmatprep.subr.mxu0 0.0
  %440 = vmatpush1.msra.mxu0 0.0
  %441 = vmatprep.subr.mxu0 0.0
  %442 = vmatpush1.msra.mxu0 0.0
  %443 = vmatprep.subr.mxu0 0.0
  %444 = vmatpush1.msra.mxu0 0.0
  %445 = vmatprep.subr.mxu0 0.0
  %446 = vmatpush1.msra.mxu0 0.0
  %447 = vmatprep.subr.mxu0 0.0
  %448 = vmatpush1.msra.mxu0 0.0
  %449 = vmatprep.subr.mxu0 0.0
  %450 = vmatpush1.msra.mxu0 0.0
  %451 = vmatprep.subr.mxu0 0.0
  %452 = vmatpush1.msra.mxu0 0.0
  %453 = vmatprep.subr.mxu0 0.0
  %454 = vmatpush1.msra.mxu0 0.0
  %455 = vmatprep.subr.mxu0 0.0
  %456 = vmatpush1.msra.mxu0 0.0
  %457 = vmatprep.subr.mxu0 0.0
  %458 = vmatpush1.msra.mxu0 0.0
  %459 = vmatprep.subr.mxu0 0.0
  %460 = vmatpush1.msra.mxu0 0.0
  %461 = vmatprep.subr.mxu0 0.0
  %462 = vmatpush1.msra.mxu0 0.0
  %463 = vmatprep.subr.mxu0 0.0
  %464 = vmatpush1.msra.mxu0 0.0
  %465 = vmatprep.subr.mxu0 0.0
  %466 = vmatpush1.msra.mxu0 0.0
  %467 = vmatprep.subr.mxu0 0.0
  %468 = vmatpush1.msra.mxu0 0.0
  %469 = vmatprep.subr.mxu0 0.0
  %470 = vmatpush1.msra.mxu0 0.0
  %471 = vmatprep.subr.mxu0 0.0
  %472 = vmatpush1.msra.mxu0 0.0
  %473 = vmatprep.subr.mxu0 0.0
  %474 = vmatpush1.msra.mxu0 0.0
  %475 = vmatprep.subr.mxu0 0.0
  %476 = vmatpush1.msra.mxu0 0.0
  %477 = vmatprep.subr.mxu0 0.0
  %478 = vmatpush1.msra.mxu0 0.0
  %479 = vmatprep.subr.mxu0 0.0
  %480 = vmatpush1.msra.mxu0 0.0
  %481 = vmatprep.subr.mxu0 0.0
  %482 = vmatpush1.msra.mxu0 0.0
  %483 = vmatprep.mubr.f32.mxu0 0.0
  %484 = vmatmul.mubr.f32.gmra.mrb[0].mxu0 %v414
  %v485 = vpop.f32.mrb[0].mxu0
  %v486 = vadd.f32 %v403, %v485
  %v487 = vpop.f32.mrb[0].mxu0
  %v488 = vadd.f32 %v405, %v487
  %489 = vmatprep.mubr.f32.mxu0 0.0
  %490 = vmatmul.mubr.f32.gmra.mrb[0].mxu0 %v417
  %v491 = vpop.f32.mrb[0].mxu0
  %v492 = vadd.f32 %v409, %v491
  %v493 = vpop.f32.mrb[0].mxu0
  %v494 = vadd.f32 %v411, %v493
  %495 = vdwg.mxu0
  %v496 = vadd.f32 %v486, %v242
  %v497 = vadd.f32 %v488, %v246
  %v498 = vadd.f32 %v492, %v242
  %v499 = vadd.f32 %v494, %v246
  %v500 = vxor.u32 %v496, 2147483648
  %v501 = vxor.u32 %v498, 2147483648
  %v502 = vmul.f32 %v500, 1.442695
  %v503 = vpow.pop %v502
  %v504 = vmul.f32 %v501, 1.442695
  %v505 = vpow.pop %v504
  %v506 = vadd.f32 %v503, 1.0
  %v507 = vadd.f32 %v505, 1.0
  %v508 = vrcp.pop %v506
  %v509 = vmul.f32 1.0, %v508
  %v510 = vrcp.pop %v507
  %v511 = vmul.f32 1.0, %v510
  %v512 = vtanh.pop %v496
  %v513 = vtanh.pop %v497
  %v514 = vtanh.pop %v498
  %v515 = vtanh.pop %v499
  %v516 = vxor.u32 %v497, 2147483648
  %v517 = vxor.u32 %v499, 2147483648
  %v518 = vmul.f32 %v516, 1.442695
  %v519 = vpow.pop %v518
  %v520 = vmul.f32 %v517, 1.442695
  %v521 = vpow.pop %v520
  %v522 = vadd.f32 %v519, 1.0
  %v523 = vadd.f32 %v521, 1.0
  %v524 = vrcp.pop %v522
  %v525 = vmul.f32 1.0, %v524
  %v526 = vrcp.pop %v523
  %v527 = vmul.f32 1.0, %v526
  %v528 = vmul.f32 %v509, %v309
  %v529 = vmul.f32 %v511, %v310
  %534 = vrot.lane.b32.xlu0 %v512, 32
  %v535 = vpop.permute.xlu0 %534
  %536 = vrot.lane.b32.xlu0 %v513, 32
  %v537 = vpop.permute.xlu0 %536
  %538 = vrot.lane.b32.xlu0 %v514, 32
  %v539 = vpop.permute.xlu0 %538
  %540 = vrot.lane.b32.xlu0 %v515, 32
  %v541 = vpop.permute.xlu0 %540
  %v542 = vsel %vm154, %v535, %v537
  %v543 = vsel %vm154, %v539, %v541
  %v546 = vmul.f32 %v509, %v542
  %v547 = vmul.f32 %v511, %v543
  %550 = vrot.lane.b32.xlu0 %v546, 48
  %v551 = vpop.permute.xlu0 %550
  %552 = vrot.lane.b32.xlu0 %v547, 48
  %v553 = vpop.permute.xlu0 %552
  %v556 = vadd.f32 %v528, %v551
  %v557 = vadd.f32 %v529, %v553
  %v558 = vtanh.pop %v556
  %v559 = vtanh.pop %v557
  %562 = vrot.lane.b32.xlu0 %v558, 96
  %v563 = vpop.permute.xlu0 %562
  %564 = vrot.lane.b32.xlu0 %v559, 96
  %v565 = vpop.permute.xlu0 %564
  %v568 = vmul.f32 %v525, %v563
  %v569 = vmul.f32 %v527, %v565
  %s570 = scalar_lea.vmem %s0, 32
  %v571 = vld [vmem:[%s570] sm:$0xff]
  %v572 = vld [vmem:[%s570 + $0x8] sm:$0xff]
  %575 = vrot.lane.b32.xlu0 %v568, 112
  %v576 = vpop.permute.xlu0 %575
  %577 = vrot.lane.b32.xlu0 %v569, 112
  %v578 = vpop.permute.xlu0 %577
  %v579 = vsel %vm73, %v576, 0
  %v581 = vsel %vm73, %v578, 0
  %583 = vmatprep.subr.mxu0 %v59
  %584 = vmatpush1.msra.mxu0 %v58
  %585 = vmatprep.subr.mxu0 %v61
  %586 = vmatpush1.msra.mxu0 %v60
  %587 = vmatprep.subr.mxu0 %v63
  %588 = vmatpush1.msra.mxu0 %v62
  %589 = vmatprep.subr.mxu0 %v65
  %590 = vmatpush1.msra.mxu0 %v64
  %591 = vmatprep.subr.mxu0 %v67
  %592 = vmatpush1.msra.mxu0 %v66
  %593 = vmatprep.subr.mxu0 %v69
  %594 = vmatpush1.msra.mxu0 %v68
  %595 = vmatprep.subr.mxu0 0.0
  %596 = vmatpush1.msra.mxu0 0.0
  %597 = vmatprep.subr.mxu0 0.0
  %598 = vmatpush1.msra.mxu0 0.0
  %599 = vmatprep.subr.mxu0 0.0
  %600 = vmatpush1.msra.mxu0 0.0
  %601 = vmatprep.subr.mxu0 0.0
  %602 = vmatpush1.msra.mxu0 0.0
  %603 = vmatprep.subr.mxu0 0.0
  %604 = vmatpush1.msra.mxu0 0.0
  %605 = vmatprep.subr.mxu0 0.0
  %606 = vmatpush1.msra.mxu0 0.0
  %607 = vmatprep.subr.mxu0 0.0
  %608 = vmatpush1.msra.mxu0 0.0
  %609 = vmatprep.subr.mxu0 0.0
  %610 = vmatpush1.msra.mxu0 0.0
  %611 = vmatprep.subr.mxu0 0.0
  %612 = vmatpush1.msra.mxu0 0.0
  %613 = vmatprep.subr.mxu0 0.0
  %614 = vmatpush1.msra.mxu0 0.0
  %615 = vmatprep.subr.mxu0 0.0
  %616 = vmatpush1.msra.mxu0 0.0
  %617 = vmatprep.subr.mxu0 0.0
  %618 = vmatpush1.msra.mxu0 0.0
  %619 = vmatprep.subr.mxu0 0.0
  %620 = vmatpush1.msra.mxu0 0.0
  %621 = vmatprep.subr.mxu0 0.0
  %622 = vmatpush1.msra.mxu0 0.0
  %623 = vmatprep.subr.mxu0 0.0
  %624 = vmatpush1.msra.mxu0 0.0
  %625 = vmatprep.subr.mxu0 0.0
  %626 = vmatpush1.msra.mxu0 0.0
  %627 = vmatprep.subr.mxu0 0.0
  %628 = vmatpush1.msra.mxu0 0.0
  %629 = vmatprep.subr.mxu0 0.0
  %630 = vmatpush1.msra.mxu0 0.0
  %631 = vmatprep.subr.mxu0 0.0
  %632 = vmatpush1.msra.mxu0 0.0
  %633 = vmatprep.subr.mxu0 0.0
  %634 = vmatpush1.msra.mxu0 0.0
  %635 = vmatprep.subr.mxu0 0.0
  %636 = vmatpush1.msra.mxu0 0.0
  %637 = vmatprep.subr.mxu0 0.0
  %638 = vmatpush1.msra.mxu0 0.0
  %639 = vmatprep.subr.mxu0 0.0
  %640 = vmatpush1.msra.mxu0 0.0
  %641 = vmatprep.subr.mxu0 0.0
  %642 = vmatpush1.msra.mxu0 0.0
  %643 = vmatprep.subr.mxu0 0.0
  %644 = vmatpush1.msra.mxu0 0.0
  %645 = vmatprep.subr.mxu0 0.0
  %646 = vmatpush1.msra.mxu0 0.0
  %647 = vmatprep.mubr.f32.mxu0 0.0
  %648 = vmatmul.mubr.f32.gmra.mrb[0].mxu0 %v579
  %v649 = vpop.f32.mrb[0].mxu0
  %v650 = vadd.f32 0.0, %v649
  %v651 = vpop.f32.mrb[0].mxu0
  %v652 = vadd.f32 0.0, %v651
  %653 = vmatprep.mubr.f32.mxu0 0.0
  %654 = vmatmul.mubr.f32.gmra.mrb[0].mxu0 %v581
  %v655 = vpop.f32.mrb[0].mxu0
  %v656 = vadd.f32 0.0, %v655
  %v657 = vpop.f32.mrb[0].mxu0
  %v658 = vadd.f32 0.0, %v657
  %659 = vdwg.mxu0
  %v661 = vsel %vm154, %v571, 0
  %v664 = vsel %vm154, %v572, 0
  %666 = vmatprep.subr.mxu0 %v51
  %667 = vmatpush1.msra.mxu0 %v50
  %668 = vmatprep.subr.mxu0 %v53
  %669 = vmatpush1.msra.mxu0 %v52
  %670 = vmatprep.subr.mxu0 %v55
  %671 = vmatpush1.msra.mxu0 %v54
  %672 = vmatprep.subr.mxu0 %v57
  %673 = vmatpush1.msra.mxu0 %v56
  %674 = vmatprep.subr.mxu0 0.0
  %675 = vmatpush1.msra.mxu0 0.0
  %676 = vmatprep.subr.mxu0 0.0
  %677 = vmatpush1.msra.mxu0 0.0
  %678 = vmatprep.subr.mxu0 0.0
  %679 = vmatpush1.msra.mxu0 0.0
  %680 = vmatprep.subr.mxu0 0.0
  %681 = vmatpush1.msra.mxu0 0.0
  %682 = vmatprep.subr.mxu0 0.0
  %683 = vmatpush1.msra.mxu0 0.0
  %684 = vmatprep.subr.mxu0 0.0
  %685 = vmatpush1.msra.mxu0 0.0
  %686 = vmatprep.subr.mxu0 0.0
  %687 = vmatpush1.msra.mxu0 0.0
  %688 = vmatprep.subr.mxu0 0.0
  %689 = vmatpush1.msra.mxu0 0.0
  %690 = vmatprep.subr.mxu0 0.0
  %691 = vmatpush1.msra.mxu0 0.0
  %692 = vmatprep.subr.mxu0 0.0
  %693 = vmatpush1.msra.mxu0 0.0
  %694 = vmatprep.subr.mxu0 0.0
  %695 = vmatpush1.msra.mxu0 0.0
  %696 = vmatprep.subr.mxu0 0.0
  %697 = vmatpush1.msra.mxu0 0.0
  %698 = vmatprep.subr.mxu0 0.0
  %699 = vmatpush1.msra.mxu0 0.0
  %700 = vmatprep.subr.mxu0 0.0
  %701 = vmatpush1.msra.mxu0 0.0
  %702 = vmatprep.subr.mxu0 0.0
  %703 = vmatpush1.msra.mxu0 0.0
  %704 = vmatprep.subr.mxu0 0.0
  %705 = vmatpush1.msra.mxu0 0.0
  %706 = vmatprep.subr.mxu0 0.0
  %707 = vmatpush1.msra.mxu0 0.0
  %708 = vmatprep.subr.mxu0 0.0
  %709 = vmatpush1.msra.mxu0 0.0
  %710 = vmatprep.subr.mxu0 0.0
  %711 = vmatpush1.msra.mxu0 0.0
  %712 = vmatprep.subr.mxu0 0.0
  %713 = vmatpush1.msra.mxu0 0.0
  %714 = vmatprep.subr.mxu0 0.0
  %715 = vmatpush1.msra.mxu0 0.0
  %716 = vmatprep.subr.mxu0 0.0
  %717 = vmatpush1.msra.mxu0 0.0
  %718 = vmatprep.subr.mxu0 0.0
  %719 = vmatpush1.msra.mxu0 0.0
  %720 = vmatprep.subr.mxu0 0.0
  %721 = vmatpush1.msra.mxu0 0.0
  %722 = vmatprep.subr.mxu0 0.0
  %723 = vmatpush1.msra.mxu0 0.0
  %724 = vmatprep.subr.mxu0 0.0
  %725 = vmatpush1.msra.mxu0 0.0
  %726 = vmatprep.subr.mxu0 0.0
  %727 = vmatpush1.msra.mxu0 0.0
  %728 = vmatprep.subr.mxu0 0.0
  %729 = vmatpush1.msra.mxu0 0.0
  %730 = vmatprep.mubr.f32.mxu0 0.0
  %731 = vmatmul.mubr.f32.gmra.mrb[0].mxu0 %v661
  %v732 = vpop.f32.mrb[0].mxu0
  %v733 = vadd.f32 %v650, %v732
  %v734 = vpop.f32.mrb[0].mxu0
  %v735 = vadd.f32 %v652, %v734
  %736 = vmatprep.mubr.f32.mxu0 0.0
  %737 = vmatmul.mubr.f32.gmra.mrb[0].mxu0 %v664
  %v738 = vpop.f32.mrb[0].mxu0
  %v739 = vadd.f32 %v656, %v738
  %v740 = vpop.f32.mrb[0].mxu0
  %v741 = vadd.f32 %v658, %v740
  %742 = vdwg.mxu0
  %v743 = vadd.f32 %v733, %v242
  %v744 = vadd.f32 %v735, %v246
  %v745 = vadd.f32 %v739, %v242
  %v746 = vadd.f32 %v741, %v246
  %v747 = vxor.u32 %v743, 2147483648
  %v748 = vxor.u32 %v745, 2147483648
  %v749 = vmul.f32 %v747, 1.442695
  %v750 = vpow.pop %v749
  %v751 = vmul.f32 %v748, 1.442695
  %v752 = vpow.pop %v751
  %v753 = vadd.f32 %v750, 1.0
  %v754 = vadd.f32 %v752, 1.0
  %v755 = vrcp.pop %v753
  %v756 = vmul.f32 1.0, %v755
  %v757 = vrcp.pop %v754
  %v758 = vmul.f32 1.0, %v757
  %v759 = vtanh.pop %v743
  %v760 = vtanh.pop %v744
  %v761 = vtanh.pop %v745
  %v762 = vtanh.pop %v746
  %v763 = vxor.u32 %v744, 2147483648
  %v764 = vxor.u32 %v746, 2147483648
  %v765 = vmul.f32 %v763, 1.442695
  %v766 = vpow.pop %v765
  %v767 = vmul.f32 %v764, 1.442695
  %v768 = vpow.pop %v767
  %v769 = vadd.f32 %v766, 1.0
  %v770 = vadd.f32 %v768, 1.0
  %v771 = vrcp.pop %v769
  %v772 = vmul.f32 1.0, %v771
  %v773 = vrcp.pop %v770
  %v774 = vmul.f32 1.0, %v773
  %v775 = vmul.f32 %v756, %v556
  %v776 = vmul.f32 %v758, %v557
  %781 = vrot.lane.b32.xlu0 %v759, 32
  %v782 = vpop.permute.xlu0 %781
  %783 = vrot.lane.b32.xlu0 %v760, 32
  %v784 = vpop.permute.xlu0 %783
  %785 = vrot.lane.b32.xlu0 %v761, 32
  %v786 = vpop.permute.xlu0 %785
  %787 = vrot.lane.b32.xlu0 %v762, 32
  %v788 = vpop.permute.xlu0 %787
  %v789 = vsel %vm154, %v782, %v784
  %v790 = vsel %vm154, %v786, %v788
  %v793 = vmul.f32 %v756, %v789
  %v794 = vmul.f32 %v758, %v790
  %797 = vrot.lane.b32.xlu0 %v793, 48
  %v798 = vpop.permute.xlu0 %797
  %799 = vrot.lane.b32.xlu0 %v794, 48
  %v800 = vpop.permute.xlu0 %799
  %v803 = vadd.f32 %v775, %v798
  %v804 = vadd.f32 %v776, %v800
  %v805 = vtanh.pop %v803
  %v806 = vtanh.pop %v804
  %809 = vrot.lane.b32.xlu0 %v805, 96
  %v810 = vpop.permute.xlu0 %809
  %811 = vrot.lane.b32.xlu0 %v806, 96
  %v812 = vpop.permute.xlu0 %811
  %v815 = vmul.f32 %v772, %v810
  %v816 = vmul.f32 %v774, %v812
  %v817 = vld [vmem:[%s4] sm:$0xff]
  %v818 = vld [vmem:[%s4 + $0x8] sm:$0xff]
  %v819 = vld [vmem:[%s4 + $0x10] sm:$0xff]
  %v820 = vld [vmem:[%s4 + $0x18] sm:$0xff]
  %v821 = vld [vmem:[%s4 + $0x20] sm:$0xff]
  %v822 = vld [vmem:[%s4 + $0x28] sm:$0xff]
  %v823 = vld [vmem:[%s4 + $0x30] sm:$0xff]
  %v824 = vld [vmem:[%s4 + $0x38] sm:$0xff]
  %v825 = vld [vmem:[%s5] sm:$0xff]
  %v826 = vld [vmem:[%s5 + $0x8] sm:$0xff]
  %v827 = vld [vmem:[%s5 + $0x10] sm:$0xff]
  %v828 = vld [vmem:[%s5 + $0x18] sm:$0xff]
  %v829 = vld [vmem:[%s5 + $0x20] sm:$0xff]
  %v830 = vld [vmem:[%s5 + $0x28] sm:$0xff]
  %v831 = vld [vmem:[%s5 + $0x30] sm:$0xff]
  %v832 = vld [vmem:[%s5 + $0x38] sm:$0xff]
  %v833 = vld [vmem:[%s5 + $0x40] sm:$0xff]
  %v834 = vld [vmem:[%s5 + $0x48] sm:$0xff]
  %v835 = vld [vmem:[%s5 + $0x50] sm:$0xff]
  %v836 = vld [vmem:[%s5 + $0x58] sm:$0xff]
  %v837 = vld [vmem:[%s6] sm:$0x3]
  %838 = vmatprep.subr.mxu0 %v826
  %839 = vmatpush1.msra.mxu0 %v825
  %840 = vmatprep.subr.mxu0 %v828
  %841 = vmatpush1.msra.mxu0 %v827
  %842 = vmatprep.subr.mxu0 %v830
  %843 = vmatpush1.msra.mxu0 %v829
  %844 = vmatprep.subr.mxu0 %v832
  %845 = vmatpush1.msra.mxu0 %v831
  %846 = vmatprep.subr.mxu0 %v834
  %847 = vmatpush1.msra.mxu0 %v833
  %848 = vmatprep.subr.mxu0 %v836
  %849 = vmatpush1.msra.mxu0 %v835
  %850 = vmatprep.subr.mxu0 0.0
  %851 = vmatpush1.msra.mxu0 0.0
  %852 = vmatprep.subr.mxu0 0.0
  %853 = vmatpush1.msra.mxu0 0.0
  %854 = vmatprep.subr.mxu0 0.0
  %855 = vmatpush1.msra.mxu0 0.0
  %856 = vmatprep.subr.mxu0 0.0
  %857 = vmatpush1.msra.mxu0 0.0
  %858 = vmatprep.subr.mxu0 0.0
  %859 = vmatpush1.msra.mxu0 0.0
  %860 = vmatprep.subr.mxu0 0.0
  %861 = vmatpush1.msra.mxu0 0.0
  %862 = vmatprep.subr.mxu0 0.0
  %863 = vmatpush1.msra.mxu0 0.0
  %864 = vmatprep.subr.mxu0 0.0
  %865 = vmatpush1.msra.mxu0 0.0
  %866 = vmatprep.subr.mxu0 0.0
  %867 = vmatpush1.msra.mxu0 0.0
  %868 = vmatprep.subr.mxu0 0.0
  %869 = vmatpush1.msra.mxu0 0.0
  %870 = vmatprep.subr.mxu0 0.0
  %871 = vmatpush1.msra.mxu0 0.0
  %872 = vmatprep.subr.mxu0 0.0
  %873 = vmatpush1.msra.mxu0 0.0
  %874 = vmatprep.subr.mxu0 0.0
  %875 = vmatpush1.msra.mxu0 0.0
  %876 = vmatprep.subr.mxu0 0.0
  %877 = vmatpush1.msra.mxu0 0.0
  %878 = vmatprep.subr.mxu0 0.0
  %879 = vmatpush1.msra.mxu0 0.0
  %880 = vmatprep.subr.mxu0 0.0
  %881 = vmatpush1.msra.mxu0 0.0
  %882 = vmatprep.subr.mxu0 0.0
  %883 = vmatpush1.msra.mxu0 0.0
  %884 = vmatprep.subr.mxu0 0.0
  %885 = vmatpush1.msra.mxu0 0.0
  %886 = vmatprep.subr.mxu0 0.0
  %887 = vmatpush1.msra.mxu0 0.0
  %888 = vmatprep.subr.mxu0 0.0
  %889 = vmatpush1.msra.mxu0 0.0
  %890 = vmatprep.subr.mxu0 0.0
  %891 = vmatpush1.msra.mxu0 0.0
  %892 = vmatprep.subr.mxu0 0.0
  %893 = vmatpush1.msra.mxu0 0.0
  %894 = vmatprep.subr.mxu0 0.0
  %895 = vmatpush1.msra.mxu0 0.0
  %896 = vmatprep.subr.mxu0 0.0
  %897 = vmatpush1.msra.mxu0 0.0
  %898 = vmatprep.subr.mxu0 0.0
  %899 = vmatpush1.msra.mxu0 0.0
  %900 = vmatprep.subr.mxu0 0.0
  %901 = vmatpush1.msra.mxu0 0.0
  %902 = vmatprep.mubr.f32.mxu0 0.0
  %903 = vmatmul.mubr.f32.gmra.mrb[0].mxu0 %v75
  %v904 = vpop.f32.mrb[0].mxu0
  %v905 = vadd.f32 0.0, %v904
  %v906 = vpop.f32.mrb[0].mxu0
  %v907 = vadd.f32 0.0, %v906
  %908 = vmatprep.mubr.f32.mxu0 0.0
  %909 = vmatmul.mubr.f32.gmra.mrb[0].mxu0 %v75
  %v910 = vpop.f32.mrb[0].mxu0
  %v911 = vadd.f32 0.0, %v910
  %v912 = vpop.f32.mrb[0].mxu0
  %v913 = vadd.f32 0.0, %v912
  %914 = vdwg.mxu0
  %915 = vmatprep.subr.mxu0 %v818
  %916 = vmatpush1.msra.mxu0 %v817
  %917 = vmatprep.subr.mxu0 %v820
  %918 = vmatpush1.msra.mxu0 %v819
  %919 = vmatprep.subr.mxu0 %v822
  %920 = vmatpush1.msra.mxu0 %v821
  %921 = vmatprep.subr.mxu0 %v824
  %922 = vmatpush1.msra.mxu0 %v823
  %923 = vmatprep.subr.mxu0 0.0
  %924 = vmatpush1.msra.mxu0 0.0
  %925 = vmatprep.subr.mxu0 0.0
  %926 = vmatpush1.msra.mxu0 0.0
  %927 = vmatprep.subr.mxu0 0.0
  %928 = vmatpush1.msra.mxu0 0.0
  %929 = vmatprep.subr.mxu0 0.0
  %930 = vmatpush1.msra.mxu0 0.0
  %931 = vmatprep.subr.mxu0 0.0
  %932 = vmatpush1.msra.mxu0 0.0
  %933 = vmatprep.subr.mxu0 0.0
  %934 = vmatpush1.msra.mxu0 0.0
  %935 = vmatprep.subr.mxu0 0.0
  %936 = vmatpush1.msra.mxu0 0.0
  %937 = vmatprep.subr.mxu0 0.0
  %938 = vmatpush1.msra.mxu0 0.0
  %939 = vmatprep.subr.mxu0 0.0
  %940 = vmatpush1.msra.mxu0 0.0
  %941 = vmatprep.subr.mxu0 0.0
  %942 = vmatpush1.msra.mxu0 0.0
  %943 = vmatprep.subr.mxu0 0.0
  %944 = vmatpush1.msra.mxu0 0.0
  %945 = vmatprep.subr.mxu0 0.0
  %946 = vmatpush1.msra.mxu0 0.0
  %947 = vmatprep.subr.mxu0 0.0
  %948 = vmatpush1.msra.mxu0 0.0
  %949 = vmatprep.subr.mxu0 0.0
  %950 = vmatpush1.msra.mxu0 0.0
  %951 = vmatprep.subr.mxu0 0.0
  %952 = vmatpush1.msra.mxu0 0.0
  %953 = vmatprep.subr.mxu0 0.0
  %954 = vmatpush1.msra.mxu0 0.0
  %955 = vmatprep.subr.mxu0 0.0
  %956 = vmatpush1.msra.mxu0 0.0
  %957 = vmatprep.subr.mxu0 0.0
  %958 = vmatpush1.msra.mxu0 0.0
  %959 = vmatprep.subr.mxu0 0.0
  %960 = vmatpush1.msra.mxu0 0.0
  %961 = vmatprep.subr.mxu0 0.0
  %962 = vmatpush1.msra.mxu0 0.0
  %963 = vmatprep.subr.mxu0 0.0
  %964 = vmatpush1.msra.mxu0 0.0
  %965 = vmatprep.subr.mxu0 0.0
  %966 = vmatpush1.msra.mxu0 0.0
  %967 = vmatprep.subr.mxu0 0.0
  %968 = vmatpush1.msra.mxu0 0.0
  %969 = vmatprep.subr.mxu0 0.0
  %970 = vmatpush1.msra.mxu0 0.0
  %971 = vmatprep.subr.mxu0 0.0
  %972 = vmatpush1.msra.mxu0 0.0
  %973 = vmatprep.subr.mxu0 0.0
  %974 = vmatpush1.msra.mxu0 0.0
  %975 = vmatprep.subr.mxu0 0.0
  %976 = vmatpush1.msra.mxu0 0.0
  %977 = vmatprep.subr.mxu0 0.0
  %978 = vmatpush1.msra.mxu0 0.0
  %979 = vmatprep.mubr.f32.mxu0 0.0
  %980 = vmatmul.mubr.f32.gmra.mrb[0].mxu0 %v661
  %v981 = vpop.f32.mrb[0].mxu0
  %v982 = vadd.f32 %v905, %v981
  %v983 = vpop.f32.mrb[0].mxu0
  %v984 = vadd.f32 %v907, %v983
  %985 = vmatprep.mubr.f32.mxu0 0.0
  %986 = vmatmul.mubr.f32.gmra.mrb[0].mxu0 %v664
  %v987 = vpop.f32.mrb[0].mxu0
  %v988 = vadd.f32 %v911, %v987
  %v989 = vpop.f32.mrb[0].mxu0
  %v990 = vadd.f32 %v913, %v989
  %991 = vdwg.mxu0
  %v993 = vlaneseq
  %v994 = vshrl.u32 %v993, 7
  %v995 = vsub.s32 0, %v994
  %v996 = vrot.slane %v837, %v995
  %v997 = vlaneseq
  %v998 = vshrl.u32 %v997, 7
  %v999 = vsub.s32 1, %v998
  %v1000 = vrot.slane %v837, %v999
  %v1003 = vadd.f32 %v982, %v996
  %v1004 = vadd.f32 %v984, %v1000
  %v1005 = vadd.f32 %v988, %v996
  %v1006 = vadd.f32 %v990, %v1000
  %v1007 = vxor.u32 %v1003, 2147483648
  %v1008 = vxor.u32 %v1005, 2147483648
  %v1009 = vmul.f32 %v1007, 1.442695
  %v1010 = vpow.pop %v1009
  %v1011 = vmul.f32 %v1008, 1.442695
  %v1012 = vpow.pop %v1011
  %v1013 = vadd.f32 %v1010, 1.0
  %v1014 = vadd.f32 %v1012, 1.0
  %v1015 = vrcp.pop %v1013
  %v1016 = vmul.f32 1.0, %v1015
  %v1017 = vrcp.pop %v1014
  %v1018 = vmul.f32 1.0, %v1017
  %v1019 = vtanh.pop %v1003
  %v1020 = vtanh.pop %v1004
  %v1021 = vtanh.pop %v1005
  %v1022 = vtanh.pop %v1006
  %v1023 = vxor.u32 %v1004, 2147483648
  %v1024 = vxor.u32 %v1006, 2147483648
  %v1025 = vmul.f32 %v1023, 1.442695
  %v1026 = vpow.pop %v1025
  %v1027 = vmul.f32 %v1024, 1.442695
  %v1028 = vpow.pop %v1027
  %v1029 = vadd.f32 %v1026, 1.0
  %v1030 = vadd.f32 %v1028, 1.0
  %v1031 = vrcp.pop %v1029
  %v1032 = vmul.f32 1.0, %v1031
  %v1033 = vrcp.pop %v1030
  %v1034 = vmul.f32 1.0, %v1033
  %v1035 = vmul.f32 %v1016, 0.0
  %v1036 = vmul.f32 %v1018, 0.0
  %1041 = vrot.lane.b32.xlu0 %v1019, 32
  %v1042 = vpop.permute.xlu0 %1041
  %1043 = vrot.lane.b32.xlu0 %v1020, 32
  %v1044 = vpop.permute.xlu0 %1043
  %1045 = vrot.lane.b32.xlu0 %v1021, 32
  %v1046 = vpop.permute.xlu0 %1045
  %1047 = vrot.lane.b32.xlu0 %v1022, 32
  %v1048 = vpop.permute.xlu0 %1047
  %v1049 = vsel %vm154, %v1042, %v1044
  %v1050 = vsel %vm154, %v1046, %v1048
  %v1053 = vmul.f32 %v1016, %v1049
  %v1054 = vmul.f32 %v1018, %v1050
  %1057 = vrot.lane.b32.xlu0 %v1053, 48
  %v1058 = vpop.permute.xlu0 %1057
  %1059 = vrot.lane.b32.xlu0 %v1054, 48
  %v1060 = vpop.permute.xlu0 %1059
  %v1063 = vadd.f32 %v1035, %v1058
  %v1064 = vadd.f32 %v1036, %v1060
  %v1065 = vtanh.pop %v1063
  %v1066 = vtanh.pop %v1064
  %1069 = vrot.lane.b32.xlu0 %v1065, 96
  %v1070 = vpop.permute.xlu0 %1069
  %1071 = vrot.lane.b32.xlu0 %v1066, 96
  %v1072 = vpop.permute.xlu0 %1071
  %v1075 = vmul.f32 %v1032, %v1070
  %v1076 = vmul.f32 %v1034, %v1072
  %1079 = vrot.lane.b32.xlu0 %v1075, 112
  %v1080 = vpop.permute.xlu0 %1079
  %1081 = vrot.lane.b32.xlu0 %v1076, 112
  %v1082 = vpop.permute.xlu0 %1081
  %v1083 = vsel %vm73, %v1080, 0
  %v1085 = vsel %vm73, %v1082, 0
  %1087 = vmatprep.subr.mxu0 %v826
  %1088 = vmatpush1.msra.mxu0 %v825
  %1089 = vmatprep.subr.mxu0 %v828
  %1090 = vmatpush1.msra.mxu0 %v827
  %1091 = vmatprep.subr.mxu0 %v830
  %1092 = vmatpush1.msra.mxu0 %v829
  %1093 = vmatprep.subr.mxu0 %v832
  %1094 = vmatpush1.msra.mxu0 %v831
  %1095 = vmatprep.subr.mxu0 %v834
  %1096 = vmatpush1.msra.mxu0 %v833
  %1097 = vmatprep.subr.mxu0 %v836
  %1098 = vmatpush1.msra.mxu0 %v835
  %1099 = vmatprep.subr.mxu0 0.0
  %1100 = vmatpush1.msra.mxu0 0.0
  %1101 = vmatprep.subr.mxu0 0.0
  %1102 = vmatpush1.msra.mxu0 0.0
  %1103 = vmatprep.subr.mxu0 0.0
  %1104 = vmatpush1.msra.mxu0 0.0
  %1105 = vmatprep.subr.mxu0 0.0
  %1106 = vmatpush1.msra.mxu0 0.0
  %1107 = vmatprep.subr.mxu0 0.0
  %1108 = vmatpush1.msra.mxu0 0.0
  %1109 = vmatprep.subr.mxu0 0.0
  %1110 = vmatpush1.msra.mxu0 0.0
  %1111 = vmatprep.subr.mxu0 0.0
  %1112 = vmatpush1.msra.mxu0 0.0
  %1113 = vmatprep.subr.mxu0 0.0
  %1114 = vmatpush1.msra.mxu0 0.0
  %1115 = vmatprep.subr.mxu0 0.0
  %1116 = vmatpush1.msra.mxu0 0.0
  %1117 = vmatprep.subr.mxu0 0.0
  %1118 = vmatpush1.msra.mxu0 0.0
  %1119 = vmatprep.subr.mxu0 0.0
  %1120 = vmatpush1.msra.mxu0 0.0
  %1121 = vmatprep.subr.mxu0 0.0
  %1122 = vmatpush1.msra.mxu0 0.0
  %1123 = vmatprep.subr.mxu0 0.0
  %1124 = vmatpush1.msra.mxu0 0.0
  %1125 = vmatprep.subr.mxu0 0.0
  %1126 = vmatpush1.msra.mxu0 0.0
  %1127 = vmatprep.subr.mxu0 0.0
  %1128 = vmatpush1.msra.mxu0 0.0
  %1129 = vmatprep.subr.mxu0 0.0
  %1130 = vmatpush1.msra.mxu0 0.0
  %1131 = vmatprep.subr.mxu0 0.0
  %1132 = vmatpush1.msra.mxu0 0.0
  %1133 = vmatprep.subr.mxu0 0.0
  %1134 = vmatpush1.msra.mxu0 0.0
  %1135 = vmatprep.subr.mxu0 0.0
  %1136 = vmatpush1.msra.mxu0 0.0
  %1137 = vmatprep.subr.mxu0 0.0
  %1138 = vmatpush1.msra.mxu0 0.0
  %1139 = vmatprep.subr.mxu0 0.0
  %1140 = vmatpush1.msra.mxu0 0.0
  %1141 = vmatprep.subr.mxu0 0.0
  %1142 = vmatpush1.msra.mxu0 0.0
  %1143 = vmatprep.subr.mxu0 0.0
  %1144 = vmatpush1.msra.mxu0 0.0
  %1145 = vmatprep.subr.mxu0 0.0
  %1146 = vmatpush1.msra.mxu0 0.0
  %1147 = vmatprep.subr.mxu0 0.0
  %1148 = vmatpush1.msra.mxu0 0.0
  %1149 = vmatprep.subr.mxu0 0.0
  %1150 = vmatpush1.msra.mxu0 0.0
  %1151 = vmatprep.mubr.f32.mxu0 0.0
  %1152 = vmatmul.mubr.f32.gmra.mrb[0].mxu0 %v1083
  %v1153 = vpop.f32.mrb[0].mxu0
  %v1154 = vadd.f32 0.0, %v1153
  %v1155 = vpop.f32.mrb[0].mxu0
  %v1156 = vadd.f32 0.0, %v1155
  %1157 = vmatprep.mubr.f32.mxu0 0.0
  %1158 = vmatmul.mubr.f32.gmra.mrb[0].mxu0 %v1085
  %v1159 = vpop.f32.mrb[0].mxu0
  %v1160 = vadd.f32 0.0, %v1159
  %v1161 = vpop.f32.mrb[0].mxu0
  %v1162 = vadd.f32 0.0, %v1161
  %1163 = vdwg.mxu0
  %1164 = vmatprep.subr.mxu0 %v818
  %1165 = vmatpush1.msra.mxu0 %v817
  %1166 = vmatprep.subr.mxu0 %v820
  %1167 = vmatpush1.msra.mxu0 %v819
  %1168 = vmatprep.subr.mxu0 %v822
  %1169 = vmatpush1.msra.mxu0 %v821
  %1170 = vmatprep.subr.mxu0 %v824
  %1171 = vmatpush1.msra.mxu0 %v823
  %1172 = vmatprep.subr.mxu0 0.0
  %1173 = vmatpush1.msra.mxu0 0.0
  %1174 = vmatprep.subr.mxu0 0.0
  %1175 = vmatpush1.msra.mxu0 0.0
  %1176 = vmatprep.subr.mxu0 0.0
  %1177 = vmatpush1.msra.mxu0 0.0
  %1178 = vmatprep.subr.mxu0 0.0
  %1179 = vmatpush1.msra.mxu0 0.0
  %1180 = vmatprep.subr.mxu0 0.0
  %1181 = vmatpush1.msra.mxu0 0.0
  %1182 = vmatprep.subr.mxu0 0.0
  %1183 = vmatpush1.msra.mxu0 0.0
  %1184 = vmatprep.subr.mxu0 0.0
  %1185 = vmatpush1.msra.mxu0 0.0
  %1186 = vmatprep.subr.mxu0 0.0
  %1187 = vmatpush1.msra.mxu0 0.0
  %1188 = vmatprep.subr.mxu0 0.0
  %1189 = vmatpush1.msra.mxu0 0.0
  %1190 = vmatprep.subr.mxu0 0.0
  %1191 = vmatpush1.msra.mxu0 0.0
  %1192 = vmatprep.subr.mxu0 0.0
  %1193 = vmatpush1.msra.mxu0 0.0
  %1194 = vmatprep.subr.mxu0 0.0
  %1195 = vmatpush1.msra.mxu0 0.0
  %1196 = vmatprep.subr.mxu0 0.0
  %1197 = vmatpush1.msra.mxu0 0.0
  %1198 = vmatprep.subr.mxu0 0.0
  %1199 = vmatpush1.msra.mxu0 0.0
  %1200 = vmatprep.subr.mxu0 0.0
  %1201 = vmatpush1.msra.mxu0 0.0
  %1202 = vmatprep.subr.mxu0 0.0
  %1203 = vmatpush1.msra.mxu0 0.0
  %1204 = vmatprep.subr.mxu0 0.0
  %1205 = vmatpush1.msra.mxu0 0.0
  %1206 = vmatprep.subr.mxu0 0.0
  %1207 = vmatpush1.msra.mxu0 0.0
  %1208 = vmatprep.subr.mxu0 0.0
  %1209 = vmatpush1.msra.mxu0 0.0
  %1210 = vmatprep.subr.mxu0 0.0
  %1211 = vmatpush1.msra.mxu0 0.0
  %1212 = vmatprep.subr.mxu0 0.0
  %1213 = vmatpush1.msra.mxu0 0.0
  %1214 = vmatprep.subr.mxu0 0.0
  %1215 = vmatpush1.msra.mxu0 0.0
  %1216 = vmatprep.subr.mxu0 0.0
  %1217 = vmatpush1.msra.mxu0 0.0
  %1218 = vmatprep.subr.mxu0 0.0
  %1219 = vmatpush1.msra.mxu0 0.0
  %1220 = vmatprep.subr.mxu0 0.0
  %1221 = vmatpush1.msra.mxu0 0.0
  %1222 = vmatprep.subr.mxu0 0.0
  %1223 = vmatpush1.msra.mxu0 0.0
  %1224 = vmatprep.subr.mxu0 0.0
  %1225 = vmatpush1.msra.mxu0 0.0
  %1226 = vmatprep.subr.mxu0 0.0
  %1227 = vmatpush1.msra.mxu0 0.0
  %1228 = vmatprep.mubr.f32.mxu0 0.0
  %1229 = vmatmul.mubr.f32.gmra.mrb[0].mxu0 %v414
  %v1230 = vpop.f32.mrb[0].mxu0
  %v1231 = vadd.f32 %v1154, %v1230
  %v1232 = vpop.f32.mrb[0].mxu0
  %v1233 = vadd.f32 %v1156, %v1232
  %1234 = vmatprep.mubr.f32.mxu0 0.0
  %1235 = vmatmul.mubr.f32.gmra.mrb[0].mxu0 %v417
  %v1236 = vpop.f32.mrb[0].mxu0
  %v1237 = vadd.f32 %v1160, %v1236
  %v1238 = vpop.f32.mrb[0].mxu0
  %v1239 = vadd.f32 %v1162, %v1238
  %1240 = vdwg.mxu0
  %v1241 = vadd.f32 %v1231, %v996
  %v1242 = vadd.f32 %v1233, %v1000
  %v1243 = vadd.f32 %v1237, %v996
  %v1244 = vadd.f32 %v1239, %v1000
  %v1245 = vxor.u32 %v1241, 2147483648
  %v1246 = vxor.u32 %v1243, 2147483648
  %v1247 = vmul.f32 %v1245, 1.442695
  %v1248 = vpow.pop %v1247
  %v1249 = vmul.f32 %v1246, 1.442695
  %v1250 = vpow.pop %v1249
  %v1251 = vadd.f32 %v1248, 1.0
  %v1252 = vadd.f32 %v1250, 1.0
  %v1253 = vrcp.pop %v1251
  %v1254 = vmul.f32 1.0, %v1253
  %v1255 = vrcp.pop %v1252
  %v1256 = vmul.f32 1.0, %v1255
  %v1257 = vtanh.pop %v1241
  %v1258 = vtanh.pop %v1242
  %v1259 = vtanh.pop %v1243
  %v1260 = vtanh.pop %v1244
  %v1261 = vxor.u32 %v1242, 2147483648
  %v1262 = vxor.u32 %v1244, 2147483648
  %v1263 = vmul.f32 %v1261, 1.442695
  %v1264 = vpow.pop %v1263
  %v1265 = vmul.f32 %v1262, 1.442695
  %v1266 = vpow.pop %v1265
  %v1267 = vadd.f32 %v1264, 1.0
  %v1268 = vadd.f32 %v1266, 1.0
  %v1269 = vrcp.pop %v1267
  %v1270 = vmul.f32 1.0, %v1269
  %v1271 = vrcp.pop %v1268
  %v1272 = vmul.f32 1.0, %v1271
  %v1273 = vmul.f32 %v1254, %v1063
  %v1274 = vmul.f32 %v1256, %v1064
  %1279 = vrot.lane.b32.xlu0 %v1257, 32
  %v1280 = vpop.permute.xlu0 %1279
  %1281 = vrot.lane.b32.xlu0 %v1258, 32
  %v1282 = vpop.permute.xlu0 %1281
  %1283 = vrot.lane.b32.xlu0 %v1259, 32
  %v1284 = vpop.permute.xlu0 %1283
  %1285 = vrot.lane.b32.xlu0 %v1260, 32
  %v1286 = vpop.permute.xlu0 %1285
  %v1287 = vsel %vm154, %v1280, %v1282
  %v1288 = vsel %vm154, %v1284, %v1286
  %v1291 = vmul.f32 %v1254, %v1287
  %v1292 = vmul.f32 %v1256, %v1288
  %1295 = vrot.lane.b32.xlu0 %v1291, 48
  %v1296 = vpop.permute.xlu0 %1295
  %1297 = vrot.lane.b32.xlu0 %v1292, 48
  %v1298 = vpop.permute.xlu0 %1297
  %v1301 = vadd.f32 %v1273, %v1296
  %v1302 = vadd.f32 %v1274, %v1298
  %v1303 = vtanh.pop %v1301
  %v1304 = vtanh.pop %v1302
  %1307 = vrot.lane.b32.xlu0 %v1303, 96
  %v1308 = vpop.permute.xlu0 %1307
  %1309 = vrot.lane.b32.xlu0 %v1304, 96
  %v1310 = vpop.permute.xlu0 %1309
  %v1313 = vmul.f32 %v1270, %v1308
  %v1314 = vmul.f32 %v1272, %v1310
  %1317 = vrot.lane.b32.xlu0 %v1313, 112
  %v1318 = vpop.permute.xlu0 %1317
  %1319 = vrot.lane.b32.xlu0 %v1314, 112
  %v1320 = vpop.permute.xlu0 %1319
  %v1321 = vsel %vm73, %v1318, 0
  %v1323 = vsel %vm73, %v1320, 0
  %1325 = vmatprep.subr.mxu0 %v826
  %1326 = vmatpush1.msra.mxu0 %v825
  %1327 = vmatprep.subr.mxu0 %v828
  %1328 = vmatpush1.msra.mxu0 %v827
  %1329 = vmatprep.subr.mxu0 %v830
  %1330 = vmatpush1.msra.mxu0 %v829
  %1331 = vmatprep.subr.mxu0 %v832
  %1332 = vmatpush1.msra.mxu0 %v831
  %1333 = vmatprep.subr.mxu0 %v834
  %1334 = vmatpush1.msra.mxu0 %v833
  %1335 = vmatprep.subr.mxu0 %v836
  %1336 = vmatpush1.msra.mxu0 %v835
  %1337 = vmatprep.subr.mxu0 0.0
  %1338 = vmatpush1.msra.mxu0 0.0
  %1339 = vmatprep.subr.mxu0 0.0
  %1340 = vmatpush1.msra.mxu0 0.0
  %1341 = vmatprep.subr.mxu0 0.0
  %1342 = vmatpush1.msra.mxu0 0.0
  %1343 = vmatprep.subr.mxu0 0.0
  %1344 = vmatpush1.msra.mxu0 0.0
  %1345 = vmatprep.subr.mxu0 0.0
  %1346 = vmatpush1.msra.mxu0 0.0
  %1347 = vmatprep.subr.mxu0 0.0
  %1348 = vmatpush1.msra.mxu0 0.0
  %1349 = vmatprep.subr.mxu0 0.0
  %1350 = vmatpush1.msra.mxu0 0.0
  %1351 = vmatprep.subr.mxu0 0.0
  %1352 = vmatpush1.msra.mxu0 0.0
  %1353 = vmatprep.subr.mxu0 0.0
  %1354 = vmatpush1.msra.mxu0 0.0
  %1355 = vmatprep.subr.mxu0 0.0
  %1356 = vmatpush1.msra.mxu0 0.0
  %1357 = vmatprep.subr.mxu0 0.0
  %1358 = vmatpush1.msra.mxu0 0.0
  %1359 = vmatprep.subr.mxu0 0.0
  %1360 = vmatpush1.msra.mxu0 0.0
  %1361 = vmatprep.subr.mxu0 0.0
  %1362 = vmatpush1.msra.mxu0 0.0
  %1363 = vmatprep.subr.mxu0 0.0
  %1364 = vmatpush1.msra.mxu0 0.0
  %1365 = vmatprep.subr.mxu0 0.0
  %1366 = vmatpush1.msra.mxu0 0.0
  %1367 = vmatprep.subr.mxu0 0.0
  %1368 = vmatpush1.msra.mxu0 0.0
  %1369 = vmatprep.subr.mxu0 0.0
  %1370 = vmatpush1.msra.mxu0 0.0
  %1371 = vmatprep.subr.mxu0 0.0
  %1372 = vmatpush1.msra.mxu0 0.0
  %1373 = vmatprep.subr.mxu0 0.0
  %1374 = vmatpush1.msra.mxu0 0.0
  %1375 = vmatprep.subr.mxu0 0.0
  %1376 = vmatpush1.msra.mxu0 0.0
  %1377 = vmatprep.subr.mxu0 0.0
  %1378 = vmatpush1.msra.mxu0 0.0
  %1379 = vmatprep.subr.mxu0 0.0
  %1380 = vmatpush1.msra.mxu0 0.0
  %1381 = vmatprep.subr.mxu0 0.0
  %1382 = vmatpush1.msra.mxu0 0.0
  %1383 = vmatprep.subr.mxu0 0.0
  %1384 = vmatpush1.msra.mxu0 0.0
  %1385 = vmatprep.subr.mxu0 0.0
  %1386 = vmatpush1.msra.mxu0 0.0
  %1387 = vmatprep.subr.mxu0 0.0
  %1388 = vmatpush1.msra.mxu0 0.0
  %1389 = vmatprep.mubr.f32.mxu0 0.0
  %1390 = vmatmul.mubr.f32.gmra.mrb[0].mxu0 %v1321
  %v1391 = vpop.f32.mrb[0].mxu0
  %v1392 = vadd.f32 0.0, %v1391
  %v1393 = vpop.f32.mrb[0].mxu0
  %v1394 = vadd.f32 0.0, %v1393
  %1395 = vmatprep.mubr.f32.mxu0 0.0
  %1396 = vmatmul.mubr.f32.gmra.mrb[0].mxu0 %v1323
  %v1397 = vpop.f32.mrb[0].mxu0
  %v1398 = vadd.f32 0.0, %v1397
  %v1399 = vpop.f32.mrb[0].mxu0
  %v1400 = vadd.f32 0.0, %v1399
  %1401 = vdwg.mxu0
  %1402 = vmatprep.subr.mxu0 %v818
  %1403 = vmatpush1.msra.mxu0 %v817
  %1404 = vmatprep.subr.mxu0 %v820
  %1405 = vmatpush1.msra.mxu0 %v819
  %1406 = vmatprep.subr.mxu0 %v822
  %1407 = vmatpush1.msra.mxu0 %v821
  %1408 = vmatprep.subr.mxu0 %v824
  %1409 = vmatpush1.msra.mxu0 %v823
  %1410 = vmatprep.subr.mxu0 0.0
  %1411 = vmatpush1.msra.mxu0 0.0
  %1412 = vmatprep.subr.mxu0 0.0
  %1413 = vmatpush1.msra.mxu0 0.0
  %1414 = vmatprep.subr.mxu0 0.0
  %1415 = vmatpush1.msra.mxu0 0.0
  %1416 = vmatprep.subr.mxu0 0.0
  %1417 = vmatpush1.msra.mxu0 0.0
  %1418 = vmatprep.subr.mxu0 0.0
  %1419 = vmatpush1.msra.mxu0 0.0
  %1420 = vmatprep.subr.mxu0 0.0
  %1421 = vmatpush1.msra.mxu0 0.0
  %1422 = vmatprep.subr.mxu0 0.0
  %1423 = vmatpush1.msra.mxu0 0.0
  %1424 = vmatprep.subr.mxu0 0.0
  %1425 = vmatpush1.msra.mxu0 0.0
  %1426 = vmatprep.subr.mxu0 0.0
  %1427 = vmatpush1.msra.mxu0 0.0
  %1428 = vmatprep.subr.mxu0 0.0
  %1429 = vmatpush1.msra.mxu0 0.0
  %1430 = vmatprep.subr.mxu0 0.0
  %1431 = vmatpush1.msra.mxu0 0.0
  %1432 = vmatprep.subr.mxu0 0.0
  %1433 = vmatpush1.msra.mxu0 0.0
  %1434 = vmatprep.subr.mxu0 0.0
  %1435 = vmatpush1.msra.mxu0 0.0
  %1436 = vmatprep.subr.mxu0 0.0
  %1437 = vmatpush1.msra.mxu0 0.0
  %1438 = vmatprep.subr.mxu0 0.0
  %1439 = vmatpush1.msra.mxu0 0.0
  %1440 = vmatprep.subr.mxu0 0.0
  %1441 = vmatpush1.msra.mxu0 0.0
  %1442 = vmatprep.subr.mxu0 0.0
  %1443 = vmatpush1.msra.mxu0 0.0
  %1444 = vmatprep.subr.mxu0 0.0
  %1445 = vmatpush1.msra.mxu0 0.0
  %1446 = vmatprep.subr.mxu0 0.0
  %1447 = vmatpush1.msra.mxu0 0.0
  %1448 = vmatprep.subr.mxu0 0.0
  %1449 = vmatpush1.msra.mxu0 0.0
  %1450 = vmatprep.subr.mxu0 0.0
  %1451 = vmatpush1.msra.mxu0 0.0
  %1452 = vmatprep.subr.mxu0 0.0
  %1453 = vmatpush1.msra.mxu0 0.0
  %1454 = vmatprep.subr.mxu0 0.0
  %1455 = vmatpush1.msra.mxu0 0.0
  %1456 = vmatprep.subr.mxu0 0.0
  %1457 = vmatpush1.msra.mxu0 0.0
  %1458 = vmatprep.subr.mxu0 0.0
  %1459 = vmatpush1.msra.mxu0 0.0
  %1460 = vmatprep.subr.mxu0 0.0
  %1461 = vmatpush1.msra.mxu0 0.0
  %1462 = vmatprep.subr.mxu0 0.0
  %1463 = vmatpush1.msra.mxu0 0.0
  %1464 = vmatprep.subr.mxu0 0.0
  %1465 = vmatpush1.msra.mxu0 0.0
  %1466 = vmatprep.mubr.f32.mxu0 0.0
  %1467 = vmatmul.mubr.f32.gmra.mrb[0].mxu0 %v156
  %v1468 = vpop.f32.mrb[0].mxu0
  %v1469 = vadd.f32 %v1392, %v1468
  %v1470 = vpop.f32.mrb[0].mxu0
  %v1471 = vadd.f32 %v1394, %v1470
  %1472 = vmatprep.mubr.f32.mxu0 0.0
  %1473 = vmatmul.mubr.f32.gmra.mrb[0].mxu0 %v159
  %v1474 = vpop.f32.mrb[0].mxu0
  %v1475 = vadd.f32 %v1398, %v1474
  %v1476 = vpop.f32.mrb[0].mxu0
  %v1477 = vadd.f32 %v1400, %v1476
  %1478 = vdwg.mxu0
  %v1479 = vadd.f32 %v1469, %v996
  %v1480 = vadd.f32 %v1471, %v1000
  %v1481 = vadd.f32 %v1475, %v996
  %v1482 = vadd.f32 %v1477, %v1000
  %v1483 = vxor.u32 %v1479, 2147483648
  %v1484 = vxor.u32 %v1481, 2147483648
  %v1485 = vmul.f32 %v1483, 1.442695
  %v1486 = vpow.pop %v1485
  %v1487 = vmul.f32 %v1484, 1.442695
  %v1488 = vpow.pop %v1487
  %v1489 = vadd.f32 %v1486, 1.0
  %v1490 = vadd.f32 %v1488, 1.0
  %v1491 = vrcp.pop %v1489
  %v1492 = vmul.f32 1.0, %v1491
  %v1493 = vrcp.pop %v1490
  %v1494 = vmul.f32 1.0, %v1493
  %v1495 = vtanh.pop %v1479
  %v1496 = vtanh.pop %v1480
  %v1497 = vtanh.pop %v1481
  %v1498 = vtanh.pop %v1482
  %v1499 = vxor.u32 %v1480, 2147483648
  %v1500 = vxor.u32 %v1482, 2147483648
  %v1501 = vmul.f32 %v1499, 1.442695
  %v1502 = vpow.pop %v1501
  %v1503 = vmul.f32 %v1500, 1.442695
  %v1504 = vpow.pop %v1503
  %v1505 = vadd.f32 %v1502, 1.0
  %v1506 = vadd.f32 %v1504, 1.0
  %v1507 = vrcp.pop %v1505
  %v1508 = vmul.f32 1.0, %v1507
  %v1509 = vrcp.pop %v1506
  %v1510 = vmul.f32 1.0, %v1509
  %v1511 = vmul.f32 %v1492, %v1301
  %v1512 = vmul.f32 %v1494, %v1302
  %1517 = vrot.lane.b32.xlu0 %v1495, 32
  %v1518 = vpop.permute.xlu0 %1517
  %1519 = vrot.lane.b32.xlu0 %v1496, 32
  %v1520 = vpop.permute.xlu0 %1519
  %1521 = vrot.lane.b32.xlu0 %v1497, 32
  %v1522 = vpop.permute.xlu0 %1521
  %1523 = vrot.lane.b32.xlu0 %v1498, 32
  %v1524 = vpop.permute.xlu0 %1523
  %v1525 = vsel %vm154, %v1518, %v1520
  %v1526 = vsel %vm154, %v1522, %v1524
  %v1529 = vmul.f32 %v1492, %v1525
  %v1530 = vmul.f32 %v1494, %v1526
  %1533 = vrot.lane.b32.xlu0 %v1529, 48
  %v1534 = vpop.permute.xlu0 %1533
  %1535 = vrot.lane.b32.xlu0 %v1530, 48
  %v1536 = vpop.permute.xlu0 %1535
  %v1539 = vadd.f32 %v1511, %v1534
  %v1540 = vadd.f32 %v1512, %v1536
  %v1541 = vtanh.pop %v1539
  %v1542 = vtanh.pop %v1540
  %1545 = vrot.lane.b32.xlu0 %v1541, 96
  %v1546 = vpop.permute.xlu0 %1545
  %1547 = vrot.lane.b32.xlu0 %v1542, 96
  %v1548 = vpop.permute.xlu0 %1547
  %v1551 = vmul.f32 %v1508, %v1546
  %v1552 = vmul.f32 %v1510, %v1548
  %v1553 = vld [vmem:[%s7] sm:$0xff]
  %v1554 = vld [vmem:[%s7 + $0x8] sm:$0xff]
  %v1555 = vld [vmem:[%s7 + $0x10] sm:$0xff]
  %v1556 = vld [vmem:[%s7 + $0x18] sm:$0xff]
  %v1557 = vld [vmem:[%s7 + $0x20] sm:$0xff]
  %v1558 = vld [vmem:[%s7 + $0x28] sm:$0xff]
  %v1559 = vld [vmem:[%s7 + $0x30] sm:$0xff]
  %v1560 = vld [vmem:[%s7 + $0x38] sm:$0xff]
  %v1561 = vld [vmem:[%s7 + $0x40] sm:$0xff]
  %v1562 = vld [vmem:[%s7 + $0x48] sm:$0xff]
  %v1563 = vld [vmem:[%s7 + $0x50] sm:$0xff]
  %v1564 = vld [vmem:[%s7 + $0x58] sm:$0xff]
  %v1565 = vld [vmem:[#allocation2] sm:$0x1]
  %1568 = vrot.lane.b32.xlu0 %v1551, 112
  %v1569 = vpop.permute.xlu0 %1568
  %1570 = vrot.lane.b32.xlu0 %v1552, 112
  %v1571 = vpop.permute.xlu0 %1570
  %v1572 = vsel %vm73, %v1569, 0
  %v1574 = vsel %vm73, %v1571, 0
  %1576 = vmatprep.subr.mxu0 0.0
  %1577 = vmatpush1.msra.mxu0 %v1559
  %1578 = vmatprep.subr.mxu0 0.0
  %1579 = vmatpush1.msra.mxu0 %v1560
  %1580 = vmatprep.subr.mxu0 0.0
  %1581 = vmatpush1.msra.mxu0 %v1561
  %1582 = vmatprep.subr.mxu0 0.0
  %1583 = vmatpush1.msra.mxu0 %v1562
  %1584 = vmatprep.subr.mxu0 0.0
  %1585 = vmatpush1.msra.mxu0 %v1563
  %1586 = vmatprep.subr.mxu0 0.0
  %1587 = vmatpush1.msra.mxu0 %v1564
  %1588 = vmatprep.subr.mxu0 0.0
  %1589 = vmatpush1.msra.mxu0 0.0
  %1590 = vmatprep.subr.mxu0 0.0
  %1591 = vmatpush1.msra.mxu0 0.0
  %1592 = vmatprep.subr.mxu0 0.0
  %1593 = vmatpush1.msra.mxu0 0.0
  %1594 = vmatprep.subr.mxu0 0.0
  %1595 = vmatpush1.msra.mxu0 0.0
  %1596 = vmatprep.subr.mxu0 0.0
  %1597 = vmatpush1.msra.mxu0 0.0
  %1598 = vmatprep.subr.mxu0 0.0
  %1599 = vmatpush1.msra.mxu0 0.0
  %1600 = vmatprep.subr.mxu0 0.0
  %1601 = vmatpush1.msra.mxu0 0.0
  %1602 = vmatprep.subr.mxu0 0.0
  %1603 = vmatpush1.msra.mxu0 0.0
  %1604 = vmatprep.subr.mxu0 0.0
  %1605 = vmatpush1.msra.mxu0 0.0
  %1606 = vmatprep.subr.mxu0 0.0
  %1607 = vmatpush1.msra.mxu0 0.0
  %1608 = vmatprep.subr.mxu0 0.0
  %1609 = vmatpush1.msra.mxu0 0.0
  %1610 = vmatprep.subr.mxu0 0.0
  %1611 = vmatpush1.msra.mxu0 0.0
  %1612 = vmatprep.subr.mxu0 0.0
  %1613 = vmatpush1.msra.mxu0 0.0
  %1614 = vmatprep.subr.mxu0 0.0
  %1615 = vmatpush1.msra.mxu0 0.0
  %1616 = vmatprep.subr.mxu0 0.0
  %1617 = vmatpush1.msra.mxu0 0.0
  %1618 = vmatprep.subr.mxu0 0.0
  %1619 = vmatpush1.msra.mxu0 0.0
  %1620 = vmatprep.subr.mxu0 0.0
  %1621 = vmatpush1.msra.mxu0 0.0
  %1622 = vmatprep.subr.mxu0 0.0
  %1623 = vmatpush1.msra.mxu0 0.0
  %1624 = vmatprep.subr.mxu0 0.0
  %1625 = vmatpush1.msra.mxu0 0.0
  %1626 = vmatprep.subr.mxu0 0.0
  %1627 = vmatpush1.msra.mxu0 0.0
  %1628 = vmatprep.subr.mxu0 0.0
  %1629 = vmatpush1.msra.mxu0 0.0
  %1630 = vmatprep.subr.mxu0 0.0
  %1631 = vmatpush1.msra.mxu0 0.0
  %1632 = vmatprep.subr.mxu0 0.0
  %1633 = vmatpush1.msra.mxu0 0.0
  %1634 = vmatprep.subr.mxu0 0.0
  %1635 = vmatpush1.msra.mxu0 0.0
  %1636 = vmatprep.subr.mxu0 0.0
  %1637 = vmatpush1.msra.mxu0 0.0
  %1638 = vmatprep.subr.mxu0 0.0
  %1639 = vmatpush1.msra.mxu0 0.0
  %1640 = vmatprep.mubr.f32.mxu0 0.0
  %1641 = vmatmul.mubr.f32.gmra.mrb[0].mxu0 %v1572
  %v1642 = vpop.f32.mrb[0].mxu0
  %v1643 = vadd.f32 0.0, %v1642
  %v1644 = vpop.f32.mrb[0].mxu0
  %1645 = vmatprep.mubr.f32.mxu0 0.0
  %1646 = vmatmul.mubr.f32.gmra.mrb[0].mxu0 %v1574
  %v1647 = vpop.f32.mrb[0].mxu0
  %v1648 = vadd.f32 0.0, %v1647
  %v1649 = vpop.f32.mrb[0].mxu0
  %1650 = vdwg.mxu0
  %1651 = vmatprep.subr.mxu0 0.0
  %1652 = vmatpush1.msra.mxu0 %v1553
  %1653 = vmatprep.subr.mxu0 0.0
  %1654 = vmatpush1.msra.mxu0 %v1554
  %1655 = vmatprep.subr.mxu0 0.0
  %1656 = vmatpush1.msra.mxu0 %v1555
  %1657 = vmatprep.subr.mxu0 0.0
  %1658 = vmatpush1.msra.mxu0 %v1556
  %1659 = vmatprep.subr.mxu0 0.0
  %1660 = vmatpush1.msra.mxu0 %v1557
  %1661 = vmatprep.subr.mxu0 0.0
  %1662 = vmatpush1.msra.mxu0 %v1558
  %1663 = vmatprep.subr.mxu0 0.0
  %1664 = vmatpush1.msra.mxu0 0.0
  %1665 = vmatprep.subr.mxu0 0.0
  %1666 = vmatpush1.msra.mxu0 0.0
  %1667 = vmatprep.subr.mxu0 0.0
  %1668 = vmatpush1.msra.mxu0 0.0
  %1669 = vmatprep.subr.mxu0 0.0
  %1670 = vmatpush1.msra.mxu0 0.0
  %1671 = vmatprep.subr.mxu0 0.0
  %1672 = vmatpush1.msra.mxu0 0.0
  %1673 = vmatprep.subr.mxu0 0.0
  %1674 = vmatpush1.msra.mxu0 0.0
  %1675 = vmatprep.subr.mxu0 0.0
  %1676 = vmatpush1.msra.mxu0 0.0
  %1677 = vmatprep.subr.mxu0 0.0
  %1678 = vmatpush1.msra.mxu0 0.0
  %1679 = vmatprep.subr.mxu0 0.0
  %1680 = vmatpush1.msra.mxu0 0.0
  %1681 = vmatprep.subr.mxu0 0.0
  %1682 = vmatpush1.msra.mxu0 0.0
  %1683 = vmatprep.subr.mxu0 0.0
  %1684 = vmatpush1.msra.mxu0 0.0
  %1685 = vmatprep.subr.mxu0 0.0
  %1686 = vmatpush1.msra.mxu0 0.0
  %1687 = vmatprep.subr.mxu0 0.0
  %1688 = vmatpush1.msra.mxu0 0.0
  %1689 = vmatprep.subr.mxu0 0.0
  %1690 = vmatpush1.msra.mxu0 0.0
  %1691 = vmatprep.subr.mxu0 0.0
  %1692 = vmatpush1.msra.mxu0 0.0
  %1693 = vmatprep.subr.mxu0 0.0
  %1694 = vmatpush1.msra.mxu0 0.0
  %1695 = vmatprep.subr.mxu0 0.0
  %1696 = vmatpush1.msra.mxu0 0.0
  %1697 = vmatprep.subr.mxu0 0.0
  %1698 = vmatpush1.msra.mxu0 0.0
  %1699 = vmatprep.subr.mxu0 0.0
  %1700 = vmatpush1.msra.mxu0 0.0
  %1701 = vmatprep.subr.mxu0 0.0
  %1702 = vmatpush1.msra.mxu0 0.0
  %1703 = vmatprep.subr.mxu0 0.0
  %1704 = vmatpush1.msra.mxu0 0.0
  %1705 = vmatprep.subr.mxu0 0.0
  %1706 = vmatpush1.msra.mxu0 0.0
  %1707 = vmatprep.subr.mxu0 0.0
  %1708 = vmatpush1.msra.mxu0 0.0
  %1709 = vmatprep.subr.mxu0 0.0
  %1710 = vmatpush1.msra.mxu0 0.0
  %1711 = vmatprep.subr.mxu0 0.0
  %1712 = vmatpush1.msra.mxu0 0.0
  %1713 = vmatprep.subr.mxu0 0.0
  %1714 = vmatpush1.msra.mxu0 0.0
  %1715 = vmatprep.mubr.f32.mxu0 0.0
  %1716 = vmatmul.mubr.f32.gmra.mrb[0].mxu0 %v332
  %v1717 = vpop.f32.mrb[0].mxu0
  %v1718 = vadd.f32 %v1643, %v1717
  %v1719 = vpop.f32.mrb[0].mxu0
  %1720 = vmatprep.mubr.f32.mxu0 0.0
  %1721 = vmatmul.mubr.f32.gmra.mrb[0].mxu0 %v334
  %v1722 = vpop.f32.mrb[0].mxu0
  %v1723 = vadd.f32 %v1648, %v1722
  %v1724 = vpop.f32.mrb[0].mxu0
  %1725 = vdwg.mxu0
  %v1727 = vlaneseq
  %v1728 = vshrl.u32 %v1727, 7
  %v1729 = vsub.s32 0, %v1728
  %v1730 = vrot.slane %v1565, %v1729
  %v1732 = vadd.f32 %v1718, %v1730
  %v1733 = vadd.f32 %v1723, %v1730
  %1734 = vmatprep.subr.mxu0 0.0
  %1735 = vmatpush1.msra.mxu0 %v1559
  %1736 = vmatprep.subr.mxu0 0.0
  %1737 = vmatpush1.msra.mxu0 %v1560
  %1738 = vmatprep.subr.mxu0 0.0
  %1739 = vmatpush1.msra.mxu0 %v1561
  %1740 = vmatprep.subr.mxu0 0.0
  %1741 = vmatpush1.msra.mxu0 %v1562
  %1742 = vmatprep.subr.mxu0 0.0
  %1743 = vmatpush1.msra.mxu0 %v1563
  %1744 = vmatprep.subr.mxu0 0.0
  %1745 = vmatpush1.msra.mxu0 %v1564
  %1746 = vmatprep.subr.mxu0 0.0
  %1747 = vmatpush1.msra.mxu0 0.0
  %1748 = vmatprep.subr.mxu0 0.0
  %1749 = vmatpush1.msra.mxu0 0.0
  %1750 = vmatprep.subr.mxu0 0.0
  %1751 = vmatpush1.msra.mxu0 0.0
  %1752 = vmatprep.subr.mxu0 0.0
  %1753 = vmatpush1.msra.mxu0 0.0
  %1754 = vmatprep.subr.mxu0 0.0
  %1755 = vmatpush1.msra.mxu0 0.0
  %1756 = vmatprep.subr.mxu0 0.0
  %1757 = vmatpush1.msra.mxu0 0.0
  %1758 = vmatprep.subr.mxu0 0.0
  %1759 = vmatpush1.msra.mxu0 0.0
  %1760 = vmatprep.subr.mxu0 0.0
  %1761 = vmatpush1.msra.mxu0 0.0
  %1762 = vmatprep.subr.mxu0 0.0
  %1763 = vmatpush1.msra.mxu0 0.0
  %1764 = vmatprep.subr.mxu0 0.0
  %1765 = vmatpush1.msra.mxu0 0.0
  %1766 = vmatprep.subr.mxu0 0.0
  %1767 = vmatpush1.msra.mxu0 0.0
  %1768 = vmatprep.subr.mxu0 0.0
  %1769 = vmatpush1.msra.mxu0 0.0
  %1770 = vmatprep.subr.mxu0 0.0
  %1771 = vmatpush1.msra.mxu0 0.0
  %1772 = vmatprep.subr.mxu0 0.0
  %1773 = vmatpush1.msra.mxu0 0.0
  %1774 = vmatprep.subr.mxu0 0.0
  %1775 = vmatpush1.msra.mxu0 0.0
  %1776 = vmatprep.subr.mxu0 0.0
  %1777 = vmatpush1.msra.mxu0 0.0
  %1778 = vmatprep.subr.mxu0 0.0
  %1779 = vmatpush1.msra.mxu0 0.0
  %1780 = vmatprep.subr.mxu0 0.0
  %1781 = vmatpush1.msra.mxu0 0.0
  %1782 = vmatprep.subr.mxu0 0.0
  %1783 = vmatpush1.msra.mxu0 0.0
  %1784 = vmatprep.subr.mxu0 0.0
  %1785 = vmatpush1.msra.mxu0 0.0
  %1786 = vmatprep.subr.mxu0 0.0
  %1787 = vmatpush1.msra.mxu0 0.0
  %1788 = vmatprep.subr.mxu0 0.0
  %1789 = vmatpush1.msra.mxu0 0.0
  %1790 = vmatprep.subr.mxu0 0.0
  %1791 = vmatpush1.msra.mxu0 0.0
  %1792 = vmatprep.subr.mxu0 0.0
  %1793 = vmatpush1.msra.mxu0 0.0
  %1794 = vmatprep.subr.mxu0 0.0
  %1795 = vmatpush1.msra.mxu0 0.0
  %1796 = vmatprep.subr.mxu0 0.0
  %1797 = vmatpush1.msra.mxu0 0.0
  %1798 = vmatprep.mubr.f32.mxu0 0.0
  %1799 = vmatmul.mubr.f32.gmra.mrb[0].mxu0 %v1321
  %v1800 = vpop.f32.mrb[0].mxu0
  %v1801 = vadd.f32 0.0, %v1800
  %v1802 = vpop.f32.mrb[0].mxu0
  %1803 = vmatprep.mubr.f32.mxu0 0.0
  %1804 = vmatmul.mubr.f32.gmra.mrb[0].mxu0 %v1323
  %v1805 = vpop.f32.mrb[0].mxu0
  %v1806 = vadd.f32 0.0, %v1805
  %v1807 = vpop.f32.mrb[0].mxu0
  %1808 = vdwg.mxu0
  %1809 = vmatprep.subr.mxu0 0.0
  %1810 = vmatpush1.msra.mxu0 %v1553
  %1811 = vmatprep.subr.mxu0 0.0
  %1812 = vmatpush1.msra.mxu0 %v1554
  %1813 = vmatprep.subr.mxu0 0.0
  %1814 = vmatpush1.msra.mxu0 %v1555
  %1815 = vmatprep.subr.mxu0 0.0
  %1816 = vmatpush1.msra.mxu0 %v1556
  %1817 = vmatprep.subr.mxu0 0.0
  %1818 = vmatpush1.msra.mxu0 %v1557
  %1819 = vmatprep.subr.mxu0 0.0
  %1820 = vmatpush1.msra.mxu0 %v1558
  %1821 = vmatprep.subr.mxu0 0.0
  %1822 = vmatpush1.msra.mxu0 0.0
  %1823 = vmatprep.subr.mxu0 0.0
  %1824 = vmatpush1.msra.mxu0 0.0
  %1825 = vmatprep.subr.mxu0 0.0
  %1826 = vmatpush1.msra.mxu0 0.0
  %1827 = vmatprep.subr.mxu0 0.0
  %1828 = vmatpush1.msra.mxu0 0.0
  %1829 = vmatprep.subr.mxu0 0.0
  %1830 = vmatpush1.msra.mxu0 0.0
  %1831 = vmatprep.subr.mxu0 0.0
  %1832 = vmatpush1.msra.mxu0 0.0
  %1833 = vmatprep.subr.mxu0 0.0
  %1834 = vmatpush1.msra.mxu0 0.0
  %1835 = vmatprep.subr.mxu0 0.0
  %1836 = vmatpush1.msra.mxu0 0.0
  %1837 = vmatprep.subr.mxu0 0.0
  %1838 = vmatpush1.msra.mxu0 0.0
  %1839 = vmatprep.subr.mxu0 0.0
  %1840 = vmatpush1.msra.mxu0 0.0
  %1841 = vmatprep.subr.mxu0 0.0
  %1842 = vmatpush1.msra.mxu0 0.0
  %1843 = vmatprep.subr.mxu0 0.0
  %1844 = vmatpush1.msra.mxu0 0.0
  %1845 = vmatprep.subr.mxu0 0.0
  %1846 = vmatpush1.msra.mxu0 0.0
  %1847 = vmatprep.subr.mxu0 0.0
  %1848 = vmatpush1.msra.mxu0 0.0
  %1849 = vmatprep.subr.mxu0 0.0
  %1850 = vmatpush1.msra.mxu0 0.0
  %1851 = vmatprep.subr.mxu0 0.0
  %1852 = vmatpush1.msra.mxu0 0.0
  %1853 = vmatprep.subr.mxu0 0.0
  %1854 = vmatpush1.msra.mxu0 0.0
  %1855 = vmatprep.subr.mxu0 0.0
  %1856 = vmatpush1.msra.mxu0 0.0
  %1857 = vmatprep.subr.mxu0 0.0
  %1858 = vmatpush1.msra.mxu0 0.0
  %1859 = vmatprep.subr.mxu0 0.0
  %1860 = vmatpush1.msra.mxu0 0.0
  %1861 = vmatprep.subr.mxu0 0.0
  %1862 = vmatpush1.msra.mxu0 0.0
  %1863 = vmatprep.subr.mxu0 0.0
  %1864 = vmatpush1.msra.mxu0 0.0
  %1865 = vmatprep.subr.mxu0 0.0
  %1866 = vmatpush1.msra.mxu0 0.0
  %1867 = vmatprep.subr.mxu0 0.0
  %1868 = vmatpush1.msra.mxu0 0.0
  %1869 = vmatprep.subr.mxu0 0.0
  %1870 = vmatpush1.msra.mxu0 0.0
  %1871 = vmatprep.subr.mxu0 0.0
  %1872 = vmatpush1.msra.mxu0 0.0
  %1873 = vmatprep.mubr.f32.mxu0 0.0
  %1874 = vmatmul.mubr.f32.gmra.mrb[0].mxu0 %v579
  %v1875 = vpop.f32.mrb[0].mxu0
  %v1876 = vadd.f32 %v1801, %v1875
  %v1877 = vpop.f32.mrb[0].mxu0
  %1878 = vmatprep.mubr.f32.mxu0 0.0
  %1879 = vmatmul.mubr.f32.gmra.mrb[0].mxu0 %v581
  %v1880 = vpop.f32.mrb[0].mxu0
  %v1881 = vadd.f32 %v1806, %v1880
  %v1882 = vpop.f32.mrb[0].mxu0
  %1883 = vdwg.mxu0
  %v1884 = vadd.f32 %v1876, %v1730
  %v1885 = vadd.f32 %v1881, %v1730
  %1886 = vmatprep.subr.mxu0 0.0
  %1887 = vmatpush1.msra.mxu0 %v1559
  %1888 = vmatprep.subr.mxu0 0.0
  %1889 = vmatpush1.msra.mxu0 %v1560
  %1890 = vmatprep.subr.mxu0 0.0
  %1891 = vmatpush1.msra.mxu0 %v1561
  %1892 = vmatprep.subr.mxu0 0.0
  %1893 = vmatpush1.msra.mxu0 %v1562
  %1894 = vmatprep.subr.mxu0 0.0
  %1895 = vmatpush1.msra.mxu0 %v1563
  %1896 = vmatprep.subr.mxu0 0.0
  %1897 = vmatpush1.msra.mxu0 %v1564
  %1898 = vmatprep.subr.mxu0 0.0
  %1899 = vmatpush1.msra.mxu0 0.0
  %1900 = vmatprep.subr.mxu0 0.0
  %1901 = vmatpush1.msra.mxu0 0.0
  %1902 = vmatprep.subr.mxu0 0.0
  %1903 = vmatpush1.msra.mxu0 0.0
  %1904 = vmatprep.subr.mxu0 0.0
  %1905 = vmatpush1.msra.mxu0 0.0
  %1906 = vmatprep.subr.mxu0 0.0
  %1907 = vmatpush1.msra.mxu0 0.0
  %1908 = vmatprep.subr.mxu0 0.0
  %1909 = vmatpush1.msra.mxu0 0.0
  %1910 = vmatprep.subr.mxu0 0.0
  %1911 = vmatpush1.msra.mxu0 0.0
  %1912 = vmatprep.subr.mxu0 0.0
  %1913 = vmatpush1.msra.mxu0 0.0
  %1914 = vmatprep.subr.mxu0 0.0
  %1915 = vmatpush1.msra.mxu0 0.0
  %1916 = vmatprep.subr.mxu0 0.0
  %1917 = vmatpush1.msra.mxu0 0.0
  %1918 = vmatprep.subr.mxu0 0.0
  %1919 = vmatpush1.msra.mxu0 0.0
  %1920 = vmatprep.subr.mxu0 0.0
  %1921 = vmatpush1.msra.mxu0 0.0
  %1922 = vmatprep.subr.mxu0 0.0
  %1923 = vmatpush1.msra.mxu0 0.0
  %1924 = vmatprep.subr.mxu0 0.0
  %1925 = vmatpush1.msra.mxu0 0.0
  %1926 = vmatprep.subr.mxu0 0.0
  %1927 = vmatpush1.msra.mxu0 0.0
  %1928 = vmatprep.subr.mxu0 0.0
  %1929 = vmatpush1.msra.mxu0 0.0
  %1930 = vmatprep.subr.mxu0 0.0
  %1931 = vmatpush1.msra.mxu0 0.0
  %1932 = vmatprep.subr.mxu0 0.0
  %1933 = vmatpush1.msra.mxu0 0.0
  %1934 = vmatprep.subr.mxu0 0.0
  %1935 = vmatpush1.msra.mxu0 0.0
  %1936 = vmatprep.subr.mxu0 0.0
  %1937 = vmatpush1.msra.mxu0 0.0
  %1938 = vmatprep.subr.mxu0 0.0
  %1939 = vmatpush1.msra.mxu0 0.0
  %1940 = vmatprep.subr.mxu0 0.0
  %1941 = vmatpush1.msra.mxu0 0.0
  %1942 = vmatprep.subr.mxu0 0.0
  %1943 = vmatpush1.msra.mxu0 0.0
  %1944 = vmatprep.subr.mxu0 0.0
  %1945 = vmatpush1.msra.mxu0 0.0
  %1946 = vmatprep.subr.mxu0 0.0
  %1947 = vmatpush1.msra.mxu0 0.0
  %1948 = vmatprep.subr.mxu0 0.0
  %1949 = vmatpush1.msra.mxu0 0.0
  %1950 = vmatprep.mubr.f32.mxu0 0.0
  %1951 = vmatmul.mubr.f32.gmra.mrb[0].mxu0 %v1083
  %v1952 = vpop.f32.mrb[0].mxu0
  %v1953 = vadd.f32 0.0, %v1952
  %v1954 = vpop.f32.mrb[0].mxu0
  %1955 = vmatprep.mubr.f32.mxu0 0.0
  %1956 = vmatmul.mubr.f32.gmra.mrb[0].mxu0 %v1085
  %v1957 = vpop.f32.mrb[0].mxu0
  %v1958 = vadd.f32 0.0, %v1957
  %v1959 = vpop.f32.mrb[0].mxu0
  %1960 = vdwg.mxu0
  %1963 = vrot.lane.b32.xlu0 %v815, 112
  %v1964 = vpop.permute.xlu0 %1963
  %1965 = vrot.lane.b32.xlu0 %v816, 112
  %v1966 = vpop.permute.xlu0 %1965
  %v1967 = vsel %vm73, %v1964, 0
  %v1969 = vsel %vm73, %v1966, 0
  %1971 = vmatprep.subr.mxu0 0.0
  %1972 = vmatpush1.msra.mxu0 %v1553
  %1973 = vmatprep.subr.mxu0 0.0
  %1974 = vmatpush1.msra.mxu0 %v1554
  %1975 = vmatprep.subr.mxu0 0.0
  %1976 = vmatpush1.msra.mxu0 %v1555
  %1977 = vmatprep.subr.mxu0 0.0
  %1978 = vmatpush1.msra.mxu0 %v1556
  %1979 = vmatprep.subr.mxu0 0.0
  %1980 = vmatpush1.msra.mxu0 %v1557
  %1981 = vmatprep.subr.mxu0 0.0
  %1982 = vmatpush1.msra.mxu0 %v1558
  %1983 = vmatprep.subr.mxu0 0.0
  %1984 = vmatpush1.msra.mxu0 0.0
  %1985 = vmatprep.subr.mxu0 0.0
  %1986 = vmatpush1.msra.mxu0 0.0
  %1987 = vmatprep.subr.mxu0 0.0
  %1988 = vmatpush1.msra.mxu0 0.0
  %1989 = vmatprep.subr.mxu0 0.0
  %1990 = vmatpush1.msra.mxu0 0.0
  %1991 = vmatprep.subr.mxu0 0.0
  %1992 = vmatpush1.msra.mxu0 0.0
  %1993 = vmatprep.subr.mxu0 0.0
  %1994 = vmatpush1.msra.mxu0 0.0
  %1995 = vmatprep.subr.mxu0 0.0
  %1996 = vmatpush1.msra.mxu0 0.0
  %1997 = vmatprep.subr.mxu0 0.0
  %1998 = vmatpush1.msra.mxu0 0.0
  %1999 = vmatprep.subr.mxu0 0.0
  %2000 = vmatpush1.msra.mxu0 0.0
  %2001 = vmatprep.subr.mxu0 0.0
  %2002 = vmatpush1.msra.mxu0 0.0
  %2003 = vmatprep.subr.mxu0 0.0
  %2004 = vmatpush1.msra.mxu0 0.0
  %2005 = vmatprep.subr.mxu0 0.0
  %2006 = vmatpush1.msra.mxu0 0.0
  %2007 = vmatprep.subr.mxu0 0.0
  %2008 = vmatpush1.msra.mxu0 0.0
  %2009 = vmatprep.subr.mxu0 0.0
  %2010 = vmatpush1.msra.mxu0 0.0
  %2011 = vmatprep.subr.mxu0 0.0
  %2012 = vmatpush1.msra.mxu0 0.0
  %2013 = vmatprep.subr.mxu0 0.0
  %2014 = vmatpush1.msra.mxu0 0.0
  %2015 = vmatprep.subr.mxu0 0.0
  %2016 = vmatpush1.msra.mxu0 0.0
  %2017 = vmatprep.subr.mxu0 0.0
  %2018 = vmatpush1.msra.mxu0 0.0
  %2019 = vmatprep.subr.mxu0 0.0
  %2020 = vmatpush1.msra.mxu0 0.0
  %2021 = vmatprep.subr.mxu0 0.0
  %2022 = vmatpush1.msra.mxu0 0.0
  %2023 = vmatprep.subr.mxu0 0.0
  %2024 = vmatpush1.msra.mxu0 0.0
  %2025 = vmatprep.subr.mxu0 0.0
  %2026 = vmatpush1.msra.mxu0 0.0
  %2027 = vmatprep.subr.mxu0 0.0
  %2028 = vmatpush1.msra.mxu0 0.0
  %2029 = vmatprep.subr.mxu0 0.0
  %2030 = vmatpush1.msra.mxu0 0.0
  %2031 = vmatprep.subr.mxu0 0.0
  %2032 = vmatpush1.msra.mxu0 0.0
  %2033 = vmatprep.subr.mxu0 0.0
  %2034 = vmatpush1.msra.mxu0 0.0
  %2035 = vmatprep.mubr.f32.mxu0 0.0
  %2036 = vmatmul.mubr.f32.gmra.mrb[0].mxu0 %v1967
  %v2037 = vpop.f32.mrb[0].mxu0
  %v2038 = vadd.f32 %v1953, %v2037
  %v2039 = vpop.f32.mrb[0].mxu0
  %2040 = vmatprep.mubr.f32.mxu0 0.0
  %2041 = vmatmul.mubr.f32.gmra.mrb[0].mxu0 %v1969
  %v2042 = vpop.f32.mrb[0].mxu0
  %v2043 = vadd.f32 %v1958, %v2042
  %v2044 = vpop.f32.mrb[0].mxu0
  %2045 = vdwg.mxu0
  %v2046 = vadd.f32 %v2038, %v1730
  %v2047 = vadd.f32 %v2043, %v1730
  %v2048 = vmax.f32 %v1732, %v1884
  %v2049 = vmax.f32 %v1733, %v1885
  %v2050 = vmax.f32 %v2048, %v2046
  %v2051 = vmax.f32 %v2049, %v2047
  %v2052 = vsub.f32 %v1732, %v2050
  %v2053 = vsub.f32 %v1733, %v2051
  %v2054 = vmul.f32 %v2052, 1.442695
  %v2055 = vpow.pop %v2054
  %v2056 = vmul.f32 %v2053, 1.442695
  %v2057 = vpow.pop %v2056
  %v2058 = vsub.f32 %v1884, %v2050
  %v2059 = vsub.f32 %v1885, %v2051
  %v2060 = vmul.f32 %v2058, 1.442695
  %v2061 = vpow.pop %v2060
  %v2062 = vmul.f32 %v2059, 1.442695
  %v2063 = vpow.pop %v2062
  %v2064 = vsub.f32 %v2046, %v2050
  %v2065 = vsub.f32 %v2047, %v2051
  %v2066 = vmul.f32 %v2064, 1.442695
  %v2067 = vpow.pop %v2066
  %v2068 = vmul.f32 %v2065, 1.442695
  %v2069 = vpow.pop %v2068
  %v2070 = vadd.f32 %v2055, %v2061
  %v2071 = vadd.f32 %v2057, %v2063
  %v2072 = vadd.f32 %v2070, %v2067
  %v2073 = vadd.f32 %v2071, %v2069
  %v2074 = vrcp.pop %v2072
  %v2075 = vrcp.pop %v2073
  %v2076 = vmul.f32 %v2055, %v2074
  %v2077 = vmul.f32 %v2057, %v2075
  %2079 = vset.pattern.permute.xlu0 0
  %2080 = vperm.xlu0 %2079, %v2076
  %v2081 = vpop.permute.xlu0 %2080
  %2084 = vset.pattern.permute.xlu0 0
  %2085 = vperm.xlu0 %2084, %v2077
  %v2086 = vpop.permute.xlu0 %2085
  %v2088 = vmul.f32 %v2081, %v71
  %v2089 = vmul.f32 %v2086, %v72
  %v2090 = vadd.f32 %v2088, 0.0
  %v2091 = vadd.f32 %v2089, 0.0
  %v2092 = vmul.f32 %v2061, %v2074
  %v2093 = vmul.f32 %v2063, %v2075
  %2095 = vset.pattern.permute.xlu0 0
  %2096 = vperm.xlu0 %2095, %v2092
  %v2097 = vpop.permute.xlu0 %2096
  %2100 = vset.pattern.permute.xlu0 0
  %2101 = vperm.xlu0 %2100, %v2093
  %v2102 = vpop.permute.xlu0 %2101
  %v2104 = vmul.f32 %v2097, %v324
  %v2105 = vmul.f32 %v2102, %v325
  %v2106 = vadd.f32 %v2090, %v2104
  %v2107 = vadd.f32 %v2091, %v2105
  %v2108 = vmul.f32 %v2067, %v2074
  %v2109 = vmul.f32 %v2069, %v2075
  %2111 = vset.pattern.permute.xlu0 0
  %2112 = vperm.xlu0 %2111, %v2108
  %v2113 = vpop.permute.xlu0 %2112
  %2116 = vset.pattern.permute.xlu0 0
  %2117 = vperm.xlu0 %2116, %v2109
  %v2118 = vpop.permute.xlu0 %2117
  %v2120 = vmul.f32 %v2113, %v571
  %v2121 = vmul.f32 %v2118, %v572
  %v2122 = vadd.f32 %v2106, %v2120
  %v2123 = vadd.f32 %v2107, %v2121
  %v2124 = vld [vmem:[%s9] sm:$0xff]
  %v2125 = vld [vmem:[%s9 + $0x8] sm:$0xff]
  %vm2126 = vcmask 130048
  %v2128 = vsel %vm2126, %v2124, 0
  %v2131 = vsel %vm2126, %v2125, 0
  %2133 = vmatprep.subr.mxu0 0.0
  %2134 = vmatpush1.msra.mxu0 %v2122
  %2135 = vmatprep.subr.mxu0 0.0
  %2136 = vmatpush1.msra.mxu0 %v2123
  %2137 = vmatprep.subr.mxu0 0.0
  %2138 = vmatpush1.msra.mxu0 0.0
  %2139 = vmatprep.subr.mxu0 0.0
  %2140 = vmatpush1.msra.mxu0 0.0
  %2141 = vmatprep.subr.mxu0 0.0
  %2142 = vmatpush1.msra.mxu0 0.0
  %2143 = vmatprep.subr.mxu0 0.0
  %2144 = vmatpush1.msra.mxu0 0.0
  %2145 = vmatprep.subr.mxu0 0.0
  %2146 = vmatpush1.msra.mxu0 0.0
  %2147 = vmatprep.subr.mxu0 0.0
  %2148 = vmatpush1.msra.mxu0 0.0
  %2149 = vmatprep.subr.mxu0 0.0
  %2150 = vmatpush1.msra.mxu0 0.0
  %2151 = vmatprep.subr.mxu0 0.0
  %2152 = vmatpush1.msra.mxu0 0.0
  %2153 = vmatprep.subr.mxu0 0.0
  %2154 = vmatpush1.msra.mxu0 0.0
  %2155 = vmatprep.subr.mxu0 0.0
  %2156 = vmatpush1.msra.mxu0 0.0
  %2157 = vmatprep.subr.mxu0 0.0
  %2158 = vmatpush1.msra.mxu0 0.0
  %2159 = vmatprep.subr.mxu0 0.0
  %2160 = vmatpush1.msra.mxu0 0.0
  %2161 = vmatprep.subr.mxu0 0.0
  %2162 = vmatpush1.msra.mxu0 0.0
  %2163 = vmatprep.subr.mxu0 0.0
  %2164 = vmatpush1.msra.mxu0 0.0
  %2165 = vmatprep.subr.mxu0 0.0
  %2166 = vmatpush1.msra.mxu0 0.0
  %2167 = vmatprep.subr.mxu0 0.0
  %2168 = vmatpush1.msra.mxu0 0.0
  %2169 = vmatprep.subr.mxu0 0.0
  %2170 = vmatpush1.msra.mxu0 0.0
  %2171 = vmatprep.subr.mxu0 0.0
  %2172 = vmatpush1.msra.mxu0 0.0
  %2173 = vmatprep.subr.mxu0 0.0
  %2174 = vmatpush1.msra.mxu0 0.0
  %2175 = vmatprep.subr.mxu0 0.0
  %2176 = vmatpush1.msra.mxu0 0.0
  %2177 = vmatprep.subr.mxu0 0.0
  %2178 = vmatpush1.msra.mxu0 0.0
  %2179 = vmatprep.subr.mxu0 0.0
  %2180 = vmatpush1.msra.mxu0 0.0
  %2181 = vmatprep.subr.mxu0 0.0
  %2182 = vmatpush1.msra.mxu0 0.0
  %2183 = vmatprep.subr.mxu0 0.0
  %2184 = vmatpush1.msra.mxu0 0.0
  %2185 = vmatprep.subr.mxu0 0.0
  %2186 = vmatpush1.msra.mxu0 0.0
  %2187 = vmatprep.subr.mxu0 0.0
  %2188 = vmatpush1.msra.mxu0 0.0
  %2189 = vmatprep.subr.mxu0 0.0
  %2190 = vmatpush1.msra.mxu0 0.0
  %2191 = vmatprep.subr.mxu0 0.0
  %2192 = vmatpush1.msra.mxu0 0.0
  %2193 = vmatprep.subr.mxu0 0.0
  %2194 = vmatpush1.msra.mxu0 0.0
  %2195 = vmatprep.subr.mxu0 0.0
  %2196 = vmatpush1.msra.mxu0 0.0
  %2197 = vmatprep.mubr.f32.mxu0 0.0
  %2198 = vmatmul.mubr.f32.gmra.mrb[0].mxu0 %v2128
  %v2199 = vpop.f32.mrb[0].mxu0
  %v2200 = vadd.f32 0.0, %v2199
  %v2201 = vpop.f32.mrb[0].mxu0
  %2202 = vmatprep.mubr.f32.mxu0 0.0
  %2203 = vmatmul.mubr.f32.gmra.mrb[0].mxu0 %v2131
  %v2204 = vpop.f32.mrb[0].mxu0
  %v2205 = vadd.f32 0.0, %v2204
  %v2206 = vpop.f32.mrb[0].mxu0
  %2207 = vdwg.mxu0
  %v2208 = vld [vmem:[%s10] sm:$0xff]
  %v2209 = vld [vmem:[%s10 + $0x8] sm:$0xff]
  %v2210 = vld [vmem:[%s10 + $0x10] sm:$0xff]
  %v2211 = vld [vmem:[%s10 + $0x18] sm:$0xff]
  %v2212 = vld [vmem:[%s11] sm:$0xff]
  %v2213 = vld [vmem:[%s11 + $0x8] sm:$0xff]
  %v2214 = vld [vmem:[%s11 + $0x10] sm:$0xff]
  %v2215 = vld [vmem:[%s11 + $0x18] sm:$0xff]
  %v2217 = vsel %vm154, %v2122, 0
  %v2220 = vsel %vm154, %v2123, 0
  %2222 = vmatprep.subr.mxu0 0.0
  %2223 = vmatpush1.msra.mxu0 %v2212
  %2224 = vmatprep.subr.mxu0 0.0
  %2225 = vmatpush1.msra.mxu0 %v2213
  %2226 = vmatprep.subr.mxu0 0.0
  %2227 = vmatpush1.msra.mxu0 %v2214
  %2228 = vmatprep.subr.mxu0 0.0
  %2229 = vmatpush1.msra.mxu0 %v2215
  %2230 = vmatprep.subr.mxu0 0.0
  %2231 = vmatpush1.msra.mxu0 0.0
  %2232 = vmatprep.subr.mxu0 0.0
  %2233 = vmatpush1.msra.mxu0 0.0
  %2234 = vmatprep.subr.mxu0 0.0
  %2235 = vmatpush1.msra.mxu0 0.0
  %2236 = vmatprep.subr.mxu0 0.0
  %2237 = vmatpush1.msra.mxu0 0.0
  %2238 = vmatprep.subr.mxu0 0.0
  %2239 = vmatpush1.msra.mxu0 0.0
  %2240 = vmatprep.subr.mxu0 0.0
  %2241 = vmatpush1.msra.mxu0 0.0
  %2242 = vmatprep.subr.mxu0 0.0
  %2243 = vmatpush1.msra.mxu0 0.0
  %2244 = vmatprep.subr.mxu0 0.0
  %2245 = vmatpush1.msra.mxu0 0.0
  %2246 = vmatprep.subr.mxu0 0.0
  %2247 = vmatpush1.msra.mxu0 0.0
  %2248 = vmatprep.subr.mxu0 0.0
  %2249 = vmatpush1.msra.mxu0 0.0
  %2250 = vmatprep.subr.mxu0 0.0
  %2251 = vmatpush1.msra.mxu0 0.0
  %2252 = vmatprep.subr.mxu0 0.0
  %2253 = vmatpush1.msra.mxu0 0.0
  %2254 = vmatprep.subr.mxu0 0.0
  %2255 = vmatpush1.msra.mxu0 0.0
  %2256 = vmatprep.subr.mxu0 0.0
  %2257 = vmatpush1.msra.mxu0 0.0
  %2258 = vmatprep.subr.mxu0 0.0
  %2259 = vmatpush1.msra.mxu0 0.0
  %2260 = vmatprep.subr.mxu0 0.0
  %2261 = vmatpush1.msra.mxu0 0.0
  %2262 = vmatprep.subr.mxu0 0.0
  %2263 = vmatpush1.msra.mxu0 0.0
  %2264 = vmatprep.subr.mxu0 0.0
  %2265 = vmatpush1.msra.mxu0 0.0
  %2266 = vmatprep.subr.mxu0 0.0
  %2267 = vmatpush1.msra.mxu0 0.0
  %2268 = vmatprep.subr.mxu0 0.0
  %2269 = vmatpush1.msra.mxu0 0.0
  %2270 = vmatprep.subr.mxu0 0.0
  %2271 = vmatpush1.msra.mxu0 0.0
  %2272 = vmatprep.subr.mxu0 0.0
  %2273 = vmatpush1.msra.mxu0 0.0
  %2274 = vmatprep.subr.mxu0 0.0
  %2275 = vmatpush1.msra.mxu0 0.0
  %2276 = vmatprep.subr.mxu0 0.0
  %2277 = vmatpush1.msra.mxu0 0.0
  %2278 = vmatprep.subr.mxu0 0.0
  %2279 = vmatpush1.msra.mxu0 0.0
  %2280 = vmatprep.subr.mxu0 0.0
  %2281 = vmatpush1.msra.mxu0 0.0
  %2282 = vmatprep.subr.mxu0 0.0
  %2283 = vmatpush1.msra.mxu0 0.0
  %2284 = vmatprep.subr.mxu0 0.0
  %2285 = vmatpush1.msra.mxu0 0.0
  %2286 = vmatprep.mubr.f32.mxu0 0.0
  %2287 = vmatmul.mubr.f32.gmra.mrb[0].mxu0 %v2217
  %v2288 = vpop.f32.mrb[0].mxu0
  %v2289 = vadd.f32 0.0, %v2288
  %v2290 = vpop.f32.mrb[0].mxu0
  %2291 = vmatprep.mubr.f32.mxu0 0.0
  %2292 = vmatmul.mubr.f32.gmra.mrb[0].mxu0 %v2220
  %v2293 = vpop.f32.mrb[0].mxu0
  %v2294 = vadd.f32 0.0, %v2293
  %v2295 = vpop.f32.mrb[0].mxu0
  %2296 = vdwg.mxu0
  %v2298 = vsel %vm154, %v2200, 0
  %v2301 = vsel %vm154, %v2205, 0
  %2303 = vmatprep.subr.mxu0 0.0
  %2304 = vmatpush1.msra.mxu0 %v2208
  %2305 = vmatprep.subr.mxu0 0.0
  %2306 = vmatpush1.msra.mxu0 %v2209
  %2307 = vmatprep.subr.mxu0 0.0
  %2308 = vmatpush1.msra.mxu0 %v2210
  %2309 = vmatprep.subr.mxu0 0.0
  %2310 = vmatpush1.msra.mxu0 %v2211
  %2311 = vmatprep.subr.mxu0 0.0
  %2312 = vmatpush1.msra.mxu0 0.0
  %2313 = vmatprep.subr.mxu0 0.0
  %2314 = vmatpush1.msra.mxu0 0.0
  %2315 = vmatprep.subr.mxu0 0.0
  %2316 = vmatpush1.msra.mxu0 0.0
  %2317 = vmatprep.subr.mxu0 0.0
  %2318 = vmatpush1.msra.mxu0 0.0
  %2319 = vmatprep.subr.mxu0 0.0
  %2320 = vmatpush1.msra.mxu0 0.0
  %2321 = vmatprep.subr.mxu0 0.0
  %2322 = vmatpush1.msra.mxu0 0.0
  %2323 = vmatprep.subr.mxu0 0.0
  %2324 = vmatpush1.msra.mxu0 0.0
  %2325 = vmatprep.subr.mxu0 0.0
  %2326 = vmatpush1.msra.mxu0 0.0
  %2327 = vmatprep.subr.mxu0 0.0
  %2328 = vmatpush1.msra.mxu0 0.0
  %2329 = vmatprep.subr.mxu0 0.0
  %2330 = vmatpush1.msra.mxu0 0.0
  %2331 = vmatprep.subr.mxu0 0.0
  %2332 = vmatpush1.msra.mxu0 0.0
  %2333 = vmatprep.subr.mxu0 0.0
  %2334 = vmatpush1.msra.mxu0 0.0
  %2335 = vmatprep.subr.mxu0 0.0
  %2336 = vmatpush1.msra.mxu0 0.0
  %2337 = vmatprep.subr.mxu0 0.0
  %2338 = vmatpush1.msra.mxu0 0.0
  %2339 = vmatprep.subr.mxu0 0.0
  %2340 = vmatpush1.msra.mxu0 0.0
  %2341 = vmatprep.subr.mxu0 0.0
  %2342 = vmatpush1.msra.mxu0 0.0
  %2343 = vmatprep.subr.mxu0 0.0
  %2344 = vmatpush1.msra.mxu0 0.0
  %2345 = vmatprep.subr.mxu0 0.0
  %2346 = vmatpush1.msra.mxu0 0.0
  %2347 = vmatprep.subr.mxu0 0.0
  %2348 = vmatpush1.msra.mxu0 0.0
  %2349 = vmatprep.subr.mxu0 0.0
  %2350 = vmatpush1.msra.mxu0 0.0
  %2351 = vmatprep.subr.mxu0 0.0
  %2352 = vmatpush1.msra.mxu0 0.0
  %2353 = vmatprep.subr.mxu0 0.0
  %2354 = vmatpush1.msra.mxu0 0.0
  %2355 = vmatprep.subr.mxu0 0.0
  %2356 = vmatpush1.msra.mxu0 0.0
  %2357 = vmatprep.subr.mxu0 0.0
  %2358 = vmatpush1.msra.mxu0 0.0
  %2359 = vmatprep.subr.mxu0 0.0
  %2360 = vmatpush1.msra.mxu0 0.0
  %2361 = vmatprep.subr.mxu0 0.0
  %2362 = vmatpush1.msra.mxu0 0.0
  %2363 = vmatprep.subr.mxu0 0.0
  %2364 = vmatpush1.msra.mxu0 0.0
  %2365 = vmatprep.subr.mxu0 0.0
  %2366 = vmatpush1.msra.mxu0 0.0
  %2367 = vmatprep.mubr.f32.mxu0 0.0
  %2368 = vmatmul.mubr.f32.gmra.mrb[0].mxu0 %v2298
  %v2369 = vpop.f32.mrb[0].mxu0
  %v2370 = vadd.f32 %v2289, %v2369
  %v2371 = vpop.f32.mrb[0].mxu0
  %2372 = vmatprep.mubr.f32.mxu0 0.0
  %2373 = vmatmul.mubr.f32.gmra.mrb[0].mxu0 %v2301
  %v2374 = vpop.f32.mrb[0].mxu0
  %v2375 = vadd.f32 %v2294, %v2374
  %v2376 = vpop.f32.mrb[0].mxu0
  %2377 = vdwg.mxu0
  %v2378 = vld [vmem:[#allocation3] sm:$0x1]
  %v2380 = vlaneseq
  %v2381 = vshrl.u32 %v2380, 7
  %v2382 = vsub.s32 0, %v2381
  %v2383 = vrot.slane %v2378, %v2382
  %v2385 = vadd.f32 %v2370, %v2383
  %v2386 = vadd.f32 %v2375, %v2383
  %v2387 = vtanh.pop %v2385
  %v2388 = vtanh.pop %v2386
  %2390 = vset.pattern.permute.xlu0 0
  %2391 = vperm.xlu0 %2390, %v2387
  %v2392 = vpop.permute.xlu0 %2391
  %2395 = vset.pattern.permute.xlu0 0
  %2396 = vperm.xlu0 %2395, %v2388
  %v2397 = vpop.permute.xlu0 %2396
  %v2399 = vmul.f32 %v2122, %v2392
  %v2400 = vmul.f32 %v2123, %v2397
  %2401 = vst.msk [vmem:[%s13] sm:$0xff] %vm154, %v2399
  %2402 = vst.msk [vmem:[%s13 + $0x8] sm:$0xff] %vm154, %v2400
  %vm2403 = vcmask 7168
  %2404 = vst.msk [vmem:[%s14] sm:$0xff] %vm2403, %v2387
  %2405 = vst.msk [vmem:[%s14 + $0x8] sm:$0xff] %vm2403, %v2388
  // Predicated region
  $region54: #{hgt_forward.8} parent=0 // pred_check
    _
  $region55: #{hgt_forward.8} parent=0 // pred_check_branch
    %2407 = sbr.rel (0) target = $region57
  $region56: #{hgt_forward.8} parent=0 // pred_region
    _
  $region57: #{hgt_forward.8} parent=0 // pred_fallthru
    _
  // Predicated region
  $region58: #{hgt_forward.8} parent=0 // pred_check
    _
  $region59: #{hgt_forward.8} parent=0 // pred_check_branch
    %2409 = sbr.rel (0) target = $region61
  $region60: #{hgt_forward.8} parent=0 // pred_region
    _
  $region61: #{hgt_forward.8} parent=0 // pred_fallthru
    _
  // Predicated region
  $region62: #{hgt_forward.8} parent=0 // pred_check
    _
  $region63: #{hgt_forward.8} parent=0 // pred_check_branch
    %2411 = sbr.rel (0) target = $region65
  $region64: #{hgt_forward.8} parent=0 // pred_region
    _
  $region65: #{hgt_forward.8} parent=0 // pred_fallthru
    _
  // Predicated region
  $region66: #{hgt_forward.8} parent=0 // pred_check
    _
  $region67: #{hgt_forward.8} parent=0 // pred_check_branch
    %2413 = sbr.rel (0) target = $region69
  $region68: #{hgt_forward.8} parent=0 // pred_region
    _
  $region69: #{hgt_forward.8} parent=0 // pred_fallthru
    _

</llo_original>
